<compile_context>
chip_gen: v6e
topology: v6e:2x2x1
jax: 0.10.0
libtpu: 0.0.40
codegen_flags: <defaults>
</compile_context>

<pallas_src>
import functools
import math

import jax
import jax.numpy as jnp
from jax import lax
from jax.experimental import pallas as pl
from jax.experimental.pallas import tpu as pltpu


def _round_up(x, m):
    return (x + m - 1) // m * m


# ----------------------------------------------------------------------------
# Architecture descriptions (static Python metadata, closed over by the jit).
# ----------------------------------------------------------------------------
FULL_ARCH = {  # exact VPGNet configuration from the PyTorch module
    'upsample': (59, 79),
    'conv1': dict(cin=3,   cout=96,   k=11, stride=4, pad=0),
    'conv2': dict(cin=96,  cout=256,  k=5,  stride=1, pad=2),
    'conv3': dict(cin=256, cout=384,  k=3,  stride=1, pad=1),
    'conv4': dict(cin=384, cout=384,  k=3,  stride=1, pad=1),
    'conv5': dict(cin=384, cout=384,  k=3,  stride=1, pad=1),
    'conv6': dict(cin=384, cout=4096, k=6,  stride=1, pad=3),
    'heads': {
        'gridBox':    dict(c7=4096, c8=256,  tile=8),
        'objectMask': dict(c7=4096, c8=128,  tile=8),
        'multiLabel': dict(c7=4096, c8=1024, tile=4),
        'vpp':        dict(c7=4096, c8=320,  tile=8),
    },
    'lrn': dict(size=5, alpha=0.0005, beta=0.75),
    'lrn_k': {'conv1': 2.0, 'conv2': 8.0},
}

# Width-reduced variant with identical topology, used for the smoke test so
# the script stays fast both on hardware and under the Pallas interpreter.
TEST_ARCH = {
    'upsample': (15, 19),
    'conv1': dict(cin=3,  cout=32,  k=11, stride=4, pad=0),
    'conv2': dict(cin=32, cout=64,  k=5,  stride=1, pad=2),
    'conv3': dict(cin=64, cout=64,  k=3,  stride=1, pad=1),
    'conv4': dict(cin=64, cout=64,  k=3,  stride=1, pad=1),
    'conv5': dict(cin=64, cout=64,  k=3,  stride=1, pad=1),
    'conv6': dict(cin=64, cout=128, k=6,  stride=1, pad=3),
    'heads': {
        'gridBox':    dict(c7=128, c8=64, tile=8),
        'objectMask': dict(c7=128, c8=64, tile=8),
        'multiLabel': dict(c7=128, c8=64, tile=4),
        'vpp':        dict(c7=128, c8=64, tile=8),
    },
    'lrn': dict(size=5, alpha=0.0005, beta=0.75),
    'lrn_k': {'conv1': 2.0, 'conv2': 8.0},
}


# ----------------------------------------------------------------------------
# Tile selection (sized against the 64 MiB VMEM of v7x; ~4 MiB peak blocks)
# ----------------------------------------------------------------------------
def _pick_kn_tiles(K, N):
    Kp0 = _round_up(K, 128)
    tk = min(512, Kp0)
    Kp = _round_up(K, tk)
    Np0 = _round_up(N, 128)
    if Np0 >= 1024:            # wide layers: keep >= 2 N tiles (v7x megacore)
        tn = 512
        Np = _round_up(Np0, tn)
    else:                      # narrow layers: full-N, single lane-dense tile
        tn = Np0
        Np = Np0
    return tk, Kp, tn, Np


def _pick_tm(M):
    # Single M tile whenever M <= 512 so the (huge) weight operand is streamed
    # from HBM exactly once (conv6 / conv7 / conv8 have M = 300).
    return _round_up(M, 128) if M <= 512 else 512


# ----------------------------------------------------------------------------
# Pallas kernels
# ----------------------------------------------------------------------------
def matmul_bias_kernel(a_ref, b_ref, bias_ref, o_ref, acc_ref, *, relu):
    @pl.when(pl.program_id(2) == 0)
    def _():
        acc_ref[...] = jnp.zeros_like(acc_ref)

    acc_ref[...] += jnp.dot(a_ref[...], b_ref[...],
                            preferred_element_type=jnp.float32)

    @pl.when(pl.program_id(2) == pl.num_programs(2) - 1)
    def _():
        r = acc_ref[...] + bias_ref[...]
        if relu:
            r = jnp.maximum(r, 0.0)
        o_ref[...] = r.astype(o_ref.dtype)


def lrn_kernel(x_ref, band_ref, o_ref, *, alpha_over_n, beta, bias_k):
    # PyTorch LocalResponseNorm: x / (k + alpha/n * sum_window x^2) ** beta.
    # Lane-padded channels are exactly zero, so the banded window-sum matmul
    # reproduces PyTorch's edge clipping automatically.
    x = x_ref[...]
    winsum = jnp.dot(x * x, band_ref[...], preferred_element_type=jnp.float32)
    base = bias_k + alpha_over_n * winsum
    if beta == 0.75:                       # base^-0.75 = rsqrt(b) * sqrt(rsqrt(b))
        r = lax.rsqrt(base)
        scale = r * jnp.sqrt(r)
    else:
        scale = jnp.exp(-beta * jnp.log(base))
    o_ref[...] = (x * scale).astype(o_ref.dtype)


def maxpool3_kernel(x_ref, o_ref):
    # x_ref: (3, TR, C) -> elementwise max over the 3 window taps.
    o_ref[...] = jnp.maximum(jnp.maximum(x_ref[0], x_ref[1]), x_ref[2])


# ----------------------------------------------------------------------------
# Pallas-backed ops
# ----------------------------------------------------------------------------
_MOSAIC_PARAMS = dict(vmem_limit_bytes=32 * 1024 * 1024)


def matmul_bias(a, w_p, bias_p, *, relu, tk, tn):
    """a: (M, K) bf16; w_p: (Kp, Np) bf16 pre-packed; bias_p: (1, Np) f32."""
    M, K = a.shape
    Kp, Np = w_p.shape
    tm = _pick_tm(M)
    Mp = _round_up(M, tm)
    if (Mp, Kp) != (M, K):
        a = jnp.pad(a, ((0, Mp - M), (0, Kp - K)))
    grid = (Mp // tm, Np // tn, Kp // tk)

    out = pl.pallas_call(
        functools.partial(matmul_bias_kernel, relu=relu),
        out_shape=jax.ShapeDtypeStruct((Mp, Np), jnp.float32),
        grid_spec=pltpu.PrefetchScalarGridSpec(
            num_scalar_prefetch=0,
            grid=grid,
            in_specs=[
                pl.BlockSpec((tm, tk), lambda i, j, k: (i, k)),
                pl.BlockSpec((tk, tn), lambda i, j, k: (k, j)),
                pl.BlockSpec((1, tn), lambda i, j, k: (0, j)),
            ],
            out_specs=pl.BlockSpec((tm, tn), lambda i, j, k: (i, j)),
            scratch_shapes=[pltpu.VMEM((tm, tn), jnp.float32)],
        ),
        compiler_params=pltpu.CompilerParams(
            dimension_semantics=("parallel", "parallel", "arbitrary"),
            **_MOSAIC_PARAMS),
    )(a, w_p, bias_p)
    # Only slice padded rows; keep the lane-padded (multiple-of-128) channel
    # dim so downstream LRN / pool stores stay lane dense.
    return out[:M]


def conv2d(x_hwc, layer_params, cfg, *, relu):
    """x_hwc: (H, W, >=cin); returns (OH, OW, Np) with Np = round_up(cout,128)."""
    cin, cout = cfg['cin'], cfg['cout']
    k, stride, pad = cfg['k'], cfg['stride'], cfg['pad']
    x = x_hwc[..., :cin].astype(jnp.bfloat16)          # drop lane padding
    H, W, _ = x.shape
    if pad:
        x = jnp.pad(x, ((pad, pad), (pad, pad), (0, 0)))
    OH = (H + 2 * pad - k) // stride + 1
    OW = (W + 2 * pad - k) // stride + 1
    if k == 1 and stride == 1:
        A = x.reshape(OH * OW, cin)
    else:
        cols = []
        for i in range(k):
            for j in range(k):
                cols.append(x[i:i + stride * (OH - 1) + 1:stride,
                              j:j + stride * (OW - 1) + 1:stride, :])
        # im2col matrix: (OH*OW, k*k*cin), K ordered as (kh, kw, cin)
        A = jnp.stack(cols, axis=2).reshape(OH * OW, k * k * cin)

    tk, Kp, tn, Np = _pick_kn_tiles(k * k * cin, cout)
    w_p, b_p = layer_params['w'], layer_params['b']
    assert w_p.shape == (Kp, Np) and b_p.shape == (1, Np)
    out = matmul_bias(A, w_p, b_p, relu=relu, tk=tk, tn=tn)
    return out.reshape(OH, OW, Np)


def local_response_norm(x_hwc, *, size, alpha, beta, k):
    H, W, C = x_hwc.shape                   # C is already a multiple of 128
    S = H * W
    TS = 512
    Sp = _round_up(S, TS)
    xf = x_hwc.reshape(S, C)
    if Sp != S:
        xf = jnp.pad(xf, ((0, Sp - S), (0, 0)))
    ch = jnp.arange(C)
    band = (jnp.abs(ch[:, None] - ch[None, :]) <= size // 2).astype(jnp.float32)

    out = pl.pallas_call(
        functools.partial(lrn_kernel, alpha_over_n=alpha / size,
                          beta=beta, bias_k=k),
        out_shape=jax.ShapeDtypeStruct((Sp, C), jnp.float32),
        grid_spec=pltpu.PrefetchScalarGridSpec(
            num_scalar_prefetch=0,
            grid=(Sp // TS,),
            in_specs=[
                pl.BlockSpec((TS, C), lambda i: (i, 0)),
                pl.BlockSpec((C, C), lambda i: (0, 0)),
            ],
            out_specs=pl.BlockSpec((TS, C), lambda i: (i, 0)),
        ),
        compiler_params=pltpu.CompilerParams(
            dimension_semantics=("parallel",), **_MOSAIC_PARAMS),
    )(xf, band)
    return out[:S].reshape(H, W, C)


def _max3_stride2(x, axis):
    """Max over window 3 / stride 2 along `axis` (0 or 1) of an (H, W, C) array."""
    n = x.shape[axis]
    on = (n - 3) // 2 + 1
    lim = 2 * (on - 1) + 1
    taps = [lax.slice_in_dim(x, i, i + lim, stride=2, axis=axis) for i in range(3)]
    stacked = jnp.stack(taps, axis=0)        # (3, d0, d1, C)
    _, d0, d1, C = stacked.shape
    R = d0 * d1
    TR = 256
    Rp = _round_up(R, TR)
    flat = stacked.reshape(3, R, C)
    if Rp != R:
        flat = jnp.pad(flat, ((0, 0), (0, Rp - R), (0, 0)))

    out = pl.pallas_call(
        maxpool3_kernel,
        out_shape=jax.ShapeDtypeStruct((Rp, C), jnp.float32),
        grid_spec=pltpu.PrefetchScalarGridSpec(
            num_scalar_prefetch=0,
            grid=(Rp // TR,),
            in_specs=[pl.BlockSpec((3, TR, C), lambda i: (0, i, 0))],
            out_specs=pl.BlockSpec((TR, C), lambda i: (i, 0)),
        ),
        compiler_params=pltpu.CompilerParams(
            dimension_semantics=("parallel",), **_MOSAIC_PARAMS),
    )(flat)
    return out[:R].reshape(d0, d1, C)


def maxpool_3x3_s2(x_hwc):
    # Separable 3x3/stride-2 max pool: pool along W, then along H (max is
    # separable).  Avoids the 9-tap HBM materialisation of the naive im2col.
    x = _max3_stride2(x_hwc, axis=1)
    x = _max3_stride2(x, axis=0)
    return x


# ----------------------------------------------------------------------------
# JAX glue (pure data movement)
# ----------------------------------------------------------------------------
def upsample_nearest(x_hwc, out_h, out_w):
    H, W, C = x_hwc.shape
    rows = jnp.floor(jnp.arange(out_h) * (H / out_h)).astype(jnp.int32)
    cols = jnp.floor(jnp.arange(out_w) * (W / out_w)).astype(jnp.int32)
    return x_hwc[rows][:, cols, :]


def tiling_op(x_hwc, tile_dim):
    # out[ds, hs*r+i, ws*r+j] = x[hs, ws, ds*r*r + i*r + j]  (pixel shuffle)
    H, W, C = x_hwc.shape
    r = tile_dim
    out_d = C // (r * r)
    t = x_hwc.reshape(H, W, out_d, r, r)
    t = jnp.transpose(t, (2, 0, 3, 1, 4))
    return t.reshape(out_d, H * r, W * r)


# ----------------------------------------------------------------------------
# Parameters: deterministic PyTorch-style init + one-time packing
# ----------------------------------------------------------------------------
def _layer_cfgs(arch):
    cfgs = {}
    for name in ('conv1', 'conv2', 'conv3', 'conv4', 'conv5', 'conv6'):
        cfgs[name] = arch[name]
    for hname, h in arch['heads'].items():
        cfgs[hname + '_conv7'] = dict(cin=arch['conv6']['cout'], cout=h['c7'],
                                      k=1, stride=1, pad=0)
        cfgs[hname + '_conv8'] = dict(cin=h['c7'], cout=h['c8'],
                                      k=1, stride=1, pad=0)
    return cfgs


def init_params(key, arch):
    params = {}
    for idx, (name, cfg) in enumerate(_layer_cfgs(arch).items()):
        cin, cout, k = cfg['cin'], cfg['cout'], cfg['k']
        bound = 1.0 / math.sqrt(cin * k * k)
        kw_, kb_ = jax.random.split(jax.random.fold_in(key, idx))
        w = jax.random.uniform(kw_, (cout, cin, k, k), jnp.float32, -bound, bound)
        b = jax.random.uniform(kb_, (cout,), jnp.float32, -bound, bound)
        params[name] = (w, b)
    return params


def prepare_params(raw_params, arch):
    """Pre-transpose / pre-pad / cast weights to bf16 ONCE (outside the jit)."""
    packed = {}
    for name in _layer_cfgs(arch):
        w, b = raw_params[name]
        cout, cin, kh, kw = w.shape
        K = kh * kw * cin
        tk, Kp, tn, Np = _pick_kn_tiles(K, cout)
        del tk, tn
        wm = jnp.transpose(w, (2, 3, 1, 0)).reshape(K, cout)
        wm = jnp.pad(wm, ((0, Kp - K), (0, Np - cout))).astype(jnp.bfloat16)
        bp = jnp.pad(b, (0, Np - cout)).reshape(1, Np).astype(jnp.float32)
        packed[name] = dict(w=wm, b=bp)
    return packed


# ----------------------------------------------------------------------------
# Forward pass
# ----------------------------------------------------------------------------
def vpgnet_forward(x_nchw, params, arch):
    lrn = arch['lrn']
    # batch is 1 (the PyTorch `tiling` module hard-codes b=1)
    x = jnp.transpose(x_nchw[0], (1, 2, 0))            # (H, W, 3)

    x = conv2d(x, params['conv1'], arch['conv1'], relu=True)
    x = local_response_norm(x, size=lrn['size'], alpha=lrn['alpha'],
                            beta=lrn['beta'], k=arch['lrn_k']['conv1'])
    x = maxpool_3x3_s2(x)
    x = upsample_nearest(x, *arch['upsample'])

    x = conv2d(x, params['conv2'], arch['conv2'], relu=True)
    x = local_response_norm(x, size=lrn['size'], alpha=lrn['alpha'],
                            beta=lrn['beta'], k=arch['lrn_k']['conv2'])
    x = maxpool_3x3_s2(x)

    x = conv2d(x, params['conv3'], arch['conv3'], relu=True)
    x = conv2d(x, params['conv4'], arch['conv4'], relu=True)
    x = conv2d(x, params['conv5'], arch['conv5'], relu=True)
    x = maxpool_3x3_s2(x)

    # TODO(synk): Dropout2d layers are stochastic; implemented as identity
    # (inference-mode semantics).
    x = conv2d(x, params['conv6'], arch['conv6'], relu=True)
    shared = x[..., :arch['conv6']['cout']]            # (15, 20, 4096) in FULL_ARCH

    outs = {'shared': jnp.transpose(shared, (2, 0, 1))[None]}
    for hname, hcfg in arch['heads'].items():
        c7_cfg = dict(cin=arch['conv6']['cout'], cout=hcfg['c7'], k=1, stride=1, pad=0)
        c8_cfg = dict(cin=hcfg['c7'], cout=hcfg['c8'], k=1, stride=1, pad=0)
        h = conv2d(shared, params[hname + '_conv7'], c7_cfg, relu=True)
        h = conv2d(h, params[hname + '_conv8'], c8_cfg, relu=False)
        h = h[..., :hcfg['c8']]
        outs[hname] = tiling_op(h, hcfg['tile'])[None]  # add batch dim -> NCHW
    return outs


if __name__ == "__main__":
    arch = TEST_ARCH    # swap to FULL_ARCH (+ e.g. 480x640 input) for real VPGNet
    key = jax.random.PRNGKey(0)
    k_params, k_x = jax.random.split(key)
    params = prepare_params(init_params(k_params, arch), arch)
    # Small NCHW input (batch must be 1; spatial >= 19 so conv1 + pool is valid).
    x = jax.random.normal(k_x, (1, 3, 32, 32), dtype=jnp.float32)

    fwd = jax.jit(functools.partial(vpgnet_forward, arch=arch))
    out = jax.block_until_ready(fwd(x, params))

    expected = {
        'shared': (1, 128, 4, 5),
        'gridBox': (1, 1, 32, 40),
        'objectMask': (1, 1, 32, 40),
        'multiLabel': (1, 4, 16, 20),
        'vpp': (1, 5 - 4, 32, 40),   # = (1, 1, 32, 40)
    }
    for name, shp in expected.items():
        assert out[name].shape == shp, (name, out[name].shape, shp)
        assert bool(jnp.all(jnp.isfinite(out[name])))

    print("KERNEL_OK")
</pallas_src>

<mosaic_0001>
module attributes {stable_mosaic.version = 11 : i64} {
  func.func @matmul_bias_kernel(%arg0: i32, %arg1: i32, %arg2: i32, %arg3: memref<128x384xbf16, #tpu.memory_space<vmem>>, %arg4: memref<384x128xbf16, #tpu.memory_space<vmem>>, %arg5: memref<1x128xf32, #tpu.memory_space<vmem>>, %arg6: memref<128x128xf32, #tpu.memory_space<vmem>>, %arg7: memref<128x128xf32, #tpu.memory_space<vmem>>) attributes {dimension_semantics = [#tpu.dimension_semantics<parallel>, #tpu.dimension_semantics<parallel>, #tpu.dimension_semantics<arbitrary>], iteration_bounds = array<i64: 1, 1, 1>, scalar_prefetch = 0 : i64, scratch_operands = 1 : i64, tpu.core_type = #tpu.core_type<tc>, window_params = [{transform_indices = @transform_0, window_bounds = array<i64: 128, 384>}, {transform_indices = @transform_1, window_bounds = array<i64: 384, 128>}, {transform_indices = @transform_2, window_bounds = array<i64: 1, 128>}, {transform_indices = @transform_3, window_bounds = array<i64: 128, 128>}]} {
    %c0_i32 = arith.constant 0 : i32
    %0 = arith.cmpi eq, %arg2, %c0_i32 : i32
    %1 = arith.extui %0 : i1 to i32
    %c0_i32_0 = arith.constant 0 : i32
    %2 = arith.cmpi ne, %1, %c0_i32_0 : i32
    scf.if %2 {
      %cst_10 = arith.constant 0.000000e+00 : f32
      %12 = vector.broadcast %cst_10 : f32 to vector<128x128xf32>
      %c0_11 = arith.constant 0 : index
      %c0_12 = arith.constant 0 : index
      %13 = vector.load %arg7[%c0_11, %c0_12] : memref<128x128xf32, #tpu.memory_space<vmem>>, vector<128x128xf32>
      tpu.vector_store %arg7[%c0_11, %c0_12], %12 {strides = array<i32>} : memref<128x128xf32, #tpu.memory_space<vmem>>, vector<128x128xf32>,
    } else {
    }
    %c0 = arith.constant 0 : index
    %c0_1 = arith.constant 0 : index
    %3 = vector.load %arg7[%c0, %c0_1] : memref<128x128xf32, #tpu.memory_space<vmem>>, vector<128x128xf32>
    %c0_2 = arith.constant 0 : index
    %c0_3 = arith.constant 0 : index
    %4 = vector.load %arg3[%c0_2, %c0_3] : memref<128x384xbf16, #tpu.memory_space<vmem>>, vector<128x384xbf16>
    %c0_4 = arith.constant 0 : index
    %c0_5 = arith.constant 0 : index
    %5 = vector.load %arg4[%c0_4, %c0_5] : memref<384x128xbf16, #tpu.memory_space<vmem>>, vector<384x128xbf16>
    %cst = arith.constant dense<0.000000e+00> : vector<128x128xf32>
    %6 = tpu.matmul %4, %5, %cst {dimension_numbers = #tpu.dot_dimension_numbers<[1], [0], [0], [1], [0, 0, 1, 1], [], []>} : vector<128x384xbf16>, vector<384x128xbf16>, vector<128x128xf32> -> vector<128x128xf32>
    %7 = arith.addf %3, %6 : vector<128x128xf32>
    %c0_6 = arith.constant 0 : index
    %c0_7 = arith.constant 0 : index
    %8 = vector.load %arg7[%c0_6, %c0_7] : memref<128x128xf32, #tpu.memory_space<vmem>>, vector<128x128xf32>
    tpu.vector_store %arg7[%c0_6, %c0_7], %7 {strides = array<i32>} : memref<128x128xf32, #tpu.memory_space<vmem>>, vector<128x128xf32>,
    %c0_i32_8 = arith.constant 0 : i32
    %9 = arith.cmpi eq, %arg2, %c0_i32_8 : i32
    %10 = arith.extui %9 : i1 to i32
    %c0_i32_9 = arith.constant 0 : i32
    %11 = arith.cmpi ne, %10, %c0_i32_9 : i32
    scf.if %11 {
      %c0_10 = arith.constant 0 : index
      %c0_11 = arith.constant 0 : index
      %12 = vector.load %arg7[%c0_10, %c0_11] : memref<128x128xf32, #tpu.memory_space<vmem>>, vector<128x128xf32>
      %c0_12 = arith.constant 0 : index
      %c0_13 = arith.constant 0 : index
      %13 = vector.load %arg5[%c0_12, %c0_13] : memref<1x128xf32, #tpu.memory_space<vmem>>, vector<1x128xf32>
      %14 = vector.broadcast %13 : vector<1x128xf32> to vector<128x128xf32>
      %15 = arith.addf %12, %14 : vector<128x128xf32>
      %cst_14 = arith.constant 0.000000e+00 : f32
      %16 = vector.broadcast %cst_14 : f32 to vector<128x128xf32>
      %17 = arith.maximumf %15, %16 : vector<128x128xf32>
      %c0_15 = arith.constant 0 : index
      %c0_16 = arith.constant 0 : index
      %18 = vector.load %arg6[%c0_15, %c0_16] : memref<128x128xf32, #tpu.memory_space<vmem>>, vector<128x128xf32>
      tpu.vector_store %arg6[%c0_15, %c0_16], %17 {strides = array<i32>} : memref<128x128xf32, #tpu.memory_space<vmem>>, vector<128x128xf32>,
    } else {
    }
    return
  }
  func.func @transform_0(%arg0: i32, %arg1: i32, %arg2: i32) -> (i32, i32) {
    %c0_i32 = arith.constant 0 : i32
    return %arg0, %arg2 : i32, i32
  }
  func.func @transform_1(%arg0: i32, %arg1: i32, %arg2: i32) -> (i32, i32) {
    %c0_i32 = arith.constant 0 : i32
    return %arg2, %arg1 : i32, i32
  }
  func.func @transform_2(%arg0: i32, %arg1: i32, %arg2: i32) -> (i32, i32) {
    %c0_i32 = arith.constant 0 : i32
    %c0_i32_0 = arith.constant 0 : i32
    return %c0_i32, %arg1 : i32, i32
  }
  func.func @transform_3(%arg0: i32, %arg1: i32, %arg2: i32) -> (i32, i32) {
    %c0_i32 = arith.constant 0 : i32
    return %arg0, %arg1 : i32, i32
  }
}

module attributes {stable_mosaic.version = 11 : i64} {
  func.func @lrn_kernel(%arg0: i32, %arg1: memref<512x128xf32, #tpu.memory_space<vmem>>, %arg2: memref<128x128xf32, #tpu.memory_space<vmem>>, %arg3: memref<512x128xf32, #tpu.memory_space<vmem>>) attributes {dimension_semantics = [#tpu.dimension_semantics<parallel>], iteration_bounds = array<i64: 1>, scalar_prefetch = 0 : i64, scratch_operands = 0 : i64, tpu.core_type = #tpu.core_type<tc>, window_params = [{transform_indices = @transform_0, window_bounds = array<i64: 512, 128>}, {pipeline_mode = #tpu.pipeline_mode<synchronous>, transform_indices = @transform_1, window_bounds = array<i64: 128, 128>}, {transform_indices = @transform_2, window_bounds = array<i64: 512, 128>}]} {
    %c0 = arith.constant 0 : index
    %c0_0 = arith.constant 0 : index
    %0 = vector.load %arg1[%c0, %c0_0] : memref<512x128xf32, #tpu.memory_space<vmem>>, vector<512x128xf32>
    %1 = arith.mulf %0, %0 : vector<512x128xf32>
    %c0_1 = arith.constant 0 : index
    %c0_2 = arith.constant 0 : index
    %2 = vector.load %arg2[%c0_1, %c0_2] : memref<128x128xf32, #tpu.memory_space<vmem>>, vector<128x128xf32>
    %cst = arith.constant dense<0.000000e+00> : vector<512x128xf32>
    %3 = tpu.matmul %1, %2, %cst {dimension_numbers = #tpu.dot_dimension_numbers<[1], [0], [0], [1], [0, 0, 1, 1], [], []>} : vector<512x128xf32>, vector<128x128xf32>, vector<512x128xf32> -> vector<512x128xf32>
    %cst_3 = arith.constant 9.99999974E-5 : f32
    %4 = vector.broadcast %cst_3 : f32 to vector<512x128xf32>
    %5 = arith.mulf %4, %3 : vector<512x128xf32>
    %cst_4 = arith.constant 2.000000e+00 : f32
    %6 = vector.broadcast %cst_4 : f32 to vector<512x128xf32>
    %7 = arith.addf %6, %5 : vector<512x128xf32>
    %8 = math.rsqrt %7 : vector<512x128xf32>
    %9 = math.sqrt %8 : vector<512x128xf32>
    %10 = arith.mulf %8, %9 : vector<512x128xf32>
    %11 = arith.mulf %0, %10 : vector<512x128xf32>
    %c0_5 = arith.constant 0 : index
    %c0_6 = arith.constant 0 : index
    %12 = vector.load %arg3[%c0_5, %c0_6] : memref<512x128xf32, #tpu.memory_space<vmem>>, vector<512x128xf32>
    tpu.vector_store %arg3[%c0_5, %c0_6], %11 {strides = array<i32>} : memref<512x128xf32, #tpu.memory_space<vmem>>, vector<512x128xf32>,
    return
  }
  func.func @transform_0(%arg0: i32) -> (i32, i32) {
    %c0_i32 = arith.constant 0 : i32
    %c0_i32_0 = arith.constant 0 : i32
    return %arg0, %c0_i32 : i32, i32
  }
  func.func @transform_1(%arg0: i32) -> (i32, i32) {
    %c0_i32 = arith.constant 0 : i32
    %c0_i32_0 = arith.constant 0 : i32
    %c0_i32_1 = arith.constant 0 : i32
    return %c0_i32, %c0_i32_0 : i32, i32
  }
  func.func @transform_2(%arg0: i32) -> (i32, i32) {
    %c0_i32 = arith.constant 0 : i32
    %c0_i32_0 = arith.constant 0 : i32
    return %arg0, %c0_i32 : i32, i32
  }
}

module attributes {stable_mosaic.version = 11 : i64} {
  func.func @maxpool3_kernel(%arg0: i32, %arg1: memref<3x256x128xf32, #tpu.memory_space<vmem>>, %arg2: memref<256x128xf32, #tpu.memory_space<vmem>>) attributes {dimension_semantics = [#tpu.dimension_semantics<parallel>], iteration_bounds = array<i64: 1>, scalar_prefetch = 0 : i64, scratch_operands = 0 : i64, tpu.core_type = #tpu.core_type<tc>, window_params = [{transform_indices = @transform_0, window_bounds = array<i64: 3, 256, 128>}, {transform_indices = @transform_1, window_bounds = array<i64: 256, 128>}]} {
    %c0 = arith.constant 0 : index
    %c0_0 = arith.constant 0 : index
    %c0_1 = arith.constant 0 : index
    %0 = vector.load %arg1[%c0, %c0_0, %c0_1] : memref<3x256x128xf32, #tpu.memory_space<vmem>>, vector<1x256x128xf32>
    %1 = vector.shape_cast %0 : vector<1x256x128xf32> to vector<256x128xf32>
    %c1 = arith.constant 1 : index
    %c0_2 = arith.constant 0 : index
    %c0_3 = arith.constant 0 : index
    %2 = vector.load %arg1[%c1, %c0_2, %c0_3] : memref<3x256x128xf32, #tpu.memory_space<vmem>>, vector<1x256x128xf32>
    %3 = vector.shape_cast %2 : vector<1x256x128xf32> to vector<256x128xf32>
    %4 = arith.maximumf %1, %3 : vector<256x128xf32>
    %c2 = arith.constant 2 : index
    %c0_4 = arith.constant 0 : index
    %c0_5 = arith.constant 0 : index
    %5 = vector.load %arg1[%c2, %c0_4, %c0_5] : memref<3x256x128xf32, #tpu.memory_space<vmem>>, vector<1x256x128xf32>
    %6 = vector.shape_cast %5 : vector<1x256x128xf32> to vector<256x128xf32>
    %7 = arith.maximumf %4, %6 : vector<256x128xf32>
    %c0_6 = arith.constant 0 : index
    %c0_7 = arith.constant 0 : index
    %8 = vector.load %arg2[%c0_6, %c0_7] : memref<256x128xf32, #tpu.memory_space<vmem>>, vector<256x128xf32>
    tpu.vector_store %arg2[%c0_6, %c0_7], %7 {strides = array<i32>} : memref<256x128xf32, #tpu.memory_space<vmem>>, vector<256x128xf32>,
    return
  }
  func.func @transform_0(%arg0: i32) -> (i32, i32, i32) {
    %c0_i32 = arith.constant 0 : i32
    %c0_i32_0 = arith.constant 0 : i32
    %c0_i32_1 = arith.constant 0 : i32
    return %c0_i32, %arg0, %c0_i32_0 : i32, i32, i32
  }
  func.func @transform_1(%arg0: i32) -> (i32, i32) {
    %c0_i32 = arith.constant 0 : i32
    %c0_i32_0 = arith.constant 0 : i32
    return %arg0, %c0_i32 : i32, i32
  }
}

module attributes {stable_mosaic.version = 11 : i64} {
  func.func @matmul_bias_kernel(%arg0: i32, %arg1: i32, %arg2: i32, %arg3: memref<384x512xbf16, #tpu.memory_space<vmem>>, %arg4: memref<512x128xbf16, #tpu.memory_space<vmem>>, %arg5: memref<1x128xf32, #tpu.memory_space<vmem>>, %arg6: memref<384x128xf32, #tpu.memory_space<vmem>>, %arg7: memref<384x128xf32, #tpu.memory_space<vmem>>) attributes {dimension_semantics = [#tpu.dimension_semantics<parallel>, #tpu.dimension_semantics<parallel>, #tpu.dimension_semantics<arbitrary>], iteration_bounds = array<i64: 1, 1, 2>, scalar_prefetch = 0 : i64, scratch_operands = 1 : i64, tpu.core_type = #tpu.core_type<tc>, window_params = [{transform_indices = @transform_0, window_bounds = array<i64: 384, 512>}, {transform_indices = @transform_1, window_bounds = array<i64: 512, 128>}, {transform_indices = @transform_2, window_bounds = array<i64: 1, 128>}, {transform_indices = @transform_3, window_bounds = array<i64: 384, 128>}]} {
    %c0_i32 = arith.constant 0 : i32
    %0 = arith.cmpi eq, %arg2, %c0_i32 : i32
    %1 = arith.extui %0 : i1 to i32
    %c0_i32_0 = arith.constant 0 : i32
    %2 = arith.cmpi ne, %1, %c0_i32_0 : i32
    scf.if %2 {
      %cst_9 = arith.constant 0.000000e+00 : f32
      %12 = vector.broadcast %cst_9 : f32 to vector<384x128xf32>
      %c0_10 = arith.constant 0 : index
      %c0_11 = arith.constant 0 : index
      %13 = vector.load %arg7[%c0_10, %c0_11] : memref<384x128xf32, #tpu.memory_space<vmem>>, vector<384x128xf32>
      tpu.vector_store %arg7[%c0_10, %c0_11], %12 {strides = array<i32>} : memref<384x128xf32, #tpu.memory_space<vmem>>, vector<384x128xf32>,
    } else {
    }
    %c0 = arith.constant 0 : index
    %c0_1 = arith.constant 0 : index
    %3 = vector.load %arg7[%c0, %c0_1] : memref<384x128xf32, #tpu.memory_space<vmem>>, vector<384x128xf32>
    %c0_2 = arith.constant 0 : index
    %c0_3 = arith.constant 0 : index
    %4 = vector.load %arg3[%c0_2, %c0_3] : memref<384x512xbf16, #tpu.memory_space<vmem>>, vector<384x512xbf16>
    %c0_4 = arith.constant 0 : index
    %c0_5 = arith.constant 0 : index
    %5 = vector.load %arg4[%c0_4, %c0_5] : memref<512x128xbf16, #tpu.memory_space<vmem>>, vector<512x128xbf16>
    %cst = arith.constant dense<0.000000e+00> : vector<384x128xf32>
    %6 = tpu.matmul %4, %5, %cst {dimension_numbers = #tpu.dot_dimension_numbers<[1], [0], [0], [1], [0, 0, 1, 1], [], []>} : vector<384x512xbf16>, vector<512x128xbf16>, vector<384x128xf32> -> vector<384x128xf32>
    %7 = arith.addf %3, %6 : vector<384x128xf32>
    %c0_6 = arith.constant 0 : index
    %c0_7 = arith.constant 0 : index
    %8 = vector.load %arg7[%c0_6, %c0_7] : memref<384x128xf32, #tpu.memory_space<vmem>>, vector<384x128xf32>
    tpu.vector_store %arg7[%c0_6, %c0_7], %7 {strides = array<i32>} : memref<384x128xf32, #tpu.memory_space<vmem>>, vector<384x128xf32>,
    %c1_i32 = arith.constant 1 : i32
    %9 = arith.cmpi eq, %arg2, %c1_i32 : i32
    %10 = arith.extui %9 : i1 to i32
    %c0_i32_8 = arith.constant 0 : i32
    %11 = arith.cmpi ne, %10, %c0_i32_8 : i32
    scf.if %11 {
      %c0_9 = arith.constant 0 : index
      %c0_10 = arith.constant 0 : index
      %12 = vector.load %arg7[%c0_9, %c0_10] : memref<384x128xf32, #tpu.memory_space<vmem>>, vector<384x128xf32>
      %c0_11 = arith.constant 0 : index
      %c0_12 = arith.constant 0 : index
      %13 = vector.load %arg5[%c0_11, %c0_12] : memref<1x128xf32, #tpu.memory_space<vmem>>, vector<1x128xf32>
      %14 = vector.broadcast %13 : vector<1x128xf32> to vector<384x128xf32>
      %15 = arith.addf %12, %14 : vector<384x128xf32>
      %cst_13 = arith.constant 0.000000e+00 : f32
      %16 = vector.broadcast %cst_13 : f32 to vector<384x128xf32>
      %17 = arith.maximumf %15, %16 : vector<384x128xf32>
      %c0_14 = arith.constant 0 : index
      %c0_15 = arith.constant 0 : index
      %18 = vector.load %arg6[%c0_14, %c0_15] : memref<384x128xf32, #tpu.memory_space<vmem>>, vector<384x128xf32>
      tpu.vector_store %arg6[%c0_14, %c0_15], %17 {strides = array<i32>} : memref<384x128xf32, #tpu.memory_space<vmem>>, vector<384x128xf32>,
    } else {
    }
    return
  }
  func.func @transform_0(%arg0: i32, %arg1: i32, %arg2: i32) -> (i32, i32) {
    %c0_i32 = arith.constant 0 : i32
    return %arg0, %arg2 : i32, i32
  }
  func.func @transform_1(%arg0: i32, %arg1: i32, %arg2: i32) -> (i32, i32) {
    %c0_i32 = arith.constant 0 : i32
    return %arg2, %arg1 : i32, i32
  }
  func.func @transform_2(%arg0: i32, %arg1: i32, %arg2: i32) -> (i32, i32) {
    %c0_i32 = arith.constant 0 : i32
    %c0_i32_0 = arith.constant 0 : i32
    return %c0_i32, %arg1 : i32, i32
  }
  func.func @transform_3(%arg0: i32, %arg1: i32, %arg2: i32) -> (i32, i32) {
    %c0_i32 = arith.constant 0 : i32
    return %arg0, %arg1 : i32, i32
  }
}

module attributes {stable_mosaic.version = 11 : i64} {
  func.func @lrn_kernel(%arg0: i32, %arg1: memref<512x128xf32, #tpu.memory_space<vmem>>, %arg2: memref<128x128xf32, #tpu.memory_space<vmem>>, %arg3: memref<512x128xf32, #tpu.memory_space<vmem>>) attributes {dimension_semantics = [#tpu.dimension_semantics<parallel>], iteration_bounds = array<i64: 1>, scalar_prefetch = 0 : i64, scratch_operands = 0 : i64, tpu.core_type = #tpu.core_type<tc>, window_params = [{transform_indices = @transform_0, window_bounds = array<i64: 512, 128>}, {pipeline_mode = #tpu.pipeline_mode<synchronous>, transform_indices = @transform_1, window_bounds = array<i64: 128, 128>}, {transform_indices = @transform_2, window_bounds = array<i64: 512, 128>}]} {
    %c0 = arith.constant 0 : index
    %c0_0 = arith.constant 0 : index
    %0 = vector.load %arg1[%c0, %c0_0] : memref<512x128xf32, #tpu.memory_space<vmem>>, vector<512x128xf32>
    %1 = arith.mulf %0, %0 : vector<512x128xf32>
    %c0_1 = arith.constant 0 : index
    %c0_2 = arith.constant 0 : index
    %2 = vector.load %arg2[%c0_1, %c0_2] : memref<128x128xf32, #tpu.memory_space<vmem>>, vector<128x128xf32>
    %cst = arith.constant dense<0.000000e+00> : vector<512x128xf32>
    %3 = tpu.matmul %1, %2, %cst {dimension_numbers = #tpu.dot_dimension_numbers<[1], [0], [0], [1], [0, 0, 1, 1], [], []>} : vector<512x128xf32>, vector<128x128xf32>, vector<512x128xf32> -> vector<512x128xf32>
    %cst_3 = arith.constant 9.99999974E-5 : f32
    %4 = vector.broadcast %cst_3 : f32 to vector<512x128xf32>
    %5 = arith.mulf %4, %3 : vector<512x128xf32>
    %cst_4 = arith.constant 8.000000e+00 : f32
    %6 = vector.broadcast %cst_4 : f32 to vector<512x128xf32>
    %7 = arith.addf %6, %5 : vector<512x128xf32>
    %8 = math.rsqrt %7 : vector<512x128xf32>
    %9 = math.sqrt %8 : vector<512x128xf32>
    %10 = arith.mulf %8, %9 : vector<512x128xf32>
    %11 = arith.mulf %0, %10 : vector<512x128xf32>
    %c0_5 = arith.constant 0 : index
    %c0_6 = arith.constant 0 : index
    %12 = vector.load %arg3[%c0_5, %c0_6] : memref<512x128xf32, #tpu.memory_space<vmem>>, vector<512x128xf32>
    tpu.vector_store %arg3[%c0_5, %c0_6], %11 {strides = array<i32>} : memref<512x128xf32, #tpu.memory_space<vmem>>, vector<512x128xf32>,
    return
  }
  func.func @transform_0(%arg0: i32) -> (i32, i32) {
    %c0_i32 = arith.constant 0 : i32
    %c0_i32_0 = arith.constant 0 : i32
    return %arg0, %c0_i32 : i32, i32
  }
  func.func @transform_1(%arg0: i32) -> (i32, i32) {
    %c0_i32 = arith.constant 0 : i32
    %c0_i32_0 = arith.constant 0 : i32
    %c0_i32_1 = arith.constant 0 : i32
    return %c0_i32, %c0_i32_0 : i32, i32
  }
  func.func @transform_2(%arg0: i32) -> (i32, i32) {
    %c0_i32 = arith.constant 0 : i32
    %c0_i32_0 = arith.constant 0 : i32
    return %arg0, %c0_i32 : i32, i32
  }
}

module attributes {stable_mosaic.version = 11 : i64} {
  func.func @matmul_bias_kernel(%arg0: i32, %arg1: i32, %arg2: i32, %arg3: memref<128x512xbf16, #tpu.memory_space<vmem>>, %arg4: memref<512x128xbf16, #tpu.memory_space<vmem>>, %arg5: memref<1x128xf32, #tpu.memory_space<vmem>>, %arg6: memref<128x128xf32, #tpu.memory_space<vmem>>, %arg7: memref<128x128xf32, #tpu.memory_space<vmem>>) attributes {dimension_semantics = [#tpu.dimension_semantics<parallel>, #tpu.dimension_semantics<parallel>, #tpu.dimension_semantics<arbitrary>], iteration_bounds = array<i64: 1, 1, 2>, scalar_prefetch = 0 : i64, scratch_operands = 1 : i64, tpu.core_type = #tpu.core_type<tc>, window_params = [{transform_indices = @transform_0, window_bounds = array<i64: 128, 512>}, {transform_indices = @transform_1, window_bounds = array<i64: 512, 128>}, {transform_indices = @transform_2, window_bounds = array<i64: 1, 128>}, {transform_indices = @transform_3, window_bounds = array<i64: 128, 128>}]} {
    %c0_i32 = arith.constant 0 : i32
    %0 = arith.cmpi eq, %arg2, %c0_i32 : i32
    %1 = arith.extui %0 : i1 to i32
    %c0_i32_0 = arith.constant 0 : i32
    %2 = arith.cmpi ne, %1, %c0_i32_0 : i32
    scf.if %2 {
      %cst_9 = arith.constant 0.000000e+00 : f32
      %12 = vector.broadcast %cst_9 : f32 to vector<128x128xf32>
      %c0_10 = arith.constant 0 : index
      %c0_11 = arith.constant 0 : index
      %13 = vector.load %arg7[%c0_10, %c0_11] : memref<128x128xf32, #tpu.memory_space<vmem>>, vector<128x128xf32>
      tpu.vector_store %arg7[%c0_10, %c0_11], %12 {strides = array<i32>} : memref<128x128xf32, #tpu.memory_space<vmem>>, vector<128x128xf32>,
    } else {
    }
    %c0 = arith.constant 0 : index
    %c0_1 = arith.constant 0 : index
    %3 = vector.load %arg7[%c0, %c0_1] : memref<128x128xf32, #tpu.memory_space<vmem>>, vector<128x128xf32>
    %c0_2 = arith.constant 0 : index
    %c0_3 = arith.constant 0 : index
    %4 = vector.load %arg3[%c0_2, %c0_3] : memref<128x512xbf16, #tpu.memory_space<vmem>>, vector<128x512xbf16>
    %c0_4 = arith.constant 0 : index
    %c0_5 = arith.constant 0 : index
    %5 = vector.load %arg4[%c0_4, %c0_5] : memref<512x128xbf16, #tpu.memory_space<vmem>>, vector<512x128xbf16>
    %cst = arith.constant dense<0.000000e+00> : vector<128x128xf32>
    %6 = tpu.matmul %4, %5, %cst {dimension_numbers = #tpu.dot_dimension_numbers<[1], [0], [0], [1], [0, 0, 1, 1], [], []>} : vector<128x512xbf16>, vector<512x128xbf16>, vector<128x128xf32> -> vector<128x128xf32>
    %7 = arith.addf %3, %6 : vector<128x128xf32>
    %c0_6 = arith.constant 0 : index
    %c0_7 = arith.constant 0 : index
    %8 = vector.load %arg7[%c0_6, %c0_7] : memref<128x128xf32, #tpu.memory_space<vmem>>, vector<128x128xf32>
    tpu.vector_store %arg7[%c0_6, %c0_7], %7 {strides = array<i32>} : memref<128x128xf32, #tpu.memory_space<vmem>>, vector<128x128xf32>,
    %c1_i32 = arith.constant 1 : i32
    %9 = arith.cmpi eq, %arg2, %c1_i32 : i32
    %10 = arith.extui %9 : i1 to i32
    %c0_i32_8 = arith.constant 0 : i32
    %11 = arith.cmpi ne, %10, %c0_i32_8 : i32
    scf.if %11 {
      %c0_9 = arith.constant 0 : index
      %c0_10 = arith.constant 0 : index
      %12 = vector.load %arg7[%c0_9, %c0_10] : memref<128x128xf32, #tpu.memory_space<vmem>>, vector<128x128xf32>
      %c0_11 = arith.constant 0 : index
      %c0_12 = arith.constant 0 : index
      %13 = vector.load %arg5[%c0_11, %c0_12] : memref<1x128xf32, #tpu.memory_space<vmem>>, vector<1x128xf32>
      %14 = vector.broadcast %13 : vector<1x128xf32> to vector<128x128xf32>
      %15 = arith.addf %12, %14 : vector<128x128xf32>
      %cst_13 = arith.constant 0.000000e+00 : f32
      %16 = vector.broadcast %cst_13 : f32 to vector<128x128xf32>
      %17 = arith.maximumf %15, %16 : vector<128x128xf32>
      %c0_14 = arith.constant 0 : index
      %c0_15 = arith.constant 0 : index
      %18 = vector.load %arg6[%c0_14, %c0_15] : memref<128x128xf32, #tpu.memory_space<vmem>>, vector<128x128xf32>
      tpu.vector_store %arg6[%c0_14, %c0_15], %17 {strides = array<i32>} : memref<128x128xf32, #tpu.memory_space<vmem>>, vector<128x128xf32>,
    } else {
    }
    return
  }
  func.func @transform_0(%arg0: i32, %arg1: i32, %arg2: i32) -> (i32, i32) {
    %c0_i32 = arith.constant 0 : i32
    return %arg0, %arg2 : i32, i32
  }
  func.func @transform_1(%arg0: i32, %arg1: i32, %arg2: i32) -> (i32, i32) {
    %c0_i32 = arith.constant 0 : i32
    return %arg2, %arg1 : i32, i32
  }
  func.func @transform_2(%arg0: i32, %arg1: i32, %arg2: i32) -> (i32, i32) {
    %c0_i32 = arith.constant 0 : i32
    %c0_i32_0 = arith.constant 0 : i32
    return %c0_i32, %arg1 : i32, i32
  }
  func.func @transform_3(%arg0: i32, %arg1: i32, %arg2: i32) -> (i32, i32) {
    %c0_i32 = arith.constant 0 : i32
    return %arg0, %arg1 : i32, i32
  }
}

module attributes {stable_mosaic.version = 11 : i64} {
  func.func @matmul_bias_kernel(%arg0: i32, %arg1: i32, %arg2: i32, %arg3: memref<128x512xbf16, #tpu.memory_space<vmem>>, %arg4: memref<512x128xbf16, #tpu.memory_space<vmem>>, %arg5: memref<1x128xf32, #tpu.memory_space<vmem>>, %arg6: memref<128x128xf32, #tpu.memory_space<vmem>>, %arg7: memref<128x128xf32, #tpu.memory_space<vmem>>) attributes {dimension_semantics = [#tpu.dimension_semantics<parallel>, #tpu.dimension_semantics<parallel>, #tpu.dimension_semantics<arbitrary>], iteration_bounds = array<i64: 1, 1, 5>, scalar_prefetch = 0 : i64, scratch_operands = 1 : i64, tpu.core_type = #tpu.core_type<tc>, window_params = [{transform_indices = @transform_0, window_bounds = array<i64: 128, 512>}, {transform_indices = @transform_1, window_bounds = array<i64: 512, 128>}, {transform_indices = @transform_2, window_bounds = array<i64: 1, 128>}, {transform_indices = @transform_3, window_bounds = array<i64: 128, 128>}]} {
    %c0_i32 = arith.constant 0 : i32
    %0 = arith.cmpi eq, %arg2, %c0_i32 : i32
    %1 = arith.extui %0 : i1 to i32
    %c0_i32_0 = arith.constant 0 : i32
    %2 = arith.cmpi ne, %1, %c0_i32_0 : i32
    scf.if %2 {
      %cst_9 = arith.constant 0.000000e+00 : f32
      %12 = vector.broadcast %cst_9 : f32 to vector<128x128xf32>
      %c0_10 = arith.constant 0 : index
      %c0_11 = arith.constant 0 : index
      %13 = vector.load %arg7[%c0_10, %c0_11] : memref<128x128xf32, #tpu.memory_space<vmem>>, vector<128x128xf32>
      tpu.vector_store %arg7[%c0_10, %c0_11], %12 {strides = array<i32>} : memref<128x128xf32, #tpu.memory_space<vmem>>, vector<128x128xf32>,
    } else {
    }
    %c0 = arith.constant 0 : index
    %c0_1 = arith.constant 0 : index
    %3 = vector.load %arg7[%c0, %c0_1] : memref<128x128xf32, #tpu.memory_space<vmem>>, vector<128x128xf32>
    %c0_2 = arith.constant 0 : index
    %c0_3 = arith.constant 0 : index
    %4 = vector.load %arg3[%c0_2, %c0_3] : memref<128x512xbf16, #tpu.memory_space<vmem>>, vector<128x512xbf16>
    %c0_4 = arith.constant 0 : index
    %c0_5 = arith.constant 0 : index
    %5 = vector.load %arg4[%c0_4, %c0_5] : memref<512x128xbf16, #tpu.memory_space<vmem>>, vector<512x128xbf16>
    %cst = arith.constant dense<0.000000e+00> : vector<128x128xf32>
    %6 = tpu.matmul %4, %5, %cst {dimension_numbers = #tpu.dot_dimension_numbers<[1], [0], [0], [1], [0, 0, 1, 1], [], []>} : vector<128x512xbf16>, vector<512x128xbf16>, vector<128x128xf32> -> vector<128x128xf32>
    %7 = arith.addf %3, %6 : vector<128x128xf32>
    %c0_6 = arith.constant 0 : index
    %c0_7 = arith.constant 0 : index
    %8 = vector.load %arg7[%c0_6, %c0_7] : memref<128x128xf32, #tpu.memory_space<vmem>>, vector<128x128xf32>
    tpu.vector_store %arg7[%c0_6, %c0_7], %7 {strides = array<i32>} : memref<128x128xf32, #tpu.memory_space<vmem>>, vector<128x128xf32>,
    %c4_i32 = arith.constant 4 : i32
    %9 = arith.cmpi eq, %arg2, %c4_i32 : i32
    %10 = arith.extui %9 : i1 to i32
    %c0_i32_8 = arith.constant 0 : i32
    %11 = arith.cmpi ne, %10, %c0_i32_8 : i32
    scf.if %11 {
      %c0_9 = arith.constant 0 : index
      %c0_10 = arith.constant 0 : index
      %12 = vector.load %arg7[%c0_9, %c0_10] : memref<128x128xf32, #tpu.memory_space<vmem>>, vector<128x128xf32>
      %c0_11 = arith.constant 0 : index
      %c0_12 = arith.constant 0 : index
      %13 = vector.load %arg5[%c0_11, %c0_12] : memref<1x128xf32, #tpu.memory_space<vmem>>, vector<1x128xf32>
      %14 = vector.broadcast %13 : vector<1x128xf32> to vector<128x128xf32>
      %15 = arith.addf %12, %14 : vector<128x128xf32>
      %cst_13 = arith.constant 0.000000e+00 : f32
      %16 = vector.broadcast %cst_13 : f32 to vector<128x128xf32>
      %17 = arith.maximumf %15, %16 : vector<128x128xf32>
      %c0_14 = arith.constant 0 : index
      %c0_15 = arith.constant 0 : index
      %18 = vector.load %arg6[%c0_14, %c0_15] : memref<128x128xf32, #tpu.memory_space<vmem>>, vector<128x128xf32>
      tpu.vector_store %arg6[%c0_14, %c0_15], %17 {strides = array<i32>} : memref<128x128xf32, #tpu.memory_space<vmem>>, vector<128x128xf32>,
    } else {
    }
    return
  }
  func.func @transform_0(%arg0: i32, %arg1: i32, %arg2: i32) -> (i32, i32) {
    %c0_i32 = arith.constant 0 : i32
    return %arg0, %arg2 : i32, i32
  }
  func.func @transform_1(%arg0: i32, %arg1: i32, %arg2: i32) -> (i32, i32) {
    %c0_i32 = arith.constant 0 : i32
    return %arg2, %arg1 : i32, i32
  }
  func.func @transform_2(%arg0: i32, %arg1: i32, %arg2: i32) -> (i32, i32) {
    %c0_i32 = arith.constant 0 : i32
    %c0_i32_0 = arith.constant 0 : i32
    return %c0_i32, %arg1 : i32, i32
  }
  func.func @transform_3(%arg0: i32, %arg1: i32, %arg2: i32) -> (i32, i32) {
    %c0_i32 = arith.constant 0 : i32
    return %arg0, %arg1 : i32, i32
  }
}

module attributes {stable_mosaic.version = 11 : i64} {
  func.func @matmul_bias_kernel(%arg0: i32, %arg1: i32, %arg2: i32, %arg3: memref<128x128xbf16, #tpu.memory_space<vmem>>, %arg4: memref<128x128xbf16, #tpu.memory_space<vmem>>, %arg5: memref<1x128xf32, #tpu.memory_space<vmem>>, %arg6: memref<128x128xf32, #tpu.memory_space<vmem>>, %arg7: memref<128x128xf32, #tpu.memory_space<vmem>>) attributes {dimension_semantics = [#tpu.dimension_semantics<parallel>, #tpu.dimension_semantics<parallel>, #tpu.dimension_semantics<arbitrary>], iteration_bounds = array<i64: 1, 1, 1>, scalar_prefetch = 0 : i64, scratch_operands = 1 : i64, tpu.core_type = #tpu.core_type<tc>, window_params = [{transform_indices = @transform_0, window_bounds = array<i64: 128, 128>}, {transform_indices = @transform_1, window_bounds = array<i64: 128, 128>}, {transform_indices = @transform_2, window_bounds = array<i64: 1, 128>}, {transform_indices = @transform_3, window_bounds = array<i64: 128, 128>}]} {
    %c0_i32 = arith.constant 0 : i32
    %0 = arith.cmpi eq, %arg2, %c0_i32 : i32
    %1 = arith.extui %0 : i1 to i32
    %c0_i32_0 = arith.constant 0 : i32
    %2 = arith.cmpi ne, %1, %c0_i32_0 : i32
    scf.if %2 {
      %cst_10 = arith.constant 0.000000e+00 : f32
      %12 = vector.broadcast %cst_10 : f32 to vector<128x128xf32>
      %c0_11 = arith.constant 0 : index
      %c0_12 = arith.constant 0 : index
      %13 = vector.load %arg7[%c0_11, %c0_12] : memref<128x128xf32, #tpu.memory_space<vmem>>, vector<128x128xf32>
      tpu.vector_store %arg7[%c0_11, %c0_12], %12 {strides = array<i32>} : memref<128x128xf32, #tpu.memory_space<vmem>>, vector<128x128xf32>,
    } else {
    }
    %c0 = arith.constant 0 : index
    %c0_1 = arith.constant 0 : index
    %3 = vector.load %arg7[%c0, %c0_1] : memref<128x128xf32, #tpu.memory_space<vmem>>, vector<128x128xf32>
    %c0_2 = arith.constant 0 : index
    %c0_3 = arith.constant 0 : index
    %4 = vector.load %arg3[%c0_2, %c0_3] : memref<128x128xbf16, #tpu.memory_space<vmem>>, vector<128x128xbf16>
    %c0_4 = arith.constant 0 : index
    %c0_5 = arith.constant 0 : index
    %5 = vector.load %arg4[%c0_4, %c0_5] : memref<128x128xbf16, #tpu.memory_space<vmem>>, vector<128x128xbf16>
    %cst = arith.constant dense<0.000000e+00> : vector<128x128xf32>
    %6 = tpu.matmul %4, %5, %cst {dimension_numbers = #tpu.dot_dimension_numbers<[1], [0], [0], [1], [0, 0, 1, 1], [], []>} : vector<128x128xbf16>, vector<128x128xbf16>, vector<128x128xf32> -> vector<128x128xf32>
    %7 = arith.addf %3, %6 : vector<128x128xf32>
    %c0_6 = arith.constant 0 : index
    %c0_7 = arith.constant 0 : index
    %8 = vector.load %arg7[%c0_6, %c0_7] : memref<128x128xf32, #tpu.memory_space<vmem>>, vector<128x128xf32>
    tpu.vector_store %arg7[%c0_6, %c0_7], %7 {strides = array<i32>} : memref<128x128xf32, #tpu.memory_space<vmem>>, vector<128x128xf32>,
    %c0_i32_8 = arith.constant 0 : i32
    %9 = arith.cmpi eq, %arg2, %c0_i32_8 : i32
    %10 = arith.extui %9 : i1 to i32
    %c0_i32_9 = arith.constant 0 : i32
    %11 = arith.cmpi ne, %10, %c0_i32_9 : i32
    scf.if %11 {
      %c0_10 = arith.constant 0 : index
      %c0_11 = arith.constant 0 : index
      %12 = vector.load %arg7[%c0_10, %c0_11] : memref<128x128xf32, #tpu.memory_space<vmem>>, vector<128x128xf32>
      %c0_12 = arith.constant 0 : index
      %c0_13 = arith.constant 0 : index
      %13 = vector.load %arg5[%c0_12, %c0_13] : memref<1x128xf32, #tpu.memory_space<vmem>>, vector<1x128xf32>
      %14 = vector.broadcast %13 : vector<1x128xf32> to vector<128x128xf32>
      %15 = arith.addf %12, %14 : vector<128x128xf32>
      %cst_14 = arith.constant 0.000000e+00 : f32
      %16 = vector.broadcast %cst_14 : f32 to vector<128x128xf32>
      %17 = arith.maximumf %15, %16 : vector<128x128xf32>
      %c0_15 = arith.constant 0 : index
      %c0_16 = arith.constant 0 : index
      %18 = vector.load %arg6[%c0_15, %c0_16] : memref<128x128xf32, #tpu.memory_space<vmem>>, vector<128x128xf32>
      tpu.vector_store %arg6[%c0_15, %c0_16], %17 {strides = array<i32>} : memref<128x128xf32, #tpu.memory_space<vmem>>, vector<128x128xf32>,
    } else {
    }
    return
  }
  func.func @transform_0(%arg0: i32, %arg1: i32, %arg2: i32) -> (i32, i32) {
    %c0_i32 = arith.constant 0 : i32
    return %arg0, %arg2 : i32, i32
  }
  func.func @transform_1(%arg0: i32, %arg1: i32, %arg2: i32) -> (i32, i32) {
    %c0_i32 = arith.constant 0 : i32
    return %arg2, %arg1 : i32, i32
  }
  func.func @transform_2(%arg0: i32, %arg1: i32, %arg2: i32) -> (i32, i32) {
    %c0_i32 = arith.constant 0 : i32
    %c0_i32_0 = arith.constant 0 : i32
    return %c0_i32, %arg1 : i32, i32
  }
  func.func @transform_3(%arg0: i32, %arg1: i32, %arg2: i32) -> (i32, i32) {
    %c0_i32 = arith.constant 0 : i32
    return %arg0, %arg1 : i32, i32
  }
}

module attributes {stable_mosaic.version = 11 : i64} {
  func.func @matmul_bias_kernel(%arg0: i32, %arg1: i32, %arg2: i32, %arg3: memref<128x128xbf16, #tpu.memory_space<vmem>>, %arg4: memref<128x128xbf16, #tpu.memory_space<vmem>>, %arg5: memref<1x128xf32, #tpu.memory_space<vmem>>, %arg6: memref<128x128xf32, #tpu.memory_space<vmem>>, %arg7: memref<128x128xf32, #tpu.memory_space<vmem>>) attributes {dimension_semantics = [#tpu.dimension_semantics<parallel>, #tpu.dimension_semantics<parallel>, #tpu.dimension_semantics<arbitrary>], iteration_bounds = array<i64: 1, 1, 1>, scalar_prefetch = 0 : i64, scratch_operands = 1 : i64, tpu.core_type = #tpu.core_type<tc>, window_params = [{transform_indices = @transform_0, window_bounds = array<i64: 128, 128>}, {transform_indices = @transform_1, window_bounds = array<i64: 128, 128>}, {transform_indices = @transform_2, window_bounds = array<i64: 1, 128>}, {transform_indices = @transform_3, window_bounds = array<i64: 128, 128>}]} {
    %c0_i32 = arith.constant 0 : i32
    %0 = arith.cmpi eq, %arg2, %c0_i32 : i32
    %1 = arith.extui %0 : i1 to i32
    %c0_i32_0 = arith.constant 0 : i32
    %2 = arith.cmpi ne, %1, %c0_i32_0 : i32
    scf.if %2 {
      %cst_10 = arith.constant 0.000000e+00 : f32
      %12 = vector.broadcast %cst_10 : f32 to vector<128x128xf32>
      %c0_11 = arith.constant 0 : index
      %c0_12 = arith.constant 0 : index
      %13 = vector.load %arg7[%c0_11, %c0_12] : memref<128x128xf32, #tpu.memory_space<vmem>>, vector<128x128xf32>
      tpu.vector_store %arg7[%c0_11, %c0_12], %12 {strides = array<i32>} : memref<128x128xf32, #tpu.memory_space<vmem>>, vector<128x128xf32>,
    } else {
    }
    %c0 = arith.constant 0 : index
    %c0_1 = arith.constant 0 : index
    %3 = vector.load %arg7[%c0, %c0_1] : memref<128x128xf32, #tpu.memory_space<vmem>>, vector<128x128xf32>
    %c0_2 = arith.constant 0 : index
    %c0_3 = arith.constant 0 : index
    %4 = vector.load %arg3[%c0_2, %c0_3] : memref<128x128xbf16, #tpu.memory_space<vmem>>, vector<128x128xbf16>
    %c0_4 = arith.constant 0 : index
    %c0_5 = arith.constant 0 : index
    %5 = vector.load %arg4[%c0_4, %c0_5] : memref<128x128xbf16, #tpu.memory_space<vmem>>, vector<128x128xbf16>
    %cst = arith.constant dense<0.000000e+00> : vector<128x128xf32>
    %6 = tpu.matmul %4, %5, %cst {dimension_numbers = #tpu.dot_dimension_numbers<[1], [0], [0], [1], [0, 0, 1, 1], [], []>} : vector<128x128xbf16>, vector<128x128xbf16>, vector<128x128xf32> -> vector<128x128xf32>
    %7 = arith.addf %3, %6 : vector<128x128xf32>
    %c0_6 = arith.constant 0 : index
    %c0_7 = arith.constant 0 : index
    %8 = vector.load %arg7[%c0_6, %c0_7] : memref<128x128xf32, #tpu.memory_space<vmem>>, vector<128x128xf32>
    tpu.vector_store %arg7[%c0_6, %c0_7], %7 {strides = array<i32>} : memref<128x128xf32, #tpu.memory_space<vmem>>, vector<128x128xf32>,
    %c0_i32_8 = arith.constant 0 : i32
    %9 = arith.cmpi eq, %arg2, %c0_i32_8 : i32
    %10 = arith.extui %9 : i1 to i32
    %c0_i32_9 = arith.constant 0 : i32
    %11 = arith.cmpi ne, %10, %c0_i32_9 : i32
    scf.if %11 {
      %c0_10 = arith.constant 0 : index
      %c0_11 = arith.constant 0 : index
      %12 = vector.load %arg7[%c0_10, %c0_11] : memref<128x128xf32, #tpu.memory_space<vmem>>, vector<128x128xf32>
      %c0_12 = arith.constant 0 : index
      %c0_13 = arith.constant 0 : index
      %13 = vector.load %arg5[%c0_12, %c0_13] : memref<1x128xf32, #tpu.memory_space<vmem>>, vector<1x128xf32>
      %14 = vector.broadcast %13 : vector<1x128xf32> to vector<128x128xf32>
      %15 = arith.addf %12, %14 : vector<128x128xf32>
      %c0_14 = arith.constant 0 : index
      %c0_15 = arith.constant 0 : index
      %16 = vector.load %arg6[%c0_14, %c0_15] : memref<128x128xf32, #tpu.memory_space<vmem>>, vector<128x128xf32>
      tpu.vector_store %arg6[%c0_14, %c0_15], %15 {strides = array<i32>} : memref<128x128xf32, #tpu.memory_space<vmem>>, vector<128x128xf32>,
    } else {
    }
    return
  }
  func.func @transform_0(%arg0: i32, %arg1: i32, %arg2: i32) -> (i32, i32) {
    %c0_i32 = arith.constant 0 : i32
    return %arg0, %arg2 : i32, i32
  }
  func.func @transform_1(%arg0: i32, %arg1: i32, %arg2: i32) -> (i32, i32) {
    %c0_i32 = arith.constant 0 : i32
    return %arg2, %arg1 : i32, i32
  }
  func.func @transform_2(%arg0: i32, %arg1: i32, %arg2: i32) -> (i32, i32) {
    %c0_i32 = arith.constant 0 : i32
    %c0_i32_0 = arith.constant 0 : i32
    return %c0_i32, %arg1 : i32, i32
  }
  func.func @transform_3(%arg0: i32, %arg1: i32, %arg2: i32) -> (i32, i32) {
    %c0_i32 = arith.constant 0 : i32
    return %arg0, %arg1 : i32, i32
  }
}

</mosaic_0001>

<llo_original>
// kernel: vpgnet_forward.22
$region0: #{vpgnet_forward.22}
  #allocation0 [shape = 'u32[]', space=smem, size = 0x4, offset = 0x4, fixed_abs, tag = 'smem constant byte address 0x4 - core index']
  #allocation1 [shape = 'u32[144,128]{1,0:T(1,128)}', space=vmem, size = 0x12000, scoped, tag = 'internal scratch']
  #allocation2 [shape = 'f32[128,128]{1,0:T(8,128)}', space=vmem, size = 0x10000, scoped, tag = 'scratch operand']
  %s0 = inlined_call_operand.vmem [shape: bf16[128,384], index: 0, kind: input, shape index: {}]
  %s1 = inlined_call_operand.vmem [shape: bf16[384,128], index: 1, kind: input, shape index: {}]
  %s2 = inlined_call_operand.vmem [shape: f32[1,128], index: 2, kind: input, shape index: {}]
  %s3 = inlined_call_operand.vmem [shape: f32[128,128], index: 3, kind: output, shape index: {}]
  %s4 = sld [smem:[#allocation0]]
  $region30: #{vpgnet_forward.22} parent=0
    _
  %s6 = ssub.s32 1, %s4
  %s7 = scalar_select 0, %s6, %s4
  // Predicated region
  $region2: #{vpgnet_forward.22} parent=0 // pred_check
    _
  $region3: #{vpgnet_forward.22} parent=0 // pred_check_branch
    %9 = sbr.rel (0) target = $region5
  $region4: #{vpgnet_forward.22} parent=0 // pred_region
    _
  $region5: #{vpgnet_forward.22} parent=0 // pred_fallthru
    _
  // Predicated region
  $region6: #{vpgnet_forward.22} parent=0 // pred_check
    _
  $region7: #{vpgnet_forward.22} parent=0 // pred_check_branch
    %11 = sbr.rel (0) target = $region9
  $region8: #{vpgnet_forward.22} parent=0 // pred_region
    _
  $region9: #{vpgnet_forward.22} parent=0 // pred_fallthru
    _
  // Predicated region
  $region10: #{vpgnet_forward.22} parent=0 // pred_check
    _
  $region11: #{vpgnet_forward.22} parent=0 // pred_check_branch
    %13 = sbr.rel (0) target = $region13
  $region12: #{vpgnet_forward.22} parent=0 // pred_region
    _
  $region13: #{vpgnet_forward.22} parent=0 // pred_fallthru
    _
  %p15 = scmp.eq.s32.totalorder 0, 0
  // Predicated region
  $region14: #{vpgnet_forward.22} parent=0 // pred_check
    %p16 = pneg %p15
  $region15: #{vpgnet_forward.22} parent=0 // pred_check_branch
    %18 = sbr.rel (%p16) target = $region17
  $region16: #{vpgnet_forward.22} parent=0 // pred_region
    %19 = vst [vmem:[#allocation2] sm:$0xff] 0.0
    %20 = vst [vmem:[#allocation2 + $0x8] sm:$0xff] 0.0
    %21 = vst [vmem:[#allocation2 + $0x10] sm:$0xff] 0.0
    %22 = vst [vmem:[#allocation2 + $0x18] sm:$0xff] 0.0
    %23 = vst [vmem:[#allocation2 + $0x20] sm:$0xff] 0.0
    %24 = vst [vmem:[#allocation2 + $0x28] sm:$0xff] 0.0
    %25 = vst [vmem:[#allocation2 + $0x30] sm:$0xff] 0.0
    %26 = vst [vmem:[#allocation2 + $0x38] sm:$0xff] 0.0
    %27 = vst [vmem:[#allocation2 + $0x40] sm:$0xff] 0.0
    %28 = vst [vmem:[#allocation2 + $0x48] sm:$0xff] 0.0
    %29 = vst [vmem:[#allocation2 + $0x50] sm:$0xff] 0.0
    %30 = vst [vmem:[#allocation2 + $0x58] sm:$0xff] 0.0
    %31 = vst [vmem:[#allocation2 + $0x60] sm:$0xff] 0.0
    %32 = vst [vmem:[#allocation2 + $0x68] sm:$0xff] 0.0
    %33 = vst [vmem:[#allocation2 + $0x70] sm:$0xff] 0.0
    %34 = vst [vmem:[#allocation2 + $0x78] sm:$0xff] 0.0
  $region17: #{vpgnet_forward.22} parent=0 // pred_fallthru
    _
  %v35 = vld [vmem:[#allocation2] sm:$0xff]
  %v36 = vld [vmem:[#allocation2 + $0x8] sm:$0xff]
  %v37 = vld [vmem:[#allocation2 + $0x10] sm:$0xff]
  %v38 = vld [vmem:[#allocation2 + $0x18] sm:$0xff]
  %v39 = vld [vmem:[#allocation2 + $0x20] sm:$0xff]
  %v40 = vld [vmem:[#allocation2 + $0x28] sm:$0xff]
  %v41 = vld [vmem:[#allocation2 + $0x30] sm:$0xff]
  %v42 = vld [vmem:[#allocation2 + $0x38] sm:$0xff]
  %v43 = vld [vmem:[#allocation2 + $0x40] sm:$0xff]
  %v44 = vld [vmem:[#allocation2 + $0x48] sm:$0xff]
  %v45 = vld [vmem:[#allocation2 + $0x50] sm:$0xff]
  %v46 = vld [vmem:[#allocation2 + $0x58] sm:$0xff]
  %v47 = vld [vmem:[#allocation2 + $0x60] sm:$0xff]
  %v48 = vld [vmem:[#allocation2 + $0x68] sm:$0xff]
  %v49 = vld [vmem:[#allocation2 + $0x70] sm:$0xff]
  %v50 = vld [vmem:[#allocation2 + $0x78] sm:$0xff]
  %v51 = vld [vmem:[%s0] sm:$0xff]
  %v52 = vld [vmem:[%s0 + $0x8] sm:$0xf]
  %v53 = vld [vmem:[%s0 + $0xc] sm:$0xff]
  %v54 = vld [vmem:[%s0 + $0x14] sm:$0xf]
  %v55 = vld [vmem:[%s0 + $0x18] sm:$0xff]
  %v56 = vld [vmem:[%s0 + $0x20] sm:$0xf]
  %v57 = vld [vmem:[%s0 + $0x24] sm:$0xff]
  %v58 = vld [vmem:[%s0 + $0x2c] sm:$0xf]
  %v59 = vld [vmem:[%s0 + $0x30] sm:$0xff]
  %v60 = vld [vmem:[%s0 + $0x38] sm:$0xf]
  %v61 = vld [vmem:[%s0 + $0x3c] sm:$0xff]
  %v62 = vld [vmem:[%s0 + $0x44] sm:$0xf]
  %v63 = vld [vmem:[%s0 + $0x48] sm:$0xff]
  %v64 = vld [vmem:[%s0 + $0x50] sm:$0xf]
  %v65 = vld [vmem:[%s0 + $0x54] sm:$0xff]
  %v66 = vld [vmem:[%s0 + $0x5c] sm:$0xf]
  %v67 = vld [vmem:[%s0 + $0x60] sm:$0xff]
  %v68 = vld [vmem:[%s0 + $0x68] sm:$0xf]
  %v69 = vld [vmem:[%s0 + $0x6c] sm:$0xff]
  %v70 = vld [vmem:[%s0 + $0x74] sm:$0xf]
  %v71 = vld [vmem:[%s0 + $0x78] sm:$0xff]
  %v72 = vld [vmem:[%s0 + $0x80] sm:$0xf]
  %v73 = vld [vmem:[%s0 + $0x84] sm:$0xff]
  %v74 = vld [vmem:[%s0 + $0x8c] sm:$0xf]
  %v75 = vld [vmem:[%s0 + $0x90] sm:$0xff]
  %v76 = vld [vmem:[%s0 + $0x98] sm:$0xf]
  %v77 = vld [vmem:[%s0 + $0x9c] sm:$0xff]
  %v78 = vld [vmem:[%s0 + $0xa4] sm:$0xf]
  %v79 = vld [vmem:[%s0 + $0xa8] sm:$0xff]
  %v80 = vld [vmem:[%s0 + $0xb0] sm:$0xf]
  %v81 = vld [vmem:[%s0 + $0xb4] sm:$0xff]
  %v82 = vld [vmem:[%s0 + $0xbc] sm:$0xf]
  %v83 = vld [vmem:[%s1] sm:$0xf]
  %v84 = vld [vmem:[%s1 + $0x4] sm:$0xf]
  %v85 = vld [vmem:[%s1 + $0x8] sm:$0xf]
  %v86 = vld [vmem:[%s1 + $0xc] sm:$0xf]
  %v87 = vld [vmem:[%s1 + $0x10] sm:$0xf]
  %v88 = vld [vmem:[%s1 + $0x14] sm:$0xf]
  %v89 = vld [vmem:[%s1 + $0x18] sm:$0xf]
  %v90 = vld [vmem:[%s1 + $0x1c] sm:$0xf]
  %v91 = vld [vmem:[%s1 + $0x20] sm:$0xf]
  %v92 = vld [vmem:[%s1 + $0x24] sm:$0xf]
  %v93 = vld [vmem:[%s1 + $0x28] sm:$0xf]
  %v94 = vld [vmem:[%s1 + $0x2c] sm:$0xf]
  %v95 = vld [vmem:[%s1 + $0x30] sm:$0xf]
  %v96 = vld [vmem:[%s1 + $0x34] sm:$0xf]
  %v97 = vld [vmem:[%s1 + $0x38] sm:$0xf]
  %v98 = vld [vmem:[%s1 + $0x3c] sm:$0xf]
  %v99 = vld [vmem:[%s1 + $0x40] sm:$0xf]
  %v100 = vld [vmem:[%s1 + $0x44] sm:$0xf]
  %v101 = vld [vmem:[%s1 + $0x48] sm:$0xf]
  %v102 = vld [vmem:[%s1 + $0x4c] sm:$0xf]
  %v103 = vld [vmem:[%s1 + $0x50] sm:$0xf]
  %v104 = vld [vmem:[%s1 + $0x54] sm:$0xf]
  %v105 = vld [vmem:[%s1 + $0x58] sm:$0xf]
  %v106 = vld [vmem:[%s1 + $0x5c] sm:$0xf]
  %v107 = vld [vmem:[%s1 + $0x60] sm:$0xf]
  %v108 = vld [vmem:[%s1 + $0x64] sm:$0xf]
  %v109 = vld [vmem:[%s1 + $0x68] sm:$0xf]
  %v110 = vld [vmem:[%s1 + $0x6c] sm:$0xf]
  %v111 = vld [vmem:[%s1 + $0x70] sm:$0xf]
  %v112 = vld [vmem:[%s1 + $0x74] sm:$0xf]
  %v113 = vld [vmem:[%s1 + $0x78] sm:$0xf]
  %v114 = vld [vmem:[%s1 + $0x7c] sm:$0xf]
  %v115 = vld [vmem:[%s1 + $0x80] sm:$0xf]
  %v116 = vld [vmem:[%s1 + $0x84] sm:$0xf]
  %v117 = vld [vmem:[%s1 + $0x88] sm:$0xf]
  %v118 = vld [vmem:[%s1 + $0x8c] sm:$0xf]
  %v119 = vld [vmem:[%s1 + $0x90] sm:$0xf]
  %v120 = vld [vmem:[%s1 + $0x94] sm:$0xf]
  %v121 = vld [vmem:[%s1 + $0x98] sm:$0xf]
  %v122 = vld [vmem:[%s1 + $0x9c] sm:$0xf]
  %v123 = vld [vmem:[%s1 + $0xa0] sm:$0xf]
  %v124 = vld [vmem:[%s1 + $0xa4] sm:$0xf]
  %v125 = vld [vmem:[%s1 + $0xa8] sm:$0xf]
  %v126 = vld [vmem:[%s1 + $0xac] sm:$0xf]
  %v127 = vld [vmem:[%s1 + $0xb0] sm:$0xf]
  %v128 = vld [vmem:[%s1 + $0xb4] sm:$0xf]
  %v129 = vld [vmem:[%s1 + $0xb8] sm:$0xf]
  %v130 = vld [vmem:[%s1 + $0xbc] sm:$0xf]
  %v163 = vunpack.c.l.b16 %v51
  %v164 = vunpack.c.h.b16 %v51
  %v165 = vunpack.c.l.b16 %v52
  %v166 = vunpack.c.l.b16 %v53
  %v167 = vunpack.c.h.b16 %v53
  %v168 = vunpack.c.l.b16 %v54
  %v169 = vunpack.c.l.b16 %v55
  %v170 = vunpack.c.h.b16 %v55
  %v171 = vunpack.c.l.b16 %v56
  %v172 = vunpack.c.l.b16 %v57
  %v173 = vunpack.c.h.b16 %v57
  %v174 = vunpack.c.l.b16 %v58
  %v175 = vunpack.c.l.b16 %v59
  %v176 = vunpack.c.h.b16 %v59
  %v177 = vunpack.c.l.b16 %v60
  %v178 = vunpack.c.l.b16 %v61
  %v179 = vunpack.c.h.b16 %v61
  %v180 = vunpack.c.l.b16 %v62
  %v181 = vunpack.c.l.b16 %v63
  %v182 = vunpack.c.h.b16 %v63
  %v183 = vunpack.c.l.b16 %v64
  %v184 = vunpack.c.l.b16 %v65
  %v185 = vunpack.c.h.b16 %v65
  %v186 = vunpack.c.l.b16 %v66
  %v187 = vunpack.c.l.b16 %v67
  %v188 = vunpack.c.h.b16 %v67
  %v189 = vunpack.c.l.b16 %v68
  %v190 = vunpack.c.l.b16 %v69
  %v191 = vunpack.c.h.b16 %v69
  %v192 = vunpack.c.l.b16 %v70
  %v193 = vunpack.c.l.b16 %v71
  %v194 = vunpack.c.h.b16 %v71
  %v195 = vunpack.c.l.b16 %v72
  %v196 = vunpack.c.l.b16 %v73
  %v197 = vunpack.c.h.b16 %v73
  %v198 = vunpack.c.l.b16 %v74
  %v199 = vunpack.c.l.b16 %v75
  %v200 = vunpack.c.h.b16 %v75
  %v201 = vunpack.c.l.b16 %v76
  %v202 = vunpack.c.l.b16 %v77
  %v203 = vunpack.c.h.b16 %v77
  %v204 = vunpack.c.l.b16 %v78
  %v205 = vunpack.c.l.b16 %v79
  %v206 = vunpack.c.h.b16 %v79
  %v207 = vunpack.c.l.b16 %v80
  %v208 = vunpack.c.l.b16 %v81
  %v209 = vunpack.c.h.b16 %v81
  %v210 = vunpack.c.l.b16 %v82
  %v211 = vpack.c.b16 %v166, %v163
  %v212 = vpack.c.b16 %v167, %v164
  %v213 = vpack.c.b16 %v168, %v165
  %v214 = vpack.c.b16 %v172, %v169
  %v215 = vpack.c.b16 %v173, %v170
  %v216 = vpack.c.b16 %v174, %v171
  %v217 = vpack.c.b16 %v178, %v175
  %v218 = vpack.c.b16 %v179, %v176
  %v219 = vpack.c.b16 %v180, %v177
  %v220 = vpack.c.b16 %v184, %v181
  %v221 = vpack.c.b16 %v185, %v182
  %v222 = vpack.c.b16 %v186, %v183
  %v223 = vpack.c.b16 %v190, %v187
  %v224 = vpack.c.b16 %v191, %v188
  %v225 = vpack.c.b16 %v192, %v189
  %v226 = vpack.c.b16 %v196, %v193
  %v227 = vpack.c.b16 %v197, %v194
  %v228 = vpack.c.b16 %v198, %v195
  %v229 = vpack.c.b16 %v202, %v199
  %v230 = vpack.c.b16 %v203, %v200
  %v231 = vpack.c.b16 %v204, %v201
  %v232 = vpack.c.b16 %v208, %v205
  %v233 = vpack.c.b16 %v209, %v206
  %v234 = vpack.c.b16 %v210, %v207
  %v307 = vunpack.c.l.b16 %v83
  %v308 = vunpack.c.l.b16 %v84
  %v309 = vunpack.c.l.b16 %v85
  %v310 = vunpack.c.l.b16 %v86
  %v311 = vunpack.c.l.b16 %v87
  %v312 = vunpack.c.l.b16 %v88
  %v313 = vunpack.c.l.b16 %v89
  %v314 = vunpack.c.l.b16 %v90
  %v315 = vunpack.c.l.b16 %v91
  %v316 = vunpack.c.l.b16 %v92
  %v317 = vunpack.c.l.b16 %v93
  %v318 = vunpack.c.l.b16 %v94
  %v319 = vunpack.c.l.b16 %v95
  %v320 = vunpack.c.l.b16 %v96
  %v321 = vunpack.c.l.b16 %v97
  %v322 = vunpack.c.l.b16 %v98
  %v323 = vunpack.c.l.b16 %v99
  %v324 = vunpack.c.l.b16 %v100
  %v325 = vunpack.c.l.b16 %v101
  %v326 = vunpack.c.l.b16 %v102
  %v327 = vunpack.c.l.b16 %v103
  %v328 = vunpack.c.l.b16 %v104
  %v329 = vunpack.c.l.b16 %v105
  %v330 = vunpack.c.l.b16 %v106
  %v331 = vunpack.c.l.b16 %v107
  %v332 = vunpack.c.l.b16 %v108
  %v333 = vunpack.c.l.b16 %v109
  %v334 = vunpack.c.l.b16 %v110
  %v335 = vunpack.c.l.b16 %v111
  %v336 = vunpack.c.l.b16 %v112
  %v337 = vunpack.c.l.b16 %v113
  %v338 = vunpack.c.l.b16 %v114
  %v339 = vunpack.c.l.b16 %v115
  %v340 = vunpack.c.l.b16 %v116
  %v341 = vunpack.c.l.b16 %v117
  %v342 = vunpack.c.l.b16 %v118
  %v343 = vunpack.c.l.b16 %v119
  %v344 = vunpack.c.l.b16 %v120
  %v345 = vunpack.c.l.b16 %v121
  %v346 = vunpack.c.l.b16 %v122
  %v347 = vunpack.c.l.b16 %v123
  %v348 = vunpack.c.l.b16 %v124
  %v349 = vunpack.c.l.b16 %v125
  %v350 = vunpack.c.l.b16 %v126
  %v351 = vunpack.c.l.b16 %v127
  %v352 = vunpack.c.l.b16 %v128
  %v353 = vunpack.c.l.b16 %v129
  %v354 = vunpack.c.l.b16 %v130
  %v355 = vpack.c.b16 %v308, %v307
  %v356 = vpack.c.b16 %v310, %v309
  %v357 = vpack.c.b16 %v312, %v311
  %v358 = vpack.c.b16 %v314, %v313
  %v359 = vpack.c.b16 %v316, %v315
  %v360 = vpack.c.b16 %v318, %v317
  %v361 = vpack.c.b16 %v320, %v319
  %v362 = vpack.c.b16 %v322, %v321
  %v363 = vpack.c.b16 %v324, %v323
  %v364 = vpack.c.b16 %v326, %v325
  %v365 = vpack.c.b16 %v328, %v327
  %v366 = vpack.c.b16 %v330, %v329
  %v367 = vpack.c.b16 %v332, %v331
  %v368 = vpack.c.b16 %v334, %v333
  %v369 = vpack.c.b16 %v336, %v335
  %v370 = vpack.c.b16 %v338, %v337
  %v371 = vpack.c.b16 %v340, %v339
  %v372 = vpack.c.b16 %v342, %v341
  %v373 = vpack.c.b16 %v344, %v343
  %v374 = vpack.c.b16 %v346, %v345
  %v375 = vpack.c.b16 %v348, %v347
  %v376 = vpack.c.b16 %v350, %v349
  %v377 = vpack.c.b16 %v352, %v351
  %v378 = vpack.c.b16 %v354, %v353
  %403 = vmatprep.subr.bf16.mxu0 0
  %404 = vmatpush1.bf16.msra.mxu0 %v362
  %405 = vmatprep.subr.bf16.mxu0 0
  %406 = vmatpush1.bf16.msra.mxu0 %v361
  %407 = vmatprep.subr.bf16.mxu0 0
  %408 = vmatpush1.bf16.msra.mxu0 %v360
  %409 = vmatprep.subr.bf16.mxu0 0
  %410 = vmatpush1.bf16.msra.mxu0 %v359
  %411 = vmatprep.subr.bf16.mxu0 0
  %412 = vmatpush1.bf16.msra.mxu0 %v358
  %413 = vmatprep.subr.bf16.mxu0 0
  %414 = vmatpush1.bf16.msra.mxu0 %v357
  %415 = vmatprep.subr.bf16.mxu0 0
  %416 = vmatpush1.bf16.msra.mxu0 %v356
  %417 = vmatprep.subr.bf16.mxu0 0
  %418 = vmatpush1.bf16.msra.mxu0 %v355
  %419 = vmatprep.subr.bf16.mxu0 0
  %420 = vmatpush2.bf16.msra.mxu0 %v370
  %421 = vmatprep.subr.bf16.mxu0 0
  %422 = vmatpush2.bf16.msra.mxu0 %v369
  %423 = vmatprep.subr.bf16.mxu0 0
  %424 = vmatpush2.bf16.msra.mxu0 %v368
  %425 = vmatprep.subr.bf16.mxu0 0
  %426 = vmatpush2.bf16.msra.mxu0 %v367
  %427 = vmatprep.subr.bf16.mxu0 0
  %428 = vmatpush2.bf16.msra.mxu0 %v366
  %429 = vmatprep.subr.bf16.mxu0 0
  %430 = vmatpush2.bf16.msra.mxu0 %v365
  %431 = vmatprep.subr.bf16.mxu0 0
  %432 = vmatpush2.bf16.msra.mxu0 %v364
  %433 = vmatprep.subr.bf16.mxu0 0
  %434 = vmatpush2.bf16.msra.mxu0 %v363
  %435 = vmatprep.mubr.bf16.mxu0 %v212
  %436 = vmatmul.mubr.bf16.gmra.mxu0 %v211
  %v437 = vpop.f32.mrf.mxu0
  %v438 = vadd.f32 0.0, %v437
  %v439 = vpop.f32.mrf.mxu0
  %v440 = vpop.f32.mrf.mxu0
  %v441 = vadd.f32 0.0, %v440
  %v442 = vpop.f32.mrf.mxu0
  %443 = vmatprep.mubr.bf16.mxu0 %v215
  %444 = vmatmul.mubr.bf16.gmra.mxu0 %v214
  %v445 = vpop.f32.mrf.mxu0
  %v446 = vadd.f32 0.0, %v445
  %v447 = vpop.f32.mrf.mxu0
  %v448 = vpop.f32.mrf.mxu0
  %v449 = vadd.f32 0.0, %v448
  %v450 = vpop.f32.mrf.mxu0
  %451 = vmatprep.mubr.bf16.mxu0 %v218
  %452 = vmatmul.mubr.bf16.gmra.mxu0 %v217
  %v453 = vpop.f32.mrf.mxu0
  %v454 = vadd.f32 0.0, %v453
  %v455 = vpop.f32.mrf.mxu0
  %v456 = vpop.f32.mrf.mxu0
  %v457 = vadd.f32 0.0, %v456
  %v458 = vpop.f32.mrf.mxu0
  %459 = vmatprep.mubr.bf16.mxu0 %v221
  %460 = vmatmul.mubr.bf16.gmra.mxu0 %v220
  %v461 = vpop.f32.mrf.mxu0
  %v462 = vadd.f32 0.0, %v461
  %v463 = vpop.f32.mrf.mxu0
  %v464 = vpop.f32.mrf.mxu0
  %v465 = vadd.f32 0.0, %v464
  %v466 = vpop.f32.mrf.mxu0
  %467 = vmatprep.mubr.bf16.mxu0 %v224
  %468 = vmatmul.mubr.bf16.gmra.mxu0 %v223
  %v469 = vpop.f32.mrf.mxu0
  %v470 = vadd.f32 0.0, %v469
  %v471 = vpop.f32.mrf.mxu0
  %v472 = vpop.f32.mrf.mxu0
  %v473 = vadd.f32 0.0, %v472
  %v474 = vpop.f32.mrf.mxu0
  %475 = vmatprep.mubr.bf16.mxu0 %v227
  %476 = vmatmul.mubr.bf16.gmra.mxu0 %v226
  %v477 = vpop.f32.mrf.mxu0
  %v478 = vadd.f32 0.0, %v477
  %v479 = vpop.f32.mrf.mxu0
  %v480 = vpop.f32.mrf.mxu0
  %v481 = vadd.f32 0.0, %v480
  %v482 = vpop.f32.mrf.mxu0
  %483 = vmatprep.mubr.bf16.mxu0 %v230
  %484 = vmatmul.mubr.bf16.gmra.mxu0 %v229
  %v485 = vpop.f32.mrf.mxu0
  %v486 = vadd.f32 0.0, %v485
  %v487 = vpop.f32.mrf.mxu0
  %v488 = vpop.f32.mrf.mxu0
  %v489 = vadd.f32 0.0, %v488
  %v490 = vpop.f32.mrf.mxu0
  %491 = vmatprep.mubr.bf16.mxu0 %v233
  %492 = vmatmul.mubr.bf16.gmra.mxu0 %v232
  %v493 = vpop.f32.mrf.mxu0
  %v494 = vadd.f32 0.0, %v493
  %v495 = vpop.f32.mrf.mxu0
  %v496 = vpop.f32.mrf.mxu0
  %v497 = vadd.f32 0.0, %v496
  %v498 = vpop.f32.mrf.mxu0
  %499 = vdwg.mxu0
  %500 = vmatprep.subr.bf16.mxu0 0
  %501 = vmatpush1.bf16.msra.mxu0 %v378
  %502 = vmatprep.subr.bf16.mxu0 0
  %503 = vmatpush1.bf16.msra.mxu0 %v377
  %504 = vmatprep.subr.bf16.mxu0 0
  %505 = vmatpush1.bf16.msra.mxu0 %v376
  %506 = vmatprep.subr.bf16.mxu0 0
  %507 = vmatpush1.bf16.msra.mxu0 %v375
  %508 = vmatprep.subr.bf16.mxu0 0
  %509 = vmatpush1.bf16.msra.mxu0 %v374
  %510 = vmatprep.subr.bf16.mxu0 0
  %511 = vmatpush1.bf16.msra.mxu0 %v373
  %512 = vmatprep.subr.bf16.mxu0 0
  %513 = vmatpush1.bf16.msra.mxu0 %v372
  %514 = vmatprep.subr.bf16.mxu0 0
  %515 = vmatpush1.bf16.msra.mxu0 %v371
  %516 = vmatprep.subr.bf16.mxu0 0
  %517 = vmatpush2.bf16.msra.mxu0 0
  %518 = vmatprep.subr.bf16.mxu0 0
  %519 = vmatpush2.bf16.msra.mxu0 0
  %520 = vmatprep.subr.bf16.mxu0 0
  %521 = vmatpush2.bf16.msra.mxu0 0
  %522 = vmatprep.subr.bf16.mxu0 0
  %523 = vmatpush2.bf16.msra.mxu0 0
  %524 = vmatprep.subr.bf16.mxu0 0
  %525 = vmatpush2.bf16.msra.mxu0 0
  %526 = vmatprep.subr.bf16.mxu0 0
  %527 = vmatpush2.bf16.msra.mxu0 0
  %528 = vmatprep.subr.bf16.mxu0 0
  %529 = vmatpush2.bf16.msra.mxu0 0
  %530 = vmatprep.subr.bf16.mxu0 0
  %531 = vmatpush2.bf16.msra.mxu0 0
  %532 = vmatprep.mubr.bf16.mxu0 0
  %533 = vmatmul.mubr.bf16.gmra.mxu0 %v213
  %v534 = vpop.f32.mrf.mxu0
  %v535 = vadd.f32 %v438, %v534
  %v536 = vpop.f32.mrf.mxu0
  %v537 = vpop.f32.mrf.mxu0
  %v538 = vadd.f32 %v441, %v537
  %v539 = vpop.f32.mrf.mxu0
  %540 = vmatprep.mubr.bf16.mxu0 0
  %541 = vmatmul.mubr.bf16.gmra.mxu0 %v216
  %v542 = vpop.f32.mrf.mxu0
  %v543 = vadd.f32 %v446, %v542
  %v544 = vpop.f32.mrf.mxu0
  %v545 = vpop.f32.mrf.mxu0
  %v546 = vadd.f32 %v449, %v545
  %v547 = vpop.f32.mrf.mxu0
  %548 = vmatprep.mubr.bf16.mxu0 0
  %549 = vmatmul.mubr.bf16.gmra.mxu0 %v219
  %v550 = vpop.f32.mrf.mxu0
  %v551 = vadd.f32 %v454, %v550
  %v552 = vpop.f32.mrf.mxu0
  %v553 = vpop.f32.mrf.mxu0
  %v554 = vadd.f32 %v457, %v553
  %v555 = vpop.f32.mrf.mxu0
  %556 = vmatprep.mubr.bf16.mxu0 0
  %557 = vmatmul.mubr.bf16.gmra.mxu0 %v222
  %v558 = vpop.f32.mrf.mxu0
  %v559 = vadd.f32 %v462, %v558
  %v560 = vpop.f32.mrf.mxu0
  %v561 = vpop.f32.mrf.mxu0
  %v562 = vadd.f32 %v465, %v561
  %v563 = vpop.f32.mrf.mxu0
  %564 = vmatprep.mubr.bf16.mxu0 0
  %565 = vmatmul.mubr.bf16.gmra.mxu0 %v225
  %v566 = vpop.f32.mrf.mxu0
  %v567 = vadd.f32 %v470, %v566
  %v568 = vpop.f32.mrf.mxu0
  %v569 = vpop.f32.mrf.mxu0
  %v570 = vadd.f32 %v473, %v569
  %v571 = vpop.f32.mrf.mxu0
  %572 = vmatprep.mubr.bf16.mxu0 0
  %573 = vmatmul.mubr.bf16.gmra.mxu0 %v228
  %v574 = vpop.f32.mrf.mxu0
  %v575 = vadd.f32 %v478, %v574
  %v576 = vpop.f32.mrf.mxu0
  %v577 = vpop.f32.mrf.mxu0
  %v578 = vadd.f32 %v481, %v577
  %v579 = vpop.f32.mrf.mxu0
  %580 = vmatprep.mubr.bf16.mxu0 0
  %581 = vmatmul.mubr.bf16.gmra.mxu0 %v231
  %v582 = vpop.f32.mrf.mxu0
  %v583 = vadd.f32 %v486, %v582
  %v584 = vpop.f32.mrf.mxu0
  %v585 = vpop.f32.mrf.mxu0
  %v586 = vadd.f32 %v489, %v585
  %v587 = vpop.f32.mrf.mxu0
  %588 = vmatprep.mubr.bf16.mxu0 0
  %589 = vmatmul.mubr.bf16.gmra.mxu0 %v234
  %v590 = vpop.f32.mrf.mxu0
  %v591 = vadd.f32 %v494, %v590
  %v592 = vpop.f32.mrf.mxu0
  %v593 = vpop.f32.mrf.mxu0
  %v594 = vadd.f32 %v497, %v593
  %v595 = vpop.f32.mrf.mxu0
  %596 = vdwg.mxu0
  %v597 = vadd.f32 %v35, %v535
  %v598 = vadd.f32 %v36, %v538
  %v599 = vadd.f32 %v37, %v543
  %v600 = vadd.f32 %v38, %v546
  %v601 = vadd.f32 %v39, %v551
  %v602 = vadd.f32 %v40, %v554
  %v603 = vadd.f32 %v41, %v559
  %v604 = vadd.f32 %v42, %v562
  %v605 = vadd.f32 %v43, %v567
  %v606 = vadd.f32 %v44, %v570
  %v607 = vadd.f32 %v45, %v575
  %v608 = vadd.f32 %v46, %v578
  %v609 = vadd.f32 %v47, %v583
  %v610 = vadd.f32 %v48, %v586
  %v611 = vadd.f32 %v49, %v591
  %v612 = vadd.f32 %v50, %v594
  %613 = vst [vmem:[#allocation2] sm:$0xff] %v597
  %614 = vst [vmem:[#allocation2 + $0x8] sm:$0xff] %v598
  %615 = vst [vmem:[#allocation2 + $0x10] sm:$0xff] %v599
  %616 = vst [vmem:[#allocation2 + $0x18] sm:$0xff] %v600
  %617 = vst [vmem:[#allocation2 + $0x20] sm:$0xff] %v601
  %618 = vst [vmem:[#allocation2 + $0x28] sm:$0xff] %v602
  %619 = vst [vmem:[#allocation2 + $0x30] sm:$0xff] %v603
  %620 = vst [vmem:[#allocation2 + $0x38] sm:$0xff] %v604
  %621 = vst [vmem:[#allocation2 + $0x40] sm:$0xff] %v605
  %622 = vst [vmem:[#allocation2 + $0x48] sm:$0xff] %v606
  %623 = vst [vmem:[#allocation2 + $0x50] sm:$0xff] %v607
  %624 = vst [vmem:[#allocation2 + $0x58] sm:$0xff] %v608
  %625 = vst [vmem:[#allocation2 + $0x60] sm:$0xff] %v609
  %626 = vst [vmem:[#allocation2 + $0x68] sm:$0xff] %v610
  %627 = vst [vmem:[#allocation2 + $0x70] sm:$0xff] %v611
  %628 = vst [vmem:[#allocation2 + $0x78] sm:$0xff] %v612
  // Predicated region
  $region18: #{vpgnet_forward.22} parent=0 // pred_check
    %p629 = pneg %p15
  $region19: #{vpgnet_forward.22} parent=0 // pred_check_branch
    %631 = sbr.rel (%p629) target = $region21
  $region20: #{vpgnet_forward.22} parent=0 // pred_region
    %v632 = vld [vmem:[#allocation2] sm:$0xff]
    %v633 = vld [vmem:[#allocation2 + $0x8] sm:$0xff]
    %v634 = vld [vmem:[#allocation2 + $0x10] sm:$0xff]
    %v635 = vld [vmem:[#allocation2 + $0x18] sm:$0xff]
    %v636 = vld [vmem:[#allocation2 + $0x20] sm:$0xff]
    %v637 = vld [vmem:[#allocation2 + $0x28] sm:$0xff]
    %v638 = vld [vmem:[#allocation2 + $0x30] sm:$0xff]
    %v639 = vld [vmem:[#allocation2 + $0x38] sm:$0xff]
    %v640 = vld [vmem:[#allocation2 + $0x40] sm:$0xff]
    %v641 = vld [vmem:[#allocation2 + $0x48] sm:$0xff]
    %v642 = vld [vmem:[#allocation2 + $0x50] sm:$0xff]
    %v643 = vld [vmem:[#allocation2 + $0x58] sm:$0xff]
    %v644 = vld [vmem:[#allocation2 + $0x60] sm:$0xff]
    %v645 = vld [vmem:[#allocation2 + $0x68] sm:$0xff]
    %v646 = vld [vmem:[#allocation2 + $0x70] sm:$0xff]
    %v647 = vld [vmem:[#allocation2 + $0x78] sm:$0xff]
    %v648 = vld [vmem:[%s2] sm:$0x1]
    %v650 = vlaneseq
    %v651 = vshrl.u32 %v650, 7
    %v652 = vsub.s32 0, %v651
    %v653 = vrot.slane %v648, %v652
    %v655 = vadd.f32 %v632, %v653
    %v656 = vadd.f32 %v633, %v653
    %v657 = vadd.f32 %v634, %v653
    %v658 = vadd.f32 %v635, %v653
    %v659 = vadd.f32 %v636, %v653
    %v660 = vadd.f32 %v637, %v653
    %v661 = vadd.f32 %v638, %v653
    %v662 = vadd.f32 %v639, %v653
    %v663 = vadd.f32 %v640, %v653
    %v664 = vadd.f32 %v641, %v653
    %v665 = vadd.f32 %v642, %v653
    %v666 = vadd.f32 %v643, %v653
    %v667 = vadd.f32 %v644, %v653
    %v668 = vadd.f32 %v645, %v653
    %v669 = vadd.f32 %v646, %v653
    %v670 = vadd.f32 %v647, %v653
    %v671 = vmax.f32 %v655, 0.0
    %v672 = vmax.f32 %v656, 0.0
    %v673 = vmax.f32 %v657, 0.0
    %v674 = vmax.f32 %v658, 0.0
    %v675 = vmax.f32 %v659, 0.0
    %v676 = vmax.f32 %v660, 0.0
    %v677 = vmax.f32 %v661, 0.0
    %v678 = vmax.f32 %v662, 0.0
    %v679 = vmax.f32 %v663, 0.0
    %v680 = vmax.f32 %v664, 0.0
    %v681 = vmax.f32 %v665, 0.0
    %v682 = vmax.f32 %v666, 0.0
    %v683 = vmax.f32 %v667, 0.0
    %v684 = vmax.f32 %v668, 0.0
    %v685 = vmax.f32 %v669, 0.0
    %v686 = vmax.f32 %v670, 0.0
    %687 = vst [vmem:[%s3] sm:$0xff] %v671
    %688 = vst [vmem:[%s3 + $0x8] sm:$0xff] %v672
    %689 = vst [vmem:[%s3 + $0x10] sm:$0xff] %v673
    %690 = vst [vmem:[%s3 + $0x18] sm:$0xff] %v674
    %691 = vst [vmem:[%s3 + $0x20] sm:$0xff] %v675
    %692 = vst [vmem:[%s3 + $0x28] sm:$0xff] %v676
    %693 = vst [vmem:[%s3 + $0x30] sm:$0xff] %v677
    %694 = vst [vmem:[%s3 + $0x38] sm:$0xff] %v678
    %695 = vst [vmem:[%s3 + $0x40] sm:$0xff] %v679
    %696 = vst [vmem:[%s3 + $0x48] sm:$0xff] %v680
    %697 = vst [vmem:[%s3 + $0x50] sm:$0xff] %v681
    %698 = vst [vmem:[%s3 + $0x58] sm:$0xff] %v682
    %699 = vst [vmem:[%s3 + $0x60] sm:$0xff] %v683
    %700 = vst [vmem:[%s3 + $0x68] sm:$0xff] %v684
    %701 = vst [vmem:[%s3 + $0x70] sm:$0xff] %v685
    %702 = vst [vmem:[%s3 + $0x78] sm:$0xff] %v686
  $region21: #{vpgnet_forward.22} parent=0 // pred_fallthru
    _
  // Predicated region
  $region22: #{vpgnet_forward.22} parent=0 // pred_check
    _
  $region23: #{vpgnet_forward.22} parent=0 // pred_check_branch
    %704 = sbr.rel (0) target = $region25
  $region24: #{vpgnet_forward.22} parent=0 // pred_region
    _
  $region25: #{vpgnet_forward.22} parent=0 // pred_fallthru
    _
  // Predicated region
  $region26: #{vpgnet_forward.22} parent=0 // pred_check
    _
  $region27: #{vpgnet_forward.22} parent=0 // pred_check_branch
    %706 = sbr.rel (0) target = $region29
  $region28: #{vpgnet_forward.22} parent=0 // pred_region
    _
  $region29: #{vpgnet_forward.22} parent=0 // pred_fallthru
    _

// kernel: vpgnet_forward.23
$region0: #{vpgnet_forward.23}
  #allocation0 [shape = 'u32[]', space=smem, size = 0x4, offset = 0x4, fixed_abs, tag = 'smem constant byte address 0x4 - core index']
  #allocation1 [shape = 'u32[144,128]{1,0:T(1,128)}', space=vmem, size = 0x12000, scoped, tag = 'internal scratch']
  %s0 = inlined_call_operand.vmem [shape: f32[512,128], index: 0, kind: input, shape index: {}]
  %s1 = inlined_call_operand.vmem [shape: f32[128,128], index: 1, kind: input, shape index: {}]
  %s2 = inlined_call_operand.vmem [shape: f32[512,128], index: 2, kind: output, shape index: {}]
  %s3 = sld [smem:[#allocation0]]
  $region18: #{vpgnet_forward.23} parent=0
    _
  %s5 = ssub.s32 1, %s3
  %s6 = scalar_select 0, %s5, %s3
  // Predicated region
  $region2: #{vpgnet_forward.23} parent=0 // pred_check
    _
  $region3: #{vpgnet_forward.23} parent=0 // pred_check_branch
    %8 = sbr.rel (0) target = $region5
  $region4: #{vpgnet_forward.23} parent=0 // pred_region
    _
  $region5: #{vpgnet_forward.23} parent=0 // pred_fallthru
    _
  // Predicated region
  $region6: #{vpgnet_forward.23} parent=0 // pred_check
    _
  $region7: #{vpgnet_forward.23} parent=0 // pred_check_branch
    %10 = sbr.rel (0) target = $region9
  $region8: #{vpgnet_forward.23} parent=0 // pred_region
    _
  $region9: #{vpgnet_forward.23} parent=0 // pred_fallthru
    _
  %v11 = vld [vmem:[%s0] sm:$0xff]
  %v12 = vld [vmem:[%s0 + $0x8] sm:$0xff]
  %v13 = vld [vmem:[%s0 + $0x10] sm:$0xff]
  %v14 = vld [vmem:[%s0 + $0x18] sm:$0xff]
  %v15 = vld [vmem:[%s0 + $0x20] sm:$0xff]
  %v16 = vld [vmem:[%s0 + $0x28] sm:$0xff]
  %v17 = vld [vmem:[%s0 + $0x30] sm:$0xff]
  %v18 = vld [vmem:[%s0 + $0x38] sm:$0xff]
  %v19 = vld [vmem:[%s0 + $0x40] sm:$0xff]
  %v20 = vld [vmem:[%s0 + $0x48] sm:$0xff]
  %v21 = vld [vmem:[%s0 + $0x50] sm:$0xff]
  %v22 = vld [vmem:[%s0 + $0x58] sm:$0xff]
  %v23 = vld [vmem:[%s0 + $0x60] sm:$0xff]
  %v24 = vld [vmem:[%s0 + $0x68] sm:$0xff]
  %v25 = vld [vmem:[%s0 + $0x70] sm:$0xff]
  %v26 = vld [vmem:[%s0 + $0x78] sm:$0xff]
  %v27 = vld [vmem:[%s0 + $0x80] sm:$0xff]
  %v28 = vld [vmem:[%s0 + $0x88] sm:$0xff]
  %v29 = vld [vmem:[%s0 + $0x90] sm:$0xff]
  %v30 = vld [vmem:[%s0 + $0x98] sm:$0xff]
  %v31 = vld [vmem:[%s0 + $0xa0] sm:$0xff]
  %v32 = vld [vmem:[%s0 + $0xa8] sm:$0xff]
  %v33 = vld [vmem:[%s0 + $0xb0] sm:$0xff]
  %v34 = vld [vmem:[%s0 + $0xb8] sm:$0xff]
  %v35 = vld [vmem:[%s0 + $0xc0] sm:$0xff]
  %v36 = vld [vmem:[%s0 + $0xc8] sm:$0xff]
  %v37 = vld [vmem:[%s0 + $0xd0] sm:$0xff]
  %v38 = vld [vmem:[%s0 + $0xd8] sm:$0xff]
  %v39 = vld [vmem:[%s0 + $0xe0] sm:$0xff]
  %v40 = vld [vmem:[%s0 + $0xe8] sm:$0xff]
  %v41 = vld [vmem:[%s0 + $0xf0] sm:$0xff]
  %v42 = vld [vmem:[%s0 + $0xf8] sm:$0xff]
  %v43 = vld [vmem:[%s0 + $0x100] sm:$0xff]
  %v44 = vld [vmem:[%s0 + $0x108] sm:$0xff]
  %v45 = vld [vmem:[%s0 + $0x110] sm:$0xff]
  %v46 = vld [vmem:[%s0 + $0x118] sm:$0xff]
  %v47 = vld [vmem:[%s0 + $0x120] sm:$0xff]
  %v48 = vld [vmem:[%s0 + $0x128] sm:$0xff]
  %v49 = vld [vmem:[%s0 + $0x130] sm:$0xff]
  %v50 = vld [vmem:[%s0 + $0x138] sm:$0xff]
  %v51 = vld [vmem:[%s0 + $0x140] sm:$0xff]
  %v52 = vld [vmem:[%s0 + $0x148] sm:$0xff]
  %v53 = vld [vmem:[%s0 + $0x150] sm:$0xff]
  %v54 = vld [vmem:[%s0 + $0x158] sm:$0xff]
  %v55 = vld [vmem:[%s0 + $0x160] sm:$0xff]
  %v56 = vld [vmem:[%s0 + $0x168] sm:$0xff]
  %v57 = vld [vmem:[%s0 + $0x170] sm:$0xff]
  %v58 = vld [vmem:[%s0 + $0x178] sm:$0xff]
  %v59 = vld [vmem:[%s0 + $0x180] sm:$0xff]
  %v60 = vld [vmem:[%s0 + $0x188] sm:$0xff]
  %v61 = vld [vmem:[%s0 + $0x190] sm:$0xff]
  %v62 = vld [vmem:[%s0 + $0x198] sm:$0xff]
  %v63 = vld [vmem:[%s0 + $0x1a0] sm:$0xff]
  %v64 = vld [vmem:[%s0 + $0x1a8] sm:$0xff]
  %v65 = vld [vmem:[%s0 + $0x1b0] sm:$0xff]
  %v66 = vld [vmem:[%s0 + $0x1b8] sm:$0xff]
  %v67 = vld [vmem:[%s0 + $0x1c0] sm:$0xff]
  %v68 = vld [vmem:[%s0 + $0x1c8] sm:$0xff]
  %v69 = vld [vmem:[%s0 + $0x1d0] sm:$0xff]
  %v70 = vld [vmem:[%s0 + $0x1d8] sm:$0xff]
  %v71 = vld [vmem:[%s0 + $0x1e0] sm:$0xff]
  %v72 = vld [vmem:[%s0 + $0x1e8] sm:$0xff]
  %v73 = vld [vmem:[%s0 + $0x1f0] sm:$0xff]
  %v74 = vld [vmem:[%s0 + $0x1f8] sm:$0xff]
  %v75 = vmul.f32 %v11, %v11
  %v76 = vmul.f32 %v12, %v12
  %v77 = vmul.f32 %v13, %v13
  %v78 = vmul.f32 %v14, %v14
  %v79 = vmul.f32 %v15, %v15
  %v80 = vmul.f32 %v16, %v16
  %v81 = vmul.f32 %v17, %v17
  %v82 = vmul.f32 %v18, %v18
  %v83 = vmul.f32 %v19, %v19
  %v84 = vmul.f32 %v20, %v20
  %v85 = vmul.f32 %v21, %v21
  %v86 = vmul.f32 %v22, %v22
  %v87 = vmul.f32 %v23, %v23
  %v88 = vmul.f32 %v24, %v24
  %v89 = vmul.f32 %v25, %v25
  %v90 = vmul.f32 %v26, %v26
  %v91 = vmul.f32 %v27, %v27
  %v92 = vmul.f32 %v28, %v28
  %v93 = vmul.f32 %v29, %v29
  %v94 = vmul.f32 %v30, %v30
  %v95 = vmul.f32 %v31, %v31
  %v96 = vmul.f32 %v32, %v32
  %v97 = vmul.f32 %v33, %v33
  %v98 = vmul.f32 %v34, %v34
  %v99 = vmul.f32 %v35, %v35
  %v100 = vmul.f32 %v36, %v36
  %v101 = vmul.f32 %v37, %v37
  %v102 = vmul.f32 %v38, %v38
  %v103 = vmul.f32 %v39, %v39
  %v104 = vmul.f32 %v40, %v40
  %v105 = vmul.f32 %v41, %v41
  %v106 = vmul.f32 %v42, %v42
  %v107 = vmul.f32 %v43, %v43
  %v108 = vmul.f32 %v44, %v44
  %v109 = vmul.f32 %v45, %v45
  %v110 = vmul.f32 %v46, %v46
  %v111 = vmul.f32 %v47, %v47
  %v112 = vmul.f32 %v48, %v48
  %v113 = vmul.f32 %v49, %v49
  %v114 = vmul.f32 %v50, %v50
  %v115 = vmul.f32 %v51, %v51
  %v116 = vmul.f32 %v52, %v52
  %v117 = vmul.f32 %v53, %v53
  %v118 = vmul.f32 %v54, %v54
  %v119 = vmul.f32 %v55, %v55
  %v120 = vmul.f32 %v56, %v56
  %v121 = vmul.f32 %v57, %v57
  %v122 = vmul.f32 %v58, %v58
  %v123 = vmul.f32 %v59, %v59
  %v124 = vmul.f32 %v60, %v60
  %v125 = vmul.f32 %v61, %v61
  %v126 = vmul.f32 %v62, %v62
  %v127 = vmul.f32 %v63, %v63
  %v128 = vmul.f32 %v64, %v64
  %v129 = vmul.f32 %v65, %v65
  %v130 = vmul.f32 %v66, %v66
  %v131 = vmul.f32 %v67, %v67
  %v132 = vmul.f32 %v68, %v68
  %v133 = vmul.f32 %v69, %v69
  %v134 = vmul.f32 %v70, %v70
  %v135 = vmul.f32 %v71, %v71
  %v136 = vmul.f32 %v72, %v72
  %v137 = vmul.f32 %v73, %v73
  %v138 = vmul.f32 %v74, %v74
  %v139 = vld [vmem:[%s1] sm:$0xff]
  %v140 = vld [vmem:[%s1 + $0x8] sm:$0xff]
  %v141 = vld [vmem:[%s1 + $0x10] sm:$0xff]
  %v142 = vld [vmem:[%s1 + $0x18] sm:$0xff]
  %v143 = vld [vmem:[%s1 + $0x20] sm:$0xff]
  %v144 = vld [vmem:[%s1 + $0x28] sm:$0xff]
  %v145 = vld [vmem:[%s1 + $0x30] sm:$0xff]
  %v146 = vld [vmem:[%s1 + $0x38] sm:$0xff]
  %v147 = vld [vmem:[%s1 + $0x40] sm:$0xff]
  %v148 = vld [vmem:[%s1 + $0x48] sm:$0xff]
  %v149 = vld [vmem:[%s1 + $0x50] sm:$0xff]
  %v150 = vld [vmem:[%s1 + $0x58] sm:$0xff]
  %v151 = vld [vmem:[%s1 + $0x60] sm:$0xff]
  %v152 = vld [vmem:[%s1 + $0x68] sm:$0xff]
  %v153 = vld [vmem:[%s1 + $0x70] sm:$0xff]
  %v154 = vld [vmem:[%s1 + $0x78] sm:$0xff]
  %155 = vmatprep.subr.mxu0 0.0
  %156 = vmatpush1.msra.mxu0 %v154
  %157 = vmatprep.subr.mxu0 0.0
  %158 = vmatpush1.msra.mxu0 %v153
  %159 = vmatprep.subr.mxu0 0.0
  %160 = vmatpush1.msra.mxu0 %v152
  %161 = vmatprep.subr.mxu0 0.0
  %162 = vmatpush1.msra.mxu0 %v151
  %163 = vmatprep.subr.mxu0 0.0
  %164 = vmatpush1.msra.mxu0 %v150
  %165 = vmatprep.subr.mxu0 0.0
  %166 = vmatpush1.msra.mxu0 %v149
  %167 = vmatprep.subr.mxu0 0.0
  %168 = vmatpush1.msra.mxu0 %v148
  %169 = vmatprep.subr.mxu0 0.0
  %170 = vmatpush1.msra.mxu0 %v147
  %171 = vmatprep.subr.mxu0 0.0
  %172 = vmatpush1.msra.mxu0 %v146
  %173 = vmatprep.subr.mxu0 0.0
  %174 = vmatpush1.msra.mxu0 %v145
  %175 = vmatprep.subr.mxu0 0.0
  %176 = vmatpush1.msra.mxu0 %v144
  %177 = vmatprep.subr.mxu0 0.0
  %178 = vmatpush1.msra.mxu0 %v143
  %179 = vmatprep.subr.mxu0 0.0
  %180 = vmatpush1.msra.mxu0 %v142
  %181 = vmatprep.subr.mxu0 0.0
  %182 = vmatpush1.msra.mxu0 %v141
  %183 = vmatprep.subr.mxu0 0.0
  %184 = vmatpush1.msra.mxu0 %v140
  %185 = vmatprep.subr.mxu0 0.0
  %186 = vmatpush1.msra.mxu0 %v139
  %187 = vmatprep.subr.mxu0 0.0
  %188 = vmatpush2.msra.mxu0 0.0
  %189 = vmatprep.subr.mxu0 0.0
  %190 = vmatpush2.msra.mxu0 0.0
  %191 = vmatprep.subr.mxu0 0.0
  %192 = vmatpush2.msra.mxu0 0.0
  %193 = vmatprep.subr.mxu0 0.0
  %194 = vmatpush2.msra.mxu0 0.0
  %195 = vmatprep.subr.mxu0 0.0
  %196 = vmatpush2.msra.mxu0 0.0
  %197 = vmatprep.subr.mxu0 0.0
  %198 = vmatpush2.msra.mxu0 0.0
  %199 = vmatprep.subr.mxu0 0.0
  %200 = vmatpush2.msra.mxu0 0.0
  %201 = vmatprep.subr.mxu0 0.0
  %202 = vmatpush2.msra.mxu0 0.0
  %203 = vmatprep.subr.mxu0 0.0
  %204 = vmatpush2.msra.mxu0 0.0
  %205 = vmatprep.subr.mxu0 0.0
  %206 = vmatpush2.msra.mxu0 0.0
  %207 = vmatprep.subr.mxu0 0.0
  %208 = vmatpush2.msra.mxu0 0.0
  %209 = vmatprep.subr.mxu0 0.0
  %210 = vmatpush2.msra.mxu0 0.0
  %211 = vmatprep.subr.mxu0 0.0
  %212 = vmatpush2.msra.mxu0 0.0
  %213 = vmatprep.subr.mxu0 0.0
  %214 = vmatpush2.msra.mxu0 0.0
  %215 = vmatprep.subr.mxu0 0.0
  %216 = vmatpush2.msra.mxu0 0.0
  %217 = vmatprep.subr.mxu0 0.0
  %218 = vmatpush2.msra.mxu0 0.0
  %219 = vmatprep.mubr.f32.mxu0 0.0
  %220 = vmatmul.mubr.f32.gmra.mxu0 %v75
  %v221 = vpop.f32.mrf.mxu0
  %v222 = vadd.f32 0.0, %v221
  %v223 = vpop.f32.mrf.mxu0
  %224 = vmatprep.mubr.f32.mxu0 0.0
  %225 = vmatmul.mubr.f32.gmra.mxu0 %v76
  %v226 = vpop.f32.mrf.mxu0
  %v227 = vadd.f32 0.0, %v226
  %v228 = vpop.f32.mrf.mxu0
  %229 = vmatprep.mubr.f32.mxu0 0.0
  %230 = vmatmul.mubr.f32.gmra.mxu0 %v77
  %v231 = vpop.f32.mrf.mxu0
  %v232 = vadd.f32 0.0, %v231
  %v233 = vpop.f32.mrf.mxu0
  %234 = vmatprep.mubr.f32.mxu0 0.0
  %235 = vmatmul.mubr.f32.gmra.mxu0 %v78
  %v236 = vpop.f32.mrf.mxu0
  %v237 = vadd.f32 0.0, %v236
  %v238 = vpop.f32.mrf.mxu0
  %239 = vmatprep.mubr.f32.mxu0 0.0
  %240 = vmatmul.mubr.f32.gmra.mxu0 %v79
  %v241 = vpop.f32.mrf.mxu0
  %v242 = vadd.f32 0.0, %v241
  %v243 = vpop.f32.mrf.mxu0
  %244 = vmatprep.mubr.f32.mxu0 0.0
  %245 = vmatmul.mubr.f32.gmra.mxu0 %v80
  %v246 = vpop.f32.mrf.mxu0
  %v247 = vadd.f32 0.0, %v246
  %v248 = vpop.f32.mrf.mxu0
  %249 = vmatprep.mubr.f32.mxu0 0.0
  %250 = vmatmul.mubr.f32.gmra.mxu0 %v81
  %v251 = vpop.f32.mrf.mxu0
  %v252 = vadd.f32 0.0, %v251
  %v253 = vpop.f32.mrf.mxu0
  %254 = vmatprep.mubr.f32.mxu0 0.0
  %255 = vmatmul.mubr.f32.gmra.mxu0 %v82
  %v256 = vpop.f32.mrf.mxu0
  %v257 = vadd.f32 0.0, %v256
  %v258 = vpop.f32.mrf.mxu0
  %259 = vmatprep.mubr.f32.mxu0 0.0
  %260 = vmatmul.mubr.f32.gmra.mxu0 %v83
  %v261 = vpop.f32.mrf.mxu0
  %v262 = vadd.f32 0.0, %v261
  %v263 = vpop.f32.mrf.mxu0
  %264 = vmatprep.mubr.f32.mxu0 0.0
  %265 = vmatmul.mubr.f32.gmra.mxu0 %v84
  %v266 = vpop.f32.mrf.mxu0
  %v267 = vadd.f32 0.0, %v266
  %v268 = vpop.f32.mrf.mxu0
  %269 = vmatprep.mubr.f32.mxu0 0.0
  %270 = vmatmul.mubr.f32.gmra.mxu0 %v85
  %v271 = vpop.f32.mrf.mxu0
  %v272 = vadd.f32 0.0, %v271
  %v273 = vpop.f32.mrf.mxu0
  %274 = vmatprep.mubr.f32.mxu0 0.0
  %275 = vmatmul.mubr.f32.gmra.mxu0 %v86
  %v276 = vpop.f32.mrf.mxu0
  %v277 = vadd.f32 0.0, %v276
  %v278 = vpop.f32.mrf.mxu0
  %279 = vmatprep.mubr.f32.mxu0 0.0
  %280 = vmatmul.mubr.f32.gmra.mxu0 %v87
  %v281 = vpop.f32.mrf.mxu0
  %v282 = vadd.f32 0.0, %v281
  %v283 = vpop.f32.mrf.mxu0
  %284 = vmatprep.mubr.f32.mxu0 0.0
  %285 = vmatmul.mubr.f32.gmra.mxu0 %v88
  %v286 = vpop.f32.mrf.mxu0
  %v287 = vadd.f32 0.0, %v286
  %v288 = vpop.f32.mrf.mxu0
  %289 = vmatprep.mubr.f32.mxu0 0.0
  %290 = vmatmul.mubr.f32.gmra.mxu0 %v89
  %v291 = vpop.f32.mrf.mxu0
  %v292 = vadd.f32 0.0, %v291
  %v293 = vpop.f32.mrf.mxu0
  %294 = vmatprep.mubr.f32.mxu0 0.0
  %295 = vmatmul.mubr.f32.gmra.mxu0 %v90
  %v296 = vpop.f32.mrf.mxu0
  %v297 = vadd.f32 0.0, %v296
  %v298 = vpop.f32.mrf.mxu0
  %299 = vmatprep.mubr.f32.mxu0 0.0
  %300 = vmatmul.mubr.f32.gmra.mxu0 %v91
  %v301 = vpop.f32.mrf.mxu0
  %v302 = vadd.f32 0.0, %v301
  %v303 = vpop.f32.mrf.mxu0
  %304 = vmatprep.mubr.f32.mxu0 0.0
  %305 = vmatmul.mubr.f32.gmra.mxu0 %v92
  %v306 = vpop.f32.mrf.mxu0
  %v307 = vadd.f32 0.0, %v306
  %v308 = vpop.f32.mrf.mxu0
  %309 = vmatprep.mubr.f32.mxu0 0.0
  %310 = vmatmul.mubr.f32.gmra.mxu0 %v93
  %v311 = vpop.f32.mrf.mxu0
  %v312 = vadd.f32 0.0, %v311
  %v313 = vpop.f32.mrf.mxu0
  %314 = vmatprep.mubr.f32.mxu0 0.0
  %315 = vmatmul.mubr.f32.gmra.mxu0 %v94
  %v316 = vpop.f32.mrf.mxu0
  %v317 = vadd.f32 0.0, %v316
  %v318 = vpop.f32.mrf.mxu0
  %319 = vmatprep.mubr.f32.mxu0 0.0
  %320 = vmatmul.mubr.f32.gmra.mxu0 %v95
  %v321 = vpop.f32.mrf.mxu0
  %v322 = vadd.f32 0.0, %v321
  %v323 = vpop.f32.mrf.mxu0
  %324 = vmatprep.mubr.f32.mxu0 0.0
  %325 = vmatmul.mubr.f32.gmra.mxu0 %v96
  %v326 = vpop.f32.mrf.mxu0
  %v327 = vadd.f32 0.0, %v326
  %v328 = vpop.f32.mrf.mxu0
  %329 = vmatprep.mubr.f32.mxu0 0.0
  %330 = vmatmul.mubr.f32.gmra.mxu0 %v97
  %v331 = vpop.f32.mrf.mxu0
  %v332 = vadd.f32 0.0, %v331
  %v333 = vpop.f32.mrf.mxu0
  %334 = vmatprep.mubr.f32.mxu0 0.0
  %335 = vmatmul.mubr.f32.gmra.mxu0 %v98
  %v336 = vpop.f32.mrf.mxu0
  %v337 = vadd.f32 0.0, %v336
  %v338 = vpop.f32.mrf.mxu0
  %339 = vmatprep.mubr.f32.mxu0 0.0
  %340 = vmatmul.mubr.f32.gmra.mxu0 %v99
  %v341 = vpop.f32.mrf.mxu0
  %v342 = vadd.f32 0.0, %v341
  %v343 = vpop.f32.mrf.mxu0
  %344 = vmatprep.mubr.f32.mxu0 0.0
  %345 = vmatmul.mubr.f32.gmra.mxu0 %v100
  %v346 = vpop.f32.mrf.mxu0
  %v347 = vadd.f32 0.0, %v346
  %v348 = vpop.f32.mrf.mxu0
  %349 = vmatprep.mubr.f32.mxu0 0.0
  %350 = vmatmul.mubr.f32.gmra.mxu0 %v101
  %v351 = vpop.f32.mrf.mxu0
  %v352 = vadd.f32 0.0, %v351
  %v353 = vpop.f32.mrf.mxu0
  %354 = vmatprep.mubr.f32.mxu0 0.0
  %355 = vmatmul.mubr.f32.gmra.mxu0 %v102
  %v356 = vpop.f32.mrf.mxu0
  %v357 = vadd.f32 0.0, %v356
  %v358 = vpop.f32.mrf.mxu0
  %359 = vmatprep.mubr.f32.mxu0 0.0
  %360 = vmatmul.mubr.f32.gmra.mxu0 %v103
  %v361 = vpop.f32.mrf.mxu0
  %v362 = vadd.f32 0.0, %v361
  %v363 = vpop.f32.mrf.mxu0
  %364 = vmatprep.mubr.f32.mxu0 0.0
  %365 = vmatmul.mubr.f32.gmra.mxu0 %v104
  %v366 = vpop.f32.mrf.mxu0
  %v367 = vadd.f32 0.0, %v366
  %v368 = vpop.f32.mrf.mxu0
  %369 = vmatprep.mubr.f32.mxu0 0.0
  %370 = vmatmul.mubr.f32.gmra.mxu0 %v105
  %v371 = vpop.f32.mrf.mxu0
  %v372 = vadd.f32 0.0, %v371
  %v373 = vpop.f32.mrf.mxu0
  %374 = vmatprep.mubr.f32.mxu0 0.0
  %375 = vmatmul.mubr.f32.gmra.mxu0 %v106
  %v376 = vpop.f32.mrf.mxu0
  %v377 = vadd.f32 0.0, %v376
  %v378 = vpop.f32.mrf.mxu0
  %379 = vmatprep.mubr.f32.mxu0 0.0
  %380 = vmatmul.mubr.f32.gmra.mxu0 %v107
  %v381 = vpop.f32.mrf.mxu0
  %v382 = vadd.f32 0.0, %v381
  %v383 = vpop.f32.mrf.mxu0
  %384 = vmatprep.mubr.f32.mxu0 0.0
  %385 = vmatmul.mubr.f32.gmra.mxu0 %v108
  %v386 = vpop.f32.mrf.mxu0
  %v387 = vadd.f32 0.0, %v386
  %v388 = vpop.f32.mrf.mxu0
  %389 = vmatprep.mubr.f32.mxu0 0.0
  %390 = vmatmul.mubr.f32.gmra.mxu0 %v109
  %v391 = vpop.f32.mrf.mxu0
  %v392 = vadd.f32 0.0, %v391
  %v393 = vpop.f32.mrf.mxu0
  %394 = vmatprep.mubr.f32.mxu0 0.0
  %395 = vmatmul.mubr.f32.gmra.mxu0 %v110
  %v396 = vpop.f32.mrf.mxu0
  %v397 = vadd.f32 0.0, %v396
  %v398 = vpop.f32.mrf.mxu0
  %399 = vmatprep.mubr.f32.mxu0 0.0
  %400 = vmatmul.mubr.f32.gmra.mxu0 %v111
  %v401 = vpop.f32.mrf.mxu0
  %v402 = vadd.f32 0.0, %v401
  %v403 = vpop.f32.mrf.mxu0
  %404 = vmatprep.mubr.f32.mxu0 0.0
  %405 = vmatmul.mubr.f32.gmra.mxu0 %v112
  %v406 = vpop.f32.mrf.mxu0
  %v407 = vadd.f32 0.0, %v406
  %v408 = vpop.f32.mrf.mxu0
  %409 = vmatprep.mubr.f32.mxu0 0.0
  %410 = vmatmul.mubr.f32.gmra.mxu0 %v113
  %v411 = vpop.f32.mrf.mxu0
  %v412 = vadd.f32 0.0, %v411
  %v413 = vpop.f32.mrf.mxu0
  %414 = vmatprep.mubr.f32.mxu0 0.0
  %415 = vmatmul.mubr.f32.gmra.mxu0 %v114
  %v416 = vpop.f32.mrf.mxu0
  %v417 = vadd.f32 0.0, %v416
  %v418 = vpop.f32.mrf.mxu0
  %419 = vmatprep.mubr.f32.mxu0 0.0
  %420 = vmatmul.mubr.f32.gmra.mxu0 %v115
  %v421 = vpop.f32.mrf.mxu0
  %v422 = vadd.f32 0.0, %v421
  %v423 = vpop.f32.mrf.mxu0
  %424 = vmatprep.mubr.f32.mxu0 0.0
  %425 = vmatmul.mubr.f32.gmra.mxu0 %v116
  %v426 = vpop.f32.mrf.mxu0
  %v427 = vadd.f32 0.0, %v426
  %v428 = vpop.f32.mrf.mxu0
  %429 = vmatprep.mubr.f32.mxu0 0.0
  %430 = vmatmul.mubr.f32.gmra.mxu0 %v117
  %v431 = vpop.f32.mrf.mxu0
  %v432 = vadd.f32 0.0, %v431
  %v433 = vpop.f32.mrf.mxu0
  %434 = vmatprep.mubr.f32.mxu0 0.0
  %435 = vmatmul.mubr.f32.gmra.mxu0 %v118
  %v436 = vpop.f32.mrf.mxu0
  %v437 = vadd.f32 0.0, %v436
  %v438 = vpop.f32.mrf.mxu0
  %439 = vmatprep.mubr.f32.mxu0 0.0
  %440 = vmatmul.mubr.f32.gmra.mxu0 %v119
  %v441 = vpop.f32.mrf.mxu0
  %v442 = vadd.f32 0.0, %v441
  %v443 = vpop.f32.mrf.mxu0
  %444 = vmatprep.mubr.f32.mxu0 0.0
  %445 = vmatmul.mubr.f32.gmra.mxu0 %v120
  %v446 = vpop.f32.mrf.mxu0
  %v447 = vadd.f32 0.0, %v446
  %v448 = vpop.f32.mrf.mxu0
  %449 = vmatprep.mubr.f32.mxu0 0.0
  %450 = vmatmul.mubr.f32.gmra.mxu0 %v121
  %v451 = vpop.f32.mrf.mxu0
  %v452 = vadd.f32 0.0, %v451
  %v453 = vpop.f32.mrf.mxu0
  %454 = vmatprep.mubr.f32.mxu0 0.0
  %455 = vmatmul.mubr.f32.gmra.mxu0 %v122
  %v456 = vpop.f32.mrf.mxu0
  %v457 = vadd.f32 0.0, %v456
  %v458 = vpop.f32.mrf.mxu0
  %459 = vmatprep.mubr.f32.mxu0 0.0
  %460 = vmatmul.mubr.f32.gmra.mxu0 %v123
  %v461 = vpop.f32.mrf.mxu0
  %v462 = vadd.f32 0.0, %v461
  %v463 = vpop.f32.mrf.mxu0
  %464 = vmatprep.mubr.f32.mxu0 0.0
  %465 = vmatmul.mubr.f32.gmra.mxu0 %v124
  %v466 = vpop.f32.mrf.mxu0
  %v467 = vadd.f32 0.0, %v466
  %v468 = vpop.f32.mrf.mxu0
  %469 = vmatprep.mubr.f32.mxu0 0.0
  %470 = vmatmul.mubr.f32.gmra.mxu0 %v125
  %v471 = vpop.f32.mrf.mxu0
  %v472 = vadd.f32 0.0, %v471
  %v473 = vpop.f32.mrf.mxu0
  %474 = vmatprep.mubr.f32.mxu0 0.0
  %475 = vmatmul.mubr.f32.gmra.mxu0 %v126
  %v476 = vpop.f32.mrf.mxu0
  %v477 = vadd.f32 0.0, %v476
  %v478 = vpop.f32.mrf.mxu0
  %479 = vmatprep.mubr.f32.mxu0 0.0
  %480 = vmatmul.mubr.f32.gmra.mxu0 %v127
  %v481 = vpop.f32.mrf.mxu0
  %v482 = vadd.f32 0.0, %v481
  %v483 = vpop.f32.mrf.mxu0
  %484 = vmatprep.mubr.f32.mxu0 0.0
  %485 = vmatmul.mubr.f32.gmra.mxu0 %v128
  %v486 = vpop.f32.mrf.mxu0
  %v487 = vadd.f32 0.0, %v486
  %v488 = vpop.f32.mrf.mxu0
  %489 = vmatprep.mubr.f32.mxu0 0.0
  %490 = vmatmul.mubr.f32.gmra.mxu0 %v129
  %v491 = vpop.f32.mrf.mxu0
  %v492 = vadd.f32 0.0, %v491
  %v493 = vpop.f32.mrf.mxu0
  %494 = vmatprep.mubr.f32.mxu0 0.0
  %495 = vmatmul.mubr.f32.gmra.mxu0 %v130
  %v496 = vpop.f32.mrf.mxu0
  %v497 = vadd.f32 0.0, %v496
  %v498 = vpop.f32.mrf.mxu0
  %499 = vmatprep.mubr.f32.mxu0 0.0
  %500 = vmatmul.mubr.f32.gmra.mxu0 %v131
  %v501 = vpop.f32.mrf.mxu0
  %v502 = vadd.f32 0.0, %v501
  %v503 = vpop.f32.mrf.mxu0
  %504 = vmatprep.mubr.f32.mxu0 0.0
  %505 = vmatmul.mubr.f32.gmra.mxu0 %v132
  %v506 = vpop.f32.mrf.mxu0
  %v507 = vadd.f32 0.0, %v506
  %v508 = vpop.f32.mrf.mxu0
  %509 = vmatprep.mubr.f32.mxu0 0.0
  %510 = vmatmul.mubr.f32.gmra.mxu0 %v133
  %v511 = vpop.f32.mrf.mxu0
  %v512 = vadd.f32 0.0, %v511
  %v513 = vpop.f32.mrf.mxu0
  %514 = vmatprep.mubr.f32.mxu0 0.0
  %515 = vmatmul.mubr.f32.gmra.mxu0 %v134
  %v516 = vpop.f32.mrf.mxu0
  %v517 = vadd.f32 0.0, %v516
  %v518 = vpop.f32.mrf.mxu0
  %519 = vmatprep.mubr.f32.mxu0 0.0
  %520 = vmatmul.mubr.f32.gmra.mxu0 %v135
  %v521 = vpop.f32.mrf.mxu0
  %v522 = vadd.f32 0.0, %v521
  %v523 = vpop.f32.mrf.mxu0
  %524 = vmatprep.mubr.f32.mxu0 0.0
  %525 = vmatmul.mubr.f32.gmra.mxu0 %v136
  %v526 = vpop.f32.mrf.mxu0
  %v527 = vadd.f32 0.0, %v526
  %v528 = vpop.f32.mrf.mxu0
  %529 = vmatprep.mubr.f32.mxu0 0.0
  %530 = vmatmul.mubr.f32.gmra.mxu0 %v137
  %v531 = vpop.f32.mrf.mxu0
  %v532 = vadd.f32 0.0, %v531
  %v533 = vpop.f32.mrf.mxu0
  %534 = vmatprep.mubr.f32.mxu0 0.0
  %535 = vmatmul.mubr.f32.gmra.mxu0 %v138
  %v536 = vpop.f32.mrf.mxu0
  %v537 = vadd.f32 0.0, %v536
  %v538 = vpop.f32.mrf.mxu0
  %539 = vdwg.mxu0
  %v540 = vmul.f32 %v222, 0.0001
  %v541 = vmul.f32 %v227, 0.0001
  %v542 = vmul.f32 %v232, 0.0001
  %v543 = vmul.f32 %v237, 0.0001
  %v544 = vmul.f32 %v242, 0.0001
  %v545 = vmul.f32 %v247, 0.0001
  %v546 = vmul.f32 %v252, 0.0001
  %v547 = vmul.f32 %v257, 0.0001
  %v548 = vmul.f32 %v262, 0.0001
  %v549 = vmul.f32 %v267, 0.0001
  %v550 = vmul.f32 %v272, 0.0001
  %v551 = vmul.f32 %v277, 0.0001
  %v552 = vmul.f32 %v282, 0.0001
  %v553 = vmul.f32 %v287, 0.0001
  %v554 = vmul.f32 %v292, 0.0001
  %v555 = vmul.f32 %v297, 0.0001
  %v556 = vmul.f32 %v302, 0.0001
  %v557 = vmul.f32 %v307, 0.0001
  %v558 = vmul.f32 %v312, 0.0001
  %v559 = vmul.f32 %v317, 0.0001
  %v560 = vmul.f32 %v322, 0.0001
  %v561 = vmul.f32 %v327, 0.0001
  %v562 = vmul.f32 %v332, 0.0001
  %v563 = vmul.f32 %v337, 0.0001
  %v564 = vmul.f32 %v342, 0.0001
  %v565 = vmul.f32 %v347, 0.0001
  %v566 = vmul.f32 %v352, 0.0001
  %v567 = vmul.f32 %v357, 0.0001
  %v568 = vmul.f32 %v362, 0.0001
  %v569 = vmul.f32 %v367, 0.0001
  %v570 = vmul.f32 %v372, 0.0001
  %v571 = vmul.f32 %v377, 0.0001
  %v572 = vmul.f32 %v382, 0.0001
  %v573 = vmul.f32 %v387, 0.0001
  %v574 = vmul.f32 %v392, 0.0001
  %v575 = vmul.f32 %v397, 0.0001
  %v576 = vmul.f32 %v402, 0.0001
  %v577 = vmul.f32 %v407, 0.0001
  %v578 = vmul.f32 %v412, 0.0001
  %v579 = vmul.f32 %v417, 0.0001
  %v580 = vmul.f32 %v422, 0.0001
  %v581 = vmul.f32 %v427, 0.0001
  %v582 = vmul.f32 %v432, 0.0001
  %v583 = vmul.f32 %v437, 0.0001
  %v584 = vmul.f32 %v442, 0.0001
  %v585 = vmul.f32 %v447, 0.0001
  %v586 = vmul.f32 %v452, 0.0001
  %v587 = vmul.f32 %v457, 0.0001
  %v588 = vmul.f32 %v462, 0.0001
  %v589 = vmul.f32 %v467, 0.0001
  %v590 = vmul.f32 %v472, 0.0001
  %v591 = vmul.f32 %v477, 0.0001
  %v592 = vmul.f32 %v482, 0.0001
  %v593 = vmul.f32 %v487, 0.0001
  %v594 = vmul.f32 %v492, 0.0001
  %v595 = vmul.f32 %v497, 0.0001
  %v596 = vmul.f32 %v502, 0.0001
  %v597 = vmul.f32 %v507, 0.0001
  %v598 = vmul.f32 %v512, 0.0001
  %v599 = vmul.f32 %v517, 0.0001
  %v600 = vmul.f32 %v522, 0.0001
  %v601 = vmul.f32 %v527, 0.0001
  %v602 = vmul.f32 %v532, 0.0001
  %v603 = vmul.f32 %v537, 0.0001
  %v604 = vadd.f32 %v540, 2.0
  %v605 = vadd.f32 %v541, 2.0
  %v606 = vadd.f32 %v542, 2.0
  %v607 = vadd.f32 %v543, 2.0
  %v608 = vadd.f32 %v544, 2.0
  %v609 = vadd.f32 %v545, 2.0
  %v610 = vadd.f32 %v546, 2.0
  %v611 = vadd.f32 %v547, 2.0
  %v612 = vadd.f32 %v548, 2.0
  %v613 = vadd.f32 %v549, 2.0
  %v614 = vadd.f32 %v550, 2.0
  %v615 = vadd.f32 %v551, 2.0
  %v616 = vadd.f32 %v552, 2.0
  %v617 = vadd.f32 %v553, 2.0
  %v618 = vadd.f32 %v554, 2.0
  %v619 = vadd.f32 %v555, 2.0
  %v620 = vadd.f32 %v556, 2.0
  %v621 = vadd.f32 %v557, 2.0
  %v622 = vadd.f32 %v558, 2.0
  %v623 = vadd.f32 %v559, 2.0
  %v624 = vadd.f32 %v560, 2.0
  %v625 = vadd.f32 %v561, 2.0
  %v626 = vadd.f32 %v562, 2.0
  %v627 = vadd.f32 %v563, 2.0
  %v628 = vadd.f32 %v564, 2.0
  %v629 = vadd.f32 %v565, 2.0
  %v630 = vadd.f32 %v566, 2.0
  %v631 = vadd.f32 %v567, 2.0
  %v632 = vadd.f32 %v568, 2.0
  %v633 = vadd.f32 %v569, 2.0
  %v634 = vadd.f32 %v570, 2.0
  %v635 = vadd.f32 %v571, 2.0
  %v636 = vadd.f32 %v572, 2.0
  %v637 = vadd.f32 %v573, 2.0
  %v638 = vadd.f32 %v574, 2.0
  %v639 = vadd.f32 %v575, 2.0
  %v640 = vadd.f32 %v576, 2.0
  %v641 = vadd.f32 %v577, 2.0
  %v642 = vadd.f32 %v578, 2.0
  %v643 = vadd.f32 %v579, 2.0
  %v644 = vadd.f32 %v580, 2.0
  %v645 = vadd.f32 %v581, 2.0
  %v646 = vadd.f32 %v582, 2.0
  %v647 = vadd.f32 %v583, 2.0
  %v648 = vadd.f32 %v584, 2.0
  %v649 = vadd.f32 %v585, 2.0
  %v650 = vadd.f32 %v586, 2.0
  %v651 = vadd.f32 %v587, 2.0
  %v652 = vadd.f32 %v588, 2.0
  %v653 = vadd.f32 %v589, 2.0
  %v654 = vadd.f32 %v590, 2.0
  %v655 = vadd.f32 %v591, 2.0
  %v656 = vadd.f32 %v592, 2.0
  %v657 = vadd.f32 %v593, 2.0
  %v658 = vadd.f32 %v594, 2.0
  %v659 = vadd.f32 %v595, 2.0
  %v660 = vadd.f32 %v596, 2.0
  %v661 = vadd.f32 %v597, 2.0
  %v662 = vadd.f32 %v598, 2.0
  %v663 = vadd.f32 %v599, 2.0
  %v664 = vadd.f32 %v600, 2.0
  %v665 = vadd.f32 %v601, 2.0
  %v666 = vadd.f32 %v602, 2.0
  %v667 = vadd.f32 %v603, 2.0
  %v668 = vrsqrt.pop %v604
  %v669 = vrsqrt.pop %v605
  %v670 = vrsqrt.pop %v606
  %v671 = vrsqrt.pop %v607
  %v672 = vrsqrt.pop %v608
  %v673 = vrsqrt.pop %v609
  %v674 = vrsqrt.pop %v610
  %v675 = vrsqrt.pop %v611
  %v676 = vrsqrt.pop %v612
  %v677 = vrsqrt.pop %v613
  %v678 = vrsqrt.pop %v614
  %v679 = vrsqrt.pop %v615
  %v680 = vrsqrt.pop %v616
  %v681 = vrsqrt.pop %v617
  %v682 = vrsqrt.pop %v618
  %v683 = vrsqrt.pop %v619
  %v684 = vrsqrt.pop %v620
  %v685 = vrsqrt.pop %v621
  %v686 = vrsqrt.pop %v622
  %v687 = vrsqrt.pop %v623
  %v688 = vrsqrt.pop %v624
  %v689 = vrsqrt.pop %v625
  %v690 = vrsqrt.pop %v626
  %v691 = vrsqrt.pop %v627
  %v692 = vrsqrt.pop %v628
  %v693 = vrsqrt.pop %v629
  %v694 = vrsqrt.pop %v630
  %v695 = vrsqrt.pop %v631
  %v696 = vrsqrt.pop %v632
  %v697 = vrsqrt.pop %v633
  %v698 = vrsqrt.pop %v634
  %v699 = vrsqrt.pop %v635
  %v700 = vrsqrt.pop %v636
  %v701 = vrsqrt.pop %v637
  %v702 = vrsqrt.pop %v638
  %v703 = vrsqrt.pop %v639
  %v704 = vrsqrt.pop %v640
  %v705 = vrsqrt.pop %v641
  %v706 = vrsqrt.pop %v642
  %v707 = vrsqrt.pop %v643
  %v708 = vrsqrt.pop %v644
  %v709 = vrsqrt.pop %v645
  %v710 = vrsqrt.pop %v646
  %v711 = vrsqrt.pop %v647
  %v712 = vrsqrt.pop %v648
  %v713 = vrsqrt.pop %v649
  %v714 = vrsqrt.pop %v650
  %v715 = vrsqrt.pop %v651
  %v716 = vrsqrt.pop %v652
  %v717 = vrsqrt.pop %v653
  %v718 = vrsqrt.pop %v654
  %v719 = vrsqrt.pop %v655
  %v720 = vrsqrt.pop %v656
  %v721 = vrsqrt.pop %v657
  %v722 = vrsqrt.pop %v658
  %v723 = vrsqrt.pop %v659
  %v724 = vrsqrt.pop %v660
  %v725 = vrsqrt.pop %v661
  %v726 = vrsqrt.pop %v662
  %v727 = vrsqrt.pop %v663
  %v728 = vrsqrt.pop %v664
  %v729 = vrsqrt.pop %v665
  %v730 = vrsqrt.pop %v666
  %v731 = vrsqrt.pop %v667
  %v732 = vrsqrt.pop %v668
  %v733 = vmul.f32 %v668, %v732
  %vm734 = vcmp.eq.f32.partialorder %v668, inf
  %v735 = vsel %vm734, %v668, %v733
  %vm736 = vcmp.eq.f32.partialorder %v668, 0.0
  %v737 = vand.u32 %v668, 2147483648
  %v738 = vsel %vm736, %v737, %v735
  %v739 = vrsqrt.pop %v669
  %v740 = vmul.f32 %v669, %v739
  %vm741 = vcmp.eq.f32.partialorder %v669, inf
  %v742 = vsel %vm741, %v669, %v740
  %vm743 = vcmp.eq.f32.partialorder %v669, 0.0
  %v744 = vand.u32 %v669, 2147483648
  %v745 = vsel %vm743, %v744, %v742
  %v746 = vrsqrt.pop %v670
  %v747 = vmul.f32 %v670, %v746
  %vm748 = vcmp.eq.f32.partialorder %v670, inf
  %v749 = vsel %vm748, %v670, %v747
  %vm750 = vcmp.eq.f32.partialorder %v670, 0.0
  %v751 = vand.u32 %v670, 2147483648
  %v752 = vsel %vm750, %v751, %v749
  %v753 = vrsqrt.pop %v671
  %v754 = vmul.f32 %v671, %v753
  %vm755 = vcmp.eq.f32.partialorder %v671, inf
  %v756 = vsel %vm755, %v671, %v754
  %vm757 = vcmp.eq.f32.partialorder %v671, 0.0
  %v758 = vand.u32 %v671, 2147483648
  %v759 = vsel %vm757, %v758, %v756
  %v760 = vrsqrt.pop %v672
  %v761 = vmul.f32 %v672, %v760
  %vm762 = vcmp.eq.f32.partialorder %v672, inf
  %v763 = vsel %vm762, %v672, %v761
  %vm764 = vcmp.eq.f32.partialorder %v672, 0.0
  %v765 = vand.u32 %v672, 2147483648
  %v766 = vsel %vm764, %v765, %v763
  %v767 = vrsqrt.pop %v673
  %v768 = vmul.f32 %v673, %v767
  %vm769 = vcmp.eq.f32.partialorder %v673, inf
  %v770 = vsel %vm769, %v673, %v768
  %vm771 = vcmp.eq.f32.partialorder %v673, 0.0
  %v772 = vand.u32 %v673, 2147483648
  %v773 = vsel %vm771, %v772, %v770
  %v774 = vrsqrt.pop %v674
  %v775 = vmul.f32 %v674, %v774
  %vm776 = vcmp.eq.f32.partialorder %v674, inf
  %v777 = vsel %vm776, %v674, %v775
  %vm778 = vcmp.eq.f32.partialorder %v674, 0.0
  %v779 = vand.u32 %v674, 2147483648
  %v780 = vsel %vm778, %v779, %v777
  %v781 = vrsqrt.pop %v675
  %v782 = vmul.f32 %v675, %v781
  %vm783 = vcmp.eq.f32.partialorder %v675, inf
  %v784 = vsel %vm783, %v675, %v782
  %vm785 = vcmp.eq.f32.partialorder %v675, 0.0
  %v786 = vand.u32 %v675, 2147483648
  %v787 = vsel %vm785, %v786, %v784
  %v788 = vrsqrt.pop %v676
  %v789 = vmul.f32 %v676, %v788
  %vm790 = vcmp.eq.f32.partialorder %v676, inf
  %v791 = vsel %vm790, %v676, %v789
  %vm792 = vcmp.eq.f32.partialorder %v676, 0.0
  %v793 = vand.u32 %v676, 2147483648
  %v794 = vsel %vm792, %v793, %v791
  %v795 = vrsqrt.pop %v677
  %v796 = vmul.f32 %v677, %v795
  %vm797 = vcmp.eq.f32.partialorder %v677, inf
  %v798 = vsel %vm797, %v677, %v796
  %vm799 = vcmp.eq.f32.partialorder %v677, 0.0
  %v800 = vand.u32 %v677, 2147483648
  %v801 = vsel %vm799, %v800, %v798
  %v802 = vrsqrt.pop %v678
  %v803 = vmul.f32 %v678, %v802
  %vm804 = vcmp.eq.f32.partialorder %v678, inf
  %v805 = vsel %vm804, %v678, %v803
  %vm806 = vcmp.eq.f32.partialorder %v678, 0.0
  %v807 = vand.u32 %v678, 2147483648
  %v808 = vsel %vm806, %v807, %v805
  %v809 = vrsqrt.pop %v679
  %v810 = vmul.f32 %v679, %v809
  %vm811 = vcmp.eq.f32.partialorder %v679, inf
  %v812 = vsel %vm811, %v679, %v810
  %vm813 = vcmp.eq.f32.partialorder %v679, 0.0
  %v814 = vand.u32 %v679, 2147483648
  %v815 = vsel %vm813, %v814, %v812
  %v816 = vrsqrt.pop %v680
  %v817 = vmul.f32 %v680, %v816
  %vm818 = vcmp.eq.f32.partialorder %v680, inf
  %v819 = vsel %vm818, %v680, %v817
  %vm820 = vcmp.eq.f32.partialorder %v680, 0.0
  %v821 = vand.u32 %v680, 2147483648
  %v822 = vsel %vm820, %v821, %v819
  %v823 = vrsqrt.pop %v681
  %v824 = vmul.f32 %v681, %v823
  %vm825 = vcmp.eq.f32.partialorder %v681, inf
  %v826 = vsel %vm825, %v681, %v824
  %vm827 = vcmp.eq.f32.partialorder %v681, 0.0
  %v828 = vand.u32 %v681, 2147483648
  %v829 = vsel %vm827, %v828, %v826
  %v830 = vrsqrt.pop %v682
  %v831 = vmul.f32 %v682, %v830
  %vm832 = vcmp.eq.f32.partialorder %v682, inf
  %v833 = vsel %vm832, %v682, %v831
  %vm834 = vcmp.eq.f32.partialorder %v682, 0.0
  %v835 = vand.u32 %v682, 2147483648
  %v836 = vsel %vm834, %v835, %v833
  %v837 = vrsqrt.pop %v683
  %v838 = vmul.f32 %v683, %v837
  %vm839 = vcmp.eq.f32.partialorder %v683, inf
  %v840 = vsel %vm839, %v683, %v838
  %vm841 = vcmp.eq.f32.partialorder %v683, 0.0
  %v842 = vand.u32 %v683, 2147483648
  %v843 = vsel %vm841, %v842, %v840
  %v844 = vrsqrt.pop %v684
  %v845 = vmul.f32 %v684, %v844
  %vm846 = vcmp.eq.f32.partialorder %v684, inf
  %v847 = vsel %vm846, %v684, %v845
  %vm848 = vcmp.eq.f32.partialorder %v684, 0.0
  %v849 = vand.u32 %v684, 2147483648
  %v850 = vsel %vm848, %v849, %v847
  %v851 = vrsqrt.pop %v685
  %v852 = vmul.f32 %v685, %v851
  %vm853 = vcmp.eq.f32.partialorder %v685, inf
  %v854 = vsel %vm853, %v685, %v852
  %vm855 = vcmp.eq.f32.partialorder %v685, 0.0
  %v856 = vand.u32 %v685, 2147483648
  %v857 = vsel %vm855, %v856, %v854
  %v858 = vrsqrt.pop %v686
  %v859 = vmul.f32 %v686, %v858
  %vm860 = vcmp.eq.f32.partialorder %v686, inf
  %v861 = vsel %vm860, %v686, %v859
  %vm862 = vcmp.eq.f32.partialorder %v686, 0.0
  %v863 = vand.u32 %v686, 2147483648
  %v864 = vsel %vm862, %v863, %v861
  %v865 = vrsqrt.pop %v687
  %v866 = vmul.f32 %v687, %v865
  %vm867 = vcmp.eq.f32.partialorder %v687, inf
  %v868 = vsel %vm867, %v687, %v866
  %vm869 = vcmp.eq.f32.partialorder %v687, 0.0
  %v870 = vand.u32 %v687, 2147483648
  %v871 = vsel %vm869, %v870, %v868
  %v872 = vrsqrt.pop %v688
  %v873 = vmul.f32 %v688, %v872
  %vm874 = vcmp.eq.f32.partialorder %v688, inf
  %v875 = vsel %vm874, %v688, %v873
  %vm876 = vcmp.eq.f32.partialorder %v688, 0.0
  %v877 = vand.u32 %v688, 2147483648
  %v878 = vsel %vm876, %v877, %v875
  %v879 = vrsqrt.pop %v689
  %v880 = vmul.f32 %v689, %v879
  %vm881 = vcmp.eq.f32.partialorder %v689, inf
  %v882 = vsel %vm881, %v689, %v880
  %vm883 = vcmp.eq.f32.partialorder %v689, 0.0
  %v884 = vand.u32 %v689, 2147483648
  %v885 = vsel %vm883, %v884, %v882
  %v886 = vrsqrt.pop %v690
  %v887 = vmul.f32 %v690, %v886
  %vm888 = vcmp.eq.f32.partialorder %v690, inf
  %v889 = vsel %vm888, %v690, %v887
  %vm890 = vcmp.eq.f32.partialorder %v690, 0.0
  %v891 = vand.u32 %v690, 2147483648
  %v892 = vsel %vm890, %v891, %v889
  %v893 = vrsqrt.pop %v691
  %v894 = vmul.f32 %v691, %v893
  %vm895 = vcmp.eq.f32.partialorder %v691, inf
  %v896 = vsel %vm895, %v691, %v894
  %vm897 = vcmp.eq.f32.partialorder %v691, 0.0
  %v898 = vand.u32 %v691, 2147483648
  %v899 = vsel %vm897, %v898, %v896
  %v900 = vrsqrt.pop %v692
  %v901 = vmul.f32 %v692, %v900
  %vm902 = vcmp.eq.f32.partialorder %v692, inf
  %v903 = vsel %vm902, %v692, %v901
  %vm904 = vcmp.eq.f32.partialorder %v692, 0.0
  %v905 = vand.u32 %v692, 2147483648
  %v906 = vsel %vm904, %v905, %v903
  %v907 = vrsqrt.pop %v693
  %v908 = vmul.f32 %v693, %v907
  %vm909 = vcmp.eq.f32.partialorder %v693, inf
  %v910 = vsel %vm909, %v693, %v908
  %vm911 = vcmp.eq.f32.partialorder %v693, 0.0
  %v912 = vand.u32 %v693, 2147483648
  %v913 = vsel %vm911, %v912, %v910
  %v914 = vrsqrt.pop %v694
  %v915 = vmul.f32 %v694, %v914
  %vm916 = vcmp.eq.f32.partialorder %v694, inf
  %v917 = vsel %vm916, %v694, %v915
  %vm918 = vcmp.eq.f32.partialorder %v694, 0.0
  %v919 = vand.u32 %v694, 2147483648
  %v920 = vsel %vm918, %v919, %v917
  %v921 = vrsqrt.pop %v695
  %v922 = vmul.f32 %v695, %v921
  %vm923 = vcmp.eq.f32.partialorder %v695, inf
  %v924 = vsel %vm923, %v695, %v922
  %vm925 = vcmp.eq.f32.partialorder %v695, 0.0
  %v926 = vand.u32 %v695, 2147483648
  %v927 = vsel %vm925, %v926, %v924
  %v928 = vrsqrt.pop %v696
  %v929 = vmul.f32 %v696, %v928
  %vm930 = vcmp.eq.f32.partialorder %v696, inf
  %v931 = vsel %vm930, %v696, %v929
  %vm932 = vcmp.eq.f32.partialorder %v696, 0.0
  %v933 = vand.u32 %v696, 2147483648
  %v934 = vsel %vm932, %v933, %v931
  %v935 = vrsqrt.pop %v697
  %v936 = vmul.f32 %v697, %v935
  %vm937 = vcmp.eq.f32.partialorder %v697, inf
  %v938 = vsel %vm937, %v697, %v936
  %vm939 = vcmp.eq.f32.partialorder %v697, 0.0
  %v940 = vand.u32 %v697, 2147483648
  %v941 = vsel %vm939, %v940, %v938
  %v942 = vrsqrt.pop %v698
  %v943 = vmul.f32 %v698, %v942
  %vm944 = vcmp.eq.f32.partialorder %v698, inf
  %v945 = vsel %vm944, %v698, %v943
  %vm946 = vcmp.eq.f32.partialorder %v698, 0.0
  %v947 = vand.u32 %v698, 2147483648
  %v948 = vsel %vm946, %v947, %v945
  %v949 = vrsqrt.pop %v699
  %v950 = vmul.f32 %v699, %v949
  %vm951 = vcmp.eq.f32.partialorder %v699, inf
  %v952 = vsel %vm951, %v699, %v950
  %vm953 = vcmp.eq.f32.partialorder %v699, 0.0
  %v954 = vand.u32 %v699, 2147483648
  %v955 = vsel %vm953, %v954, %v952
  %v956 = vrsqrt.pop %v700
  %v957 = vmul.f32 %v700, %v956
  %vm958 = vcmp.eq.f32.partialorder %v700, inf
  %v959 = vsel %vm958, %v700, %v957
  %vm960 = vcmp.eq.f32.partialorder %v700, 0.0
  %v961 = vand.u32 %v700, 2147483648
  %v962 = vsel %vm960, %v961, %v959
  %v963 = vrsqrt.pop %v701
  %v964 = vmul.f32 %v701, %v963
  %vm965 = vcmp.eq.f32.partialorder %v701, inf
  %v966 = vsel %vm965, %v701, %v964
  %vm967 = vcmp.eq.f32.partialorder %v701, 0.0
  %v968 = vand.u32 %v701, 2147483648
  %v969 = vsel %vm967, %v968, %v966
  %v970 = vrsqrt.pop %v702
  %v971 = vmul.f32 %v702, %v970
  %vm972 = vcmp.eq.f32.partialorder %v702, inf
  %v973 = vsel %vm972, %v702, %v971
  %vm974 = vcmp.eq.f32.partialorder %v702, 0.0
  %v975 = vand.u32 %v702, 2147483648
  %v976 = vsel %vm974, %v975, %v973
  %v977 = vrsqrt.pop %v703
  %v978 = vmul.f32 %v703, %v977
  %vm979 = vcmp.eq.f32.partialorder %v703, inf
  %v980 = vsel %vm979, %v703, %v978
  %vm981 = vcmp.eq.f32.partialorder %v703, 0.0
  %v982 = vand.u32 %v703, 2147483648
  %v983 = vsel %vm981, %v982, %v980
  %v984 = vrsqrt.pop %v704
  %v985 = vmul.f32 %v704, %v984
  %vm986 = vcmp.eq.f32.partialorder %v704, inf
  %v987 = vsel %vm986, %v704, %v985
  %vm988 = vcmp.eq.f32.partialorder %v704, 0.0
  %v989 = vand.u32 %v704, 2147483648
  %v990 = vsel %vm988, %v989, %v987
  %v991 = vrsqrt.pop %v705
  %v992 = vmul.f32 %v705, %v991
  %vm993 = vcmp.eq.f32.partialorder %v705, inf
  %v994 = vsel %vm993, %v705, %v992
  %vm995 = vcmp.eq.f32.partialorder %v705, 0.0
  %v996 = vand.u32 %v705, 2147483648
  %v997 = vsel %vm995, %v996, %v994
  %v998 = vrsqrt.pop %v706
  %v999 = vmul.f32 %v706, %v998
  %vm1000 = vcmp.eq.f32.partialorder %v706, inf
  %v1001 = vsel %vm1000, %v706, %v999
  %vm1002 = vcmp.eq.f32.partialorder %v706, 0.0
  %v1003 = vand.u32 %v706, 2147483648
  %v1004 = vsel %vm1002, %v1003, %v1001
  %v1005 = vrsqrt.pop %v707
  %v1006 = vmul.f32 %v707, %v1005
  %vm1007 = vcmp.eq.f32.partialorder %v707, inf
  %v1008 = vsel %vm1007, %v707, %v1006
  %vm1009 = vcmp.eq.f32.partialorder %v707, 0.0
  %v1010 = vand.u32 %v707, 2147483648
  %v1011 = vsel %vm1009, %v1010, %v1008
  %v1012 = vrsqrt.pop %v708
  %v1013 = vmul.f32 %v708, %v1012
  %vm1014 = vcmp.eq.f32.partialorder %v708, inf
  %v1015 = vsel %vm1014, %v708, %v1013
  %vm1016 = vcmp.eq.f32.partialorder %v708, 0.0
  %v1017 = vand.u32 %v708, 2147483648
  %v1018 = vsel %vm1016, %v1017, %v1015
  %v1019 = vrsqrt.pop %v709
  %v1020 = vmul.f32 %v709, %v1019
  %vm1021 = vcmp.eq.f32.partialorder %v709, inf
  %v1022 = vsel %vm1021, %v709, %v1020
  %vm1023 = vcmp.eq.f32.partialorder %v709, 0.0
  %v1024 = vand.u32 %v709, 2147483648
  %v1025 = vsel %vm1023, %v1024, %v1022
  %v1026 = vrsqrt.pop %v710
  %v1027 = vmul.f32 %v710, %v1026
  %vm1028 = vcmp.eq.f32.partialorder %v710, inf
  %v1029 = vsel %vm1028, %v710, %v1027
  %vm1030 = vcmp.eq.f32.partialorder %v710, 0.0
  %v1031 = vand.u32 %v710, 2147483648
  %v1032 = vsel %vm1030, %v1031, %v1029
  %v1033 = vrsqrt.pop %v711
  %v1034 = vmul.f32 %v711, %v1033
  %vm1035 = vcmp.eq.f32.partialorder %v711, inf
  %v1036 = vsel %vm1035, %v711, %v1034
  %vm1037 = vcmp.eq.f32.partialorder %v711, 0.0
  %v1038 = vand.u32 %v711, 2147483648
  %v1039 = vsel %vm1037, %v1038, %v1036
  %v1040 = vrsqrt.pop %v712
  %v1041 = vmul.f32 %v712, %v1040
  %vm1042 = vcmp.eq.f32.partialorder %v712, inf
  %v1043 = vsel %vm1042, %v712, %v1041
  %vm1044 = vcmp.eq.f32.partialorder %v712, 0.0
  %v1045 = vand.u32 %v712, 2147483648
  %v1046 = vsel %vm1044, %v1045, %v1043
  %v1047 = vrsqrt.pop %v713
  %v1048 = vmul.f32 %v713, %v1047
  %vm1049 = vcmp.eq.f32.partialorder %v713, inf
  %v1050 = vsel %vm1049, %v713, %v1048
  %vm1051 = vcmp.eq.f32.partialorder %v713, 0.0
  %v1052 = vand.u32 %v713, 2147483648
  %v1053 = vsel %vm1051, %v1052, %v1050
  %v1054 = vrsqrt.pop %v714
  %v1055 = vmul.f32 %v714, %v1054
  %vm1056 = vcmp.eq.f32.partialorder %v714, inf
  %v1057 = vsel %vm1056, %v714, %v1055
  %vm1058 = vcmp.eq.f32.partialorder %v714, 0.0
  %v1059 = vand.u32 %v714, 2147483648
  %v1060 = vsel %vm1058, %v1059, %v1057
  %v1061 = vrsqrt.pop %v715
  %v1062 = vmul.f32 %v715, %v1061
  %vm1063 = vcmp.eq.f32.partialorder %v715, inf
  %v1064 = vsel %vm1063, %v715, %v1062
  %vm1065 = vcmp.eq.f32.partialorder %v715, 0.0
  %v1066 = vand.u32 %v715, 2147483648
  %v1067 = vsel %vm1065, %v1066, %v1064
  %v1068 = vrsqrt.pop %v716
  %v1069 = vmul.f32 %v716, %v1068
  %vm1070 = vcmp.eq.f32.partialorder %v716, inf
  %v1071 = vsel %vm1070, %v716, %v1069
  %vm1072 = vcmp.eq.f32.partialorder %v716, 0.0
  %v1073 = vand.u32 %v716, 2147483648
  %v1074 = vsel %vm1072, %v1073, %v1071
  %v1075 = vrsqrt.pop %v717
  %v1076 = vmul.f32 %v717, %v1075
  %vm1077 = vcmp.eq.f32.partialorder %v717, inf
  %v1078 = vsel %vm1077, %v717, %v1076
  %vm1079 = vcmp.eq.f32.partialorder %v717, 0.0
  %v1080 = vand.u32 %v717, 2147483648
  %v1081 = vsel %vm1079, %v1080, %v1078
  %v1082 = vrsqrt.pop %v718
  %v1083 = vmul.f32 %v718, %v1082
  %vm1084 = vcmp.eq.f32.partialorder %v718, inf
  %v1085 = vsel %vm1084, %v718, %v1083
  %vm1086 = vcmp.eq.f32.partialorder %v718, 0.0
  %v1087 = vand.u32 %v718, 2147483648
  %v1088 = vsel %vm1086, %v1087, %v1085
  %v1089 = vrsqrt.pop %v719
  %v1090 = vmul.f32 %v719, %v1089
  %vm1091 = vcmp.eq.f32.partialorder %v719, inf
  %v1092 = vsel %vm1091, %v719, %v1090
  %vm1093 = vcmp.eq.f32.partialorder %v719, 0.0
  %v1094 = vand.u32 %v719, 2147483648
  %v1095 = vsel %vm1093, %v1094, %v1092
  %v1096 = vrsqrt.pop %v720
  %v1097 = vmul.f32 %v720, %v1096
  %vm1098 = vcmp.eq.f32.partialorder %v720, inf
  %v1099 = vsel %vm1098, %v720, %v1097
  %vm1100 = vcmp.eq.f32.partialorder %v720, 0.0
  %v1101 = vand.u32 %v720, 2147483648
  %v1102 = vsel %vm1100, %v1101, %v1099
  %v1103 = vrsqrt.pop %v721
  %v1104 = vmul.f32 %v721, %v1103
  %vm1105 = vcmp.eq.f32.partialorder %v721, inf
  %v1106 = vsel %vm1105, %v721, %v1104
  %vm1107 = vcmp.eq.f32.partialorder %v721, 0.0
  %v1108 = vand.u32 %v721, 2147483648
  %v1109 = vsel %vm1107, %v1108, %v1106
  %v1110 = vrsqrt.pop %v722
  %v1111 = vmul.f32 %v722, %v1110
  %vm1112 = vcmp.eq.f32.partialorder %v722, inf
  %v1113 = vsel %vm1112, %v722, %v1111
  %vm1114 = vcmp.eq.f32.partialorder %v722, 0.0
  %v1115 = vand.u32 %v722, 2147483648
  %v1116 = vsel %vm1114, %v1115, %v1113
  %v1117 = vrsqrt.pop %v723
  %v1118 = vmul.f32 %v723, %v1117
  %vm1119 = vcmp.eq.f32.partialorder %v723, inf
  %v1120 = vsel %vm1119, %v723, %v1118
  %vm1121 = vcmp.eq.f32.partialorder %v723, 0.0
  %v1122 = vand.u32 %v723, 2147483648
  %v1123 = vsel %vm1121, %v1122, %v1120
  %v1124 = vrsqrt.pop %v724
  %v1125 = vmul.f32 %v724, %v1124
  %vm1126 = vcmp.eq.f32.partialorder %v724, inf
  %v1127 = vsel %vm1126, %v724, %v1125
  %vm1128 = vcmp.eq.f32.partialorder %v724, 0.0
  %v1129 = vand.u32 %v724, 2147483648
  %v1130 = vsel %vm1128, %v1129, %v1127
  %v1131 = vrsqrt.pop %v725
  %v1132 = vmul.f32 %v725, %v1131
  %vm1133 = vcmp.eq.f32.partialorder %v725, inf
  %v1134 = vsel %vm1133, %v725, %v1132
  %vm1135 = vcmp.eq.f32.partialorder %v725, 0.0
  %v1136 = vand.u32 %v725, 2147483648
  %v1137 = vsel %vm1135, %v1136, %v1134
  %v1138 = vrsqrt.pop %v726
  %v1139 = vmul.f32 %v726, %v1138
  %vm1140 = vcmp.eq.f32.partialorder %v726, inf
  %v1141 = vsel %vm1140, %v726, %v1139
  %vm1142 = vcmp.eq.f32.partialorder %v726, 0.0
  %v1143 = vand.u32 %v726, 2147483648
  %v1144 = vsel %vm1142, %v1143, %v1141
  %v1145 = vrsqrt.pop %v727
  %v1146 = vmul.f32 %v727, %v1145
  %vm1147 = vcmp.eq.f32.partialorder %v727, inf
  %v1148 = vsel %vm1147, %v727, %v1146
  %vm1149 = vcmp.eq.f32.partialorder %v727, 0.0
  %v1150 = vand.u32 %v727, 2147483648
  %v1151 = vsel %vm1149, %v1150, %v1148
  %v1152 = vrsqrt.pop %v728
  %v1153 = vmul.f32 %v728, %v1152
  %vm1154 = vcmp.eq.f32.partialorder %v728, inf
  %v1155 = vsel %vm1154, %v728, %v1153
  %vm1156 = vcmp.eq.f32.partialorder %v728, 0.0
  %v1157 = vand.u32 %v728, 2147483648
  %v1158 = vsel %vm1156, %v1157, %v1155
  %v1159 = vrsqrt.pop %v729
  %v1160 = vmul.f32 %v729, %v1159
  %vm1161 = vcmp.eq.f32.partialorder %v729, inf
  %v1162 = vsel %vm1161, %v729, %v1160
  %vm1163 = vcmp.eq.f32.partialorder %v729, 0.0
  %v1164 = vand.u32 %v729, 2147483648
  %v1165 = vsel %vm1163, %v1164, %v1162
  %v1166 = vrsqrt.pop %v730
  %v1167 = vmul.f32 %v730, %v1166
  %vm1168 = vcmp.eq.f32.partialorder %v730, inf
  %v1169 = vsel %vm1168, %v730, %v1167
  %vm1170 = vcmp.eq.f32.partialorder %v730, 0.0
  %v1171 = vand.u32 %v730, 2147483648
  %v1172 = vsel %vm1170, %v1171, %v1169
  %v1173 = vrsqrt.pop %v731
  %v1174 = vmul.f32 %v731, %v1173
  %vm1175 = vcmp.eq.f32.partialorder %v731, inf
  %v1176 = vsel %vm1175, %v731, %v1174
  %vm1177 = vcmp.eq.f32.partialorder %v731, 0.0
  %v1178 = vand.u32 %v731, 2147483648
  %v1179 = vsel %vm1177, %v1178, %v1176
  %v1180 = vmul.f32 %v668, %v738
  %v1181 = vmul.f32 %v669, %v745
  %v1182 = vmul.f32 %v670, %v752
  %v1183 = vmul.f32 %v671, %v759
  %v1184 = vmul.f32 %v672, %v766
  %v1185 = vmul.f32 %v673, %v773
  %v1186 = vmul.f32 %v674, %v780
  %v1187 = vmul.f32 %v675, %v787
  %v1188 = vmul.f32 %v676, %v794
  %v1189 = vmul.f32 %v677, %v801
  %v1190 = vmul.f32 %v678, %v808
  %v1191 = vmul.f32 %v679, %v815
  %v1192 = vmul.f32 %v680, %v822
  %v1193 = vmul.f32 %v681, %v829
  %v1194 = vmul.f32 %v682, %v836
  %v1195 = vmul.f32 %v683, %v843
  %v1196 = vmul.f32 %v684, %v850
  %v1197 = vmul.f32 %v685, %v857
  %v1198 = vmul.f32 %v686, %v864
  %v1199 = vmul.f32 %v687, %v871
  %v1200 = vmul.f32 %v688, %v878
  %v1201 = vmul.f32 %v689, %v885
  %v1202 = vmul.f32 %v690, %v892
  %v1203 = vmul.f32 %v691, %v899
  %v1204 = vmul.f32 %v692, %v906
  %v1205 = vmul.f32 %v693, %v913
  %v1206 = vmul.f32 %v694, %v920
  %v1207 = vmul.f32 %v695, %v927
  %v1208 = vmul.f32 %v696, %v934
  %v1209 = vmul.f32 %v697, %v941
  %v1210 = vmul.f32 %v698, %v948
  %v1211 = vmul.f32 %v699, %v955
  %v1212 = vmul.f32 %v700, %v962
  %v1213 = vmul.f32 %v701, %v969
  %v1214 = vmul.f32 %v702, %v976
  %v1215 = vmul.f32 %v703, %v983
  %v1216 = vmul.f32 %v704, %v990
  %v1217 = vmul.f32 %v705, %v997
  %v1218 = vmul.f32 %v706, %v1004
  %v1219 = vmul.f32 %v707, %v1011
  %v1220 = vmul.f32 %v708, %v1018
  %v1221 = vmul.f32 %v709, %v1025
  %v1222 = vmul.f32 %v710, %v1032
  %v1223 = vmul.f32 %v711, %v1039
  %v1224 = vmul.f32 %v712, %v1046
  %v1225 = vmul.f32 %v713, %v1053
  %v1226 = vmul.f32 %v714, %v1060
  %v1227 = vmul.f32 %v715, %v1067
  %v1228 = vmul.f32 %v716, %v1074
  %v1229 = vmul.f32 %v717, %v1081
  %v1230 = vmul.f32 %v718, %v1088
  %v1231 = vmul.f32 %v719, %v1095
  %v1232 = vmul.f32 %v720, %v1102
  %v1233 = vmul.f32 %v721, %v1109
  %v1234 = vmul.f32 %v722, %v1116
  %v1235 = vmul.f32 %v723, %v1123
  %v1236 = vmul.f32 %v724, %v1130
  %v1237 = vmul.f32 %v725, %v1137
  %v1238 = vmul.f32 %v726, %v1144
  %v1239 = vmul.f32 %v727, %v1151
  %v1240 = vmul.f32 %v728, %v1158
  %v1241 = vmul.f32 %v729, %v1165
  %v1242 = vmul.f32 %v730, %v1172
  %v1243 = vmul.f32 %v731, %v1179
  %v1244 = vmul.f32 %v11, %v1180
  %v1245 = vmul.f32 %v12, %v1181
  %v1246 = vmul.f32 %v13, %v1182
  %v1247 = vmul.f32 %v14, %v1183
  %v1248 = vmul.f32 %v15, %v1184
  %v1249 = vmul.f32 %v16, %v1185
  %v1250 = vmul.f32 %v17, %v1186
  %v1251 = vmul.f32 %v18, %v1187
  %v1252 = vmul.f32 %v19, %v1188
  %v1253 = vmul.f32 %v20, %v1189
  %v1254 = vmul.f32 %v21, %v1190
  %v1255 = vmul.f32 %v22, %v1191
  %v1256 = vmul.f32 %v23, %v1192
  %v1257 = vmul.f32 %v24, %v1193
  %v1258 = vmul.f32 %v25, %v1194
  %v1259 = vmul.f32 %v26, %v1195
  %v1260 = vmul.f32 %v27, %v1196
  %v1261 = vmul.f32 %v28, %v1197
  %v1262 = vmul.f32 %v29, %v1198
  %v1263 = vmul.f32 %v30, %v1199
  %v1264 = vmul.f32 %v31, %v1200
  %v1265 = vmul.f32 %v32, %v1201
  %v1266 = vmul.f32 %v33, %v1202
  %v1267 = vmul.f32 %v34, %v1203
  %v1268 = vmul.f32 %v35, %v1204
  %v1269 = vmul.f32 %v36, %v1205
  %v1270 = vmul.f32 %v37, %v1206
  %v1271 = vmul.f32 %v38, %v1207
  %v1272 = vmul.f32 %v39, %v1208
  %v1273 = vmul.f32 %v40, %v1209
  %v1274 = vmul.f32 %v41, %v1210
  %v1275 = vmul.f32 %v42, %v1211
  %v1276 = vmul.f32 %v43, %v1212
  %v1277 = vmul.f32 %v44, %v1213
  %v1278 = vmul.f32 %v45, %v1214
  %v1279 = vmul.f32 %v46, %v1215
  %v1280 = vmul.f32 %v47, %v1216
  %v1281 = vmul.f32 %v48, %v1217
  %v1282 = vmul.f32 %v49, %v1218
  %v1283 = vmul.f32 %v50, %v1219
  %v1284 = vmul.f32 %v51, %v1220
  %v1285 = vmul.f32 %v52, %v1221
  %v1286 = vmul.f32 %v53, %v1222
  %v1287 = vmul.f32 %v54, %v1223
  %v1288 = vmul.f32 %v55, %v1224
  %v1289 = vmul.f32 %v56, %v1225
  %v1290 = vmul.f32 %v57, %v1226
  %v1291 = vmul.f32 %v58, %v1227
  %v1292 = vmul.f32 %v59, %v1228
  %v1293 = vmul.f32 %v60, %v1229
  %v1294 = vmul.f32 %v61, %v1230
  %v1295 = vmul.f32 %v62, %v1231
  %v1296 = vmul.f32 %v63, %v1232
  %v1297 = vmul.f32 %v64, %v1233
  %v1298 = vmul.f32 %v65, %v1234
  %v1299 = vmul.f32 %v66, %v1235
  %v1300 = vmul.f32 %v67, %v1236
  %v1301 = vmul.f32 %v68, %v1237
  %v1302 = vmul.f32 %v69, %v1238
  %v1303 = vmul.f32 %v70, %v1239
  %v1304 = vmul.f32 %v71, %v1240
  %v1305 = vmul.f32 %v72, %v1241
  %v1306 = vmul.f32 %v73, %v1242
  %v1307 = vmul.f32 %v74, %v1243
  %1308 = vst [vmem:[%s2] sm:$0xff] %v1244
  %1309 = vst [vmem:[%s2 + $0x8] sm:$0xff] %v1245
  %1310 = vst [vmem:[%s2 + $0x10] sm:$0xff] %v1246
  %1311 = vst [vmem:[%s2 + $0x18] sm:$0xff] %v1247
  %1312 = vst [vmem:[%s2 + $0x20] sm:$0xff] %v1248
  %1313 = vst [vmem:[%s2 + $0x28] sm:$0xff] %v1249
  %1314 = vst [vmem:[%s2 + $0x30] sm:$0xff] %v1250
  %1315 = vst [vmem:[%s2 + $0x38] sm:$0xff] %v1251
  %1316 = vst [vmem:[%s2 + $0x40] sm:$0xff] %v1252
  %1317 = vst [vmem:[%s2 + $0x48] sm:$0xff] %v1253
  %1318 = vst [vmem:[%s2 + $0x50] sm:$0xff] %v1254
  %1319 = vst [vmem:[%s2 + $0x58] sm:$0xff] %v1255
  %1320 = vst [vmem:[%s2 + $0x60] sm:$0xff] %v1256
  %1321 = vst [vmem:[%s2 + $0x68] sm:$0xff] %v1257
  %1322 = vst [vmem:[%s2 + $0x70] sm:$0xff] %v1258
  %1323 = vst [vmem:[%s2 + $0x78] sm:$0xff] %v1259
  %1324 = vst [vmem:[%s2 + $0x80] sm:$0xff] %v1260
  %1325 = vst [vmem:[%s2 + $0x88] sm:$0xff] %v1261
  %1326 = vst [vmem:[%s2 + $0x90] sm:$0xff] %v1262
  %1327 = vst [vmem:[%s2 + $0x98] sm:$0xff] %v1263
  %1328 = vst [vmem:[%s2 + $0xa0] sm:$0xff] %v1264
  %1329 = vst [vmem:[%s2 + $0xa8] sm:$0xff] %v1265
  %1330 = vst [vmem:[%s2 + $0xb0] sm:$0xff] %v1266
  %1331 = vst [vmem:[%s2 + $0xb8] sm:$0xff] %v1267
  %1332 = vst [vmem:[%s2 + $0xc0] sm:$0xff] %v1268
  %1333 = vst [vmem:[%s2 + $0xc8] sm:$0xff] %v1269
  %1334 = vst [vmem:[%s2 + $0xd0] sm:$0xff] %v1270
  %1335 = vst [vmem:[%s2 + $0xd8] sm:$0xff] %v1271
  %1336 = vst [vmem:[%s2 + $0xe0] sm:$0xff] %v1272
  %1337 = vst [vmem:[%s2 + $0xe8] sm:$0xff] %v1273
  %1338 = vst [vmem:[%s2 + $0xf0] sm:$0xff] %v1274
  %1339 = vst [vmem:[%s2 + $0xf8] sm:$0xff] %v1275
  %1340 = vst [vmem:[%s2 + $0x100] sm:$0xff] %v1276
  %1341 = vst [vmem:[%s2 + $0x108] sm:$0xff] %v1277
  %1342 = vst [vmem:[%s2 + $0x110] sm:$0xff] %v1278
  %1343 = vst [vmem:[%s2 + $0x118] sm:$0xff] %v1279
  %1344 = vst [vmem:[%s2 + $0x120] sm:$0xff] %v1280
  %1345 = vst [vmem:[%s2 + $0x128] sm:$0xff] %v1281
  %1346 = vst [vmem:[%s2 + $0x130] sm:$0xff] %v1282
  %1347 = vst [vmem:[%s2 + $0x138] sm:$0xff] %v1283
  %1348 = vst [vmem:[%s2 + $0x140] sm:$0xff] %v1284
  %1349 = vst [vmem:[%s2 + $0x148] sm:$0xff] %v1285
  %1350 = vst [vmem:[%s2 + $0x150] sm:$0xff] %v1286
  %1351 = vst [vmem:[%s2 + $0x158] sm:$0xff] %v1287
  %1352 = vst [vmem:[%s2 + $0x160] sm:$0xff] %v1288
  %1353 = vst [vmem:[%s2 + $0x168] sm:$0xff] %v1289
  %1354 = vst [vmem:[%s2 + $0x170] sm:$0xff] %v1290
  %1355 = vst [vmem:[%s2 + $0x178] sm:$0xff] %v1291
  %1356 = vst [vmem:[%s2 + $0x180] sm:$0xff] %v1292
  %1357 = vst [vmem:[%s2 + $0x188] sm:$0xff] %v1293
  %1358 = vst [vmem:[%s2 + $0x190] sm:$0xff] %v1294
  %1359 = vst [vmem:[%s2 + $0x198] sm:$0xff] %v1295
  %1360 = vst [vmem:[%s2 + $0x1a0] sm:$0xff] %v1296
  %1361 = vst [vmem:[%s2 + $0x1a8] sm:$0xff] %v1297
  %1362 = vst [vmem:[%s2 + $0x1b0] sm:$0xff] %v1298
  %1363 = vst [vmem:[%s2 + $0x1b8] sm:$0xff] %v1299
  %1364 = vst [vmem:[%s2 + $0x1c0] sm:$0xff] %v1300
  %1365 = vst [vmem:[%s2 + $0x1c8] sm:$0xff] %v1301
  %1366 = vst [vmem:[%s2 + $0x1d0] sm:$0xff] %v1302
  %1367 = vst [vmem:[%s2 + $0x1d8] sm:$0xff] %v1303
  %1368 = vst [vmem:[%s2 + $0x1e0] sm:$0xff] %v1304
  %1369 = vst [vmem:[%s2 + $0x1e8] sm:$0xff] %v1305
  %1370 = vst [vmem:[%s2 + $0x1f0] sm:$0xff] %v1306
  %1371 = vst [vmem:[%s2 + $0x1f8] sm:$0xff] %v1307
  // Predicated region
  $region10: #{vpgnet_forward.23} parent=0 // pred_check
    _
  $region11: #{vpgnet_forward.23} parent=0 // pred_check_branch
    %1373 = sbr.rel (0) target = $region13
  $region12: #{vpgnet_forward.23} parent=0 // pred_region
    _
  $region13: #{vpgnet_forward.23} parent=0 // pred_fallthru
    _
  // Predicated region
  $region14: #{vpgnet_forward.23} parent=0 // pred_check
    _
  $region15: #{vpgnet_forward.23} parent=0 // pred_check_branch
    %1375 = sbr.rel (0) target = $region17
  $region16: #{vpgnet_forward.23} parent=0 // pred_region
    _
  $region17: #{vpgnet_forward.23} parent=0 // pred_fallthru
    _

// kernel: vpgnet_forward.24
$region0: #{vpgnet_forward.24}
  #allocation0 [shape = 'u32[]', space=smem, size = 0x4, offset = 0x4, fixed_abs, tag = 'smem constant byte address 0x4 - core index']
  #allocation1 [shape = 'u32[144,128]{1,0:T(1,128)}', space=vmem, size = 0x12000, scoped, tag = 'internal scratch']
  %s0 = inlined_call_operand.vmem [shape: f32[3,256,128], index: 0, kind: input, shape index: {}]
  %s1 = inlined_call_operand.vmem [shape: f32[256,128], index: 1, kind: output, shape index: {}]
  %s2 = sld [smem:[#allocation0]]
  $region14: #{vpgnet_forward.24} parent=0
    _
  %s4 = ssub.s32 1, %s2
  %s5 = scalar_select 0, %s4, %s2
  // Predicated region
  $region2: #{vpgnet_forward.24} parent=0 // pred_check
    _
  $region3: #{vpgnet_forward.24} parent=0 // pred_check_branch
    %7 = sbr.rel (0) target = $region5
  $region4: #{vpgnet_forward.24} parent=0 // pred_region
    _
  $region5: #{vpgnet_forward.24} parent=0 // pred_fallthru
    _
  %v8 = vld [vmem:[%s0] sm:$0xff]
  %v9 = vld [vmem:[%s0 + $0x8] sm:$0xff]
  %v10 = vld [vmem:[%s0 + $0x10] sm:$0xff]
  %v11 = vld [vmem:[%s0 + $0x18] sm:$0xff]
  %v12 = vld [vmem:[%s0 + $0x20] sm:$0xff]
  %v13 = vld [vmem:[%s0 + $0x28] sm:$0xff]
  %v14 = vld [vmem:[%s0 + $0x30] sm:$0xff]
  %v15 = vld [vmem:[%s0 + $0x38] sm:$0xff]
  %v16 = vld [vmem:[%s0 + $0x40] sm:$0xff]
  %v17 = vld [vmem:[%s0 + $0x48] sm:$0xff]
  %v18 = vld [vmem:[%s0 + $0x50] sm:$0xff]
  %v19 = vld [vmem:[%s0 + $0x58] sm:$0xff]
  %v20 = vld [vmem:[%s0 + $0x60] sm:$0xff]
  %v21 = vld [vmem:[%s0 + $0x68] sm:$0xff]
  %v22 = vld [vmem:[%s0 + $0x70] sm:$0xff]
  %v23 = vld [vmem:[%s0 + $0x78] sm:$0xff]
  %v24 = vld [vmem:[%s0 + $0x80] sm:$0xff]
  %v25 = vld [vmem:[%s0 + $0x88] sm:$0xff]
  %v26 = vld [vmem:[%s0 + $0x90] sm:$0xff]
  %v27 = vld [vmem:[%s0 + $0x98] sm:$0xff]
  %v28 = vld [vmem:[%s0 + $0xa0] sm:$0xff]
  %v29 = vld [vmem:[%s0 + $0xa8] sm:$0xff]
  %v30 = vld [vmem:[%s0 + $0xb0] sm:$0xff]
  %v31 = vld [vmem:[%s0 + $0xb8] sm:$0xff]
  %v32 = vld [vmem:[%s0 + $0xc0] sm:$0xff]
  %v33 = vld [vmem:[%s0 + $0xc8] sm:$0xff]
  %v34 = vld [vmem:[%s0 + $0xd0] sm:$0xff]
  %v35 = vld [vmem:[%s0 + $0xd8] sm:$0xff]
  %v36 = vld [vmem:[%s0 + $0xe0] sm:$0xff]
  %v37 = vld [vmem:[%s0 + $0xe8] sm:$0xff]
  %v38 = vld [vmem:[%s0 + $0xf0] sm:$0xff]
  %v39 = vld [vmem:[%s0 + $0xf8] sm:$0xff]
  %s40 = scalar_lea.vmem %s0, 256
  %v41 = vld [vmem:[%s40] sm:$0xff]
  %v42 = vld [vmem:[%s40 + $0x8] sm:$0xff]
  %v43 = vld [vmem:[%s40 + $0x10] sm:$0xff]
  %v44 = vld [vmem:[%s40 + $0x18] sm:$0xff]
  %v45 = vld [vmem:[%s40 + $0x20] sm:$0xff]
  %v46 = vld [vmem:[%s40 + $0x28] sm:$0xff]
  %v47 = vld [vmem:[%s40 + $0x30] sm:$0xff]
  %v48 = vld [vmem:[%s40 + $0x38] sm:$0xff]
  %v49 = vld [vmem:[%s40 + $0x40] sm:$0xff]
  %v50 = vld [vmem:[%s40 + $0x48] sm:$0xff]
  %v51 = vld [vmem:[%s40 + $0x50] sm:$0xff]
  %v52 = vld [vmem:[%s40 + $0x58] sm:$0xff]
  %v53 = vld [vmem:[%s40 + $0x60] sm:$0xff]
  %v54 = vld [vmem:[%s40 + $0x68] sm:$0xff]
  %v55 = vld [vmem:[%s40 + $0x70] sm:$0xff]
  %v56 = vld [vmem:[%s40 + $0x78] sm:$0xff]
  %v57 = vld [vmem:[%s40 + $0x80] sm:$0xff]
  %v58 = vld [vmem:[%s40 + $0x88] sm:$0xff]
  %v59 = vld [vmem:[%s40 + $0x90] sm:$0xff]
  %v60 = vld [vmem:[%s40 + $0x98] sm:$0xff]
  %v61 = vld [vmem:[%s40 + $0xa0] sm:$0xff]
  %v62 = vld [vmem:[%s40 + $0xa8] sm:$0xff]
  %v63 = vld [vmem:[%s40 + $0xb0] sm:$0xff]
  %v64 = vld [vmem:[%s40 + $0xb8] sm:$0xff]
  %v65 = vld [vmem:[%s40 + $0xc0] sm:$0xff]
  %v66 = vld [vmem:[%s40 + $0xc8] sm:$0xff]
  %v67 = vld [vmem:[%s40 + $0xd0] sm:$0xff]
  %v68 = vld [vmem:[%s40 + $0xd8] sm:$0xff]
  %v69 = vld [vmem:[%s40 + $0xe0] sm:$0xff]
  %v70 = vld [vmem:[%s40 + $0xe8] sm:$0xff]
  %v71 = vld [vmem:[%s40 + $0xf0] sm:$0xff]
  %v72 = vld [vmem:[%s40 + $0xf8] sm:$0xff]
  %v73 = vmax.f32 %v8, %v41
  %v74 = vmax.f32 %v9, %v42
  %v75 = vmax.f32 %v10, %v43
  %v76 = vmax.f32 %v11, %v44
  %v77 = vmax.f32 %v12, %v45
  %v78 = vmax.f32 %v13, %v46
  %v79 = vmax.f32 %v14, %v47
  %v80 = vmax.f32 %v15, %v48
  %v81 = vmax.f32 %v16, %v49
  %v82 = vmax.f32 %v17, %v50
  %v83 = vmax.f32 %v18, %v51
  %v84 = vmax.f32 %v19, %v52
  %v85 = vmax.f32 %v20, %v53
  %v86 = vmax.f32 %v21, %v54
  %v87 = vmax.f32 %v22, %v55
  %v88 = vmax.f32 %v23, %v56
  %v89 = vmax.f32 %v24, %v57
  %v90 = vmax.f32 %v25, %v58
  %v91 = vmax.f32 %v26, %v59
  %v92 = vmax.f32 %v27, %v60
  %v93 = vmax.f32 %v28, %v61
  %v94 = vmax.f32 %v29, %v62
  %v95 = vmax.f32 %v30, %v63
  %v96 = vmax.f32 %v31, %v64
  %v97 = vmax.f32 %v32, %v65
  %v98 = vmax.f32 %v33, %v66
  %v99 = vmax.f32 %v34, %v67
  %v100 = vmax.f32 %v35, %v68
  %v101 = vmax.f32 %v36, %v69
  %v102 = vmax.f32 %v37, %v70
  %v103 = vmax.f32 %v38, %v71
  %v104 = vmax.f32 %v39, %v72
  %s105 = scalar_lea.vmem %s0, 512
  %v106 = vld [vmem:[%s105] sm:$0xff]
  %v107 = vld [vmem:[%s105 + $0x8] sm:$0xff]
  %v108 = vld [vmem:[%s105 + $0x10] sm:$0xff]
  %v109 = vld [vmem:[%s105 + $0x18] sm:$0xff]
  %v110 = vld [vmem:[%s105 + $0x20] sm:$0xff]
  %v111 = vld [vmem:[%s105 + $0x28] sm:$0xff]
  %v112 = vld [vmem:[%s105 + $0x30] sm:$0xff]
  %v113 = vld [vmem:[%s105 + $0x38] sm:$0xff]
  %v114 = vld [vmem:[%s105 + $0x40] sm:$0xff]
  %v115 = vld [vmem:[%s105 + $0x48] sm:$0xff]
  %v116 = vld [vmem:[%s105 + $0x50] sm:$0xff]
  %v117 = vld [vmem:[%s105 + $0x58] sm:$0xff]
  %v118 = vld [vmem:[%s105 + $0x60] sm:$0xff]
  %v119 = vld [vmem:[%s105 + $0x68] sm:$0xff]
  %v120 = vld [vmem:[%s105 + $0x70] sm:$0xff]
  %v121 = vld [vmem:[%s105 + $0x78] sm:$0xff]
  %v122 = vld [vmem:[%s105 + $0x80] sm:$0xff]
  %v123 = vld [vmem:[%s105 + $0x88] sm:$0xff]
  %v124 = vld [vmem:[%s105 + $0x90] sm:$0xff]
  %v125 = vld [vmem:[%s105 + $0x98] sm:$0xff]
  %v126 = vld [vmem:[%s105 + $0xa0] sm:$0xff]
  %v127 = vld [vmem:[%s105 + $0xa8] sm:$0xff]
  %v128 = vld [vmem:[%s105 + $0xb0] sm:$0xff]
  %v129 = vld [vmem:[%s105 + $0xb8] sm:$0xff]
  %v130 = vld [vmem:[%s105 + $0xc0] sm:$0xff]
  %v131 = vld [vmem:[%s105 + $0xc8] sm:$0xff]
  %v132 = vld [vmem:[%s105 + $0xd0] sm:$0xff]
  %v133 = vld [vmem:[%s105 + $0xd8] sm:$0xff]
  %v134 = vld [vmem:[%s105 + $0xe0] sm:$0xff]
  %v135 = vld [vmem:[%s105 + $0xe8] sm:$0xff]
  %v136 = vld [vmem:[%s105 + $0xf0] sm:$0xff]
  %v137 = vld [vmem:[%s105 + $0xf8] sm:$0xff]
  %v138 = vmax.f32 %v73, %v106
  %v139 = vmax.f32 %v74, %v107
  %v140 = vmax.f32 %v75, %v108
  %v141 = vmax.f32 %v76, %v109
  %v142 = vmax.f32 %v77, %v110
  %v143 = vmax.f32 %v78, %v111
  %v144 = vmax.f32 %v79, %v112
  %v145 = vmax.f32 %v80, %v113
  %v146 = vmax.f32 %v81, %v114
  %v147 = vmax.f32 %v82, %v115
  %v148 = vmax.f32 %v83, %v116
  %v149 = vmax.f32 %v84, %v117
  %v150 = vmax.f32 %v85, %v118
  %v151 = vmax.f32 %v86, %v119
  %v152 = vmax.f32 %v87, %v120
  %v153 = vmax.f32 %v88, %v121
  %v154 = vmax.f32 %v89, %v122
  %v155 = vmax.f32 %v90, %v123
  %v156 = vmax.f32 %v91, %v124
  %v157 = vmax.f32 %v92, %v125
  %v158 = vmax.f32 %v93, %v126
  %v159 = vmax.f32 %v94, %v127
  %v160 = vmax.f32 %v95, %v128
  %v161 = vmax.f32 %v96, %v129
  %v162 = vmax.f32 %v97, %v130
  %v163 = vmax.f32 %v98, %v131
  %v164 = vmax.f32 %v99, %v132
  %v165 = vmax.f32 %v100, %v133
  %v166 = vmax.f32 %v101, %v134
  %v167 = vmax.f32 %v102, %v135
  %v168 = vmax.f32 %v103, %v136
  %v169 = vmax.f32 %v104, %v137
  %170 = vst [vmem:[%s1] sm:$0xff] %v138
  %171 = vst [vmem:[%s1 + $0x8] sm:$0xff] %v139
  %172 = vst [vmem:[%s1 + $0x10] sm:$0xff] %v140
  %173 = vst [vmem:[%s1 + $0x18] sm:$0xff] %v141
  %174 = vst [vmem:[%s1 + $0x20] sm:$0xff] %v142
  %175 = vst [vmem:[%s1 + $0x28] sm:$0xff] %v143
  %176 = vst [vmem:[%s1 + $0x30] sm:$0xff] %v144
  %177 = vst [vmem:[%s1 + $0x38] sm:$0xff] %v145
  %178 = vst [vmem:[%s1 + $0x40] sm:$0xff] %v146
  %179 = vst [vmem:[%s1 + $0x48] sm:$0xff] %v147
  %180 = vst [vmem:[%s1 + $0x50] sm:$0xff] %v148
  %181 = vst [vmem:[%s1 + $0x58] sm:$0xff] %v149
  %182 = vst [vmem:[%s1 + $0x60] sm:$0xff] %v150
  %183 = vst [vmem:[%s1 + $0x68] sm:$0xff] %v151
  %184 = vst [vmem:[%s1 + $0x70] sm:$0xff] %v152
  %185 = vst [vmem:[%s1 + $0x78] sm:$0xff] %v153
  %186 = vst [vmem:[%s1 + $0x80] sm:$0xff] %v154
  %187 = vst [vmem:[%s1 + $0x88] sm:$0xff] %v155
  %188 = vst [vmem:[%s1 + $0x90] sm:$0xff] %v156
  %189 = vst [vmem:[%s1 + $0x98] sm:$0xff] %v157
  %190 = vst [vmem:[%s1 + $0xa0] sm:$0xff] %v158
  %191 = vst [vmem:[%s1 + $0xa8] sm:$0xff] %v159
  %192 = vst [vmem:[%s1 + $0xb0] sm:$0xff] %v160
  %193 = vst [vmem:[%s1 + $0xb8] sm:$0xff] %v161
  %194 = vst [vmem:[%s1 + $0xc0] sm:$0xff] %v162
  %195 = vst [vmem:[%s1 + $0xc8] sm:$0xff] %v163
  %196 = vst [vmem:[%s1 + $0xd0] sm:$0xff] %v164
  %197 = vst [vmem:[%s1 + $0xd8] sm:$0xff] %v165
  %198 = vst [vmem:[%s1 + $0xe0] sm:$0xff] %v166
  %199 = vst [vmem:[%s1 + $0xe8] sm:$0xff] %v167
  %200 = vst [vmem:[%s1 + $0xf0] sm:$0xff] %v168
  %201 = vst [vmem:[%s1 + $0xf8] sm:$0xff] %v169
  // Predicated region
  $region6: #{vpgnet_forward.24} parent=0 // pred_check
    _
  $region7: #{vpgnet_forward.24} parent=0 // pred_check_branch
    %203 = sbr.rel (0) target = $region9
  $region8: #{vpgnet_forward.24} parent=0 // pred_region
    _
  $region9: #{vpgnet_forward.24} parent=0 // pred_fallthru
    _
  // Predicated region
  $region10: #{vpgnet_forward.24} parent=0 // pred_check
    _
  $region11: #{vpgnet_forward.24} parent=0 // pred_check_branch
    %205 = sbr.rel (0) target = $region13
  $region12: #{vpgnet_forward.24} parent=0 // pred_region
    _
  $region13: #{vpgnet_forward.24} parent=0 // pred_fallthru
    _

// kernel: vpgnet_forward.26
$region0: #{vpgnet_forward.26}
  #allocation0 [shape = 'u32[]', space=smem, size = 0x4, offset = 0x4, fixed_abs, tag = 'smem constant byte address 0x4 - core index']
  #allocation1 [shape = 'u32[144,128]{1,0:T(1,128)}', space=vmem, size = 0x12000, scoped, tag = 'internal scratch']
  #allocation2 [shape = 'f32[384,128]{1,0:T(8,128)}', space=vmem, size = 0x30000, scoped, tag = 'scratch operand']
  %s0 = inlined_call_operand.vmem [shape: bf16[384,1024], index: 0, kind: input, shape index: {}]
  %s1 = inlined_call_operand.vmem [shape: bf16[1024,128], index: 1, kind: input, shape index: {}]
  %s2 = inlined_call_operand.vmem [shape: f32[1,128], index: 2, kind: input, shape index: {}]
  %s3 = inlined_call_operand.vmem [shape: f32[384,128], index: 3, kind: output, shape index: {}]
  %s4 = sld [smem:[#allocation0]]
  $region76: #{vpgnet_forward.26} parent=0
    _
  %s6 = ssub.s32 1, %s4
  %s7 = scalar_select 0, %s6, %s4
  $region1: #{vpgnet_forward.26} parent=0
    #allocation3 [shape = 'u8[786432]{0}', space=vmem, size = 0xc0000, scoped, tag = 'input window, operand 0']
    loop: start=0, step=1, limit=4
    $region2: #{vpgnet_forward.26} parent=1 // loop_pre_header
      _
    $region3: #{vpgnet_forward.26} parent=1 // loop_header
      %s9 = sphi 0, %s13
      %p10 = scmp.ge.s32.totalorder %s9, 4
      %s16 = sphi 0, %s35
      %s17 = sphi 0, %s31
      %s18 = sphi 0, %s27
      %s19 = sphi 0, %s16
      %s20 = sphi 0, %s17
      %s21 = sphi 0, %s18
      %s22 = sphi 0, %s19
      %s23 = sphi 0, %s20
      %s24 = sphi 0, %s21
      %s40 = sphi 0, %s42
      %s43 = sphi 0, %s40
      %s44 = sphi 0, %s43
      %s60 = sphi 0, %s44
      %s68 = sphi 0, %s70
      %s71 = sphi 0, %s68
      %s72 = sphi 0, %s71
      %s88 = sphi 0, %s72
      %s94 = sphi 0, %s96
      %s97 = sphi 0, %s94
      %s98 = sphi 0, %s97
      %s114 = sphi 0, %s98
      %s122 = sphi 0, %s124
      %s125 = sphi 0, %s122
      %s126 = sphi 0, %s125
      %s142 = sphi 0, %s126
    $region4: #{vpgnet_forward.26} parent=1 // loop_header_branch
      %12 = sbr.rel (%p10) target = $region8
    $region5: #{vpgnet_forward.26} parent=1 // loop_body
      %s14 = ssub.s32 %s9, 1
      %s15 = ssub.s32 %s9, 2
      %s25 = sadd.s32 1, %s18
      %p26 = scmp.ge.s32.totalorder %s25, 2
      %s27 = scalar_select %p26, 0, %s25
      %s28 = sadd.s32 1, %s17
      %s29 = scalar_select %p26, %s28, %s17
      %p30 = scmp.ge.s32.totalorder %s29, 1
      %s31 = scalar_select %p30, 0, %s29
      %s32 = sadd.s32 1, %s16
      %s33 = scalar_select %p30, %s32, %s16
      %p34 = scmp.ge.s32.totalorder %s33, 1
      %s35 = scalar_select %p34, 0, %s33
      %s36 = ssub.s32 %s16, %s35
      %s37 = ssub.s32 %s18, %s27
      %s38 = sor.u32 %s36, %s37
      %p39 = scmp.eq.s32.totalorder %s38, 0
      %s41 = sadd.s32 %s40, 1
      %s42 = scalar_select %p39, %s40, %s41
      %p45 = pneg %p39
      %p46 = scmp.eq.s32.totalorder %s9, 1
      %p47 = por %p45, %p46
      %p48 = scmp.ne.s32.totalorder %s40, %s43
      %p49 = scmp.eq.s32.totalorder %s9, 0
      %p50 = por %p48, %p49
      %p51 = scmp.ne.s32.totalorder %s40, %s43
      %p52 = scmp.eq.s32.totalorder %s14, 1
      %p53 = por %p51, %p52
      %p54 = scmp.ne.s32.totalorder %s43, %s44
      %p55 = scmp.eq.s32.totalorder %s14, 0
      %p56 = por %p54, %p55
      %p57 = scmp.ne.s32.totalorder %s43, %s44
      %p58 = scmp.eq.s32.totalorder %s15, 1
      %p59 = por %p57, %p58
      %p61 = scmp.ne.s32.totalorder %s44, %s60
      %p62 = scmp.eq.s32.totalorder %s15, 0
      %p63 = por %p61, %p62
      %s64 = ssub.s32 %s18, %s27
      %s65 = ssub.s32 %s17, %s31
      %s66 = sor.u32 %s64, %s65
      %p67 = scmp.eq.s32.totalorder %s66, 0
      %s69 = sadd.s32 %s68, 1
      %s70 = scalar_select %p67, %s68, %s69
      %p73 = pneg %p67
      %p74 = scmp.eq.s32.totalorder %s9, 1
      %p75 = por %p73, %p74
      %p76 = scmp.ne.s32.totalorder %s68, %s71
      %p77 = scmp.eq.s32.totalorder %s9, 0
      %p78 = por %p76, %p77
      %p79 = scmp.ne.s32.totalorder %s68, %s71
      %p80 = scmp.eq.s32.totalorder %s14, 1
      %p81 = por %p79, %p80
      %p82 = scmp.ne.s32.totalorder %s71, %s72
      %p83 = scmp.eq.s32.totalorder %s14, 0
      %p84 = por %p82, %p83
      %p85 = scmp.ne.s32.totalorder %s71, %s72
      %p86 = scmp.eq.s32.totalorder %s15, 1
      %p87 = por %p85, %p86
      %p89 = scmp.ne.s32.totalorder %s72, %s88
      %p90 = scmp.eq.s32.totalorder %s15, 0
      %p91 = por %p89, %p90
      %s92 = ssub.s32 %s17, %s31
      %p93 = scmp.eq.s32.totalorder %s92, 0
      %s95 = sadd.s32 %s94, 1
      %s96 = scalar_select %p93, %s94, %s95
      %p99 = pneg %p93
      %p100 = scmp.eq.s32.totalorder %s9, 1
      %p101 = por %p99, %p100
      %p102 = scmp.ne.s32.totalorder %s94, %s97
      %p103 = scmp.eq.s32.totalorder %s9, 0
      %p104 = por %p102, %p103
      %p105 = scmp.ne.s32.totalorder %s94, %s97
      %p106 = scmp.eq.s32.totalorder %s14, 1
      %p107 = por %p105, %p106
      %p108 = scmp.ne.s32.totalorder %s97, %s98
      %p109 = scmp.eq.s32.totalorder %s14, 0
      %p110 = por %p108, %p109
      %p111 = scmp.ne.s32.totalorder %s97, %s98
      %p112 = scmp.eq.s32.totalorder %s15, 1
      %p113 = por %p111, %p112
      %p115 = scmp.ne.s32.totalorder %s98, %s114
      %p116 = scmp.eq.s32.totalorder %s15, 0
      %p117 = por %p115, %p116
      %s118 = ssub.s32 %s16, %s35
      %s119 = ssub.s32 %s17, %s31
      %s120 = sor.u32 %s118, %s119
      %p121 = scmp.eq.s32.totalorder %s120, 0
      %s123 = sadd.s32 %s122, 1
      %s124 = scalar_select %p121, %s122, %s123
      %p127 = pneg %p121
      %p128 = scmp.eq.s32.totalorder %s9, 1
      %p129 = por %p127, %p128
      %p130 = scmp.ne.s32.totalorder %s122, %s125
      %p131 = scmp.eq.s32.totalorder %s9, 0
      %p132 = por %p130, %p131
      %p133 = scmp.ne.s32.totalorder %s122, %s125
      %p134 = scmp.eq.s32.totalorder %s14, 1
      %p135 = por %p133, %p134
      %p136 = scmp.ne.s32.totalorder %s125, %s126
      %p137 = scmp.eq.s32.totalorder %s14, 0
      %p138 = por %p136, %p137
      %p139 = scmp.ne.s32.totalorder %s125, %s126
      %p140 = scmp.eq.s32.totalorder %s15, 1
      %p141 = por %p139, %p140
      %p143 = scmp.ne.s32.totalorder %s126, %s142
      %p144 = scmp.eq.s32.totalorder %s15, 0
      %p145 = por %p143, %p144
      %p146 = scmp.le.s32.totalorder 1, %s9
      %p147 = scmp.lt.s32.totalorder %s9, 3
      %p148 = pnand %p146, %p147
      %p149 = pneg %p148
      // Predicated region
      $region9: #{vpgnet_forward.26} parent=5 // pred_check
        _
      $region10: #{vpgnet_forward.26} parent=5 // pred_check_branch
        %151 = sbr.rel (%p148) target = $region12
      $region11: #{vpgnet_forward.26} parent=5 // pred_region
        %s152 = ssub.s32 %s9, 1
        // Predicated region
        $region13: #{vpgnet_forward.26} parent=11 // pred_check
          %p153 = pneg %p110
        $region14: #{vpgnet_forward.26} parent=11 // pred_check_branch
          %155 = sbr.rel (%p153) target = $region16
        $region15: #{vpgnet_forward.26} parent=11 // pred_region
          %p156 = scmp.lt.s32.totalorder %s20, 0
          %s157 = scalar_select %p156, %s20, 0
          %s158 = scalar_lea.vmem %s2, %s157
        $region16: #{vpgnet_forward.26} parent=11 // pred_fallthru
          _
      $region12: #{vpgnet_forward.26} parent=5 // pred_fallthru
        _
      %p159 = scmp.lt.s32.totalorder %s9, 2
      // Predicated region
      $region17: #{vpgnet_forward.26} parent=5 // pred_check
        %p160 = pneg %p159
      $region18: #{vpgnet_forward.26} parent=5 // pred_check_branch
        %162 = sbr.rel (%p160) target = $region20
      $region19: #{vpgnet_forward.26} parent=5 // pred_region
        // Predicated region
        $region21: #{vpgnet_forward.26} parent=19 // pred_check
          %p163 = pneg %p50
        $region22: #{vpgnet_forward.26} parent=19 // pred_check_branch
          %165 = sbr.rel (%p163) target = $region24
        $region23: #{vpgnet_forward.26} parent=19 // pred_region
          %s166 = sand.u32 %s40, 1
          %s167 = sand.u32 %s40, 1
          %s168 = smul.addr %s167, 768
          %s169 = scalar_lea.vmem [#allocation3], %s168
          %s170 = smul.u32 48, %s16
          %s171 = smul.u32 4, %s18
          %s172 = smul.addr %s170, 8
          %s173 = sadd.s32 %s171, %s172
          %s174 = smul.addr %s173, 4
          %s175 = scalar_lea.vmem %s0, %s174
          // Predicated region
          $region25: #{vpgnet_forward.26} parent=23 // pred_check
            _
          $region26: #{vpgnet_forward.26} parent=23 // pred_check_branch
            %177 = sbr.rel (0) target = $region28
          $region27: #{vpgnet_forward.26} parent=23 // pred_region
            // Predicated region
            $region29: #{vpgnet_forward.26} parent=27 // pred_check
              _
            $region30: #{vpgnet_forward.26} parent=27 // pred_check_branch
              %179 = sbr.rel (0) target = $region32
            $region31: #{vpgnet_forward.26} parent=27 // pred_region
              loop: start=0, step=1, limit=1
              $region33: #{vpgnet_forward.26} parent=31 // loop_pre_header
                _
              $region34: #{vpgnet_forward.26} parent=31 // loop_header
                %s181 = sphi 0, %s185
                %p182 = scmp.ge.s32.totalorder %s181, 1
                %s186 = sphi %s175, %s175
                %s187 = sphi %s169, %s169
              $region35: #{vpgnet_forward.26} parent=31 // loop_header_branch
                %184 = sbr.rel (%p182) target = $region39
              $region36: #{vpgnet_forward.26} parent=31 // loop_body
                %v188 = vld [vmem:[%s186] sm:$0xff]
                %189 = vst [vmem:[%s187] sm:$0xff] %v188
                %v190 = vld [vmem:[%s186 + $0x8] sm:$0xff]
                %191 = vst [vmem:[%s187 + $0x8] sm:$0xff] %v190
                %v192 = vld [vmem:[%s186 + $0x20] sm:$0xff]
                %193 = vst [vmem:[%s187 + $0x10] sm:$0xff] %v192
                %v194 = vld [vmem:[%s186 + $0x28] sm:$0xff]
                %195 = vst [vmem:[%s187 + $0x18] sm:$0xff] %v194
                %v196 = vld [vmem:[%s186 + $0x40] sm:$0xff]
                %197 = vst [vmem:[%s187 + $0x20] sm:$0xff] %v196
                %v198 = vld [vmem:[%s186 + $0x48] sm:$0xff]
                %199 = vst [vmem:[%s187 + $0x28] sm:$0xff] %v198
                %v200 = vld [vmem:[%s186 + $0x60] sm:$0xff]
                %201 = vst [vmem:[%s187 + $0x30] sm:$0xff] %v200
                %v202 = vld [vmem:[%s186 + $0x68] sm:$0xff]
                %203 = vst [vmem:[%s187 + $0x38] sm:$0xff] %v202
                %v204 = vld [vmem:[%s186 + $0x80] sm:$0xff]
                %205 = vst [vmem:[%s187 + $0x40] sm:$0xff] %v204
                %v206 = vld [vmem:[%s186 + $0x88] sm:$0xff]
                %207 = vst [vmem:[%s187 + $0x48] sm:$0xff] %v206
                %v208 = vld [vmem:[%s186 + $0xa0] sm:$0xff]
                %209 = vst [vmem:[%s187 + $0x50] sm:$0xff] %v208
                %v210 = vld [vmem:[%s186 + $0xa8] sm:$0xff]
                %211 = vst [vmem:[%s187 + $0x58] sm:$0xff] %v210
                %v212 = vld [vmem:[%s186 + $0xc0] sm:$0xff]
                %213 = vst [vmem:[%s187 + $0x60] sm:$0xff] %v212
                %v214 = vld [vmem:[%s186 + $0xc8] sm:$0xff]
                %215 = vst [vmem:[%s187 + $0x68] sm:$0xff] %v214
                %v216 = vld [vmem:[%s186 + $0xe0] sm:$0xff]
                %217 = vst [vmem:[%s187 + $0x70] sm:$0xff] %v216
                %v218 = vld [vmem:[%s186 + $0xe8] sm:$0xff]
                %219 = vst [vmem:[%s187 + $0x78] sm:$0xff] %v218
                %v220 = vld [vmem:[%s186 + $0x100] sm:$0xff]
                %221 = vst [vmem:[%s187 + $0x80] sm:$0xff] %v220
                %v222 = vld [vmem:[%s186 + $0x108] sm:$0xff]
                %223 = vst [vmem:[%s187 + $0x88] sm:$0xff] %v222
                %v224 = vld [vmem:[%s186 + $0x120] sm:$0xff]
                %225 = vst [vmem:[%s187 + $0x90] sm:$0xff] %v224
                %v226 = vld [vmem:[%s186 + $0x128] sm:$0xff]
                %227 = vst [vmem:[%s187 + $0x98] sm:$0xff] %v226
                %v228 = vld [vmem:[%s186 + $0x140] sm:$0xff]
                %229 = vst [vmem:[%s187 + $0xa0] sm:$0xff] %v228
                %v230 = vld [vmem:[%s186 + $0x148] sm:$0xff]
                %231 = vst [vmem:[%s187 + $0xa8] sm:$0xff] %v230
                %v232 = vld [vmem:[%s186 + $0x160] sm:$0xff]
                %233 = vst [vmem:[%s187 + $0xb0] sm:$0xff] %v232
                %v234 = vld [vmem:[%s186 + $0x168] sm:$0xff]
                %235 = vst [vmem:[%s187 + $0xb8] sm:$0xff] %v234
                %v236 = vld [vmem:[%s186 + $0x180] sm:$0xff]
                %237 = vst [vmem:[%s187 + $0xc0] sm:$0xff] %v236
                %v238 = vld [vmem:[%s186 + $0x188] sm:$0xff]
                %239 = vst [vmem:[%s187 + $0xc8] sm:$0xff] %v238
                %v240 = vld [vmem:[%s186 + $0x1a0] sm:$0xff]
                %241 = vst [vmem:[%s187 + $0xd0] sm:$0xff] %v240
                %v242 = vld [vmem:[%s186 + $0x1a8] sm:$0xff]
                %243 = vst [vmem:[%s187 + $0xd8] sm:$0xff] %v242
                %v244 = vld [vmem:[%s186 + $0x1c0] sm:$0xff]
                %245 = vst [vmem:[%s187 + $0xe0] sm:$0xff] %v244
                %v246 = vld [vmem:[%s186 + $0x1c8] sm:$0xff]
                %247 = vst [vmem:[%s187 + $0xe8] sm:$0xff] %v246
                %v248 = vld [vmem:[%s186 + $0x1e0] sm:$0xff]
                %249 = vst [vmem:[%s187 + $0xf0] sm:$0xff] %v248
                %v250 = vld [vmem:[%s186 + $0x1e8] sm:$0xff]
                %251 = vst [vmem:[%s187 + $0xf8] sm:$0xff] %v250
                %v252 = vld [vmem:[%s186 + $0x200] sm:$0xff]
                %253 = vst [vmem:[%s187 + $0x100] sm:$0xff] %v252
                %v254 = vld [vmem:[%s186 + $0x208] sm:$0xff]
                %255 = vst [vmem:[%s187 + $0x108] sm:$0xff] %v254
                %v256 = vld [vmem:[%s186 + $0x220] sm:$0xff]
                %257 = vst [vmem:[%s187 + $0x110] sm:$0xff] %v256
                %v258 = vld [vmem:[%s186 + $0x228] sm:$0xff]
                %259 = vst [vmem:[%s187 + $0x118] sm:$0xff] %v258
                %v260 = vld [vmem:[%s186 + $0x240] sm:$0xff]
                %261 = vst [vmem:[%s187 + $0x120] sm:$0xff] %v260
                %v262 = vld [vmem:[%s186 + $0x248] sm:$0xff]
                %263 = vst [vmem:[%s187 + $0x128] sm:$0xff] %v262
                %v264 = vld [vmem:[%s186 + $0x260] sm:$0xff]
                %265 = vst [vmem:[%s187 + $0x130] sm:$0xff] %v264
                %v266 = vld [vmem:[%s186 + $0x268] sm:$0xff]
                %267 = vst [vmem:[%s187 + $0x138] sm:$0xff] %v266
                %v268 = vld [vmem:[%s186 + $0x280] sm:$0xff]
                %269 = vst [vmem:[%s187 + $0x140] sm:$0xff] %v268
                %v270 = vld [vmem:[%s186 + $0x288] sm:$0xff]
                %271 = vst [vmem:[%s187 + $0x148] sm:$0xff] %v270
                %v272 = vld [vmem:[%s186 + $0x2a0] sm:$0xff]
                %273 = vst [vmem:[%s187 + $0x150] sm:$0xff] %v272
                %v274 = vld [vmem:[%s186 + $0x2a8] sm:$0xff]
                %275 = vst [vmem:[%s187 + $0x158] sm:$0xff] %v274
                %v276 = vld [vmem:[%s186 + $0x2c0] sm:$0xff]
                %277 = vst [vmem:[%s187 + $0x160] sm:$0xff] %v276
                %v278 = vld [vmem:[%s186 + $0x2c8] sm:$0xff]
                %279 = vst [vmem:[%s187 + $0x168] sm:$0xff] %v278
                %v280 = vld [vmem:[%s186 + $0x2e0] sm:$0xff]
                %281 = vst [vmem:[%s187 + $0x170] sm:$0xff] %v280
                %v282 = vld [vmem:[%s186 + $0x2e8] sm:$0xff]
                %283 = vst [vmem:[%s187 + $0x178] sm:$0xff] %v282
                %v284 = vld [vmem:[%s186 + $0x300] sm:$0xff]
                %285 = vst [vmem:[%s187 + $0x180] sm:$0xff] %v284
                %v286 = vld [vmem:[%s186 + $0x308] sm:$0xff]
                %287 = vst [vmem:[%s187 + $0x188] sm:$0xff] %v286
                %v288 = vld [vmem:[%s186 + $0x320] sm:$0xff]
                %289 = vst [vmem:[%s187 + $0x190] sm:$0xff] %v288
                %v290 = vld [vmem:[%s186 + $0x328] sm:$0xff]
                %291 = vst [vmem:[%s187 + $0x198] sm:$0xff] %v290
                %v292 = vld [vmem:[%s186 + $0x340] sm:$0xff]
                %293 = vst [vmem:[%s187 + $0x1a0] sm:$0xff] %v292
                %v294 = vld [vmem:[%s186 + $0x348] sm:$0xff]
                %295 = vst [vmem:[%s187 + $0x1a8] sm:$0xff] %v294
                %v296 = vld [vmem:[%s186 + $0x360] sm:$0xff]
                %297 = vst [vmem:[%s187 + $0x1b0] sm:$0xff] %v296
                %v298 = vld [vmem:[%s186 + $0x368] sm:$0xff]
                %299 = vst [vmem:[%s187 + $0x1b8] sm:$0xff] %v298
                %v300 = vld [vmem:[%s186 + $0x380] sm:$0xff]
                %301 = vst [vmem:[%s187 + $0x1c0] sm:$0xff] %v300
                %v302 = vld [vmem:[%s186 + $0x388] sm:$0xff]
                %303 = vst [vmem:[%s187 + $0x1c8] sm:$0xff] %v302
                %v304 = vld [vmem:[%s186 + $0x3a0] sm:$0xff]
                %305 = vst [vmem:[%s187 + $0x1d0] sm:$0xff] %v304
                %v306 = vld [vmem:[%s186 + $0x3a8] sm:$0xff]
                %307 = vst [vmem:[%s187 + $0x1d8] sm:$0xff] %v306
                %v308 = vld [vmem:[%s186 + $0x3c0] sm:$0xff]
                %309 = vst [vmem:[%s187 + $0x1e0] sm:$0xff] %v308
                %v310 = vld [vmem:[%s186 + $0x3c8] sm:$0xff]
                %311 = vst [vmem:[%s187 + $0x1e8] sm:$0xff] %v310
                %v312 = vld [vmem:[%s186 + $0x3e0] sm:$0xff]
                %313 = vst [vmem:[%s187 + $0x1f0] sm:$0xff] %v312
                %v314 = vld [vmem:[%s186 + $0x3e8] sm:$0xff]
                %315 = vst [vmem:[%s187 + $0x1f8] sm:$0xff] %v314
                %v316 = vld [vmem:[%s186 + $0x400] sm:$0xff]
                %317 = vst [vmem:[%s187 + $0x200] sm:$0xff] %v316
                %v318 = vld [vmem:[%s186 + $0x408] sm:$0xff]
                %319 = vst [vmem:[%s187 + $0x208] sm:$0xff] %v318
                %v320 = vld [vmem:[%s186 + $0x420] sm:$0xff]
                %321 = vst [vmem:[%s187 + $0x210] sm:$0xff] %v320
                %v322 = vld [vmem:[%s186 + $0x428] sm:$0xff]
                %323 = vst [vmem:[%s187 + $0x218] sm:$0xff] %v322
                %v324 = vld [vmem:[%s186 + $0x440] sm:$0xff]
                %325 = vst [vmem:[%s187 + $0x220] sm:$0xff] %v324
                %v326 = vld [vmem:[%s186 + $0x448] sm:$0xff]
                %327 = vst [vmem:[%s187 + $0x228] sm:$0xff] %v326
                %v328 = vld [vmem:[%s186 + $0x460] sm:$0xff]
                %329 = vst [vmem:[%s187 + $0x230] sm:$0xff] %v328
                %v330 = vld [vmem:[%s186 + $0x468] sm:$0xff]
                %331 = vst [vmem:[%s187 + $0x238] sm:$0xff] %v330
                %v332 = vld [vmem:[%s186 + $0x480] sm:$0xff]
                %333 = vst [vmem:[%s187 + $0x240] sm:$0xff] %v332
                %v334 = vld [vmem:[%s186 + $0x488] sm:$0xff]
                %335 = vst [vmem:[%s187 + $0x248] sm:$0xff] %v334
                %v336 = vld [vmem:[%s186 + $0x4a0] sm:$0xff]
                %337 = vst [vmem:[%s187 + $0x250] sm:$0xff] %v336
                %v338 = vld [vmem:[%s186 + $0x4a8] sm:$0xff]
                %339 = vst [vmem:[%s187 + $0x258] sm:$0xff] %v338
                %v340 = vld [vmem:[%s186 + $0x4c0] sm:$0xff]
                %341 = vst [vmem:[%s187 + $0x260] sm:$0xff] %v340
                %v342 = vld [vmem:[%s186 + $0x4c8] sm:$0xff]
                %343 = vst [vmem:[%s187 + $0x268] sm:$0xff] %v342
                %v344 = vld [vmem:[%s186 + $0x4e0] sm:$0xff]
                %345 = vst [vmem:[%s187 + $0x270] sm:$0xff] %v344
                %v346 = vld [vmem:[%s186 + $0x4e8] sm:$0xff]
                %347 = vst [vmem:[%s187 + $0x278] sm:$0xff] %v346
                %v348 = vld [vmem:[%s186 + $0x500] sm:$0xff]
                %349 = vst [vmem:[%s187 + $0x280] sm:$0xff] %v348
                %v350 = vld [vmem:[%s186 + $0x508] sm:$0xff]
                %351 = vst [vmem:[%s187 + $0x288] sm:$0xff] %v350
                %v352 = vld [vmem:[%s186 + $0x520] sm:$0xff]
                %353 = vst [vmem:[%s187 + $0x290] sm:$0xff] %v352
                %v354 = vld [vmem:[%s186 + $0x528] sm:$0xff]
                %355 = vst [vmem:[%s187 + $0x298] sm:$0xff] %v354
                %v356 = vld [vmem:[%s186 + $0x540] sm:$0xff]
                %357 = vst [vmem:[%s187 + $0x2a0] sm:$0xff] %v356
                %v358 = vld [vmem:[%s186 + $0x548] sm:$0xff]
                %359 = vst [vmem:[%s187 + $0x2a8] sm:$0xff] %v358
                %v360 = vld [vmem:[%s186 + $0x560] sm:$0xff]
                %361 = vst [vmem:[%s187 + $0x2b0] sm:$0xff] %v360
                %v362 = vld [vmem:[%s186 + $0x568] sm:$0xff]
                %363 = vst [vmem:[%s187 + $0x2b8] sm:$0xff] %v362
                %v364 = vld [vmem:[%s186 + $0x580] sm:$0xff]
                %365 = vst [vmem:[%s187 + $0x2c0] sm:$0xff] %v364
                %v366 = vld [vmem:[%s186 + $0x588] sm:$0xff]
                %367 = vst [vmem:[%s187 + $0x2c8] sm:$0xff] %v366
                %v368 = vld [vmem:[%s186 + $0x5a0] sm:$0xff]
                %369 = vst [vmem:[%s187 + $0x2d0] sm:$0xff] %v368
                %v370 = vld [vmem:[%s186 + $0x5a8] sm:$0xff]
                %371 = vst [vmem:[%s187 + $0x2d8] sm:$0xff] %v370
                %v372 = vld [vmem:[%s186 + $0x5c0] sm:$0xff]
                %373 = vst [vmem:[%s187 + $0x2e0] sm:$0xff] %v372
                %v374 = vld [vmem:[%s186 + $0x5c8] sm:$0xff]
                %375 = vst [vmem:[%s187 + $0x2e8] sm:$0xff] %v374
                %v376 = vld [vmem:[%s186 + $0x5e0] sm:$0xff]
                %377 = vst [vmem:[%s187 + $0x2f0] sm:$0xff] %v376
                %v378 = vld [vmem:[%s186 + $0x5e8] sm:$0xff]
                %379 = vst [vmem:[%s187 + $0x2f8] sm:$0xff] %v378
              $region37: #{vpgnet_forward.26} parent=31 // loop_footer
                %s185 = sadd.s32 1, %s181
              $region38: #{vpgnet_forward.26} parent=31 // loop_footer_branch
                %180 = sbr.rel target = $region34
              $region39: #{vpgnet_forward.26} parent=31 // loop_exit
                _
            $region32: #{vpgnet_forward.26} parent=27 // pred_fallthru
              _
            // Predicated region
            $region40: #{vpgnet_forward.26} parent=27 // pred_check
              _
            $region41: #{vpgnet_forward.26} parent=27 // pred_check_branch
              %381 = sbr.rel target = $region43
            $region42: #{vpgnet_forward.26} parent=27 // pred_region
              _
            $region43: #{vpgnet_forward.26} parent=27 // pred_fallthru
              _
          $region28: #{vpgnet_forward.26} parent=23 // pred_fallthru
            _
          %382 = vnop
        $region24: #{vpgnet_forward.26} parent=19 // pred_fallthru
          _
        // Predicated region
        $region44: #{vpgnet_forward.26} parent=19 // pred_check
          %p383 = pneg %p78
        $region45: #{vpgnet_forward.26} parent=19 // pred_check_branch
          %385 = sbr.rel (%p383) target = $region47
        $region46: #{vpgnet_forward.26} parent=19 // pred_region
          %s386 = smul.u32 64, %s18
          %p387 = scmp.lt.s32.totalorder %s386, 127
          %s388 = scalar_select %p387, %s386, 127
          %p389 = scmp.lt.s32.totalorder %s17, 0
          %s390 = scalar_select %p389, %s17, 0
          %s391 = sadd.s32 %s390, %s388
          %s392 = smul.addr %s391, 4
          %s393 = scalar_lea.vmem %s1, %s392
          %s394 = smul.u32 64, %s18
        $region47: #{vpgnet_forward.26} parent=19 // pred_fallthru
          _
      $region20: #{vpgnet_forward.26} parent=5 // pred_fallthru
        _
      %p395 = scmp.le.s32.totalorder 1, %s9
      %p396 = scmp.lt.s32.totalorder %s9, 3
      %p397 = pnand %p395, %p396
      %p398 = pneg %p397
      // Predicated region
      $region48: #{vpgnet_forward.26} parent=5 // pred_check
        _
      $region49: #{vpgnet_forward.26} parent=5 // pred_check_branch
        %400 = sbr.rel (%p397) target = $region51
      $region50: #{vpgnet_forward.26} parent=5 // pred_region
        %s401 = ssub.s32 %s9, 1
        %s402 = sand.u32 %s43, 1
        %s403 = sand.u32 %s43, 1
        %s404 = smul.addr %s403, 768
        %s405 = scalar_lea.vmem [#allocation3], %s404
        // Predicated region
        $region52: #{vpgnet_forward.26} parent=50 // pred_check
          %p406 = pneg %p56
        $region53: #{vpgnet_forward.26} parent=50 // pred_check_branch
          %408 = sbr.rel (%p406) target = $region55
        $region54: #{vpgnet_forward.26} parent=50 // pred_region
          _
        $region55: #{vpgnet_forward.26} parent=50 // pred_fallthru
          _
        %s409 = sand.u32 %s43, 1
        %s410 = sand.u32 %s43, 1
        %s411 = smul.addr %s410, 768
        %s412 = scalar_lea.vmem [#allocation3], %s411
        %p413 = pneg %p56
        %p414 = pneg %p53
        %s415 = smul.u32 64, %s21
        %p416 = scmp.lt.s32.totalorder %s415, 127
        %s417 = scalar_select %p416, %s415, 127
        %p418 = scmp.lt.s32.totalorder %s20, 0
        %s419 = scalar_select %p418, %s20, 0
        %s420 = sadd.s32 %s419, %s417
        %s421 = smul.addr %s420, 4
        %s422 = scalar_lea.vmem %s1, %s421
        %p423 = pneg %p84
        %p424 = pneg %p81
        %p425 = scmp.lt.s32.totalorder %s20, 0
        %s426 = scalar_select %p425, %s20, 0
        %s427 = scalar_lea.vmem %s2, %s426
        %p428 = pneg %p110
        %p429 = pneg %p107
        %p430 = pneg %p138
        %p431 = pneg %p135
        %s432 = smul.u32 48, %s19
        %p433 = scmp.lt.s32.totalorder %s432, 47
        %s434 = scalar_select %p433, %s432, 47
        %p435 = scmp.lt.s32.totalorder %s20, 0
        %s436 = scalar_select %p435, %s20, 0
        %s437 = sadd.s32 %s436, %s434
        %s438 = smul.addr %s437, 8
        %s439 = scalar_lea.vmem %s3, %s438
        %s440 = smul.u32 48, %s19
        %s441 = smul.u32 4, %s21
        %s442 = smul.u32 64, %s21
        %p443 = scmp.lt.s32.totalorder %s442, 127
        %s444 = scalar_select %p443, %s442, 127
        %p445 = scmp.lt.s32.totalorder %s20, 0
        %s446 = scalar_select %p445, %s20, 0
        %s447 = sadd.s32 %s446, %s444
        %s448 = smul.addr %s447, 4
        %s449 = scalar_lea.vmem %s1, %s448
        %s450 = smul.u32 64, %s21
        %p451 = scmp.lt.s32.totalorder %s20, 0
        %s452 = scalar_select %p451, %s20, 0
        %s453 = scalar_lea.vmem %s2, %s452
        %s454 = smul.u32 48, %s19
        %p455 = scmp.lt.s32.totalorder %s454, 47
        %s456 = scalar_select %p455, %s454, 47
        %p457 = scmp.lt.s32.totalorder %s20, 0
        %s458 = scalar_select %p457, %s20, 0
        %s459 = sadd.s32 %s458, %s456
        %s460 = smul.addr %s459, 8
        %s461 = scalar_lea.vmem %s3, %s460
        %s462 = smul.u32 48, %s19
        %p464 = scmp.eq.s32.totalorder %s21, 0
        // Predicated region
        $region56: #{vpgnet_forward.26} parent=50 // pred_check
          %p465 = pneg %p464
        $region57: #{vpgnet_forward.26} parent=50 // pred_check_branch
          %467 = sbr.rel (%p465) target = $region59
        $region58: #{vpgnet_forward.26} parent=50 // pred_region
          %468 = vst [vmem:[#allocation2] sm:$0xff] 0.0
          %469 = vst [vmem:[#allocation2 + $0x8] sm:$0xff] 0.0
          %470 = vst [vmem:[#allocation2 + $0x10] sm:$0xff] 0.0
          %471 = vst [vmem:[#allocation2 + $0x18] sm:$0xff] 0.0
          %472 = vst [vmem:[#allocation2 + $0x20] sm:$0xff] 0.0
          %473 = vst [vmem:[#allocation2 + $0x28] sm:$0xff] 0.0
          %474 = vst [vmem:[#allocation2 + $0x30] sm:$0xff] 0.0
          %475 = vst [vmem:[#allocation2 + $0x38] sm:$0xff] 0.0
          %476 = vst [vmem:[#allocation2 + $0x40] sm:$0xff] 0.0
          %477 = vst [vmem:[#allocation2 + $0x48] sm:$0xff] 0.0
          %478 = vst [vmem:[#allocation2 + $0x50] sm:$0xff] 0.0
          %479 = vst [vmem:[#allocation2 + $0x58] sm:$0xff] 0.0
          %480 = vst [vmem:[#allocation2 + $0x60] sm:$0xff] 0.0
          %481 = vst [vmem:[#allocation2 + $0x68] sm:$0xff] 0.0
          %482 = vst [vmem:[#allocation2 + $0x70] sm:$0xff] 0.0
          %483 = vst [vmem:[#allocation2 + $0x78] sm:$0xff] 0.0
          %484 = vst [vmem:[#allocation2 + $0x80] sm:$0xff] 0.0
          %485 = vst [vmem:[#allocation2 + $0x88] sm:$0xff] 0.0
          %486 = vst [vmem:[#allocation2 + $0x90] sm:$0xff] 0.0
          %487 = vst [vmem:[#allocation2 + $0x98] sm:$0xff] 0.0
          %488 = vst [vmem:[#allocation2 + $0xa0] sm:$0xff] 0.0
          %489 = vst [vmem:[#allocation2 + $0xa8] sm:$0xff] 0.0
          %490 = vst [vmem:[#allocation2 + $0xb0] sm:$0xff] 0.0
          %491 = vst [vmem:[#allocation2 + $0xb8] sm:$0xff] 0.0
          %492 = vst [vmem:[#allocation2 + $0xc0] sm:$0xff] 0.0
          %493 = vst [vmem:[#allocation2 + $0xc8] sm:$0xff] 0.0
          %494 = vst [vmem:[#allocation2 + $0xd0] sm:$0xff] 0.0
          %495 = vst [vmem:[#allocation2 + $0xd8] sm:$0xff] 0.0
          %496 = vst [vmem:[#allocation2 + $0xe0] sm:$0xff] 0.0
          %497 = vst [vmem:[#allocation2 + $0xe8] sm:$0xff] 0.0
          %498 = vst [vmem:[#allocation2 + $0xf0] sm:$0xff] 0.0
          %499 = vst [vmem:[#allocation2 + $0xf8] sm:$0xff] 0.0
          %500 = vst [vmem:[#allocation2 + $0x100] sm:$0xff] 0.0
          %501 = vst [vmem:[#allocation2 + $0x108] sm:$0xff] 0.0
          %502 = vst [vmem:[#allocation2 + $0x110] sm:$0xff] 0.0
          %503 = vst [vmem:[#allocation2 + $0x118] sm:$0xff] 0.0
          %504 = vst [vmem:[#allocation2 + $0x120] sm:$0xff] 0.0
          %505 = vst [vmem:[#allocation2 + $0x128] sm:$0xff] 0.0
          %506 = vst [vmem:[#allocation2 + $0x130] sm:$0xff] 0.0
          %507 = vst [vmem:[#allocation2 + $0x138] sm:$0xff] 0.0
          %508 = vst [vmem:[#allocation2 + $0x140] sm:$0xff] 0.0
          %509 = vst [vmem:[#allocation2 + $0x148] sm:$0xff] 0.0
          %510 = vst [vmem:[#allocation2 + $0x150] sm:$0xff] 0.0
          %511 = vst [vmem:[#allocation2 + $0x158] sm:$0xff] 0.0
          %512 = vst [vmem:[#allocation2 + $0x160] sm:$0xff] 0.0
          %513 = vst [vmem:[#allocation2 + $0x168] sm:$0xff] 0.0
          %514 = vst [vmem:[#allocation2 + $0x170] sm:$0xff] 0.0
          %515 = vst [vmem:[#allocation2 + $0x178] sm:$0xff] 0.0
        $region59: #{vpgnet_forward.26} parent=50 // pred_fallthru
          _
        %v516 = vld [vmem:[#allocation2] sm:$0xff]
        %v517 = vld [vmem:[#allocation2 + $0x8] sm:$0xff]
        %v518 = vld [vmem:[#allocation2 + $0x10] sm:$0xff]
        %v519 = vld [vmem:[#allocation2 + $0x18] sm:$0xff]
        %v520 = vld [vmem:[#allocation2 + $0x20] sm:$0xff]
        %v521 = vld [vmem:[#allocation2 + $0x28] sm:$0xff]
        %v522 = vld [vmem:[#allocation2 + $0x30] sm:$0xff]
        %v523 = vld [vmem:[#allocation2 + $0x38] sm:$0xff]
        %v524 = vld [vmem:[#allocation2 + $0x40] sm:$0xff]
        %v525 = vld [vmem:[#allocation2 + $0x48] sm:$0xff]
        %v526 = vld [vmem:[#allocation2 + $0x50] sm:$0xff]
        %v527 = vld [vmem:[#allocation2 + $0x58] sm:$0xff]
        %v528 = vld [vmem:[#allocation2 + $0x60] sm:$0xff]
        %v529 = vld [vmem:[#allocation2 + $0x68] sm:$0xff]
        %v530 = vld [vmem:[#allocation2 + $0x70] sm:$0xff]
        %v531 = vld [vmem:[#allocation2 + $0x78] sm:$0xff]
        %v532 = vld [vmem:[#allocation2 + $0x80] sm:$0xff]
        %v533 = vld [vmem:[#allocation2 + $0x88] sm:$0xff]
        %v534 = vld [vmem:[#allocation2 + $0x90] sm:$0xff]
        %v535 = vld [vmem:[#allocation2 + $0x98] sm:$0xff]
        %v536 = vld [vmem:[#allocation2 + $0xa0] sm:$0xff]
        %v537 = vld [vmem:[#allocation2 + $0xa8] sm:$0xff]
        %v538 = vld [vmem:[#allocation2 + $0xb0] sm:$0xff]
        %v539 = vld [vmem:[#allocation2 + $0xb8] sm:$0xff]
        %v540 = vld [vmem:[#allocation2 + $0xc0] sm:$0xff]
        %v541 = vld [vmem:[#allocation2 + $0xc8] sm:$0xff]
        %v542 = vld [vmem:[#allocation2 + $0xd0] sm:$0xff]
        %v543 = vld [vmem:[#allocation2 + $0xd8] sm:$0xff]
        %v544 = vld [vmem:[#allocation2 + $0xe0] sm:$0xff]
        %v545 = vld [vmem:[#allocation2 + $0xe8] sm:$0xff]
        %v546 = vld [vmem:[#allocation2 + $0xf0] sm:$0xff]
        %v547 = vld [vmem:[#allocation2 + $0xf8] sm:$0xff]
        %v548 = vld [vmem:[#allocation2 + $0x100] sm:$0xff]
        %v549 = vld [vmem:[#allocation2 + $0x108] sm:$0xff]
        %v550 = vld [vmem:[#allocation2 + $0x110] sm:$0xff]
        %v551 = vld [vmem:[#allocation2 + $0x118] sm:$0xff]
        %v552 = vld [vmem:[#allocation2 + $0x120] sm:$0xff]
        %v553 = vld [vmem:[#allocation2 + $0x128] sm:$0xff]
        %v554 = vld [vmem:[#allocation2 + $0x130] sm:$0xff]
        %v555 = vld [vmem:[#allocation2 + $0x138] sm:$0xff]
        %v556 = vld [vmem:[#allocation2 + $0x140] sm:$0xff]
        %v557 = vld [vmem:[#allocation2 + $0x148] sm:$0xff]
        %v558 = vld [vmem:[#allocation2 + $0x150] sm:$0xff]
        %v559 = vld [vmem:[#allocation2 + $0x158] sm:$0xff]
        %v560 = vld [vmem:[#allocation2 + $0x160] sm:$0xff]
        %v561 = vld [vmem:[#allocation2 + $0x168] sm:$0xff]
        %v562 = vld [vmem:[#allocation2 + $0x170] sm:$0xff]
        %v563 = vld [vmem:[#allocation2 + $0x178] sm:$0xff]
        %v564 = vld [vmem:[%s405] sm:$0xff]
        %v565 = vld [vmem:[%s405 + $0x8] sm:$0xff]
        %v566 = vld [vmem:[%s405 + $0x10] sm:$0xff]
        %v567 = vld [vmem:[%s405 + $0x18] sm:$0xff]
        %v568 = vld [vmem:[%s405 + $0x20] sm:$0xff]
        %v569 = vld [vmem:[%s405 + $0x28] sm:$0xff]
        %v570 = vld [vmem:[%s405 + $0x30] sm:$0xff]
        %v571 = vld [vmem:[%s405 + $0x38] sm:$0xff]
        %v572 = vld [vmem:[%s405 + $0x40] sm:$0xff]
        %v573 = vld [vmem:[%s405 + $0x48] sm:$0xff]
        %v574 = vld [vmem:[%s405 + $0x50] sm:$0xff]
        %v575 = vld [vmem:[%s405 + $0x58] sm:$0xff]
        %v576 = vld [vmem:[%s405 + $0x60] sm:$0xff]
        %v577 = vld [vmem:[%s405 + $0x68] sm:$0xff]
        %v578 = vld [vmem:[%s405 + $0x70] sm:$0xff]
        %v579 = vld [vmem:[%s405 + $0x78] sm:$0xff]
        %v580 = vld [vmem:[%s405 + $0x80] sm:$0xff]
        %v581 = vld [vmem:[%s405 + $0x88] sm:$0xff]
        %v582 = vld [vmem:[%s405 + $0x90] sm:$0xff]
        %v583 = vld [vmem:[%s405 + $0x98] sm:$0xff]
        %v584 = vld [vmem:[%s405 + $0xa0] sm:$0xff]
        %v585 = vld [vmem:[%s405 + $0xa8] sm:$0xff]
        %v586 = vld [vmem:[%s405 + $0xb0] sm:$0xff]
        %v587 = vld [vmem:[%s405 + $0xb8] sm:$0xff]
        %v588 = vld [vmem:[%s405 + $0xc0] sm:$0xff]
        %v589 = vld [vmem:[%s405 + $0xc8] sm:$0xff]
        %v590 = vld [vmem:[%s405 + $0xd0] sm:$0xff]
        %v591 = vld [vmem:[%s405 + $0xd8] sm:$0xff]
        %v592 = vld [vmem:[%s405 + $0xe0] sm:$0xff]
        %v593 = vld [vmem:[%s405 + $0xe8] sm:$0xff]
        %v594 = vld [vmem:[%s405 + $0xf0] sm:$0xff]
        %v595 = vld [vmem:[%s405 + $0xf8] sm:$0xff]
        %v596 = vld [vmem:[%s405 + $0x100] sm:$0xff]
        %v597 = vld [vmem:[%s405 + $0x108] sm:$0xff]
        %v598 = vld [vmem:[%s405 + $0x110] sm:$0xff]
        %v599 = vld [vmem:[%s405 + $0x118] sm:$0xff]
        %v600 = vld [vmem:[%s405 + $0x120] sm:$0xff]
        %v601 = vld [vmem:[%s405 + $0x128] sm:$0xff]
        %v602 = vld [vmem:[%s405 + $0x130] sm:$0xff]
        %v603 = vld [vmem:[%s405 + $0x138] sm:$0xff]
        %v604 = vld [vmem:[%s405 + $0x140] sm:$0xff]
        %v605 = vld [vmem:[%s405 + $0x148] sm:$0xff]
        %v606 = vld [vmem:[%s405 + $0x150] sm:$0xff]
        %v607 = vld [vmem:[%s405 + $0x158] sm:$0xff]
        %v608 = vld [vmem:[%s405 + $0x160] sm:$0xff]
        %v609 = vld [vmem:[%s405 + $0x168] sm:$0xff]
        %v610 = vld [vmem:[%s405 + $0x170] sm:$0xff]
        %v611 = vld [vmem:[%s405 + $0x178] sm:$0xff]
        %v612 = vld [vmem:[%s405 + $0x180] sm:$0xff]
        %v613 = vld [vmem:[%s405 + $0x188] sm:$0xff]
        %v614 = vld [vmem:[%s405 + $0x190] sm:$0xff]
        %v615 = vld [vmem:[%s405 + $0x198] sm:$0xff]
        %v616 = vld [vmem:[%s405 + $0x1a0] sm:$0xff]
        %v617 = vld [vmem:[%s405 + $0x1a8] sm:$0xff]
        %v618 = vld [vmem:[%s405 + $0x1b0] sm:$0xff]
        %v619 = vld [vmem:[%s405 + $0x1b8] sm:$0xff]
        %v620 = vld [vmem:[%s405 + $0x1c0] sm:$0xff]
        %v621 = vld [vmem:[%s405 + $0x1c8] sm:$0xff]
        %v622 = vld [vmem:[%s405 + $0x1d0] sm:$0xff]
        %v623 = vld [vmem:[%s405 + $0x1d8] sm:$0xff]
        %v624 = vld [vmem:[%s405 + $0x1e0] sm:$0xff]
        %v625 = vld [vmem:[%s405 + $0x1e8] sm:$0xff]
        %v626 = vld [vmem:[%s405 + $0x1f0] sm:$0xff]
        %v627 = vld [vmem:[%s405 + $0x1f8] sm:$0xff]
        %v628 = vld [vmem:[%s405 + $0x200] sm:$0xff]
        %v629 = vld [vmem:[%s405 + $0x208] sm:$0xff]
        %v630 = vld [vmem:[%s405 + $0x210] sm:$0xff]
        %v631 = vld [vmem:[%s405 + $0x218] sm:$0xff]
        %v632 = vld [vmem:[%s405 + $0x220] sm:$0xff]
        %v633 = vld [vmem:[%s405 + $0x228] sm:$0xff]
        %v634 = vld [vmem:[%s405 + $0x230] sm:$0xff]
        %v635 = vld [vmem:[%s405 + $0x238] sm:$0xff]
        %v636 = vld [vmem:[%s405 + $0x240] sm:$0xff]
        %v637 = vld [vmem:[%s405 + $0x248] sm:$0xff]
        %v638 = vld [vmem:[%s405 + $0x250] sm:$0xff]
        %v639 = vld [vmem:[%s405 + $0x258] sm:$0xff]
        %v640 = vld [vmem:[%s405 + $0x260] sm:$0xff]
        %v641 = vld [vmem:[%s405 + $0x268] sm:$0xff]
        %v642 = vld [vmem:[%s405 + $0x270] sm:$0xff]
        %v643 = vld [vmem:[%s405 + $0x278] sm:$0xff]
        %v644 = vld [vmem:[%s405 + $0x280] sm:$0xff]
        %v645 = vld [vmem:[%s405 + $0x288] sm:$0xff]
        %v646 = vld [vmem:[%s405 + $0x290] sm:$0xff]
        %v647 = vld [vmem:[%s405 + $0x298] sm:$0xff]
        %v648 = vld [vmem:[%s405 + $0x2a0] sm:$0xff]
        %v649 = vld [vmem:[%s405 + $0x2a8] sm:$0xff]
        %v650 = vld [vmem:[%s405 + $0x2b0] sm:$0xff]
        %v651 = vld [vmem:[%s405 + $0x2b8] sm:$0xff]
        %v652 = vld [vmem:[%s405 + $0x2c0] sm:$0xff]
        %v653 = vld [vmem:[%s405 + $0x2c8] sm:$0xff]
        %v654 = vld [vmem:[%s405 + $0x2d0] sm:$0xff]
        %v655 = vld [vmem:[%s405 + $0x2d8] sm:$0xff]
        %v656 = vld [vmem:[%s405 + $0x2e0] sm:$0xff]
        %v657 = vld [vmem:[%s405 + $0x2e8] sm:$0xff]
        %v658 = vld [vmem:[%s405 + $0x2f0] sm:$0xff]
        %v659 = vld [vmem:[%s405 + $0x2f8] sm:$0xff]
        %v660 = vld [vmem:[%s449] sm:$0xf]
        %v661 = vld [vmem:[%s449 + $0x4] sm:$0xf]
        %v662 = vld [vmem:[%s449 + $0x8] sm:$0xf]
        %v663 = vld [vmem:[%s449 + $0xc] sm:$0xf]
        %v664 = vld [vmem:[%s449 + $0x10] sm:$0xf]
        %v665 = vld [vmem:[%s449 + $0x14] sm:$0xf]
        %v666 = vld [vmem:[%s449 + $0x18] sm:$0xf]
        %v667 = vld [vmem:[%s449 + $0x1c] sm:$0xf]
        %v668 = vld [vmem:[%s449 + $0x20] sm:$0xf]
        %v669 = vld [vmem:[%s449 + $0x24] sm:$0xf]
        %v670 = vld [vmem:[%s449 + $0x28] sm:$0xf]
        %v671 = vld [vmem:[%s449 + $0x2c] sm:$0xf]
        %v672 = vld [vmem:[%s449 + $0x30] sm:$0xf]
        %v673 = vld [vmem:[%s449 + $0x34] sm:$0xf]
        %v674 = vld [vmem:[%s449 + $0x38] sm:$0xf]
        %v675 = vld [vmem:[%s449 + $0x3c] sm:$0xf]
        %v676 = vld [vmem:[%s449 + $0x40] sm:$0xf]
        %v677 = vld [vmem:[%s449 + $0x44] sm:$0xf]
        %v678 = vld [vmem:[%s449 + $0x48] sm:$0xf]
        %v679 = vld [vmem:[%s449 + $0x4c] sm:$0xf]
        %v680 = vld [vmem:[%s449 + $0x50] sm:$0xf]
        %v681 = vld [vmem:[%s449 + $0x54] sm:$0xf]
        %v682 = vld [vmem:[%s449 + $0x58] sm:$0xf]
        %v683 = vld [vmem:[%s449 + $0x5c] sm:$0xf]
        %v684 = vld [vmem:[%s449 + $0x60] sm:$0xf]
        %v685 = vld [vmem:[%s449 + $0x64] sm:$0xf]
        %v686 = vld [vmem:[%s449 + $0x68] sm:$0xf]
        %v687 = vld [vmem:[%s449 + $0x6c] sm:$0xf]
        %v688 = vld [vmem:[%s449 + $0x70] sm:$0xf]
        %v689 = vld [vmem:[%s449 + $0x74] sm:$0xf]
        %v690 = vld [vmem:[%s449 + $0x78] sm:$0xf]
        %v691 = vld [vmem:[%s449 + $0x7c] sm:$0xf]
        %v692 = vld [vmem:[%s449 + $0x80] sm:$0xf]
        %v693 = vld [vmem:[%s449 + $0x84] sm:$0xf]
        %v694 = vld [vmem:[%s449 + $0x88] sm:$0xf]
        %v695 = vld [vmem:[%s449 + $0x8c] sm:$0xf]
        %v696 = vld [vmem:[%s449 + $0x90] sm:$0xf]
        %v697 = vld [vmem:[%s449 + $0x94] sm:$0xf]
        %v698 = vld [vmem:[%s449 + $0x98] sm:$0xf]
        %v699 = vld [vmem:[%s449 + $0x9c] sm:$0xf]
        %v700 = vld [vmem:[%s449 + $0xa0] sm:$0xf]
        %v701 = vld [vmem:[%s449 + $0xa4] sm:$0xf]
        %v702 = vld [vmem:[%s449 + $0xa8] sm:$0xf]
        %v703 = vld [vmem:[%s449 + $0xac] sm:$0xf]
        %v704 = vld [vmem:[%s449 + $0xb0] sm:$0xf]
        %v705 = vld [vmem:[%s449 + $0xb4] sm:$0xf]
        %v706 = vld [vmem:[%s449 + $0xb8] sm:$0xf]
        %v707 = vld [vmem:[%s449 + $0xbc] sm:$0xf]
        %v708 = vld [vmem:[%s449 + $0xc0] sm:$0xf]
        %v709 = vld [vmem:[%s449 + $0xc4] sm:$0xf]
        %v710 = vld [vmem:[%s449 + $0xc8] sm:$0xf]
        %v711 = vld [vmem:[%s449 + $0xcc] sm:$0xf]
        %v712 = vld [vmem:[%s449 + $0xd0] sm:$0xf]
        %v713 = vld [vmem:[%s449 + $0xd4] sm:$0xf]
        %v714 = vld [vmem:[%s449 + $0xd8] sm:$0xf]
        %v715 = vld [vmem:[%s449 + $0xdc] sm:$0xf]
        %v716 = vld [vmem:[%s449 + $0xe0] sm:$0xf]
        %v717 = vld [vmem:[%s449 + $0xe4] sm:$0xf]
        %v718 = vld [vmem:[%s449 + $0xe8] sm:$0xf]
        %v719 = vld [vmem:[%s449 + $0xec] sm:$0xf]
        %v720 = vld [vmem:[%s449 + $0xf0] sm:$0xf]
        %v721 = vld [vmem:[%s449 + $0xf4] sm:$0xf]
        %v722 = vld [vmem:[%s449 + $0xf8] sm:$0xf]
        %v723 = vld [vmem:[%s449 + $0xfc] sm:$0xf]
        %v820 = vunpack.c.l.b16 %v564
        %v821 = vunpack.c.h.b16 %v564
        %v822 = vunpack.c.l.b16 %v565
        %v823 = vunpack.c.h.b16 %v565
        %v824 = vunpack.c.l.b16 %v566
        %v825 = vunpack.c.h.b16 %v566
        %v826 = vunpack.c.l.b16 %v567
        %v827 = vunpack.c.h.b16 %v567
        %v828 = vunpack.c.l.b16 %v568
        %v829 = vunpack.c.h.b16 %v568
        %v830 = vunpack.c.l.b16 %v569
        %v831 = vunpack.c.h.b16 %v569
        %v832 = vunpack.c.l.b16 %v570
        %v833 = vunpack.c.h.b16 %v570
        %v834 = vunpack.c.l.b16 %v571
        %v835 = vunpack.c.h.b16 %v571
        %v836 = vunpack.c.l.b16 %v572
        %v837 = vunpack.c.h.b16 %v572
        %v838 = vunpack.c.l.b16 %v573
        %v839 = vunpack.c.h.b16 %v573
        %v840 = vunpack.c.l.b16 %v574
        %v841 = vunpack.c.h.b16 %v574
        %v842 = vunpack.c.l.b16 %v575
        %v843 = vunpack.c.h.b16 %v575
        %v844 = vunpack.c.l.b16 %v576
        %v845 = vunpack.c.h.b16 %v576
        %v846 = vunpack.c.l.b16 %v577
        %v847 = vunpack.c.h.b16 %v577
        %v848 = vunpack.c.l.b16 %v578
        %v849 = vunpack.c.h.b16 %v578
        %v850 = vunpack.c.l.b16 %v579
        %v851 = vunpack.c.h.b16 %v579
        %v852 = vunpack.c.l.b16 %v580
        %v853 = vunpack.c.h.b16 %v580
        %v854 = vunpack.c.l.b16 %v581
        %v855 = vunpack.c.h.b16 %v581
        %v856 = vunpack.c.l.b16 %v582
        %v857 = vunpack.c.h.b16 %v582
        %v858 = vunpack.c.l.b16 %v583
        %v859 = vunpack.c.h.b16 %v583
        %v860 = vunpack.c.l.b16 %v584
        %v861 = vunpack.c.h.b16 %v584
        %v862 = vunpack.c.l.b16 %v585
        %v863 = vunpack.c.h.b16 %v585
        %v864 = vunpack.c.l.b16 %v586
        %v865 = vunpack.c.h.b16 %v586
        %v866 = vunpack.c.l.b16 %v587
        %v867 = vunpack.c.h.b16 %v587
        %v868 = vunpack.c.l.b16 %v588
        %v869 = vunpack.c.h.b16 %v588
        %v870 = vunpack.c.l.b16 %v589
        %v871 = vunpack.c.h.b16 %v589
        %v872 = vunpack.c.l.b16 %v590
        %v873 = vunpack.c.h.b16 %v590
        %v874 = vunpack.c.l.b16 %v591
        %v875 = vunpack.c.h.b16 %v591
        %v876 = vunpack.c.l.b16 %v592
        %v877 = vunpack.c.h.b16 %v592
        %v878 = vunpack.c.l.b16 %v593
        %v879 = vunpack.c.h.b16 %v593
        %v880 = vunpack.c.l.b16 %v594
        %v881 = vunpack.c.h.b16 %v594
        %v882 = vunpack.c.l.b16 %v595
        %v883 = vunpack.c.h.b16 %v595
        %v884 = vunpack.c.l.b16 %v596
        %v885 = vunpack.c.h.b16 %v596
        %v886 = vunpack.c.l.b16 %v597
        %v887 = vunpack.c.h.b16 %v597
        %v888 = vunpack.c.l.b16 %v598
        %v889 = vunpack.c.h.b16 %v598
        %v890 = vunpack.c.l.b16 %v599
        %v891 = vunpack.c.h.b16 %v599
        %v892 = vunpack.c.l.b16 %v600
        %v893 = vunpack.c.h.b16 %v600
        %v894 = vunpack.c.l.b16 %v601
        %v895 = vunpack.c.h.b16 %v601
        %v896 = vunpack.c.l.b16 %v602
        %v897 = vunpack.c.h.b16 %v602
        %v898 = vunpack.c.l.b16 %v603
        %v899 = vunpack.c.h.b16 %v603
        %v900 = vunpack.c.l.b16 %v604
        %v901 = vunpack.c.h.b16 %v604
        %v902 = vunpack.c.l.b16 %v605
        %v903 = vunpack.c.h.b16 %v605
        %v904 = vunpack.c.l.b16 %v606
        %v905 = vunpack.c.h.b16 %v606
        %v906 = vunpack.c.l.b16 %v607
        %v907 = vunpack.c.h.b16 %v607
        %v908 = vunpack.c.l.b16 %v608
        %v909 = vunpack.c.h.b16 %v608
        %v910 = vunpack.c.l.b16 %v609
        %v911 = vunpack.c.h.b16 %v609
        %v912 = vunpack.c.l.b16 %v610
        %v913 = vunpack.c.h.b16 %v610
        %v914 = vunpack.c.l.b16 %v611
        %v915 = vunpack.c.h.b16 %v611
        %v916 = vunpack.c.l.b16 %v612
        %v917 = vunpack.c.h.b16 %v612
        %v918 = vunpack.c.l.b16 %v613
        %v919 = vunpack.c.h.b16 %v613
        %v920 = vunpack.c.l.b16 %v614
        %v921 = vunpack.c.h.b16 %v614
        %v922 = vunpack.c.l.b16 %v615
        %v923 = vunpack.c.h.b16 %v615
        %v924 = vunpack.c.l.b16 %v616
        %v925 = vunpack.c.h.b16 %v616
        %v926 = vunpack.c.l.b16 %v617
        %v927 = vunpack.c.h.b16 %v617
        %v928 = vunpack.c.l.b16 %v618
        %v929 = vunpack.c.h.b16 %v618
        %v930 = vunpack.c.l.b16 %v619
        %v931 = vunpack.c.h.b16 %v619
        %v932 = vunpack.c.l.b16 %v620
        %v933 = vunpack.c.h.b16 %v620
        %v934 = vunpack.c.l.b16 %v621
        %v935 = vunpack.c.h.b16 %v621
        %v936 = vunpack.c.l.b16 %v622
        %v937 = vunpack.c.h.b16 %v622
        %v938 = vunpack.c.l.b16 %v623
        %v939 = vunpack.c.h.b16 %v623
        %v940 = vunpack.c.l.b16 %v624
        %v941 = vunpack.c.h.b16 %v624
        %v942 = vunpack.c.l.b16 %v625
        %v943 = vunpack.c.h.b16 %v625
        %v944 = vunpack.c.l.b16 %v626
        %v945 = vunpack.c.h.b16 %v626
        %v946 = vunpack.c.l.b16 %v627
        %v947 = vunpack.c.h.b16 %v627
        %v948 = vunpack.c.l.b16 %v628
        %v949 = vunpack.c.h.b16 %v628
        %v950 = vunpack.c.l.b16 %v629
        %v951 = vunpack.c.h.b16 %v629
        %v952 = vunpack.c.l.b16 %v630
        %v953 = vunpack.c.h.b16 %v630
        %v954 = vunpack.c.l.b16 %v631
        %v955 = vunpack.c.h.b16 %v631
        %v956 = vunpack.c.l.b16 %v632
        %v957 = vunpack.c.h.b16 %v632
        %v958 = vunpack.c.l.b16 %v633
        %v959 = vunpack.c.h.b16 %v633
        %v960 = vunpack.c.l.b16 %v634
        %v961 = vunpack.c.h.b16 %v634
        %v962 = vunpack.c.l.b16 %v635
        %v963 = vunpack.c.h.b16 %v635
        %v964 = vunpack.c.l.b16 %v636
        %v965 = vunpack.c.h.b16 %v636
        %v966 = vunpack.c.l.b16 %v637
        %v967 = vunpack.c.h.b16 %v637
        %v968 = vunpack.c.l.b16 %v638
        %v969 = vunpack.c.h.b16 %v638
        %v970 = vunpack.c.l.b16 %v639
        %v971 = vunpack.c.h.b16 %v639
        %v972 = vunpack.c.l.b16 %v640
        %v973 = vunpack.c.h.b16 %v640
        %v974 = vunpack.c.l.b16 %v641
        %v975 = vunpack.c.h.b16 %v641
        %v976 = vunpack.c.l.b16 %v642
        %v977 = vunpack.c.h.b16 %v642
        %v978 = vunpack.c.l.b16 %v643
        %v979 = vunpack.c.h.b16 %v643
        %v980 = vunpack.c.l.b16 %v644
        %v981 = vunpack.c.h.b16 %v644
        %v982 = vunpack.c.l.b16 %v645
        %v983 = vunpack.c.h.b16 %v645
        %v984 = vunpack.c.l.b16 %v646
        %v985 = vunpack.c.h.b16 %v646
        %v986 = vunpack.c.l.b16 %v647
        %v987 = vunpack.c.h.b16 %v647
        %v988 = vunpack.c.l.b16 %v648
        %v989 = vunpack.c.h.b16 %v648
        %v990 = vunpack.c.l.b16 %v649
        %v991 = vunpack.c.h.b16 %v649
        %v992 = vunpack.c.l.b16 %v650
        %v993 = vunpack.c.h.b16 %v650
        %v994 = vunpack.c.l.b16 %v651
        %v995 = vunpack.c.h.b16 %v651
        %v996 = vunpack.c.l.b16 %v652
        %v997 = vunpack.c.h.b16 %v652
        %v998 = vunpack.c.l.b16 %v653
        %v999 = vunpack.c.h.b16 %v653
        %v1000 = vunpack.c.l.b16 %v654
        %v1001 = vunpack.c.h.b16 %v654
        %v1002 = vunpack.c.l.b16 %v655
        %v1003 = vunpack.c.h.b16 %v655
        %v1004 = vunpack.c.l.b16 %v656
        %v1005 = vunpack.c.h.b16 %v656
        %v1006 = vunpack.c.l.b16 %v657
        %v1007 = vunpack.c.h.b16 %v657
        %v1008 = vunpack.c.l.b16 %v658
        %v1009 = vunpack.c.h.b16 %v658
        %v1010 = vunpack.c.l.b16 %v659
        %v1011 = vunpack.c.h.b16 %v659
        %v1012 = vpack.c.b16 %v824, %v820
        %v1013 = vpack.c.b16 %v825, %v821
        %v1014 = vpack.c.b16 %v826, %v822
        %v1015 = vpack.c.b16 %v827, %v823
        %v1016 = vpack.c.b16 %v832, %v828
        %v1017 = vpack.c.b16 %v833, %v829
        %v1018 = vpack.c.b16 %v834, %v830
        %v1019 = vpack.c.b16 %v835, %v831
        %v1020 = vpack.c.b16 %v840, %v836
        %v1021 = vpack.c.b16 %v841, %v837
        %v1022 = vpack.c.b16 %v842, %v838
        %v1023 = vpack.c.b16 %v843, %v839
        %v1024 = vpack.c.b16 %v848, %v844
        %v1025 = vpack.c.b16 %v849, %v845
        %v1026 = vpack.c.b16 %v850, %v846
        %v1027 = vpack.c.b16 %v851, %v847
        %v1028 = vpack.c.b16 %v856, %v852
        %v1029 = vpack.c.b16 %v857, %v853
        %v1030 = vpack.c.b16 %v858, %v854
        %v1031 = vpack.c.b16 %v859, %v855
        %v1032 = vpack.c.b16 %v864, %v860
        %v1033 = vpack.c.b16 %v865, %v861
        %v1034 = vpack.c.b16 %v866, %v862
        %v1035 = vpack.c.b16 %v867, %v863
        %v1036 = vpack.c.b16 %v872, %v868
        %v1037 = vpack.c.b16 %v873, %v869
        %v1038 = vpack.c.b16 %v874, %v870
        %v1039 = vpack.c.b16 %v875, %v871
        %v1040 = vpack.c.b16 %v880, %v876
        %v1041 = vpack.c.b16 %v881, %v877
        %v1042 = vpack.c.b16 %v882, %v878
        %v1043 = vpack.c.b16 %v883, %v879
        %v1044 = vpack.c.b16 %v888, %v884
        %v1045 = vpack.c.b16 %v889, %v885
        %v1046 = vpack.c.b16 %v890, %v886
        %v1047 = vpack.c.b16 %v891, %v887
        %v1048 = vpack.c.b16 %v896, %v892
        %v1049 = vpack.c.b16 %v897, %v893
        %v1050 = vpack.c.b16 %v898, %v894
        %v1051 = vpack.c.b16 %v899, %v895
        %v1052 = vpack.c.b16 %v904, %v900
        %v1053 = vpack.c.b16 %v905, %v901
        %v1054 = vpack.c.b16 %v906, %v902
        %v1055 = vpack.c.b16 %v907, %v903
        %v1056 = vpack.c.b16 %v912, %v908
        %v1057 = vpack.c.b16 %v913, %v909
        %v1058 = vpack.c.b16 %v914, %v910
        %v1059 = vpack.c.b16 %v915, %v911
        %v1060 = vpack.c.b16 %v920, %v916
        %v1061 = vpack.c.b16 %v921, %v917
        %v1062 = vpack.c.b16 %v922, %v918
        %v1063 = vpack.c.b16 %v923, %v919
        %v1064 = vpack.c.b16 %v928, %v924
        %v1065 = vpack.c.b16 %v929, %v925
        %v1066 = vpack.c.b16 %v930, %v926
        %v1067 = vpack.c.b16 %v931, %v927
        %v1068 = vpack.c.b16 %v936, %v932
        %v1069 = vpack.c.b16 %v937, %v933
        %v1070 = vpack.c.b16 %v938, %v934
        %v1071 = vpack.c.b16 %v939, %v935
        %v1072 = vpack.c.b16 %v944, %v940
        %v1073 = vpack.c.b16 %v945, %v941
        %v1074 = vpack.c.b16 %v946, %v942
        %v1075 = vpack.c.b16 %v947, %v943
        %v1076 = vpack.c.b16 %v952, %v948
        %v1077 = vpack.c.b16 %v953, %v949
        %v1078 = vpack.c.b16 %v954, %v950
        %v1079 = vpack.c.b16 %v955, %v951
        %v1080 = vpack.c.b16 %v960, %v956
        %v1081 = vpack.c.b16 %v961, %v957
        %v1082 = vpack.c.b16 %v962, %v958
        %v1083 = vpack.c.b16 %v963, %v959
        %v1084 = vpack.c.b16 %v968, %v964
        %v1085 = vpack.c.b16 %v969, %v965
        %v1086 = vpack.c.b16 %v970, %v966
        %v1087 = vpack.c.b16 %v971, %v967
        %v1088 = vpack.c.b16 %v976, %v972
        %v1089 = vpack.c.b16 %v977, %v973
        %v1090 = vpack.c.b16 %v978, %v974
        %v1091 = vpack.c.b16 %v979, %v975
        %v1092 = vpack.c.b16 %v984, %v980
        %v1093 = vpack.c.b16 %v985, %v981
        %v1094 = vpack.c.b16 %v986, %v982
        %v1095 = vpack.c.b16 %v987, %v983
        %v1096 = vpack.c.b16 %v992, %v988
        %v1097 = vpack.c.b16 %v993, %v989
        %v1098 = vpack.c.b16 %v994, %v990
        %v1099 = vpack.c.b16 %v995, %v991
        %v1100 = vpack.c.b16 %v1000, %v996
        %v1101 = vpack.c.b16 %v1001, %v997
        %v1102 = vpack.c.b16 %v1002, %v998
        %v1103 = vpack.c.b16 %v1003, %v999
        %v1104 = vpack.c.b16 %v1008, %v1004
        %v1105 = vpack.c.b16 %v1009, %v1005
        %v1106 = vpack.c.b16 %v1010, %v1006
        %v1107 = vpack.c.b16 %v1011, %v1007
        %v1268 = vunpack.c.l.b16 %v660
        %v1269 = vunpack.c.l.b16 %v661
        %v1270 = vunpack.c.l.b16 %v662
        %v1271 = vunpack.c.l.b16 %v663
        %v1272 = vunpack.c.l.b16 %v664
        %v1273 = vunpack.c.l.b16 %v665
        %v1274 = vunpack.c.l.b16 %v666
        %v1275 = vunpack.c.l.b16 %v667
        %v1276 = vunpack.c.l.b16 %v668
        %v1277 = vunpack.c.l.b16 %v669
        %v1278 = vunpack.c.l.b16 %v670
        %v1279 = vunpack.c.l.b16 %v671
        %v1280 = vunpack.c.l.b16 %v672
        %v1281 = vunpack.c.l.b16 %v673
        %v1282 = vunpack.c.l.b16 %v674
        %v1283 = vunpack.c.l.b16 %v675
        %v1284 = vunpack.c.l.b16 %v676
        %v1285 = vunpack.c.l.b16 %v677
        %v1286 = vunpack.c.l.b16 %v678
        %v1287 = vunpack.c.l.b16 %v679
        %v1288 = vunpack.c.l.b16 %v680
        %v1289 = vunpack.c.l.b16 %v681
        %v1290 = vunpack.c.l.b16 %v682
        %v1291 = vunpack.c.l.b16 %v683
        %v1292 = vunpack.c.l.b16 %v684
        %v1293 = vunpack.c.l.b16 %v685
        %v1294 = vunpack.c.l.b16 %v686
        %v1295 = vunpack.c.l.b16 %v687
        %v1296 = vunpack.c.l.b16 %v688
        %v1297 = vunpack.c.l.b16 %v689
        %v1298 = vunpack.c.l.b16 %v690
        %v1299 = vunpack.c.l.b16 %v691
        %v1300 = vunpack.c.l.b16 %v692
        %v1301 = vunpack.c.l.b16 %v693
        %v1302 = vunpack.c.l.b16 %v694
        %v1303 = vunpack.c.l.b16 %v695
        %v1304 = vunpack.c.l.b16 %v696
        %v1305 = vunpack.c.l.b16 %v697
        %v1306 = vunpack.c.l.b16 %v698
        %v1307 = vunpack.c.l.b16 %v699
        %v1308 = vunpack.c.l.b16 %v700
        %v1309 = vunpack.c.l.b16 %v701
        %v1310 = vunpack.c.l.b16 %v702
        %v1311 = vunpack.c.l.b16 %v703
        %v1312 = vunpack.c.l.b16 %v704
        %v1313 = vunpack.c.l.b16 %v705
        %v1314 = vunpack.c.l.b16 %v706
        %v1315 = vunpack.c.l.b16 %v707
        %v1316 = vunpack.c.l.b16 %v708
        %v1317 = vunpack.c.l.b16 %v709
        %v1318 = vunpack.c.l.b16 %v710
        %v1319 = vunpack.c.l.b16 %v711
        %v1320 = vunpack.c.l.b16 %v712
        %v1321 = vunpack.c.l.b16 %v713
        %v1322 = vunpack.c.l.b16 %v714
        %v1323 = vunpack.c.l.b16 %v715
        %v1324 = vunpack.c.l.b16 %v716
        %v1325 = vunpack.c.l.b16 %v717
        %v1326 = vunpack.c.l.b16 %v718
        %v1327 = vunpack.c.l.b16 %v719
        %v1328 = vunpack.c.l.b16 %v720
        %v1329 = vunpack.c.l.b16 %v721
        %v1330 = vunpack.c.l.b16 %v722
        %v1331 = vunpack.c.l.b16 %v723
        %v1332 = vpack.c.b16 %v1269, %v1268
        %v1333 = vpack.c.b16 %v1271, %v1270
        %v1334 = vpack.c.b16 %v1273, %v1272
        %v1335 = vpack.c.b16 %v1275, %v1274
        %v1336 = vpack.c.b16 %v1277, %v1276
        %v1337 = vpack.c.b16 %v1279, %v1278
        %v1338 = vpack.c.b16 %v1281, %v1280
        %v1339 = vpack.c.b16 %v1283, %v1282
        %v1340 = vpack.c.b16 %v1285, %v1284
        %v1341 = vpack.c.b16 %v1287, %v1286
        %v1342 = vpack.c.b16 %v1289, %v1288
        %v1343 = vpack.c.b16 %v1291, %v1290
        %v1344 = vpack.c.b16 %v1293, %v1292
        %v1345 = vpack.c.b16 %v1295, %v1294
        %v1346 = vpack.c.b16 %v1297, %v1296
        %v1347 = vpack.c.b16 %v1299, %v1298
        %v1348 = vpack.c.b16 %v1301, %v1300
        %v1349 = vpack.c.b16 %v1303, %v1302
        %v1350 = vpack.c.b16 %v1305, %v1304
        %v1351 = vpack.c.b16 %v1307, %v1306
        %v1352 = vpack.c.b16 %v1309, %v1308
        %v1353 = vpack.c.b16 %v1311, %v1310
        %v1354 = vpack.c.b16 %v1313, %v1312
        %v1355 = vpack.c.b16 %v1315, %v1314
        %v1356 = vpack.c.b16 %v1317, %v1316
        %v1357 = vpack.c.b16 %v1319, %v1318
        %v1358 = vpack.c.b16 %v1321, %v1320
        %v1359 = vpack.c.b16 %v1323, %v1322
        %v1360 = vpack.c.b16 %v1325, %v1324
        %v1361 = vpack.c.b16 %v1327, %v1326
        %v1362 = vpack.c.b16 %v1329, %v1328
        %v1363 = vpack.c.b16 %v1331, %v1330
        %1396 = vmatprep.subr.bf16.mxu0 0
        %1397 = vmatpush1.bf16.msra.mxu0 %v1339
        %1398 = vmatprep.subr.bf16.mxu0 0
        %1399 = vmatpush1.bf16.msra.mxu0 %v1338
        %1400 = vmatprep.subr.bf16.mxu0 0
        %1401 = vmatpush1.bf16.msra.mxu0 %v1337
        %1402 = vmatprep.subr.bf16.mxu0 0
        %1403 = vmatpush1.bf16.msra.mxu0 %v1336
        %1404 = vmatprep.subr.bf16.mxu0 0
        %1405 = vmatpush1.bf16.msra.mxu0 %v1335
        %1406 = vmatprep.subr.bf16.mxu0 0
        %1407 = vmatpush1.bf16.msra.mxu0 %v1334
        %1408 = vmatprep.subr.bf16.mxu0 0
        %1409 = vmatpush1.bf16.msra.mxu0 %v1333
        %1410 = vmatprep.subr.bf16.mxu0 0
        %1411 = vmatpush1.bf16.msra.mxu0 %v1332
        %1412 = vmatprep.subr.bf16.mxu0 0
        %1413 = vmatpush2.bf16.msra.mxu0 %v1347
        %1414 = vmatprep.subr.bf16.mxu0 0
        %1415 = vmatpush2.bf16.msra.mxu0 %v1346
        %1416 = vmatprep.subr.bf16.mxu0 0
        %1417 = vmatpush2.bf16.msra.mxu0 %v1345
        %1418 = vmatprep.subr.bf16.mxu0 0
        %1419 = vmatpush2.bf16.msra.mxu0 %v1344
        %1420 = vmatprep.subr.bf16.mxu0 0
        %1421 = vmatpush2.bf16.msra.mxu0 %v1343
        %1422 = vmatprep.subr.bf16.mxu0 0
        %1423 = vmatpush2.bf16.msra.mxu0 %v1342
        %1424 = vmatprep.subr.bf16.mxu0 0
        %1425 = vmatpush2.bf16.msra.mxu0 %v1341
        %1426 = vmatprep.subr.bf16.mxu0 0
        %1427 = vmatpush2.bf16.msra.mxu0 %v1340
        %1428 = vmatprep.mubr.bf16.mxu0 %v1013
        %1429 = vmatmul.mubr.bf16.gmra.mxu0 %v1012
        %v1430 = vpop.f32.mrf.mxu0
        %v1431 = vadd.f32 0.0, %v1430
        %v1432 = vpop.f32.mrf.mxu0
        %v1433 = vpop.f32.mrf.mxu0
        %v1434 = vadd.f32 0.0, %v1433
        %v1435 = vpop.f32.mrf.mxu0
        %1436 = vmatprep.mubr.bf16.mxu0 %v1017
        %1437 = vmatmul.mubr.bf16.gmra.mxu0 %v1016
        %v1438 = vpop.f32.mrf.mxu0
        %v1439 = vadd.f32 0.0, %v1438
        %v1440 = vpop.f32.mrf.mxu0
        %v1441 = vpop.f32.mrf.mxu0
        %v1442 = vadd.f32 0.0, %v1441
        %v1443 = vpop.f32.mrf.mxu0
        %1444 = vmatprep.mubr.bf16.mxu0 %v1021
        %1445 = vmatmul.mubr.bf16.gmra.mxu0 %v1020
        %v1446 = vpop.f32.mrf.mxu0
        %v1447 = vadd.f32 0.0, %v1446
        %v1448 = vpop.f32.mrf.mxu0
        %v1449 = vpop.f32.mrf.mxu0
        %v1450 = vadd.f32 0.0, %v1449
        %v1451 = vpop.f32.mrf.mxu0
        %1452 = vmatprep.mubr.bf16.mxu0 %v1025
        %1453 = vmatmul.mubr.bf16.gmra.mxu0 %v1024
        %v1454 = vpop.f32.mrf.mxu0
        %v1455 = vadd.f32 0.0, %v1454
        %v1456 = vpop.f32.mrf.mxu0
        %v1457 = vpop.f32.mrf.mxu0
        %v1458 = vadd.f32 0.0, %v1457
        %v1459 = vpop.f32.mrf.mxu0
        %1460 = vmatprep.mubr.bf16.mxu0 %v1029
        %1461 = vmatmul.mubr.bf16.gmra.mxu0 %v1028
        %v1462 = vpop.f32.mrf.mxu0
        %v1463 = vadd.f32 0.0, %v1462
        %v1464 = vpop.f32.mrf.mxu0
        %v1465 = vpop.f32.mrf.mxu0
        %v1466 = vadd.f32 0.0, %v1465
        %v1467 = vpop.f32.mrf.mxu0
        %1468 = vmatprep.mubr.bf16.mxu0 %v1033
        %1469 = vmatmul.mubr.bf16.gmra.mxu0 %v1032
        %v1470 = vpop.f32.mrf.mxu0
        %v1471 = vadd.f32 0.0, %v1470
        %v1472 = vpop.f32.mrf.mxu0
        %v1473 = vpop.f32.mrf.mxu0
        %v1474 = vadd.f32 0.0, %v1473
        %v1475 = vpop.f32.mrf.mxu0
        %1476 = vmatprep.mubr.bf16.mxu0 %v1037
        %1477 = vmatmul.mubr.bf16.gmra.mxu0 %v1036
        %v1478 = vpop.f32.mrf.mxu0
        %v1479 = vadd.f32 0.0, %v1478
        %v1480 = vpop.f32.mrf.mxu0
        %v1481 = vpop.f32.mrf.mxu0
        %v1482 = vadd.f32 0.0, %v1481
        %v1483 = vpop.f32.mrf.mxu0
        %1484 = vmatprep.mubr.bf16.mxu0 %v1041
        %1485 = vmatmul.mubr.bf16.gmra.mxu0 %v1040
        %v1486 = vpop.f32.mrf.mxu0
        %v1487 = vadd.f32 0.0, %v1486
        %v1488 = vpop.f32.mrf.mxu0
        %v1489 = vpop.f32.mrf.mxu0
        %v1490 = vadd.f32 0.0, %v1489
        %v1491 = vpop.f32.mrf.mxu0
        %1492 = vmatprep.mubr.bf16.mxu0 %v1045
        %1493 = vmatmul.mubr.bf16.gmra.mxu0 %v1044
        %v1494 = vpop.f32.mrf.mxu0
        %v1495 = vadd.f32 0.0, %v1494
        %v1496 = vpop.f32.mrf.mxu0
        %v1497 = vpop.f32.mrf.mxu0
        %v1498 = vadd.f32 0.0, %v1497
        %v1499 = vpop.f32.mrf.mxu0
        %1500 = vmatprep.mubr.bf16.mxu0 %v1049
        %1501 = vmatmul.mubr.bf16.gmra.mxu0 %v1048
        %v1502 = vpop.f32.mrf.mxu0
        %v1503 = vadd.f32 0.0, %v1502
        %v1504 = vpop.f32.mrf.mxu0
        %v1505 = vpop.f32.mrf.mxu0
        %v1506 = vadd.f32 0.0, %v1505
        %v1507 = vpop.f32.mrf.mxu0
        %1508 = vmatprep.mubr.bf16.mxu0 %v1053
        %1509 = vmatmul.mubr.bf16.gmra.mxu0 %v1052
        %v1510 = vpop.f32.mrf.mxu0
        %v1511 = vadd.f32 0.0, %v1510
        %v1512 = vpop.f32.mrf.mxu0
        %v1513 = vpop.f32.mrf.mxu0
        %v1514 = vadd.f32 0.0, %v1513
        %v1515 = vpop.f32.mrf.mxu0
        %1516 = vmatprep.mubr.bf16.mxu0 %v1057
        %1517 = vmatmul.mubr.bf16.gmra.mxu0 %v1056
        %v1518 = vpop.f32.mrf.mxu0
        %v1519 = vadd.f32 0.0, %v1518
        %v1520 = vpop.f32.mrf.mxu0
        %v1521 = vpop.f32.mrf.mxu0
        %v1522 = vadd.f32 0.0, %v1521
        %v1523 = vpop.f32.mrf.mxu0
        %1524 = vmatprep.mubr.bf16.mxu0 %v1061
        %1525 = vmatmul.mubr.bf16.gmra.mxu0 %v1060
        %v1526 = vpop.f32.mrf.mxu0
        %v1527 = vadd.f32 0.0, %v1526
        %v1528 = vpop.f32.mrf.mxu0
        %v1529 = vpop.f32.mrf.mxu0
        %v1530 = vadd.f32 0.0, %v1529
        %v1531 = vpop.f32.mrf.mxu0
        %1532 = vmatprep.mubr.bf16.mxu0 %v1065
        %1533 = vmatmul.mubr.bf16.gmra.mxu0 %v1064
        %v1534 = vpop.f32.mrf.mxu0
        %v1535 = vadd.f32 0.0, %v1534
        %v1536 = vpop.f32.mrf.mxu0
        %v1537 = vpop.f32.mrf.mxu0
        %v1538 = vadd.f32 0.0, %v1537
        %v1539 = vpop.f32.mrf.mxu0
        %1540 = vmatprep.mubr.bf16.mxu0 %v1069
        %1541 = vmatmul.mubr.bf16.gmra.mxu0 %v1068
        %v1542 = vpop.f32.mrf.mxu0
        %v1543 = vadd.f32 0.0, %v1542
        %v1544 = vpop.f32.mrf.mxu0
        %v1545 = vpop.f32.mrf.mxu0
        %v1546 = vadd.f32 0.0, %v1545
        %v1547 = vpop.f32.mrf.mxu0
        %1548 = vmatprep.mubr.bf16.mxu0 %v1073
        %1549 = vmatmul.mubr.bf16.gmra.mxu0 %v1072
        %v1550 = vpop.f32.mrf.mxu0
        %v1551 = vadd.f32 0.0, %v1550
        %v1552 = vpop.f32.mrf.mxu0
        %v1553 = vpop.f32.mrf.mxu0
        %v1554 = vadd.f32 0.0, %v1553
        %v1555 = vpop.f32.mrf.mxu0
        %1556 = vmatprep.mubr.bf16.mxu0 %v1077
        %1557 = vmatmul.mubr.bf16.gmra.mxu0 %v1076
        %v1558 = vpop.f32.mrf.mxu0
        %v1559 = vadd.f32 0.0, %v1558
        %v1560 = vpop.f32.mrf.mxu0
        %v1561 = vpop.f32.mrf.mxu0
        %v1562 = vadd.f32 0.0, %v1561
        %v1563 = vpop.f32.mrf.mxu0
        %1564 = vmatprep.mubr.bf16.mxu0 %v1081
        %1565 = vmatmul.mubr.bf16.gmra.mxu0 %v1080
        %v1566 = vpop.f32.mrf.mxu0
        %v1567 = vadd.f32 0.0, %v1566
        %v1568 = vpop.f32.mrf.mxu0
        %v1569 = vpop.f32.mrf.mxu0
        %v1570 = vadd.f32 0.0, %v1569
        %v1571 = vpop.f32.mrf.mxu0
        %1572 = vmatprep.mubr.bf16.mxu0 %v1085
        %1573 = vmatmul.mubr.bf16.gmra.mxu0 %v1084
        %v1574 = vpop.f32.mrf.mxu0
        %v1575 = vadd.f32 0.0, %v1574
        %v1576 = vpop.f32.mrf.mxu0
        %v1577 = vpop.f32.mrf.mxu0
        %v1578 = vadd.f32 0.0, %v1577
        %v1579 = vpop.f32.mrf.mxu0
        %1580 = vmatprep.mubr.bf16.mxu0 %v1089
        %1581 = vmatmul.mubr.bf16.gmra.mxu0 %v1088
        %v1582 = vpop.f32.mrf.mxu0
        %v1583 = vadd.f32 0.0, %v1582
        %v1584 = vpop.f32.mrf.mxu0
        %v1585 = vpop.f32.mrf.mxu0
        %v1586 = vadd.f32 0.0, %v1585
        %v1587 = vpop.f32.mrf.mxu0
        %1588 = vmatprep.mubr.bf16.mxu0 %v1093
        %1589 = vmatmul.mubr.bf16.gmra.mxu0 %v1092
        %v1590 = vpop.f32.mrf.mxu0
        %v1591 = vadd.f32 0.0, %v1590
        %v1592 = vpop.f32.mrf.mxu0
        %v1593 = vpop.f32.mrf.mxu0
        %v1594 = vadd.f32 0.0, %v1593
        %v1595 = vpop.f32.mrf.mxu0
        %1596 = vmatprep.mubr.bf16.mxu0 %v1097
        %1597 = vmatmul.mubr.bf16.gmra.mxu0 %v1096
        %v1598 = vpop.f32.mrf.mxu0
        %v1599 = vadd.f32 0.0, %v1598
        %v1600 = vpop.f32.mrf.mxu0
        %v1601 = vpop.f32.mrf.mxu0
        %v1602 = vadd.f32 0.0, %v1601
        %v1603 = vpop.f32.mrf.mxu0
        %1604 = vmatprep.mubr.bf16.mxu0 %v1101
        %1605 = vmatmul.mubr.bf16.gmra.mxu0 %v1100
        %v1606 = vpop.f32.mrf.mxu0
        %v1607 = vadd.f32 0.0, %v1606
        %v1608 = vpop.f32.mrf.mxu0
        %v1609 = vpop.f32.mrf.mxu0
        %v1610 = vadd.f32 0.0, %v1609
        %v1611 = vpop.f32.mrf.mxu0
        %1612 = vmatprep.mubr.bf16.mxu0 %v1105
        %1613 = vmatmul.mubr.bf16.gmra.mxu0 %v1104
        %v1614 = vpop.f32.mrf.mxu0
        %v1615 = vadd.f32 0.0, %v1614
        %v1616 = vpop.f32.mrf.mxu0
        %v1617 = vpop.f32.mrf.mxu0
        %v1618 = vadd.f32 0.0, %v1617
        %v1619 = vpop.f32.mrf.mxu0
        %1620 = vdwg.mxu0
        %1621 = vmatprep.subr.bf16.mxu0 0
        %1622 = vmatpush1.bf16.msra.mxu0 %v1355
        %1623 = vmatprep.subr.bf16.mxu0 0
        %1624 = vmatpush1.bf16.msra.mxu0 %v1354
        %1625 = vmatprep.subr.bf16.mxu0 0
        %1626 = vmatpush1.bf16.msra.mxu0 %v1353
        %1627 = vmatprep.subr.bf16.mxu0 0
        %1628 = vmatpush1.bf16.msra.mxu0 %v1352
        %1629 = vmatprep.subr.bf16.mxu0 0
        %1630 = vmatpush1.bf16.msra.mxu0 %v1351
        %1631 = vmatprep.subr.bf16.mxu0 0
        %1632 = vmatpush1.bf16.msra.mxu0 %v1350
        %1633 = vmatprep.subr.bf16.mxu0 0
        %1634 = vmatpush1.bf16.msra.mxu0 %v1349
        %1635 = vmatprep.subr.bf16.mxu0 0
        %1636 = vmatpush1.bf16.msra.mxu0 %v1348
        %1637 = vmatprep.subr.bf16.mxu0 0
        %1638 = vmatpush2.bf16.msra.mxu0 %v1363
        %1639 = vmatprep.subr.bf16.mxu0 0
        %1640 = vmatpush2.bf16.msra.mxu0 %v1362
        %1641 = vmatprep.subr.bf16.mxu0 0
        %1642 = vmatpush2.bf16.msra.mxu0 %v1361
        %1643 = vmatprep.subr.bf16.mxu0 0
        %1644 = vmatpush2.bf16.msra.mxu0 %v1360
        %1645 = vmatprep.subr.bf16.mxu0 0
        %1646 = vmatpush2.bf16.msra.mxu0 %v1359
        %1647 = vmatprep.subr.bf16.mxu0 0
        %1648 = vmatpush2.bf16.msra.mxu0 %v1358
        %1649 = vmatprep.subr.bf16.mxu0 0
        %1650 = vmatpush2.bf16.msra.mxu0 %v1357
        %1651 = vmatprep.subr.bf16.mxu0 0
        %1652 = vmatpush2.bf16.msra.mxu0 %v1356
        %1653 = vmatprep.mubr.bf16.mxu0 %v1015
        %1654 = vmatmul.mubr.bf16.gmra.mxu0 %v1014
        %v1655 = vpop.f32.mrf.mxu0
        %v1656 = vadd.f32 %v1431, %v1655
        %v1657 = vpop.f32.mrf.mxu0
        %v1658 = vpop.f32.mrf.mxu0
        %v1659 = vadd.f32 %v1434, %v1658
        %v1660 = vpop.f32.mrf.mxu0
        %1661 = vmatprep.mubr.bf16.mxu0 %v1019
        %1662 = vmatmul.mubr.bf16.gmra.mxu0 %v1018
        %v1663 = vpop.f32.mrf.mxu0
        %v1664 = vadd.f32 %v1439, %v1663
        %v1665 = vpop.f32.mrf.mxu0
        %v1666 = vpop.f32.mrf.mxu0
        %v1667 = vadd.f32 %v1442, %v1666
        %v1668 = vpop.f32.mrf.mxu0
        %1669 = vmatprep.mubr.bf16.mxu0 %v1023
        %1670 = vmatmul.mubr.bf16.gmra.mxu0 %v1022
        %v1671 = vpop.f32.mrf.mxu0
        %v1672 = vadd.f32 %v1447, %v1671
        %v1673 = vpop.f32.mrf.mxu0
        %v1674 = vpop.f32.mrf.mxu0
        %v1675 = vadd.f32 %v1450, %v1674
        %v1676 = vpop.f32.mrf.mxu0
        %1677 = vmatprep.mubr.bf16.mxu0 %v1027
        %1678 = vmatmul.mubr.bf16.gmra.mxu0 %v1026
        %v1679 = vpop.f32.mrf.mxu0
        %v1680 = vadd.f32 %v1455, %v1679
        %v1681 = vpop.f32.mrf.mxu0
        %v1682 = vpop.f32.mrf.mxu0
        %v1683 = vadd.f32 %v1458, %v1682
        %v1684 = vpop.f32.mrf.mxu0
        %1685 = vmatprep.mubr.bf16.mxu0 %v1031
        %1686 = vmatmul.mubr.bf16.gmra.mxu0 %v1030
        %v1687 = vpop.f32.mrf.mxu0
        %v1688 = vadd.f32 %v1463, %v1687
        %v1689 = vpop.f32.mrf.mxu0
        %v1690 = vpop.f32.mrf.mxu0
        %v1691 = vadd.f32 %v1466, %v1690
        %v1692 = vpop.f32.mrf.mxu0
        %1693 = vmatprep.mubr.bf16.mxu0 %v1035
        %1694 = vmatmul.mubr.bf16.gmra.mxu0 %v1034
        %v1695 = vpop.f32.mrf.mxu0
        %v1696 = vadd.f32 %v1471, %v1695
        %v1697 = vpop.f32.mrf.mxu0
        %v1698 = vpop.f32.mrf.mxu0
        %v1699 = vadd.f32 %v1474, %v1698
        %v1700 = vpop.f32.mrf.mxu0
        %1701 = vmatprep.mubr.bf16.mxu0 %v1039
        %1702 = vmatmul.mubr.bf16.gmra.mxu0 %v1038
        %v1703 = vpop.f32.mrf.mxu0
        %v1704 = vadd.f32 %v1479, %v1703
        %v1705 = vpop.f32.mrf.mxu0
        %v1706 = vpop.f32.mrf.mxu0
        %v1707 = vadd.f32 %v1482, %v1706
        %v1708 = vpop.f32.mrf.mxu0
        %1709 = vmatprep.mubr.bf16.mxu0 %v1043
        %1710 = vmatmul.mubr.bf16.gmra.mxu0 %v1042
        %v1711 = vpop.f32.mrf.mxu0
        %v1712 = vadd.f32 %v1487, %v1711
        %v1713 = vpop.f32.mrf.mxu0
        %v1714 = vpop.f32.mrf.mxu0
        %v1715 = vadd.f32 %v1490, %v1714
        %v1716 = vpop.f32.mrf.mxu0
        %1717 = vmatprep.mubr.bf16.mxu0 %v1047
        %1718 = vmatmul.mubr.bf16.gmra.mxu0 %v1046
        %v1719 = vpop.f32.mrf.mxu0
        %v1720 = vadd.f32 %v1495, %v1719
        %v1721 = vpop.f32.mrf.mxu0
        %v1722 = vpop.f32.mrf.mxu0
        %v1723 = vadd.f32 %v1498, %v1722
        %v1724 = vpop.f32.mrf.mxu0
        %1725 = vmatprep.mubr.bf16.mxu0 %v1051
        %1726 = vmatmul.mubr.bf16.gmra.mxu0 %v1050
        %v1727 = vpop.f32.mrf.mxu0
        %v1728 = vadd.f32 %v1503, %v1727
        %v1729 = vpop.f32.mrf.mxu0
        %v1730 = vpop.f32.mrf.mxu0
        %v1731 = vadd.f32 %v1506, %v1730
        %v1732 = vpop.f32.mrf.mxu0
        %1733 = vmatprep.mubr.bf16.mxu0 %v1055
        %1734 = vmatmul.mubr.bf16.gmra.mxu0 %v1054
        %v1735 = vpop.f32.mrf.mxu0
        %v1736 = vadd.f32 %v1511, %v1735
        %v1737 = vpop.f32.mrf.mxu0
        %v1738 = vpop.f32.mrf.mxu0
        %v1739 = vadd.f32 %v1514, %v1738
        %v1740 = vpop.f32.mrf.mxu0
        %1741 = vmatprep.mubr.bf16.mxu0 %v1059
        %1742 = vmatmul.mubr.bf16.gmra.mxu0 %v1058
        %v1743 = vpop.f32.mrf.mxu0
        %v1744 = vadd.f32 %v1519, %v1743
        %v1745 = vpop.f32.mrf.mxu0
        %v1746 = vpop.f32.mrf.mxu0
        %v1747 = vadd.f32 %v1522, %v1746
        %v1748 = vpop.f32.mrf.mxu0
        %1749 = vmatprep.mubr.bf16.mxu0 %v1063
        %1750 = vmatmul.mubr.bf16.gmra.mxu0 %v1062
        %v1751 = vpop.f32.mrf.mxu0
        %v1752 = vadd.f32 %v1527, %v1751
        %v1753 = vpop.f32.mrf.mxu0
        %v1754 = vpop.f32.mrf.mxu0
        %v1755 = vadd.f32 %v1530, %v1754
        %v1756 = vpop.f32.mrf.mxu0
        %1757 = vmatprep.mubr.bf16.mxu0 %v1067
        %1758 = vmatmul.mubr.bf16.gmra.mxu0 %v1066
        %v1759 = vpop.f32.mrf.mxu0
        %v1760 = vadd.f32 %v1535, %v1759
        %v1761 = vpop.f32.mrf.mxu0
        %v1762 = vpop.f32.mrf.mxu0
        %v1763 = vadd.f32 %v1538, %v1762
        %v1764 = vpop.f32.mrf.mxu0
        %1765 = vmatprep.mubr.bf16.mxu0 %v1071
        %1766 = vmatmul.mubr.bf16.gmra.mxu0 %v1070
        %v1767 = vpop.f32.mrf.mxu0
        %v1768 = vadd.f32 %v1543, %v1767
        %v1769 = vpop.f32.mrf.mxu0
        %v1770 = vpop.f32.mrf.mxu0
        %v1771 = vadd.f32 %v1546, %v1770
        %v1772 = vpop.f32.mrf.mxu0
        %1773 = vmatprep.mubr.bf16.mxu0 %v1075
        %1774 = vmatmul.mubr.bf16.gmra.mxu0 %v1074
        %v1775 = vpop.f32.mrf.mxu0
        %v1776 = vadd.f32 %v1551, %v1775
        %v1777 = vpop.f32.mrf.mxu0
        %v1778 = vpop.f32.mrf.mxu0
        %v1779 = vadd.f32 %v1554, %v1778
        %v1780 = vpop.f32.mrf.mxu0
        %1781 = vmatprep.mubr.bf16.mxu0 %v1079
        %1782 = vmatmul.mubr.bf16.gmra.mxu0 %v1078
        %v1783 = vpop.f32.mrf.mxu0
        %v1784 = vadd.f32 %v1559, %v1783
        %v1785 = vpop.f32.mrf.mxu0
        %v1786 = vpop.f32.mrf.mxu0
        %v1787 = vadd.f32 %v1562, %v1786
        %v1788 = vpop.f32.mrf.mxu0
        %1789 = vmatprep.mubr.bf16.mxu0 %v1083
        %1790 = vmatmul.mubr.bf16.gmra.mxu0 %v1082
        %v1791 = vpop.f32.mrf.mxu0
        %v1792 = vadd.f32 %v1567, %v1791
        %v1793 = vpop.f32.mrf.mxu0
        %v1794 = vpop.f32.mrf.mxu0
        %v1795 = vadd.f32 %v1570, %v1794
        %v1796 = vpop.f32.mrf.mxu0
        %1797 = vmatprep.mubr.bf16.mxu0 %v1087
        %1798 = vmatmul.mubr.bf16.gmra.mxu0 %v1086
        %v1799 = vpop.f32.mrf.mxu0
        %v1800 = vadd.f32 %v1575, %v1799
        %v1801 = vpop.f32.mrf.mxu0
        %v1802 = vpop.f32.mrf.mxu0
        %v1803 = vadd.f32 %v1578, %v1802
        %v1804 = vpop.f32.mrf.mxu0
        %1805 = vmatprep.mubr.bf16.mxu0 %v1091
        %1806 = vmatmul.mubr.bf16.gmra.mxu0 %v1090
        %v1807 = vpop.f32.mrf.mxu0
        %v1808 = vadd.f32 %v1583, %v1807
        %v1809 = vpop.f32.mrf.mxu0
        %v1810 = vpop.f32.mrf.mxu0
        %v1811 = vadd.f32 %v1586, %v1810
        %v1812 = vpop.f32.mrf.mxu0
        %1813 = vmatprep.mubr.bf16.mxu0 %v1095
        %1814 = vmatmul.mubr.bf16.gmra.mxu0 %v1094
        %v1815 = vpop.f32.mrf.mxu0
        %v1816 = vadd.f32 %v1591, %v1815
        %v1817 = vpop.f32.mrf.mxu0
        %v1818 = vpop.f32.mrf.mxu0
        %v1819 = vadd.f32 %v1594, %v1818
        %v1820 = vpop.f32.mrf.mxu0
        %1821 = vmatprep.mubr.bf16.mxu0 %v1099
        %1822 = vmatmul.mubr.bf16.gmra.mxu0 %v1098
        %v1823 = vpop.f32.mrf.mxu0
        %v1824 = vadd.f32 %v1599, %v1823
        %v1825 = vpop.f32.mrf.mxu0
        %v1826 = vpop.f32.mrf.mxu0
        %v1827 = vadd.f32 %v1602, %v1826
        %v1828 = vpop.f32.mrf.mxu0
        %1829 = vmatprep.mubr.bf16.mxu0 %v1103
        %1830 = vmatmul.mubr.bf16.gmra.mxu0 %v1102
        %v1831 = vpop.f32.mrf.mxu0
        %v1832 = vadd.f32 %v1607, %v1831
        %v1833 = vpop.f32.mrf.mxu0
        %v1834 = vpop.f32.mrf.mxu0
        %v1835 = vadd.f32 %v1610, %v1834
        %v1836 = vpop.f32.mrf.mxu0
        %1837 = vmatprep.mubr.bf16.mxu0 %v1107
        %1838 = vmatmul.mubr.bf16.gmra.mxu0 %v1106
        %v1839 = vpop.f32.mrf.mxu0
        %v1840 = vadd.f32 %v1615, %v1839
        %v1841 = vpop.f32.mrf.mxu0
        %v1842 = vpop.f32.mrf.mxu0
        %v1843 = vadd.f32 %v1618, %v1842
        %v1844 = vpop.f32.mrf.mxu0
        %1845 = vdwg.mxu0
        %v1846 = vadd.f32 %v516, %v1656
        %v1847 = vadd.f32 %v517, %v1659
        %v1848 = vadd.f32 %v518, %v1664
        %v1849 = vadd.f32 %v519, %v1667
        %v1850 = vadd.f32 %v520, %v1672
        %v1851 = vadd.f32 %v521, %v1675
        %v1852 = vadd.f32 %v522, %v1680
        %v1853 = vadd.f32 %v523, %v1683
        %v1854 = vadd.f32 %v524, %v1688
        %v1855 = vadd.f32 %v525, %v1691
        %v1856 = vadd.f32 %v526, %v1696
        %v1857 = vadd.f32 %v527, %v1699
        %v1858 = vadd.f32 %v528, %v1704
        %v1859 = vadd.f32 %v529, %v1707
        %v1860 = vadd.f32 %v530, %v1712
        %v1861 = vadd.f32 %v531, %v1715
        %v1862 = vadd.f32 %v532, %v1720
        %v1863 = vadd.f32 %v533, %v1723
        %v1864 = vadd.f32 %v534, %v1728
        %v1865 = vadd.f32 %v535, %v1731
        %v1866 = vadd.f32 %v536, %v1736
        %v1867 = vadd.f32 %v537, %v1739
        %v1868 = vadd.f32 %v538, %v1744
        %v1869 = vadd.f32 %v539, %v1747
        %v1870 = vadd.f32 %v540, %v1752
        %v1871 = vadd.f32 %v541, %v1755
        %v1872 = vadd.f32 %v542, %v1760
        %v1873 = vadd.f32 %v543, %v1763
        %v1874 = vadd.f32 %v544, %v1768
        %v1875 = vadd.f32 %v545, %v1771
        %v1876 = vadd.f32 %v546, %v1776
        %v1877 = vadd.f32 %v547, %v1779
        %v1878 = vadd.f32 %v548, %v1784
        %v1879 = vadd.f32 %v549, %v1787
        %v1880 = vadd.f32 %v550, %v1792
        %v1881 = vadd.f32 %v551, %v1795
        %v1882 = vadd.f32 %v552, %v1800
        %v1883 = vadd.f32 %v553, %v1803
        %v1884 = vadd.f32 %v554, %v1808
        %v1885 = vadd.f32 %v555, %v1811
        %v1886 = vadd.f32 %v556, %v1816
        %v1887 = vadd.f32 %v557, %v1819
        %v1888 = vadd.f32 %v558, %v1824
        %v1889 = vadd.f32 %v559, %v1827
        %v1890 = vadd.f32 %v560, %v1832
        %v1891 = vadd.f32 %v561, %v1835
        %v1892 = vadd.f32 %v562, %v1840
        %v1893 = vadd.f32 %v563, %v1843
        %1894 = vst [vmem:[#allocation2] sm:$0xff] %v1846
        %1895 = vst [vmem:[#allocation2 + $0x8] sm:$0xff] %v1847
        %1896 = vst [vmem:[#allocation2 + $0x10] sm:$0xff] %v1848
        %1897 = vst [vmem:[#allocation2 + $0x18] sm:$0xff] %v1849
        %1898 = vst [vmem:[#allocation2 + $0x20] sm:$0xff] %v1850
        %1899 = vst [vmem:[#allocation2 + $0x28] sm:$0xff] %v1851
        %1900 = vst [vmem:[#allocation2 + $0x30] sm:$0xff] %v1852
        %1901 = vst [vmem:[#allocation2 + $0x38] sm:$0xff] %v1853
        %1902 = vst [vmem:[#allocation2 + $0x40] sm:$0xff] %v1854
        %1903 = vst [vmem:[#allocation2 + $0x48] sm:$0xff] %v1855
        %1904 = vst [vmem:[#allocation2 + $0x50] sm:$0xff] %v1856
        %1905 = vst [vmem:[#allocation2 + $0x58] sm:$0xff] %v1857
        %1906 = vst [vmem:[#allocation2 + $0x60] sm:$0xff] %v1858
        %1907 = vst [vmem:[#allocation2 + $0x68] sm:$0xff] %v1859
        %1908 = vst [vmem:[#allocation2 + $0x70] sm:$0xff] %v1860
        %1909 = vst [vmem:[#allocation2 + $0x78] sm:$0xff] %v1861
        %1910 = vst [vmem:[#allocation2 + $0x80] sm:$0xff] %v1862
        %1911 = vst [vmem:[#allocation2 + $0x88] sm:$0xff] %v1863
        %1912 = vst [vmem:[#allocation2 + $0x90] sm:$0xff] %v1864
        %1913 = vst [vmem:[#allocation2 + $0x98] sm:$0xff] %v1865
        %1914 = vst [vmem:[#allocation2 + $0xa0] sm:$0xff] %v1866
        %1915 = vst [vmem:[#allocation2 + $0xa8] sm:$0xff] %v1867
        %1916 = vst [vmem:[#allocation2 + $0xb0] sm:$0xff] %v1868
        %1917 = vst [vmem:[#allocation2 + $0xb8] sm:$0xff] %v1869
        %1918 = vst [vmem:[#allocation2 + $0xc0] sm:$0xff] %v1870
        %1919 = vst [vmem:[#allocation2 + $0xc8] sm:$0xff] %v1871
        %1920 = vst [vmem:[#allocation2 + $0xd0] sm:$0xff] %v1872
        %1921 = vst [vmem:[#allocation2 + $0xd8] sm:$0xff] %v1873
        %1922 = vst [vmem:[#allocation2 + $0xe0] sm:$0xff] %v1874
        %1923 = vst [vmem:[#allocation2 + $0xe8] sm:$0xff] %v1875
        %1924 = vst [vmem:[#allocation2 + $0xf0] sm:$0xff] %v1876
        %1925 = vst [vmem:[#allocation2 + $0xf8] sm:$0xff] %v1877
        %1926 = vst [vmem:[#allocation2 + $0x100] sm:$0xff] %v1878
        %1927 = vst [vmem:[#allocation2 + $0x108] sm:$0xff] %v1879
        %1928 = vst [vmem:[#allocation2 + $0x110] sm:$0xff] %v1880
        %1929 = vst [vmem:[#allocation2 + $0x118] sm:$0xff] %v1881
        %1930 = vst [vmem:[#allocation2 + $0x120] sm:$0xff] %v1882
        %1931 = vst [vmem:[#allocation2 + $0x128] sm:$0xff] %v1883
        %1932 = vst [vmem:[#allocation2 + $0x130] sm:$0xff] %v1884
        %1933 = vst [vmem:[#allocation2 + $0x138] sm:$0xff] %v1885
        %1934 = vst [vmem:[#allocation2 + $0x140] sm:$0xff] %v1886
        %1935 = vst [vmem:[#allocation2 + $0x148] sm:$0xff] %v1887
        %1936 = vst [vmem:[#allocation2 + $0x150] sm:$0xff] %v1888
        %1937 = vst [vmem:[#allocation2 + $0x158] sm:$0xff] %v1889
        %1938 = vst [vmem:[#allocation2 + $0x160] sm:$0xff] %v1890
        %1939 = vst [vmem:[#allocation2 + $0x168] sm:$0xff] %v1891
        %1940 = vst [vmem:[#allocation2 + $0x170] sm:$0xff] %v1892
        %1941 = vst [vmem:[#allocation2 + $0x178] sm:$0xff] %v1893
        %p1942 = scmp.eq.s32.totalorder %s21, 1
        // Predicated region
        $region60: #{vpgnet_forward.26} parent=50 // pred_check
          %p1943 = pneg %p1942
        $region61: #{vpgnet_forward.26} parent=50 // pred_check_branch
          %1945 = sbr.rel (%p1943) target = $region63
        $region62: #{vpgnet_forward.26} parent=50 // pred_region
          %v1946 = vld [vmem:[#allocation2] sm:$0xff]
          %v1947 = vld [vmem:[#allocation2 + $0x8] sm:$0xff]
          %v1948 = vld [vmem:[#allocation2 + $0x10] sm:$0xff]
          %v1949 = vld [vmem:[#allocation2 + $0x18] sm:$0xff]
          %v1950 = vld [vmem:[#allocation2 + $0x20] sm:$0xff]
          %v1951 = vld [vmem:[#allocation2 + $0x28] sm:$0xff]
          %v1952 = vld [vmem:[#allocation2 + $0x30] sm:$0xff]
          %v1953 = vld [vmem:[#allocation2 + $0x38] sm:$0xff]
          %v1954 = vld [vmem:[#allocation2 + $0x40] sm:$0xff]
          %v1955 = vld [vmem:[#allocation2 + $0x48] sm:$0xff]
          %v1956 = vld [vmem:[#allocation2 + $0x50] sm:$0xff]
          %v1957 = vld [vmem:[#allocation2 + $0x58] sm:$0xff]
          %v1958 = vld [vmem:[#allocation2 + $0x60] sm:$0xff]
          %v1959 = vld [vmem:[#allocation2 + $0x68] sm:$0xff]
          %v1960 = vld [vmem:[#allocation2 + $0x70] sm:$0xff]
          %v1961 = vld [vmem:[#allocation2 + $0x78] sm:$0xff]
          %v1962 = vld [vmem:[#allocation2 + $0x80] sm:$0xff]
          %v1963 = vld [vmem:[#allocation2 + $0x88] sm:$0xff]
          %v1964 = vld [vmem:[#allocation2 + $0x90] sm:$0xff]
          %v1965 = vld [vmem:[#allocation2 + $0x98] sm:$0xff]
          %v1966 = vld [vmem:[#allocation2 + $0xa0] sm:$0xff]
          %v1967 = vld [vmem:[#allocation2 + $0xa8] sm:$0xff]
          %v1968 = vld [vmem:[#allocation2 + $0xb0] sm:$0xff]
          %v1969 = vld [vmem:[#allocation2 + $0xb8] sm:$0xff]
          %v1970 = vld [vmem:[#allocation2 + $0xc0] sm:$0xff]
          %v1971 = vld [vmem:[#allocation2 + $0xc8] sm:$0xff]
          %v1972 = vld [vmem:[#allocation2 + $0xd0] sm:$0xff]
          %v1973 = vld [vmem:[#allocation2 + $0xd8] sm:$0xff]
          %v1974 = vld [vmem:[#allocation2 + $0xe0] sm:$0xff]
          %v1975 = vld [vmem:[#allocation2 + $0xe8] sm:$0xff]
          %v1976 = vld [vmem:[#allocation2 + $0xf0] sm:$0xff]
          %v1977 = vld [vmem:[#allocation2 + $0xf8] sm:$0xff]
          %v1978 = vld [vmem:[#allocation2 + $0x100] sm:$0xff]
          %v1979 = vld [vmem:[#allocation2 + $0x108] sm:$0xff]
          %v1980 = vld [vmem:[#allocation2 + $0x110] sm:$0xff]
          %v1981 = vld [vmem:[#allocation2 + $0x118] sm:$0xff]
          %v1982 = vld [vmem:[#allocation2 + $0x120] sm:$0xff]
          %v1983 = vld [vmem:[#allocation2 + $0x128] sm:$0xff]
          %v1984 = vld [vmem:[#allocation2 + $0x130] sm:$0xff]
          %v1985 = vld [vmem:[#allocation2 + $0x138] sm:$0xff]
          %v1986 = vld [vmem:[#allocation2 + $0x140] sm:$0xff]
          %v1987 = vld [vmem:[#allocation2 + $0x148] sm:$0xff]
          %v1988 = vld [vmem:[#allocation2 + $0x150] sm:$0xff]
          %v1989 = vld [vmem:[#allocation2 + $0x158] sm:$0xff]
          %v1990 = vld [vmem:[#allocation2 + $0x160] sm:$0xff]
          %v1991 = vld [vmem:[#allocation2 + $0x168] sm:$0xff]
          %v1992 = vld [vmem:[#allocation2 + $0x170] sm:$0xff]
          %v1993 = vld [vmem:[#allocation2 + $0x178] sm:$0xff]
          %v1994 = vld [vmem:[%s453] sm:$0x1]
          %v1996 = vlaneseq
          %v1997 = vshrl.u32 %v1996, 7
          %v1998 = vsub.s32 0, %v1997
          %v1999 = vrot.slane %v1994, %v1998
          %v2001 = vadd.f32 %v1946, %v1999
          %v2002 = vadd.f32 %v1947, %v1999
          %v2003 = vadd.f32 %v1948, %v1999
          %v2004 = vadd.f32 %v1949, %v1999
          %v2005 = vadd.f32 %v1950, %v1999
          %v2006 = vadd.f32 %v1951, %v1999
          %v2007 = vadd.f32 %v1952, %v1999
          %v2008 = vadd.f32 %v1953, %v1999
          %v2009 = vadd.f32 %v1954, %v1999
          %v2010 = vadd.f32 %v1955, %v1999
          %v2011 = vadd.f32 %v1956, %v1999
          %v2012 = vadd.f32 %v1957, %v1999
          %v2013 = vadd.f32 %v1958, %v1999
          %v2014 = vadd.f32 %v1959, %v1999
          %v2015 = vadd.f32 %v1960, %v1999
          %v2016 = vadd.f32 %v1961, %v1999
          %v2017 = vadd.f32 %v1962, %v1999
          %v2018 = vadd.f32 %v1963, %v1999
          %v2019 = vadd.f32 %v1964, %v1999
          %v2020 = vadd.f32 %v1965, %v1999
          %v2021 = vadd.f32 %v1966, %v1999
          %v2022 = vadd.f32 %v1967, %v1999
          %v2023 = vadd.f32 %v1968, %v1999
          %v2024 = vadd.f32 %v1969, %v1999
          %v2025 = vadd.f32 %v1970, %v1999
          %v2026 = vadd.f32 %v1971, %v1999
          %v2027 = vadd.f32 %v1972, %v1999
          %v2028 = vadd.f32 %v1973, %v1999
          %v2029 = vadd.f32 %v1974, %v1999
          %v2030 = vadd.f32 %v1975, %v1999
          %v2031 = vadd.f32 %v1976, %v1999
          %v2032 = vadd.f32 %v1977, %v1999
          %v2033 = vadd.f32 %v1978, %v1999
          %v2034 = vadd.f32 %v1979, %v1999
          %v2035 = vadd.f32 %v1980, %v1999
          %v2036 = vadd.f32 %v1981, %v1999
          %v2037 = vadd.f32 %v1982, %v1999
          %v2038 = vadd.f32 %v1983, %v1999
          %v2039 = vadd.f32 %v1984, %v1999
          %v2040 = vadd.f32 %v1985, %v1999
          %v2041 = vadd.f32 %v1986, %v1999
          %v2042 = vadd.f32 %v1987, %v1999
          %v2043 = vadd.f32 %v1988, %v1999
          %v2044 = vadd.f32 %v1989, %v1999
          %v2045 = vadd.f32 %v1990, %v1999
          %v2046 = vadd.f32 %v1991, %v1999
          %v2047 = vadd.f32 %v1992, %v1999
          %v2048 = vadd.f32 %v1993, %v1999
          %v2049 = vmax.f32 %v2001, 0.0
          %v2050 = vmax.f32 %v2002, 0.0
          %v2051 = vmax.f32 %v2003, 0.0
          %v2052 = vmax.f32 %v2004, 0.0
          %v2053 = vmax.f32 %v2005, 0.0
          %v2054 = vmax.f32 %v2006, 0.0
          %v2055 = vmax.f32 %v2007, 0.0
          %v2056 = vmax.f32 %v2008, 0.0
          %v2057 = vmax.f32 %v2009, 0.0
          %v2058 = vmax.f32 %v2010, 0.0
          %v2059 = vmax.f32 %v2011, 0.0
          %v2060 = vmax.f32 %v2012, 0.0
          %v2061 = vmax.f32 %v2013, 0.0
          %v2062 = vmax.f32 %v2014, 0.0
          %v2063 = vmax.f32 %v2015, 0.0
          %v2064 = vmax.f32 %v2016, 0.0
          %v2065 = vmax.f32 %v2017, 0.0
          %v2066 = vmax.f32 %v2018, 0.0
          %v2067 = vmax.f32 %v2019, 0.0
          %v2068 = vmax.f32 %v2020, 0.0
          %v2069 = vmax.f32 %v2021, 0.0
          %v2070 = vmax.f32 %v2022, 0.0
          %v2071 = vmax.f32 %v2023, 0.0
          %v2072 = vmax.f32 %v2024, 0.0
          %v2073 = vmax.f32 %v2025, 0.0
          %v2074 = vmax.f32 %v2026, 0.0
          %v2075 = vmax.f32 %v2027, 0.0
          %v2076 = vmax.f32 %v2028, 0.0
          %v2077 = vmax.f32 %v2029, 0.0
          %v2078 = vmax.f32 %v2030, 0.0
          %v2079 = vmax.f32 %v2031, 0.0
          %v2080 = vmax.f32 %v2032, 0.0
          %v2081 = vmax.f32 %v2033, 0.0
          %v2082 = vmax.f32 %v2034, 0.0
          %v2083 = vmax.f32 %v2035, 0.0
          %v2084 = vmax.f32 %v2036, 0.0
          %v2085 = vmax.f32 %v2037, 0.0
          %v2086 = vmax.f32 %v2038, 0.0
          %v2087 = vmax.f32 %v2039, 0.0
          %v2088 = vmax.f32 %v2040, 0.0
          %v2089 = vmax.f32 %v2041, 0.0
          %v2090 = vmax.f32 %v2042, 0.0
          %v2091 = vmax.f32 %v2043, 0.0
          %v2092 = vmax.f32 %v2044, 0.0
          %v2093 = vmax.f32 %v2045, 0.0
          %v2094 = vmax.f32 %v2046, 0.0
          %v2095 = vmax.f32 %v2047, 0.0
          %v2096 = vmax.f32 %v2048, 0.0
          %2097 = vst [vmem:[%s461] sm:$0xff] %v2049
          %2098 = vst [vmem:[%s461 + $0x8] sm:$0xff] %v2050
          %2099 = vst [vmem:[%s461 + $0x10] sm:$0xff] %v2051
          %2100 = vst [vmem:[%s461 + $0x18] sm:$0xff] %v2052
          %2101 = vst [vmem:[%s461 + $0x20] sm:$0xff] %v2053
          %2102 = vst [vmem:[%s461 + $0x28] sm:$0xff] %v2054
          %2103 = vst [vmem:[%s461 + $0x30] sm:$0xff] %v2055
          %2104 = vst [vmem:[%s461 + $0x38] sm:$0xff] %v2056
          %2105 = vst [vmem:[%s461 + $0x40] sm:$0xff] %v2057
          %2106 = vst [vmem:[%s461 + $0x48] sm:$0xff] %v2058
          %2107 = vst [vmem:[%s461 + $0x50] sm:$0xff] %v2059
          %2108 = vst [vmem:[%s461 + $0x58] sm:$0xff] %v2060
          %2109 = vst [vmem:[%s461 + $0x60] sm:$0xff] %v2061
          %2110 = vst [vmem:[%s461 + $0x68] sm:$0xff] %v2062
          %2111 = vst [vmem:[%s461 + $0x70] sm:$0xff] %v2063
          %2112 = vst [vmem:[%s461 + $0x78] sm:$0xff] %v2064
          %2113 = vst [vmem:[%s461 + $0x80] sm:$0xff] %v2065
          %2114 = vst [vmem:[%s461 + $0x88] sm:$0xff] %v2066
          %2115 = vst [vmem:[%s461 + $0x90] sm:$0xff] %v2067
          %2116 = vst [vmem:[%s461 + $0x98] sm:$0xff] %v2068
          %2117 = vst [vmem:[%s461 + $0xa0] sm:$0xff] %v2069
          %2118 = vst [vmem:[%s461 + $0xa8] sm:$0xff] %v2070
          %2119 = vst [vmem:[%s461 + $0xb0] sm:$0xff] %v2071
          %2120 = vst [vmem:[%s461 + $0xb8] sm:$0xff] %v2072
          %2121 = vst [vmem:[%s461 + $0xc0] sm:$0xff] %v2073
          %2122 = vst [vmem:[%s461 + $0xc8] sm:$0xff] %v2074
          %2123 = vst [vmem:[%s461 + $0xd0] sm:$0xff] %v2075
          %2124 = vst [vmem:[%s461 + $0xd8] sm:$0xff] %v2076
          %2125 = vst [vmem:[%s461 + $0xe0] sm:$0xff] %v2077
          %2126 = vst [vmem:[%s461 + $0xe8] sm:$0xff] %v2078
          %2127 = vst [vmem:[%s461 + $0xf0] sm:$0xff] %v2079
          %2128 = vst [vmem:[%s461 + $0xf8] sm:$0xff] %v2080
          %2129 = vst [vmem:[%s461 + $0x100] sm:$0xff] %v2081
          %2130 = vst [vmem:[%s461 + $0x108] sm:$0xff] %v2082
          %2131 = vst [vmem:[%s461 + $0x110] sm:$0xff] %v2083
          %2132 = vst [vmem:[%s461 + $0x118] sm:$0xff] %v2084
          %2133 = vst [vmem:[%s461 + $0x120] sm:$0xff] %v2085
          %2134 = vst [vmem:[%s461 + $0x128] sm:$0xff] %v2086
          %2135 = vst [vmem:[%s461 + $0x130] sm:$0xff] %v2087
          %2136 = vst [vmem:[%s461 + $0x138] sm:$0xff] %v2088
          %2137 = vst [vmem:[%s461 + $0x140] sm:$0xff] %v2089
          %2138 = vst [vmem:[%s461 + $0x148] sm:$0xff] %v2090
          %2139 = vst [vmem:[%s461 + $0x150] sm:$0xff] %v2091
          %2140 = vst [vmem:[%s461 + $0x158] sm:$0xff] %v2092
          %2141 = vst [vmem:[%s461 + $0x160] sm:$0xff] %v2093
          %2142 = vst [vmem:[%s461 + $0x168] sm:$0xff] %v2094
          %2143 = vst [vmem:[%s461 + $0x170] sm:$0xff] %v2095
          %2144 = vst [vmem:[%s461 + $0x178] sm:$0xff] %v2096
        $region63: #{vpgnet_forward.26} parent=50 // pred_fallthru
          _
        %s2145 = smul.u32 48, %s19
        %p2146 = scmp.lt.s32.totalorder %s2145, 47
        %s2147 = scalar_select %p2146, %s2145, 47
        %p2148 = scmp.lt.s32.totalorder %s20, 0
        %s2149 = scalar_select %p2148, %s20, 0
        %s2150 = sadd.s32 %s2149, %s2147
        %s2151 = smul.addr %s2150, 8
        %s2152 = scalar_lea.vmem %s3, %s2151
        // Predicated region
        $region64: #{vpgnet_forward.26} parent=50 // pred_check
          %p2153 = pneg %p135
        $region65: #{vpgnet_forward.26} parent=50 // pred_check_branch
          %2155 = sbr.rel (%p2153) target = $region67
        $region66: #{vpgnet_forward.26} parent=50 // pred_region
          %s2156 = smul.u32 48, %s19
        $region67: #{vpgnet_forward.26} parent=50 // pred_fallthru
          _
        // Predicated region
        $region68: #{vpgnet_forward.26} parent=50 // pred_check
          %p2157 = pneg %p135
        $region69: #{vpgnet_forward.26} parent=50 // pred_check_branch
          %2159 = sbr.rel (%p2157) target = $region71
        $region70: #{vpgnet_forward.26} parent=50 // pred_region
          %s2160 = smul.u32 48, %s19
          %p2161 = scmp.lt.s32.totalorder %s2160, 47
          %s2162 = scalar_select %p2161, %s2160, 47
          %p2163 = scmp.lt.s32.totalorder %s20, 0
          %s2164 = scalar_select %p2163, %s20, 0
          %s2165 = sadd.s32 %s2164, %s2162
          %s2166 = smul.addr %s2165, 8
          %s2167 = scalar_lea.vmem %s3, %s2166
        $region71: #{vpgnet_forward.26} parent=50 // pred_fallthru
          _
      $region51: #{vpgnet_forward.26} parent=5 // pred_fallthru
        _
      %p2168 = scmp.le.s32.totalorder 2, %s9
      // Predicated region
      $region72: #{vpgnet_forward.26} parent=5 // pred_check
        %p2169 = pneg %p2168
      $region73: #{vpgnet_forward.26} parent=5 // pred_check_branch
        %2171 = sbr.rel (%p2169) target = $region75
      $region74: #{vpgnet_forward.26} parent=5 // pred_region
        %s2172 = ssub.s32 %s9, 2
      $region75: #{vpgnet_forward.26} parent=5 // pred_fallthru
        _
    $region6: #{vpgnet_forward.26} parent=1 // loop_footer
      %s13 = sadd.s32 1, %s9
    $region7: #{vpgnet_forward.26} parent=1 // loop_footer_branch
      %8 = sbr.rel target = $region3
    $region8: #{vpgnet_forward.26} parent=1 // loop_exit
      _

// kernel: vpgnet_forward.27
$region0: #{vpgnet_forward.27}
  #allocation0 [shape = 'u32[]', space=smem, size = 0x4, offset = 0x4, fixed_abs, tag = 'smem constant byte address 0x4 - core index']
  #allocation1 [shape = 'u32[144,128]{1,0:T(1,128)}', space=vmem, size = 0x12000, scoped, tag = 'internal scratch']
  %s0 = inlined_call_operand.vmem [shape: f32[512,128], index: 0, kind: input, shape index: {}]
  %s1 = inlined_call_operand.vmem [shape: f32[128,128], index: 1, kind: input, shape index: {}]
  %s2 = inlined_call_operand.vmem [shape: f32[512,128], index: 2, kind: output, shape index: {}]
  %s3 = sld [smem:[#allocation0]]
  $region18: #{vpgnet_forward.27} parent=0
    _
  %s5 = ssub.s32 1, %s3
  %s6 = scalar_select 0, %s5, %s3
  // Predicated region
  $region2: #{vpgnet_forward.27} parent=0 // pred_check
    _
  $region3: #{vpgnet_forward.27} parent=0 // pred_check_branch
    %8 = sbr.rel (0) target = $region5
  $region4: #{vpgnet_forward.27} parent=0 // pred_region
    _
  $region5: #{vpgnet_forward.27} parent=0 // pred_fallthru
    _
  // Predicated region
  $region6: #{vpgnet_forward.27} parent=0 // pred_check
    _
  $region7: #{vpgnet_forward.27} parent=0 // pred_check_branch
    %10 = sbr.rel (0) target = $region9
  $region8: #{vpgnet_forward.27} parent=0 // pred_region
    _
  $region9: #{vpgnet_forward.27} parent=0 // pred_fallthru
    _
  %v11 = vld [vmem:[%s0] sm:$0xff]
  %v12 = vld [vmem:[%s0 + $0x8] sm:$0xff]
  %v13 = vld [vmem:[%s0 + $0x10] sm:$0xff]
  %v14 = vld [vmem:[%s0 + $0x18] sm:$0xff]
  %v15 = vld [vmem:[%s0 + $0x20] sm:$0xff]
  %v16 = vld [vmem:[%s0 + $0x28] sm:$0xff]
  %v17 = vld [vmem:[%s0 + $0x30] sm:$0xff]
  %v18 = vld [vmem:[%s0 + $0x38] sm:$0xff]
  %v19 = vld [vmem:[%s0 + $0x40] sm:$0xff]
  %v20 = vld [vmem:[%s0 + $0x48] sm:$0xff]
  %v21 = vld [vmem:[%s0 + $0x50] sm:$0xff]
  %v22 = vld [vmem:[%s0 + $0x58] sm:$0xff]
  %v23 = vld [vmem:[%s0 + $0x60] sm:$0xff]
  %v24 = vld [vmem:[%s0 + $0x68] sm:$0xff]
  %v25 = vld [vmem:[%s0 + $0x70] sm:$0xff]
  %v26 = vld [vmem:[%s0 + $0x78] sm:$0xff]
  %v27 = vld [vmem:[%s0 + $0x80] sm:$0xff]
  %v28 = vld [vmem:[%s0 + $0x88] sm:$0xff]
  %v29 = vld [vmem:[%s0 + $0x90] sm:$0xff]
  %v30 = vld [vmem:[%s0 + $0x98] sm:$0xff]
  %v31 = vld [vmem:[%s0 + $0xa0] sm:$0xff]
  %v32 = vld [vmem:[%s0 + $0xa8] sm:$0xff]
  %v33 = vld [vmem:[%s0 + $0xb0] sm:$0xff]
  %v34 = vld [vmem:[%s0 + $0xb8] sm:$0xff]
  %v35 = vld [vmem:[%s0 + $0xc0] sm:$0xff]
  %v36 = vld [vmem:[%s0 + $0xc8] sm:$0xff]
  %v37 = vld [vmem:[%s0 + $0xd0] sm:$0xff]
  %v38 = vld [vmem:[%s0 + $0xd8] sm:$0xff]
  %v39 = vld [vmem:[%s0 + $0xe0] sm:$0xff]
  %v40 = vld [vmem:[%s0 + $0xe8] sm:$0xff]
  %v41 = vld [vmem:[%s0 + $0xf0] sm:$0xff]
  %v42 = vld [vmem:[%s0 + $0xf8] sm:$0xff]
  %v43 = vld [vmem:[%s0 + $0x100] sm:$0xff]
  %v44 = vld [vmem:[%s0 + $0x108] sm:$0xff]
  %v45 = vld [vmem:[%s0 + $0x110] sm:$0xff]
  %v46 = vld [vmem:[%s0 + $0x118] sm:$0xff]
  %v47 = vld [vmem:[%s0 + $0x120] sm:$0xff]
  %v48 = vld [vmem:[%s0 + $0x128] sm:$0xff]
  %v49 = vld [vmem:[%s0 + $0x130] sm:$0xff]
  %v50 = vld [vmem:[%s0 + $0x138] sm:$0xff]
  %v51 = vld [vmem:[%s0 + $0x140] sm:$0xff]
  %v52 = vld [vmem:[%s0 + $0x148] sm:$0xff]
  %v53 = vld [vmem:[%s0 + $0x150] sm:$0xff]
  %v54 = vld [vmem:[%s0 + $0x158] sm:$0xff]
  %v55 = vld [vmem:[%s0 + $0x160] sm:$0xff]
  %v56 = vld [vmem:[%s0 + $0x168] sm:$0xff]
  %v57 = vld [vmem:[%s0 + $0x170] sm:$0xff]
  %v58 = vld [vmem:[%s0 + $0x178] sm:$0xff]
  %v59 = vld [vmem:[%s0 + $0x180] sm:$0xff]
  %v60 = vld [vmem:[%s0 + $0x188] sm:$0xff]
  %v61 = vld [vmem:[%s0 + $0x190] sm:$0xff]
  %v62 = vld [vmem:[%s0 + $0x198] sm:$0xff]
  %v63 = vld [vmem:[%s0 + $0x1a0] sm:$0xff]
  %v64 = vld [vmem:[%s0 + $0x1a8] sm:$0xff]
  %v65 = vld [vmem:[%s0 + $0x1b0] sm:$0xff]
  %v66 = vld [vmem:[%s0 + $0x1b8] sm:$0xff]
  %v67 = vld [vmem:[%s0 + $0x1c0] sm:$0xff]
  %v68 = vld [vmem:[%s0 + $0x1c8] sm:$0xff]
  %v69 = vld [vmem:[%s0 + $0x1d0] sm:$0xff]
  %v70 = vld [vmem:[%s0 + $0x1d8] sm:$0xff]
  %v71 = vld [vmem:[%s0 + $0x1e0] sm:$0xff]
  %v72 = vld [vmem:[%s0 + $0x1e8] sm:$0xff]
  %v73 = vld [vmem:[%s0 + $0x1f0] sm:$0xff]
  %v74 = vld [vmem:[%s0 + $0x1f8] sm:$0xff]
  %v75 = vmul.f32 %v11, %v11
  %v76 = vmul.f32 %v12, %v12
  %v77 = vmul.f32 %v13, %v13
  %v78 = vmul.f32 %v14, %v14
  %v79 = vmul.f32 %v15, %v15
  %v80 = vmul.f32 %v16, %v16
  %v81 = vmul.f32 %v17, %v17
  %v82 = vmul.f32 %v18, %v18
  %v83 = vmul.f32 %v19, %v19
  %v84 = vmul.f32 %v20, %v20
  %v85 = vmul.f32 %v21, %v21
  %v86 = vmul.f32 %v22, %v22
  %v87 = vmul.f32 %v23, %v23
  %v88 = vmul.f32 %v24, %v24
  %v89 = vmul.f32 %v25, %v25
  %v90 = vmul.f32 %v26, %v26
  %v91 = vmul.f32 %v27, %v27
  %v92 = vmul.f32 %v28, %v28
  %v93 = vmul.f32 %v29, %v29
  %v94 = vmul.f32 %v30, %v30
  %v95 = vmul.f32 %v31, %v31
  %v96 = vmul.f32 %v32, %v32
  %v97 = vmul.f32 %v33, %v33
  %v98 = vmul.f32 %v34, %v34
  %v99 = vmul.f32 %v35, %v35
  %v100 = vmul.f32 %v36, %v36
  %v101 = vmul.f32 %v37, %v37
  %v102 = vmul.f32 %v38, %v38
  %v103 = vmul.f32 %v39, %v39
  %v104 = vmul.f32 %v40, %v40
  %v105 = vmul.f32 %v41, %v41
  %v106 = vmul.f32 %v42, %v42
  %v107 = vmul.f32 %v43, %v43
  %v108 = vmul.f32 %v44, %v44
  %v109 = vmul.f32 %v45, %v45
  %v110 = vmul.f32 %v46, %v46
  %v111 = vmul.f32 %v47, %v47
  %v112 = vmul.f32 %v48, %v48
  %v113 = vmul.f32 %v49, %v49
  %v114 = vmul.f32 %v50, %v50
  %v115 = vmul.f32 %v51, %v51
  %v116 = vmul.f32 %v52, %v52
  %v117 = vmul.f32 %v53, %v53
  %v118 = vmul.f32 %v54, %v54
  %v119 = vmul.f32 %v55, %v55
  %v120 = vmul.f32 %v56, %v56
  %v121 = vmul.f32 %v57, %v57
  %v122 = vmul.f32 %v58, %v58
  %v123 = vmul.f32 %v59, %v59
  %v124 = vmul.f32 %v60, %v60
  %v125 = vmul.f32 %v61, %v61
  %v126 = vmul.f32 %v62, %v62
  %v127 = vmul.f32 %v63, %v63
  %v128 = vmul.f32 %v64, %v64
  %v129 = vmul.f32 %v65, %v65
  %v130 = vmul.f32 %v66, %v66
  %v131 = vmul.f32 %v67, %v67
  %v132 = vmul.f32 %v68, %v68
  %v133 = vmul.f32 %v69, %v69
  %v134 = vmul.f32 %v70, %v70
  %v135 = vmul.f32 %v71, %v71
  %v136 = vmul.f32 %v72, %v72
  %v137 = vmul.f32 %v73, %v73
  %v138 = vmul.f32 %v74, %v74
  %v139 = vld [vmem:[%s1] sm:$0xff]
  %v140 = vld [vmem:[%s1 + $0x8] sm:$0xff]
  %v141 = vld [vmem:[%s1 + $0x10] sm:$0xff]
  %v142 = vld [vmem:[%s1 + $0x18] sm:$0xff]
  %v143 = vld [vmem:[%s1 + $0x20] sm:$0xff]
  %v144 = vld [vmem:[%s1 + $0x28] sm:$0xff]
  %v145 = vld [vmem:[%s1 + $0x30] sm:$0xff]
  %v146 = vld [vmem:[%s1 + $0x38] sm:$0xff]
  %v147 = vld [vmem:[%s1 + $0x40] sm:$0xff]
  %v148 = vld [vmem:[%s1 + $0x48] sm:$0xff]
  %v149 = vld [vmem:[%s1 + $0x50] sm:$0xff]
  %v150 = vld [vmem:[%s1 + $0x58] sm:$0xff]
  %v151 = vld [vmem:[%s1 + $0x60] sm:$0xff]
  %v152 = vld [vmem:[%s1 + $0x68] sm:$0xff]
  %v153 = vld [vmem:[%s1 + $0x70] sm:$0xff]
  %v154 = vld [vmem:[%s1 + $0x78] sm:$0xff]
  %155 = vmatprep.subr.mxu0 0.0
  %156 = vmatpush1.msra.mxu0 %v154
  %157 = vmatprep.subr.mxu0 0.0
  %158 = vmatpush1.msra.mxu0 %v153
  %159 = vmatprep.subr.mxu0 0.0
  %160 = vmatpush1.msra.mxu0 %v152
  %161 = vmatprep.subr.mxu0 0.0
  %162 = vmatpush1.msra.mxu0 %v151
  %163 = vmatprep.subr.mxu0 0.0
  %164 = vmatpush1.msra.mxu0 %v150
  %165 = vmatprep.subr.mxu0 0.0
  %166 = vmatpush1.msra.mxu0 %v149
  %167 = vmatprep.subr.mxu0 0.0
  %168 = vmatpush1.msra.mxu0 %v148
  %169 = vmatprep.subr.mxu0 0.0
  %170 = vmatpush1.msra.mxu0 %v147
  %171 = vmatprep.subr.mxu0 0.0
  %172 = vmatpush1.msra.mxu0 %v146
  %173 = vmatprep.subr.mxu0 0.0
  %174 = vmatpush1.msra.mxu0 %v145
  %175 = vmatprep.subr.mxu0 0.0
  %176 = vmatpush1.msra.mxu0 %v144
  %177 = vmatprep.subr.mxu0 0.0
  %178 = vmatpush1.msra.mxu0 %v143
  %179 = vmatprep.subr.mxu0 0.0
  %180 = vmatpush1.msra.mxu0 %v142
  %181 = vmatprep.subr.mxu0 0.0
  %182 = vmatpush1.msra.mxu0 %v141
  %183 = vmatprep.subr.mxu0 0.0
  %184 = vmatpush1.msra.mxu0 %v140
  %185 = vmatprep.subr.mxu0 0.0
  %186 = vmatpush1.msra.mxu0 %v139
  %187 = vmatprep.subr.mxu0 0.0
  %188 = vmatpush2.msra.mxu0 0.0
  %189 = vmatprep.subr.mxu0 0.0
  %190 = vmatpush2.msra.mxu0 0.0
  %191 = vmatprep.subr.mxu0 0.0
  %192 = vmatpush2.msra.mxu0 0.0
  %193 = vmatprep.subr.mxu0 0.0
  %194 = vmatpush2.msra.mxu0 0.0
  %195 = vmatprep.subr.mxu0 0.0
  %196 = vmatpush2.msra.mxu0 0.0
  %197 = vmatprep.subr.mxu0 0.0
  %198 = vmatpush2.msra.mxu0 0.0
  %199 = vmatprep.subr.mxu0 0.0
  %200 = vmatpush2.msra.mxu0 0.0
  %201 = vmatprep.subr.mxu0 0.0
  %202 = vmatpush2.msra.mxu0 0.0
  %203 = vmatprep.subr.mxu0 0.0
  %204 = vmatpush2.msra.mxu0 0.0
  %205 = vmatprep.subr.mxu0 0.0
  %206 = vmatpush2.msra.mxu0 0.0
  %207 = vmatprep.subr.mxu0 0.0
  %208 = vmatpush2.msra.mxu0 0.0
  %209 = vmatprep.subr.mxu0 0.0
  %210 = vmatpush2.msra.mxu0 0.0
  %211 = vmatprep.subr.mxu0 0.0
  %212 = vmatpush2.msra.mxu0 0.0
  %213 = vmatprep.subr.mxu0 0.0
  %214 = vmatpush2.msra.mxu0 0.0
  %215 = vmatprep.subr.mxu0 0.0
  %216 = vmatpush2.msra.mxu0 0.0
  %217 = vmatprep.subr.mxu0 0.0
  %218 = vmatpush2.msra.mxu0 0.0
  %219 = vmatprep.mubr.f32.mxu0 0.0
  %220 = vmatmul.mubr.f32.gmra.mxu0 %v75
  %v221 = vpop.f32.mrf.mxu0
  %v222 = vadd.f32 0.0, %v221
  %v223 = vpop.f32.mrf.mxu0
  %224 = vmatprep.mubr.f32.mxu0 0.0
  %225 = vmatmul.mubr.f32.gmra.mxu0 %v76
  %v226 = vpop.f32.mrf.mxu0
  %v227 = vadd.f32 0.0, %v226
  %v228 = vpop.f32.mrf.mxu0
  %229 = vmatprep.mubr.f32.mxu0 0.0
  %230 = vmatmul.mubr.f32.gmra.mxu0 %v77
  %v231 = vpop.f32.mrf.mxu0
  %v232 = vadd.f32 0.0, %v231
  %v233 = vpop.f32.mrf.mxu0
  %234 = vmatprep.mubr.f32.mxu0 0.0
  %235 = vmatmul.mubr.f32.gmra.mxu0 %v78
  %v236 = vpop.f32.mrf.mxu0
  %v237 = vadd.f32 0.0, %v236
  %v238 = vpop.f32.mrf.mxu0
  %239 = vmatprep.mubr.f32.mxu0 0.0
  %240 = vmatmul.mubr.f32.gmra.mxu0 %v79
  %v241 = vpop.f32.mrf.mxu0
  %v242 = vadd.f32 0.0, %v241
  %v243 = vpop.f32.mrf.mxu0
  %244 = vmatprep.mubr.f32.mxu0 0.0
  %245 = vmatmul.mubr.f32.gmra.mxu0 %v80
  %v246 = vpop.f32.mrf.mxu0
  %v247 = vadd.f32 0.0, %v246
  %v248 = vpop.f32.mrf.mxu0
  %249 = vmatprep.mubr.f32.mxu0 0.0
  %250 = vmatmul.mubr.f32.gmra.mxu0 %v81
  %v251 = vpop.f32.mrf.mxu0
  %v252 = vadd.f32 0.0, %v251
  %v253 = vpop.f32.mrf.mxu0
  %254 = vmatprep.mubr.f32.mxu0 0.0
  %255 = vmatmul.mubr.f32.gmra.mxu0 %v82
  %v256 = vpop.f32.mrf.mxu0
  %v257 = vadd.f32 0.0, %v256
  %v258 = vpop.f32.mrf.mxu0
  %259 = vmatprep.mubr.f32.mxu0 0.0
  %260 = vmatmul.mubr.f32.gmra.mxu0 %v83
  %v261 = vpop.f32.mrf.mxu0
  %v262 = vadd.f32 0.0, %v261
  %v263 = vpop.f32.mrf.mxu0
  %264 = vmatprep.mubr.f32.mxu0 0.0
  %265 = vmatmul.mubr.f32.gmra.mxu0 %v84
  %v266 = vpop.f32.mrf.mxu0
  %v267 = vadd.f32 0.0, %v266
  %v268 = vpop.f32.mrf.mxu0
  %269 = vmatprep.mubr.f32.mxu0 0.0
  %270 = vmatmul.mubr.f32.gmra.mxu0 %v85
  %v271 = vpop.f32.mrf.mxu0
  %v272 = vadd.f32 0.0, %v271
  %v273 = vpop.f32.mrf.mxu0
  %274 = vmatprep.mubr.f32.mxu0 0.0
  %275 = vmatmul.mubr.f32.gmra.mxu0 %v86
  %v276 = vpop.f32.mrf.mxu0
  %v277 = vadd.f32 0.0, %v276
  %v278 = vpop.f32.mrf.mxu0
  %279 = vmatprep.mubr.f32.mxu0 0.0
  %280 = vmatmul.mubr.f32.gmra.mxu0 %v87
  %v281 = vpop.f32.mrf.mxu0
  %v282 = vadd.f32 0.0, %v281
  %v283 = vpop.f32.mrf.mxu0
  %284 = vmatprep.mubr.f32.mxu0 0.0
  %285 = vmatmul.mubr.f32.gmra.mxu0 %v88
  %v286 = vpop.f32.mrf.mxu0
  %v287 = vadd.f32 0.0, %v286
  %v288 = vpop.f32.mrf.mxu0
  %289 = vmatprep.mubr.f32.mxu0 0.0
  %290 = vmatmul.mubr.f32.gmra.mxu0 %v89
  %v291 = vpop.f32.mrf.mxu0
  %v292 = vadd.f32 0.0, %v291
  %v293 = vpop.f32.mrf.mxu0
  %294 = vmatprep.mubr.f32.mxu0 0.0
  %295 = vmatmul.mubr.f32.gmra.mxu0 %v90
  %v296 = vpop.f32.mrf.mxu0
  %v297 = vadd.f32 0.0, %v296
  %v298 = vpop.f32.mrf.mxu0
  %299 = vmatprep.mubr.f32.mxu0 0.0
  %300 = vmatmul.mubr.f32.gmra.mxu0 %v91
  %v301 = vpop.f32.mrf.mxu0
  %v302 = vadd.f32 0.0, %v301
  %v303 = vpop.f32.mrf.mxu0
  %304 = vmatprep.mubr.f32.mxu0 0.0
  %305 = vmatmul.mubr.f32.gmra.mxu0 %v92
  %v306 = vpop.f32.mrf.mxu0
  %v307 = vadd.f32 0.0, %v306
  %v308 = vpop.f32.mrf.mxu0
  %309 = vmatprep.mubr.f32.mxu0 0.0
  %310 = vmatmul.mubr.f32.gmra.mxu0 %v93
  %v311 = vpop.f32.mrf.mxu0
  %v312 = vadd.f32 0.0, %v311
  %v313 = vpop.f32.mrf.mxu0
  %314 = vmatprep.mubr.f32.mxu0 0.0
  %315 = vmatmul.mubr.f32.gmra.mxu0 %v94
  %v316 = vpop.f32.mrf.mxu0
  %v317 = vadd.f32 0.0, %v316
  %v318 = vpop.f32.mrf.mxu0
  %319 = vmatprep.mubr.f32.mxu0 0.0
  %320 = vmatmul.mubr.f32.gmra.mxu0 %v95
  %v321 = vpop.f32.mrf.mxu0
  %v322 = vadd.f32 0.0, %v321
  %v323 = vpop.f32.mrf.mxu0
  %324 = vmatprep.mubr.f32.mxu0 0.0
  %325 = vmatmul.mubr.f32.gmra.mxu0 %v96
  %v326 = vpop.f32.mrf.mxu0
  %v327 = vadd.f32 0.0, %v326
  %v328 = vpop.f32.mrf.mxu0
  %329 = vmatprep.mubr.f32.mxu0 0.0
  %330 = vmatmul.mubr.f32.gmra.mxu0 %v97
  %v331 = vpop.f32.mrf.mxu0
  %v332 = vadd.f32 0.0, %v331
  %v333 = vpop.f32.mrf.mxu0
  %334 = vmatprep.mubr.f32.mxu0 0.0
  %335 = vmatmul.mubr.f32.gmra.mxu0 %v98
  %v336 = vpop.f32.mrf.mxu0
  %v337 = vadd.f32 0.0, %v336
  %v338 = vpop.f32.mrf.mxu0
  %339 = vmatprep.mubr.f32.mxu0 0.0
  %340 = vmatmul.mubr.f32.gmra.mxu0 %v99
  %v341 = vpop.f32.mrf.mxu0
  %v342 = vadd.f32 0.0, %v341
  %v343 = vpop.f32.mrf.mxu0
  %344 = vmatprep.mubr.f32.mxu0 0.0
  %345 = vmatmul.mubr.f32.gmra.mxu0 %v100
  %v346 = vpop.f32.mrf.mxu0
  %v347 = vadd.f32 0.0, %v346
  %v348 = vpop.f32.mrf.mxu0
  %349 = vmatprep.mubr.f32.mxu0 0.0
  %350 = vmatmul.mubr.f32.gmra.mxu0 %v101
  %v351 = vpop.f32.mrf.mxu0
  %v352 = vadd.f32 0.0, %v351
  %v353 = vpop.f32.mrf.mxu0
  %354 = vmatprep.mubr.f32.mxu0 0.0
  %355 = vmatmul.mubr.f32.gmra.mxu0 %v102
  %v356 = vpop.f32.mrf.mxu0
  %v357 = vadd.f32 0.0, %v356
  %v358 = vpop.f32.mrf.mxu0
  %359 = vmatprep.mubr.f32.mxu0 0.0
  %360 = vmatmul.mubr.f32.gmra.mxu0 %v103
  %v361 = vpop.f32.mrf.mxu0
  %v362 = vadd.f32 0.0, %v361
  %v363 = vpop.f32.mrf.mxu0
  %364 = vmatprep.mubr.f32.mxu0 0.0
  %365 = vmatmul.mubr.f32.gmra.mxu0 %v104
  %v366 = vpop.f32.mrf.mxu0
  %v367 = vadd.f32 0.0, %v366
  %v368 = vpop.f32.mrf.mxu0
  %369 = vmatprep.mubr.f32.mxu0 0.0
  %370 = vmatmul.mubr.f32.gmra.mxu0 %v105
  %v371 = vpop.f32.mrf.mxu0
  %v372 = vadd.f32 0.0, %v371
  %v373 = vpop.f32.mrf.mxu0
  %374 = vmatprep.mubr.f32.mxu0 0.0
  %375 = vmatmul.mubr.f32.gmra.mxu0 %v106
  %v376 = vpop.f32.mrf.mxu0
  %v377 = vadd.f32 0.0, %v376
  %v378 = vpop.f32.mrf.mxu0
  %379 = vmatprep.mubr.f32.mxu0 0.0
  %380 = vmatmul.mubr.f32.gmra.mxu0 %v107
  %v381 = vpop.f32.mrf.mxu0
  %v382 = vadd.f32 0.0, %v381
  %v383 = vpop.f32.mrf.mxu0
  %384 = vmatprep.mubr.f32.mxu0 0.0
  %385 = vmatmul.mubr.f32.gmra.mxu0 %v108
  %v386 = vpop.f32.mrf.mxu0
  %v387 = vadd.f32 0.0, %v386
  %v388 = vpop.f32.mrf.mxu0
  %389 = vmatprep.mubr.f32.mxu0 0.0
  %390 = vmatmul.mubr.f32.gmra.mxu0 %v109
  %v391 = vpop.f32.mrf.mxu0
  %v392 = vadd.f32 0.0, %v391
  %v393 = vpop.f32.mrf.mxu0
  %394 = vmatprep.mubr.f32.mxu0 0.0
  %395 = vmatmul.mubr.f32.gmra.mxu0 %v110
  %v396 = vpop.f32.mrf.mxu0
  %v397 = vadd.f32 0.0, %v396
  %v398 = vpop.f32.mrf.mxu0
  %399 = vmatprep.mubr.f32.mxu0 0.0
  %400 = vmatmul.mubr.f32.gmra.mxu0 %v111
  %v401 = vpop.f32.mrf.mxu0
  %v402 = vadd.f32 0.0, %v401
  %v403 = vpop.f32.mrf.mxu0
  %404 = vmatprep.mubr.f32.mxu0 0.0
  %405 = vmatmul.mubr.f32.gmra.mxu0 %v112
  %v406 = vpop.f32.mrf.mxu0
  %v407 = vadd.f32 0.0, %v406
  %v408 = vpop.f32.mrf.mxu0
  %409 = vmatprep.mubr.f32.mxu0 0.0
  %410 = vmatmul.mubr.f32.gmra.mxu0 %v113
  %v411 = vpop.f32.mrf.mxu0
  %v412 = vadd.f32 0.0, %v411
  %v413 = vpop.f32.mrf.mxu0
  %414 = vmatprep.mubr.f32.mxu0 0.0
  %415 = vmatmul.mubr.f32.gmra.mxu0 %v114
  %v416 = vpop.f32.mrf.mxu0
  %v417 = vadd.f32 0.0, %v416
  %v418 = vpop.f32.mrf.mxu0
  %419 = vmatprep.mubr.f32.mxu0 0.0
  %420 = vmatmul.mubr.f32.gmra.mxu0 %v115
  %v421 = vpop.f32.mrf.mxu0
  %v422 = vadd.f32 0.0, %v421
  %v423 = vpop.f32.mrf.mxu0
  %424 = vmatprep.mubr.f32.mxu0 0.0
  %425 = vmatmul.mubr.f32.gmra.mxu0 %v116
  %v426 = vpop.f32.mrf.mxu0
  %v427 = vadd.f32 0.0, %v426
  %v428 = vpop.f32.mrf.mxu0
  %429 = vmatprep.mubr.f32.mxu0 0.0
  %430 = vmatmul.mubr.f32.gmra.mxu0 %v117
  %v431 = vpop.f32.mrf.mxu0
  %v432 = vadd.f32 0.0, %v431
  %v433 = vpop.f32.mrf.mxu0
  %434 = vmatprep.mubr.f32.mxu0 0.0
  %435 = vmatmul.mubr.f32.gmra.mxu0 %v118
  %v436 = vpop.f32.mrf.mxu0
  %v437 = vadd.f32 0.0, %v436
  %v438 = vpop.f32.mrf.mxu0
  %439 = vmatprep.mubr.f32.mxu0 0.0
  %440 = vmatmul.mubr.f32.gmra.mxu0 %v119
  %v441 = vpop.f32.mrf.mxu0
  %v442 = vadd.f32 0.0, %v441
  %v443 = vpop.f32.mrf.mxu0
  %444 = vmatprep.mubr.f32.mxu0 0.0
  %445 = vmatmul.mubr.f32.gmra.mxu0 %v120
  %v446 = vpop.f32.mrf.mxu0
  %v447 = vadd.f32 0.0, %v446
  %v448 = vpop.f32.mrf.mxu0
  %449 = vmatprep.mubr.f32.mxu0 0.0
  %450 = vmatmul.mubr.f32.gmra.mxu0 %v121
  %v451 = vpop.f32.mrf.mxu0
  %v452 = vadd.f32 0.0, %v451
  %v453 = vpop.f32.mrf.mxu0
  %454 = vmatprep.mubr.f32.mxu0 0.0
  %455 = vmatmul.mubr.f32.gmra.mxu0 %v122
  %v456 = vpop.f32.mrf.mxu0
  %v457 = vadd.f32 0.0, %v456
  %v458 = vpop.f32.mrf.mxu0
  %459 = vmatprep.mubr.f32.mxu0 0.0
  %460 = vmatmul.mubr.f32.gmra.mxu0 %v123
  %v461 = vpop.f32.mrf.mxu0
  %v462 = vadd.f32 0.0, %v461
  %v463 = vpop.f32.mrf.mxu0
  %464 = vmatprep.mubr.f32.mxu0 0.0
  %465 = vmatmul.mubr.f32.gmra.mxu0 %v124
  %v466 = vpop.f32.mrf.mxu0
  %v467 = vadd.f32 0.0, %v466
  %v468 = vpop.f32.mrf.mxu0
  %469 = vmatprep.mubr.f32.mxu0 0.0
  %470 = vmatmul.mubr.f32.gmra.mxu0 %v125
  %v471 = vpop.f32.mrf.mxu0
  %v472 = vadd.f32 0.0, %v471
  %v473 = vpop.f32.mrf.mxu0
  %474 = vmatprep.mubr.f32.mxu0 0.0
  %475 = vmatmul.mubr.f32.gmra.mxu0 %v126
  %v476 = vpop.f32.mrf.mxu0
  %v477 = vadd.f32 0.0, %v476
  %v478 = vpop.f32.mrf.mxu0
  %479 = vmatprep.mubr.f32.mxu0 0.0
  %480 = vmatmul.mubr.f32.gmra.mxu0 %v127
  %v481 = vpop.f32.mrf.mxu0
  %v482 = vadd.f32 0.0, %v481
  %v483 = vpop.f32.mrf.mxu0
  %484 = vmatprep.mubr.f32.mxu0 0.0
  %485 = vmatmul.mubr.f32.gmra.mxu0 %v128
  %v486 = vpop.f32.mrf.mxu0
  %v487 = vadd.f32 0.0, %v486
  %v488 = vpop.f32.mrf.mxu0
  %489 = vmatprep.mubr.f32.mxu0 0.0
  %490 = vmatmul.mubr.f32.gmra.mxu0 %v129
  %v491 = vpop.f32.mrf.mxu0
  %v492 = vadd.f32 0.0, %v491
  %v493 = vpop.f32.mrf.mxu0
  %494 = vmatprep.mubr.f32.mxu0 0.0
  %495 = vmatmul.mubr.f32.gmra.mxu0 %v130
  %v496 = vpop.f32.mrf.mxu0
  %v497 = vadd.f32 0.0, %v496
  %v498 = vpop.f32.mrf.mxu0
  %499 = vmatprep.mubr.f32.mxu0 0.0
  %500 = vmatmul.mubr.f32.gmra.mxu0 %v131
  %v501 = vpop.f32.mrf.mxu0
  %v502 = vadd.f32 0.0, %v501
  %v503 = vpop.f32.mrf.mxu0
  %504 = vmatprep.mubr.f32.mxu0 0.0
  %505 = vmatmul.mubr.f32.gmra.mxu0 %v132
  %v506 = vpop.f32.mrf.mxu0
  %v507 = vadd.f32 0.0, %v506
  %v508 = vpop.f32.mrf.mxu0
  %509 = vmatprep.mubr.f32.mxu0 0.0
  %510 = vmatmul.mubr.f32.gmra.mxu0 %v133
  %v511 = vpop.f32.mrf.mxu0
  %v512 = vadd.f32 0.0, %v511
  %v513 = vpop.f32.mrf.mxu0
  %514 = vmatprep.mubr.f32.mxu0 0.0
  %515 = vmatmul.mubr.f32.gmra.mxu0 %v134
  %v516 = vpop.f32.mrf.mxu0
  %v517 = vadd.f32 0.0, %v516
  %v518 = vpop.f32.mrf.mxu0
  %519 = vmatprep.mubr.f32.mxu0 0.0
  %520 = vmatmul.mubr.f32.gmra.mxu0 %v135
  %v521 = vpop.f32.mrf.mxu0
  %v522 = vadd.f32 0.0, %v521
  %v523 = vpop.f32.mrf.mxu0
  %524 = vmatprep.mubr.f32.mxu0 0.0
  %525 = vmatmul.mubr.f32.gmra.mxu0 %v136
  %v526 = vpop.f32.mrf.mxu0
  %v527 = vadd.f32 0.0, %v526
  %v528 = vpop.f32.mrf.mxu0
  %529 = vmatprep.mubr.f32.mxu0 0.0
  %530 = vmatmul.mubr.f32.gmra.mxu0 %v137
  %v531 = vpop.f32.mrf.mxu0
  %v532 = vadd.f32 0.0, %v531
  %v533 = vpop.f32.mrf.mxu0
  %534 = vmatprep.mubr.f32.mxu0 0.0
  %535 = vmatmul.mubr.f32.gmra.mxu0 %v138
  %v536 = vpop.f32.mrf.mxu0
  %v537 = vadd.f32 0.0, %v536
  %v538 = vpop.f32.mrf.mxu0
  %539 = vdwg.mxu0
  %v540 = vmul.f32 %v222, 0.0001
  %v541 = vmul.f32 %v227, 0.0001
  %v542 = vmul.f32 %v232, 0.0001
  %v543 = vmul.f32 %v237, 0.0001
  %v544 = vmul.f32 %v242, 0.0001
  %v545 = vmul.f32 %v247, 0.0001
  %v546 = vmul.f32 %v252, 0.0001
  %v547 = vmul.f32 %v257, 0.0001
  %v548 = vmul.f32 %v262, 0.0001
  %v549 = vmul.f32 %v267, 0.0001
  %v550 = vmul.f32 %v272, 0.0001
  %v551 = vmul.f32 %v277, 0.0001
  %v552 = vmul.f32 %v282, 0.0001
  %v553 = vmul.f32 %v287, 0.0001
  %v554 = vmul.f32 %v292, 0.0001
  %v555 = vmul.f32 %v297, 0.0001
  %v556 = vmul.f32 %v302, 0.0001
  %v557 = vmul.f32 %v307, 0.0001
  %v558 = vmul.f32 %v312, 0.0001
  %v559 = vmul.f32 %v317, 0.0001
  %v560 = vmul.f32 %v322, 0.0001
  %v561 = vmul.f32 %v327, 0.0001
  %v562 = vmul.f32 %v332, 0.0001
  %v563 = vmul.f32 %v337, 0.0001
  %v564 = vmul.f32 %v342, 0.0001
  %v565 = vmul.f32 %v347, 0.0001
  %v566 = vmul.f32 %v352, 0.0001
  %v567 = vmul.f32 %v357, 0.0001
  %v568 = vmul.f32 %v362, 0.0001
  %v569 = vmul.f32 %v367, 0.0001
  %v570 = vmul.f32 %v372, 0.0001
  %v571 = vmul.f32 %v377, 0.0001
  %v572 = vmul.f32 %v382, 0.0001
  %v573 = vmul.f32 %v387, 0.0001
  %v574 = vmul.f32 %v392, 0.0001
  %v575 = vmul.f32 %v397, 0.0001
  %v576 = vmul.f32 %v402, 0.0001
  %v577 = vmul.f32 %v407, 0.0001
  %v578 = vmul.f32 %v412, 0.0001
  %v579 = vmul.f32 %v417, 0.0001
  %v580 = vmul.f32 %v422, 0.0001
  %v581 = vmul.f32 %v427, 0.0001
  %v582 = vmul.f32 %v432, 0.0001
  %v583 = vmul.f32 %v437, 0.0001
  %v584 = vmul.f32 %v442, 0.0001
  %v585 = vmul.f32 %v447, 0.0001
  %v586 = vmul.f32 %v452, 0.0001
  %v587 = vmul.f32 %v457, 0.0001
  %v588 = vmul.f32 %v462, 0.0001
  %v589 = vmul.f32 %v467, 0.0001
  %v590 = vmul.f32 %v472, 0.0001
  %v591 = vmul.f32 %v477, 0.0001
  %v592 = vmul.f32 %v482, 0.0001
  %v593 = vmul.f32 %v487, 0.0001
  %v594 = vmul.f32 %v492, 0.0001
  %v595 = vmul.f32 %v497, 0.0001
  %v596 = vmul.f32 %v502, 0.0001
  %v597 = vmul.f32 %v507, 0.0001
  %v598 = vmul.f32 %v512, 0.0001
  %v599 = vmul.f32 %v517, 0.0001
  %v600 = vmul.f32 %v522, 0.0001
  %v601 = vmul.f32 %v527, 0.0001
  %v602 = vmul.f32 %v532, 0.0001
  %v603 = vmul.f32 %v537, 0.0001
  %v604 = vadd.f32 %v540, 8.0
  %v605 = vadd.f32 %v541, 8.0
  %v606 = vadd.f32 %v542, 8.0
  %v607 = vadd.f32 %v543, 8.0
  %v608 = vadd.f32 %v544, 8.0
  %v609 = vadd.f32 %v545, 8.0
  %v610 = vadd.f32 %v546, 8.0
  %v611 = vadd.f32 %v547, 8.0
  %v612 = vadd.f32 %v548, 8.0
  %v613 = vadd.f32 %v549, 8.0
  %v614 = vadd.f32 %v550, 8.0
  %v615 = vadd.f32 %v551, 8.0
  %v616 = vadd.f32 %v552, 8.0
  %v617 = vadd.f32 %v553, 8.0
  %v618 = vadd.f32 %v554, 8.0
  %v619 = vadd.f32 %v555, 8.0
  %v620 = vadd.f32 %v556, 8.0
  %v621 = vadd.f32 %v557, 8.0
  %v622 = vadd.f32 %v558, 8.0
  %v623 = vadd.f32 %v559, 8.0
  %v624 = vadd.f32 %v560, 8.0
  %v625 = vadd.f32 %v561, 8.0
  %v626 = vadd.f32 %v562, 8.0
  %v627 = vadd.f32 %v563, 8.0
  %v628 = vadd.f32 %v564, 8.0
  %v629 = vadd.f32 %v565, 8.0
  %v630 = vadd.f32 %v566, 8.0
  %v631 = vadd.f32 %v567, 8.0
  %v632 = vadd.f32 %v568, 8.0
  %v633 = vadd.f32 %v569, 8.0
  %v634 = vadd.f32 %v570, 8.0
  %v635 = vadd.f32 %v571, 8.0
  %v636 = vadd.f32 %v572, 8.0
  %v637 = vadd.f32 %v573, 8.0
  %v638 = vadd.f32 %v574, 8.0
  %v639 = vadd.f32 %v575, 8.0
  %v640 = vadd.f32 %v576, 8.0
  %v641 = vadd.f32 %v577, 8.0
  %v642 = vadd.f32 %v578, 8.0
  %v643 = vadd.f32 %v579, 8.0
  %v644 = vadd.f32 %v580, 8.0
  %v645 = vadd.f32 %v581, 8.0
  %v646 = vadd.f32 %v582, 8.0
  %v647 = vadd.f32 %v583, 8.0
  %v648 = vadd.f32 %v584, 8.0
  %v649 = vadd.f32 %v585, 8.0
  %v650 = vadd.f32 %v586, 8.0
  %v651 = vadd.f32 %v587, 8.0
  %v652 = vadd.f32 %v588, 8.0
  %v653 = vadd.f32 %v589, 8.0
  %v654 = vadd.f32 %v590, 8.0
  %v655 = vadd.f32 %v591, 8.0
  %v656 = vadd.f32 %v592, 8.0
  %v657 = vadd.f32 %v593, 8.0
  %v658 = vadd.f32 %v594, 8.0
  %v659 = vadd.f32 %v595, 8.0
  %v660 = vadd.f32 %v596, 8.0
  %v661 = vadd.f32 %v597, 8.0
  %v662 = vadd.f32 %v598, 8.0
  %v663 = vadd.f32 %v599, 8.0
  %v664 = vadd.f32 %v600, 8.0
  %v665 = vadd.f32 %v601, 8.0
  %v666 = vadd.f32 %v602, 8.0
  %v667 = vadd.f32 %v603, 8.0
  %v668 = vrsqrt.pop %v604
  %v669 = vrsqrt.pop %v605
  %v670 = vrsqrt.pop %v606
  %v671 = vrsqrt.pop %v607
  %v672 = vrsqrt.pop %v608
  %v673 = vrsqrt.pop %v609
  %v674 = vrsqrt.pop %v610
  %v675 = vrsqrt.pop %v611
  %v676 = vrsqrt.pop %v612
  %v677 = vrsqrt.pop %v613
  %v678 = vrsqrt.pop %v614
  %v679 = vrsqrt.pop %v615
  %v680 = vrsqrt.pop %v616
  %v681 = vrsqrt.pop %v617
  %v682 = vrsqrt.pop %v618
  %v683 = vrsqrt.pop %v619
  %v684 = vrsqrt.pop %v620
  %v685 = vrsqrt.pop %v621
  %v686 = vrsqrt.pop %v622
  %v687 = vrsqrt.pop %v623
  %v688 = vrsqrt.pop %v624
  %v689 = vrsqrt.pop %v625
  %v690 = vrsqrt.pop %v626
  %v691 = vrsqrt.pop %v627
  %v692 = vrsqrt.pop %v628
  %v693 = vrsqrt.pop %v629
  %v694 = vrsqrt.pop %v630
  %v695 = vrsqrt.pop %v631
  %v696 = vrsqrt.pop %v632
  %v697 = vrsqrt.pop %v633
  %v698 = vrsqrt.pop %v634
  %v699 = vrsqrt.pop %v635
  %v700 = vrsqrt.pop %v636
  %v701 = vrsqrt.pop %v637
  %v702 = vrsqrt.pop %v638
  %v703 = vrsqrt.pop %v639
  %v704 = vrsqrt.pop %v640
  %v705 = vrsqrt.pop %v641
  %v706 = vrsqrt.pop %v642
  %v707 = vrsqrt.pop %v643
  %v708 = vrsqrt.pop %v644
  %v709 = vrsqrt.pop %v645
  %v710 = vrsqrt.pop %v646
  %v711 = vrsqrt.pop %v647
  %v712 = vrsqrt.pop %v648
  %v713 = vrsqrt.pop %v649
  %v714 = vrsqrt.pop %v650
  %v715 = vrsqrt.pop %v651
  %v716 = vrsqrt.pop %v652
  %v717 = vrsqrt.pop %v653
  %v718 = vrsqrt.pop %v654
  %v719 = vrsqrt.pop %v655
  %v720 = vrsqrt.pop %v656
  %v721 = vrsqrt.pop %v657
  %v722 = vrsqrt.pop %v658
  %v723 = vrsqrt.pop %v659
  %v724 = vrsqrt.pop %v660
  %v725 = vrsqrt.pop %v661
  %v726 = vrsqrt.pop %v662
  %v727 = vrsqrt.pop %v663
  %v728 = vrsqrt.pop %v664
  %v729 = vrsqrt.pop %v665
  %v730 = vrsqrt.pop %v666
  %v731 = vrsqrt.pop %v667
  %v732 = vrsqrt.pop %v668
  %v733 = vmul.f32 %v668, %v732
  %vm734 = vcmp.eq.f32.partialorder %v668, inf
  %v735 = vsel %vm734, %v668, %v733
  %vm736 = vcmp.eq.f32.partialorder %v668, 0.0
  %v737 = vand.u32 %v668, 2147483648
  %v738 = vsel %vm736, %v737, %v735
  %v739 = vrsqrt.pop %v669
  %v740 = vmul.f32 %v669, %v739
  %vm741 = vcmp.eq.f32.partialorder %v669, inf
  %v742 = vsel %vm741, %v669, %v740
  %vm743 = vcmp.eq.f32.partialorder %v669, 0.0
  %v744 = vand.u32 %v669, 2147483648
  %v745 = vsel %vm743, %v744, %v742
  %v746 = vrsqrt.pop %v670
  %v747 = vmul.f32 %v670, %v746
  %vm748 = vcmp.eq.f32.partialorder %v670, inf
  %v749 = vsel %vm748, %v670, %v747
  %vm750 = vcmp.eq.f32.partialorder %v670, 0.0
  %v751 = vand.u32 %v670, 2147483648
  %v752 = vsel %vm750, %v751, %v749
  %v753 = vrsqrt.pop %v671
  %v754 = vmul.f32 %v671, %v753
  %vm755 = vcmp.eq.f32.partialorder %v671, inf
  %v756 = vsel %vm755, %v671, %v754
  %vm757 = vcmp.eq.f32.partialorder %v671, 0.0
  %v758 = vand.u32 %v671, 2147483648
  %v759 = vsel %vm757, %v758, %v756
  %v760 = vrsqrt.pop %v672
  %v761 = vmul.f32 %v672, %v760
  %vm762 = vcmp.eq.f32.partialorder %v672, inf
  %v763 = vsel %vm762, %v672, %v761
  %vm764 = vcmp.eq.f32.partialorder %v672, 0.0
  %v765 = vand.u32 %v672, 2147483648
  %v766 = vsel %vm764, %v765, %v763
  %v767 = vrsqrt.pop %v673
  %v768 = vmul.f32 %v673, %v767
  %vm769 = vcmp.eq.f32.partialorder %v673, inf
  %v770 = vsel %vm769, %v673, %v768
  %vm771 = vcmp.eq.f32.partialorder %v673, 0.0
  %v772 = vand.u32 %v673, 2147483648
  %v773 = vsel %vm771, %v772, %v770
  %v774 = vrsqrt.pop %v674
  %v775 = vmul.f32 %v674, %v774
  %vm776 = vcmp.eq.f32.partialorder %v674, inf
  %v777 = vsel %vm776, %v674, %v775
  %vm778 = vcmp.eq.f32.partialorder %v674, 0.0
  %v779 = vand.u32 %v674, 2147483648
  %v780 = vsel %vm778, %v779, %v777
  %v781 = vrsqrt.pop %v675
  %v782 = vmul.f32 %v675, %v781
  %vm783 = vcmp.eq.f32.partialorder %v675, inf
  %v784 = vsel %vm783, %v675, %v782
  %vm785 = vcmp.eq.f32.partialorder %v675, 0.0
  %v786 = vand.u32 %v675, 2147483648
  %v787 = vsel %vm785, %v786, %v784
  %v788 = vrsqrt.pop %v676
  %v789 = vmul.f32 %v676, %v788
  %vm790 = vcmp.eq.f32.partialorder %v676, inf
  %v791 = vsel %vm790, %v676, %v789
  %vm792 = vcmp.eq.f32.partialorder %v676, 0.0
  %v793 = vand.u32 %v676, 2147483648
  %v794 = vsel %vm792, %v793, %v791
  %v795 = vrsqrt.pop %v677
  %v796 = vmul.f32 %v677, %v795
  %vm797 = vcmp.eq.f32.partialorder %v677, inf
  %v798 = vsel %vm797, %v677, %v796
  %vm799 = vcmp.eq.f32.partialorder %v677, 0.0
  %v800 = vand.u32 %v677, 2147483648
  %v801 = vsel %vm799, %v800, %v798
  %v802 = vrsqrt.pop %v678
  %v803 = vmul.f32 %v678, %v802
  %vm804 = vcmp.eq.f32.partialorder %v678, inf
  %v805 = vsel %vm804, %v678, %v803
  %vm806 = vcmp.eq.f32.partialorder %v678, 0.0
  %v807 = vand.u32 %v678, 2147483648
  %v808 = vsel %vm806, %v807, %v805
  %v809 = vrsqrt.pop %v679
  %v810 = vmul.f32 %v679, %v809
  %vm811 = vcmp.eq.f32.partialorder %v679, inf
  %v812 = vsel %vm811, %v679, %v810
  %vm813 = vcmp.eq.f32.partialorder %v679, 0.0
  %v814 = vand.u32 %v679, 2147483648
  %v815 = vsel %vm813, %v814, %v812
  %v816 = vrsqrt.pop %v680
  %v817 = vmul.f32 %v680, %v816
  %vm818 = vcmp.eq.f32.partialorder %v680, inf
  %v819 = vsel %vm818, %v680, %v817
  %vm820 = vcmp.eq.f32.partialorder %v680, 0.0
  %v821 = vand.u32 %v680, 2147483648
  %v822 = vsel %vm820, %v821, %v819
  %v823 = vrsqrt.pop %v681
  %v824 = vmul.f32 %v681, %v823
  %vm825 = vcmp.eq.f32.partialorder %v681, inf
  %v826 = vsel %vm825, %v681, %v824
  %vm827 = vcmp.eq.f32.partialorder %v681, 0.0
  %v828 = vand.u32 %v681, 2147483648
  %v829 = vsel %vm827, %v828, %v826
  %v830 = vrsqrt.pop %v682
  %v831 = vmul.f32 %v682, %v830
  %vm832 = vcmp.eq.f32.partialorder %v682, inf
  %v833 = vsel %vm832, %v682, %v831
  %vm834 = vcmp.eq.f32.partialorder %v682, 0.0
  %v835 = vand.u32 %v682, 2147483648
  %v836 = vsel %vm834, %v835, %v833
  %v837 = vrsqrt.pop %v683
  %v838 = vmul.f32 %v683, %v837
  %vm839 = vcmp.eq.f32.partialorder %v683, inf
  %v840 = vsel %vm839, %v683, %v838
  %vm841 = vcmp.eq.f32.partialorder %v683, 0.0
  %v842 = vand.u32 %v683, 2147483648
  %v843 = vsel %vm841, %v842, %v840
  %v844 = vrsqrt.pop %v684
  %v845 = vmul.f32 %v684, %v844
  %vm846 = vcmp.eq.f32.partialorder %v684, inf
  %v847 = vsel %vm846, %v684, %v845
  %vm848 = vcmp.eq.f32.partialorder %v684, 0.0
  %v849 = vand.u32 %v684, 2147483648
  %v850 = vsel %vm848, %v849, %v847
  %v851 = vrsqrt.pop %v685
  %v852 = vmul.f32 %v685, %v851
  %vm853 = vcmp.eq.f32.partialorder %v685, inf
  %v854 = vsel %vm853, %v685, %v852
  %vm855 = vcmp.eq.f32.partialorder %v685, 0.0
  %v856 = vand.u32 %v685, 2147483648
  %v857 = vsel %vm855, %v856, %v854
  %v858 = vrsqrt.pop %v686
  %v859 = vmul.f32 %v686, %v858
  %vm860 = vcmp.eq.f32.partialorder %v686, inf
  %v861 = vsel %vm860, %v686, %v859
  %vm862 = vcmp.eq.f32.partialorder %v686, 0.0
  %v863 = vand.u32 %v686, 2147483648
  %v864 = vsel %vm862, %v863, %v861
  %v865 = vrsqrt.pop %v687
  %v866 = vmul.f32 %v687, %v865
  %vm867 = vcmp.eq.f32.partialorder %v687, inf
  %v868 = vsel %vm867, %v687, %v866
  %vm869 = vcmp.eq.f32.partialorder %v687, 0.0
  %v870 = vand.u32 %v687, 2147483648
  %v871 = vsel %vm869, %v870, %v868
  %v872 = vrsqrt.pop %v688
  %v873 = vmul.f32 %v688, %v872
  %vm874 = vcmp.eq.f32.partialorder %v688, inf
  %v875 = vsel %vm874, %v688, %v873
  %vm876 = vcmp.eq.f32.partialorder %v688, 0.0
  %v877 = vand.u32 %v688, 2147483648
  %v878 = vsel %vm876, %v877, %v875
  %v879 = vrsqrt.pop %v689
  %v880 = vmul.f32 %v689, %v879
  %vm881 = vcmp.eq.f32.partialorder %v689, inf
  %v882 = vsel %vm881, %v689, %v880
  %vm883 = vcmp.eq.f32.partialorder %v689, 0.0
  %v884 = vand.u32 %v689, 2147483648
  %v885 = vsel %vm883, %v884, %v882
  %v886 = vrsqrt.pop %v690
  %v887 = vmul.f32 %v690, %v886
  %vm888 = vcmp.eq.f32.partialorder %v690, inf
  %v889 = vsel %vm888, %v690, %v887
  %vm890 = vcmp.eq.f32.partialorder %v690, 0.0
  %v891 = vand.u32 %v690, 2147483648
  %v892 = vsel %vm890, %v891, %v889
  %v893 = vrsqrt.pop %v691
  %v894 = vmul.f32 %v691, %v893
  %vm895 = vcmp.eq.f32.partialorder %v691, inf
  %v896 = vsel %vm895, %v691, %v894
  %vm897 = vcmp.eq.f32.partialorder %v691, 0.0
  %v898 = vand.u32 %v691, 2147483648
  %v899 = vsel %vm897, %v898, %v896
  %v900 = vrsqrt.pop %v692
  %v901 = vmul.f32 %v692, %v900
  %vm902 = vcmp.eq.f32.partialorder %v692, inf
  %v903 = vsel %vm902, %v692, %v901
  %vm904 = vcmp.eq.f32.partialorder %v692, 0.0
  %v905 = vand.u32 %v692, 2147483648
  %v906 = vsel %vm904, %v905, %v903
  %v907 = vrsqrt.pop %v693
  %v908 = vmul.f32 %v693, %v907
  %vm909 = vcmp.eq.f32.partialorder %v693, inf
  %v910 = vsel %vm909, %v693, %v908
  %vm911 = vcmp.eq.f32.partialorder %v693, 0.0
  %v912 = vand.u32 %v693, 2147483648
  %v913 = vsel %vm911, %v912, %v910
  %v914 = vrsqrt.pop %v694
  %v915 = vmul.f32 %v694, %v914
  %vm916 = vcmp.eq.f32.partialorder %v694, inf
  %v917 = vsel %vm916, %v694, %v915
  %vm918 = vcmp.eq.f32.partialorder %v694, 0.0
  %v919 = vand.u32 %v694, 2147483648
  %v920 = vsel %vm918, %v919, %v917
  %v921 = vrsqrt.pop %v695
  %v922 = vmul.f32 %v695, %v921
  %vm923 = vcmp.eq.f32.partialorder %v695, inf
  %v924 = vsel %vm923, %v695, %v922
  %vm925 = vcmp.eq.f32.partialorder %v695, 0.0
  %v926 = vand.u32 %v695, 2147483648
  %v927 = vsel %vm925, %v926, %v924
  %v928 = vrsqrt.pop %v696
  %v929 = vmul.f32 %v696, %v928
  %vm930 = vcmp.eq.f32.partialorder %v696, inf
  %v931 = vsel %vm930, %v696, %v929
  %vm932 = vcmp.eq.f32.partialorder %v696, 0.0
  %v933 = vand.u32 %v696, 2147483648
  %v934 = vsel %vm932, %v933, %v931
  %v935 = vrsqrt.pop %v697
  %v936 = vmul.f32 %v697, %v935
  %vm937 = vcmp.eq.f32.partialorder %v697, inf
  %v938 = vsel %vm937, %v697, %v936
  %vm939 = vcmp.eq.f32.partialorder %v697, 0.0
  %v940 = vand.u32 %v697, 2147483648
  %v941 = vsel %vm939, %v940, %v938
  %v942 = vrsqrt.pop %v698
  %v943 = vmul.f32 %v698, %v942
  %vm944 = vcmp.eq.f32.partialorder %v698, inf
  %v945 = vsel %vm944, %v698, %v943
  %vm946 = vcmp.eq.f32.partialorder %v698, 0.0
  %v947 = vand.u32 %v698, 2147483648
  %v948 = vsel %vm946, %v947, %v945
  %v949 = vrsqrt.pop %v699
  %v950 = vmul.f32 %v699, %v949
  %vm951 = vcmp.eq.f32.partialorder %v699, inf
  %v952 = vsel %vm951, %v699, %v950
  %vm953 = vcmp.eq.f32.partialorder %v699, 0.0
  %v954 = vand.u32 %v699, 2147483648
  %v955 = vsel %vm953, %v954, %v952
  %v956 = vrsqrt.pop %v700
  %v957 = vmul.f32 %v700, %v956
  %vm958 = vcmp.eq.f32.partialorder %v700, inf
  %v959 = vsel %vm958, %v700, %v957
  %vm960 = vcmp.eq.f32.partialorder %v700, 0.0
  %v961 = vand.u32 %v700, 2147483648
  %v962 = vsel %vm960, %v961, %v959
  %v963 = vrsqrt.pop %v701
  %v964 = vmul.f32 %v701, %v963
  %vm965 = vcmp.eq.f32.partialorder %v701, inf
  %v966 = vsel %vm965, %v701, %v964
  %vm967 = vcmp.eq.f32.partialorder %v701, 0.0
  %v968 = vand.u32 %v701, 2147483648
  %v969 = vsel %vm967, %v968, %v966
  %v970 = vrsqrt.pop %v702
  %v971 = vmul.f32 %v702, %v970
  %vm972 = vcmp.eq.f32.partialorder %v702, inf
  %v973 = vsel %vm972, %v702, %v971
  %vm974 = vcmp.eq.f32.partialorder %v702, 0.0
  %v975 = vand.u32 %v702, 2147483648
  %v976 = vsel %vm974, %v975, %v973
  %v977 = vrsqrt.pop %v703
  %v978 = vmul.f32 %v703, %v977
  %vm979 = vcmp.eq.f32.partialorder %v703, inf
  %v980 = vsel %vm979, %v703, %v978
  %vm981 = vcmp.eq.f32.partialorder %v703, 0.0
  %v982 = vand.u32 %v703, 2147483648
  %v983 = vsel %vm981, %v982, %v980
  %v984 = vrsqrt.pop %v704
  %v985 = vmul.f32 %v704, %v984
  %vm986 = vcmp.eq.f32.partialorder %v704, inf
  %v987 = vsel %vm986, %v704, %v985
  %vm988 = vcmp.eq.f32.partialorder %v704, 0.0
  %v989 = vand.u32 %v704, 2147483648
  %v990 = vsel %vm988, %v989, %v987
  %v991 = vrsqrt.pop %v705
  %v992 = vmul.f32 %v705, %v991
  %vm993 = vcmp.eq.f32.partialorder %v705, inf
  %v994 = vsel %vm993, %v705, %v992
  %vm995 = vcmp.eq.f32.partialorder %v705, 0.0
  %v996 = vand.u32 %v705, 2147483648
  %v997 = vsel %vm995, %v996, %v994
  %v998 = vrsqrt.pop %v706
  %v999 = vmul.f32 %v706, %v998
  %vm1000 = vcmp.eq.f32.partialorder %v706, inf
  %v1001 = vsel %vm1000, %v706, %v999
  %vm1002 = vcmp.eq.f32.partialorder %v706, 0.0
  %v1003 = vand.u32 %v706, 2147483648
  %v1004 = vsel %vm1002, %v1003, %v1001
  %v1005 = vrsqrt.pop %v707
  %v1006 = vmul.f32 %v707, %v1005
  %vm1007 = vcmp.eq.f32.partialorder %v707, inf
  %v1008 = vsel %vm1007, %v707, %v1006
  %vm1009 = vcmp.eq.f32.partialorder %v707, 0.0
  %v1010 = vand.u32 %v707, 2147483648
  %v1011 = vsel %vm1009, %v1010, %v1008
  %v1012 = vrsqrt.pop %v708
  %v1013 = vmul.f32 %v708, %v1012
  %vm1014 = vcmp.eq.f32.partialorder %v708, inf
  %v1015 = vsel %vm1014, %v708, %v1013
  %vm1016 = vcmp.eq.f32.partialorder %v708, 0.0
  %v1017 = vand.u32 %v708, 2147483648
  %v1018 = vsel %vm1016, %v1017, %v1015
  %v1019 = vrsqrt.pop %v709
  %v1020 = vmul.f32 %v709, %v1019
  %vm1021 = vcmp.eq.f32.partialorder %v709, inf
  %v1022 = vsel %vm1021, %v709, %v1020
  %vm1023 = vcmp.eq.f32.partialorder %v709, 0.0
  %v1024 = vand.u32 %v709, 2147483648
  %v1025 = vsel %vm1023, %v1024, %v1022
  %v1026 = vrsqrt.pop %v710
  %v1027 = vmul.f32 %v710, %v1026
  %vm1028 = vcmp.eq.f32.partialorder %v710, inf
  %v1029 = vsel %vm1028, %v710, %v1027
  %vm1030 = vcmp.eq.f32.partialorder %v710, 0.0
  %v1031 = vand.u32 %v710, 2147483648
  %v1032 = vsel %vm1030, %v1031, %v1029
  %v1033 = vrsqrt.pop %v711
  %v1034 = vmul.f32 %v711, %v1033
  %vm1035 = vcmp.eq.f32.partialorder %v711, inf
  %v1036 = vsel %vm1035, %v711, %v1034
  %vm1037 = vcmp.eq.f32.partialorder %v711, 0.0
  %v1038 = vand.u32 %v711, 2147483648
  %v1039 = vsel %vm1037, %v1038, %v1036
  %v1040 = vrsqrt.pop %v712
  %v1041 = vmul.f32 %v712, %v1040
  %vm1042 = vcmp.eq.f32.partialorder %v712, inf
  %v1043 = vsel %vm1042, %v712, %v1041
  %vm1044 = vcmp.eq.f32.partialorder %v712, 0.0
  %v1045 = vand.u32 %v712, 2147483648
  %v1046 = vsel %vm1044, %v1045, %v1043
  %v1047 = vrsqrt.pop %v713
  %v1048 = vmul.f32 %v713, %v1047
  %vm1049 = vcmp.eq.f32.partialorder %v713, inf
  %v1050 = vsel %vm1049, %v713, %v1048
  %vm1051 = vcmp.eq.f32.partialorder %v713, 0.0
  %v1052 = vand.u32 %v713, 2147483648
  %v1053 = vsel %vm1051, %v1052, %v1050
  %v1054 = vrsqrt.pop %v714
  %v1055 = vmul.f32 %v714, %v1054
  %vm1056 = vcmp.eq.f32.partialorder %v714, inf
  %v1057 = vsel %vm1056, %v714, %v1055
  %vm1058 = vcmp.eq.f32.partialorder %v714, 0.0
  %v1059 = vand.u32 %v714, 2147483648
  %v1060 = vsel %vm1058, %v1059, %v1057
  %v1061 = vrsqrt.pop %v715
  %v1062 = vmul.f32 %v715, %v1061
  %vm1063 = vcmp.eq.f32.partialorder %v715, inf
  %v1064 = vsel %vm1063, %v715, %v1062
  %vm1065 = vcmp.eq.f32.partialorder %v715, 0.0
  %v1066 = vand.u32 %v715, 2147483648
  %v1067 = vsel %vm1065, %v1066, %v1064
  %v1068 = vrsqrt.pop %v716
  %v1069 = vmul.f32 %v716, %v1068
  %vm1070 = vcmp.eq.f32.partialorder %v716, inf
  %v1071 = vsel %vm1070, %v716, %v1069
  %vm1072 = vcmp.eq.f32.partialorder %v716, 0.0
  %v1073 = vand.u32 %v716, 2147483648
  %v1074 = vsel %vm1072, %v1073, %v1071
  %v1075 = vrsqrt.pop %v717
  %v1076 = vmul.f32 %v717, %v1075
  %vm1077 = vcmp.eq.f32.partialorder %v717, inf
  %v1078 = vsel %vm1077, %v717, %v1076
  %vm1079 = vcmp.eq.f32.partialorder %v717, 0.0
  %v1080 = vand.u32 %v717, 2147483648
  %v1081 = vsel %vm1079, %v1080, %v1078
  %v1082 = vrsqrt.pop %v718
  %v1083 = vmul.f32 %v718, %v1082
  %vm1084 = vcmp.eq.f32.partialorder %v718, inf
  %v1085 = vsel %vm1084, %v718, %v1083
  %vm1086 = vcmp.eq.f32.partialorder %v718, 0.0
  %v1087 = vand.u32 %v718, 2147483648
  %v1088 = vsel %vm1086, %v1087, %v1085
  %v1089 = vrsqrt.pop %v719
  %v1090 = vmul.f32 %v719, %v1089
  %vm1091 = vcmp.eq.f32.partialorder %v719, inf
  %v1092 = vsel %vm1091, %v719, %v1090
  %vm1093 = vcmp.eq.f32.partialorder %v719, 0.0
  %v1094 = vand.u32 %v719, 2147483648
  %v1095 = vsel %vm1093, %v1094, %v1092
  %v1096 = vrsqrt.pop %v720
  %v1097 = vmul.f32 %v720, %v1096
  %vm1098 = vcmp.eq.f32.partialorder %v720, inf
  %v1099 = vsel %vm1098, %v720, %v1097
  %vm1100 = vcmp.eq.f32.partialorder %v720, 0.0
  %v1101 = vand.u32 %v720, 2147483648
  %v1102 = vsel %vm1100, %v1101, %v1099
  %v1103 = vrsqrt.pop %v721
  %v1104 = vmul.f32 %v721, %v1103
  %vm1105 = vcmp.eq.f32.partialorder %v721, inf
  %v1106 = vsel %vm1105, %v721, %v1104
  %vm1107 = vcmp.eq.f32.partialorder %v721, 0.0
  %v1108 = vand.u32 %v721, 2147483648
  %v1109 = vsel %vm1107, %v1108, %v1106
  %v1110 = vrsqrt.pop %v722
  %v1111 = vmul.f32 %v722, %v1110
  %vm1112 = vcmp.eq.f32.partialorder %v722, inf
  %v1113 = vsel %vm1112, %v722, %v1111
  %vm1114 = vcmp.eq.f32.partialorder %v722, 0.0
  %v1115 = vand.u32 %v722, 2147483648
  %v1116 = vsel %vm1114, %v1115, %v1113
  %v1117 = vrsqrt.pop %v723
  %v1118 = vmul.f32 %v723, %v1117
  %vm1119 = vcmp.eq.f32.partialorder %v723, inf
  %v1120 = vsel %vm1119, %v723, %v1118
  %vm1121 = vcmp.eq.f32.partialorder %v723, 0.0
  %v1122 = vand.u32 %v723, 2147483648
  %v1123 = vsel %vm1121, %v1122, %v1120
  %v1124 = vrsqrt.pop %v724
  %v1125 = vmul.f32 %v724, %v1124
  %vm1126 = vcmp.eq.f32.partialorder %v724, inf
  %v1127 = vsel %vm1126, %v724, %v1125
  %vm1128 = vcmp.eq.f32.partialorder %v724, 0.0
  %v1129 = vand.u32 %v724, 2147483648
  %v1130 = vsel %vm1128, %v1129, %v1127
  %v1131 = vrsqrt.pop %v725
  %v1132 = vmul.f32 %v725, %v1131
  %vm1133 = vcmp.eq.f32.partialorder %v725, inf
  %v1134 = vsel %vm1133, %v725, %v1132
  %vm1135 = vcmp.eq.f32.partialorder %v725, 0.0
  %v1136 = vand.u32 %v725, 2147483648
  %v1137 = vsel %vm1135, %v1136, %v1134
  %v1138 = vrsqrt.pop %v726
  %v1139 = vmul.f32 %v726, %v1138
  %vm1140 = vcmp.eq.f32.partialorder %v726, inf
  %v1141 = vsel %vm1140, %v726, %v1139
  %vm1142 = vcmp.eq.f32.partialorder %v726, 0.0
  %v1143 = vand.u32 %v726, 2147483648
  %v1144 = vsel %vm1142, %v1143, %v1141
  %v1145 = vrsqrt.pop %v727
  %v1146 = vmul.f32 %v727, %v1145
  %vm1147 = vcmp.eq.f32.partialorder %v727, inf
  %v1148 = vsel %vm1147, %v727, %v1146
  %vm1149 = vcmp.eq.f32.partialorder %v727, 0.0
  %v1150 = vand.u32 %v727, 2147483648
  %v1151 = vsel %vm1149, %v1150, %v1148
  %v1152 = vrsqrt.pop %v728
  %v1153 = vmul.f32 %v728, %v1152
  %vm1154 = vcmp.eq.f32.partialorder %v728, inf
  %v1155 = vsel %vm1154, %v728, %v1153
  %vm1156 = vcmp.eq.f32.partialorder %v728, 0.0
  %v1157 = vand.u32 %v728, 2147483648
  %v1158 = vsel %vm1156, %v1157, %v1155
  %v1159 = vrsqrt.pop %v729
  %v1160 = vmul.f32 %v729, %v1159
  %vm1161 = vcmp.eq.f32.partialorder %v729, inf
  %v1162 = vsel %vm1161, %v729, %v1160
  %vm1163 = vcmp.eq.f32.partialorder %v729, 0.0
  %v1164 = vand.u32 %v729, 2147483648
  %v1165 = vsel %vm1163, %v1164, %v1162
  %v1166 = vrsqrt.pop %v730
  %v1167 = vmul.f32 %v730, %v1166
  %vm1168 = vcmp.eq.f32.partialorder %v730, inf
  %v1169 = vsel %vm1168, %v730, %v1167
  %vm1170 = vcmp.eq.f32.partialorder %v730, 0.0
  %v1171 = vand.u32 %v730, 2147483648
  %v1172 = vsel %vm1170, %v1171, %v1169
  %v1173 = vrsqrt.pop %v731
  %v1174 = vmul.f32 %v731, %v1173
  %vm1175 = vcmp.eq.f32.partialorder %v731, inf
  %v1176 = vsel %vm1175, %v731, %v1174
  %vm1177 = vcmp.eq.f32.partialorder %v731, 0.0
  %v1178 = vand.u32 %v731, 2147483648
  %v1179 = vsel %vm1177, %v1178, %v1176
  %v1180 = vmul.f32 %v668, %v738
  %v1181 = vmul.f32 %v669, %v745
  %v1182 = vmul.f32 %v670, %v752
  %v1183 = vmul.f32 %v671, %v759
  %v1184 = vmul.f32 %v672, %v766
  %v1185 = vmul.f32 %v673, %v773
  %v1186 = vmul.f32 %v674, %v780
  %v1187 = vmul.f32 %v675, %v787
  %v1188 = vmul.f32 %v676, %v794
  %v1189 = vmul.f32 %v677, %v801
  %v1190 = vmul.f32 %v678, %v808
  %v1191 = vmul.f32 %v679, %v815
  %v1192 = vmul.f32 %v680, %v822
  %v1193 = vmul.f32 %v681, %v829
  %v1194 = vmul.f32 %v682, %v836
  %v1195 = vmul.f32 %v683, %v843
  %v1196 = vmul.f32 %v684, %v850
  %v1197 = vmul.f32 %v685, %v857
  %v1198 = vmul.f32 %v686, %v864
  %v1199 = vmul.f32 %v687, %v871
  %v1200 = vmul.f32 %v688, %v878
  %v1201 = vmul.f32 %v689, %v885
  %v1202 = vmul.f32 %v690, %v892
  %v1203 = vmul.f32 %v691, %v899
  %v1204 = vmul.f32 %v692, %v906
  %v1205 = vmul.f32 %v693, %v913
  %v1206 = vmul.f32 %v694, %v920
  %v1207 = vmul.f32 %v695, %v927
  %v1208 = vmul.f32 %v696, %v934
  %v1209 = vmul.f32 %v697, %v941
  %v1210 = vmul.f32 %v698, %v948
  %v1211 = vmul.f32 %v699, %v955
  %v1212 = vmul.f32 %v700, %v962
  %v1213 = vmul.f32 %v701, %v969
  %v1214 = vmul.f32 %v702, %v976
  %v1215 = vmul.f32 %v703, %v983
  %v1216 = vmul.f32 %v704, %v990
  %v1217 = vmul.f32 %v705, %v997
  %v1218 = vmul.f32 %v706, %v1004
  %v1219 = vmul.f32 %v707, %v1011
  %v1220 = vmul.f32 %v708, %v1018
  %v1221 = vmul.f32 %v709, %v1025
  %v1222 = vmul.f32 %v710, %v1032
  %v1223 = vmul.f32 %v711, %v1039
  %v1224 = vmul.f32 %v712, %v1046
  %v1225 = vmul.f32 %v713, %v1053
  %v1226 = vmul.f32 %v714, %v1060
  %v1227 = vmul.f32 %v715, %v1067
  %v1228 = vmul.f32 %v716, %v1074
  %v1229 = vmul.f32 %v717, %v1081
  %v1230 = vmul.f32 %v718, %v1088
  %v1231 = vmul.f32 %v719, %v1095
  %v1232 = vmul.f32 %v720, %v1102
  %v1233 = vmul.f32 %v721, %v1109
  %v1234 = vmul.f32 %v722, %v1116
  %v1235 = vmul.f32 %v723, %v1123
  %v1236 = vmul.f32 %v724, %v1130
  %v1237 = vmul.f32 %v725, %v1137
  %v1238 = vmul.f32 %v726, %v1144
  %v1239 = vmul.f32 %v727, %v1151
  %v1240 = vmul.f32 %v728, %v1158
  %v1241 = vmul.f32 %v729, %v1165
  %v1242 = vmul.f32 %v730, %v1172
  %v1243 = vmul.f32 %v731, %v1179
  %v1244 = vmul.f32 %v11, %v1180
  %v1245 = vmul.f32 %v12, %v1181
  %v1246 = vmul.f32 %v13, %v1182
  %v1247 = vmul.f32 %v14, %v1183
  %v1248 = vmul.f32 %v15, %v1184
  %v1249 = vmul.f32 %v16, %v1185
  %v1250 = vmul.f32 %v17, %v1186
  %v1251 = vmul.f32 %v18, %v1187
  %v1252 = vmul.f32 %v19, %v1188
  %v1253 = vmul.f32 %v20, %v1189
  %v1254 = vmul.f32 %v21, %v1190
  %v1255 = vmul.f32 %v22, %v1191
  %v1256 = vmul.f32 %v23, %v1192
  %v1257 = vmul.f32 %v24, %v1193
  %v1258 = vmul.f32 %v25, %v1194
  %v1259 = vmul.f32 %v26, %v1195
  %v1260 = vmul.f32 %v27, %v1196
  %v1261 = vmul.f32 %v28, %v1197
  %v1262 = vmul.f32 %v29, %v1198
  %v1263 = vmul.f32 %v30, %v1199
  %v1264 = vmul.f32 %v31, %v1200
  %v1265 = vmul.f32 %v32, %v1201
  %v1266 = vmul.f32 %v33, %v1202
  %v1267 = vmul.f32 %v34, %v1203
  %v1268 = vmul.f32 %v35, %v1204
  %v1269 = vmul.f32 %v36, %v1205
  %v1270 = vmul.f32 %v37, %v1206
  %v1271 = vmul.f32 %v38, %v1207
  %v1272 = vmul.f32 %v39, %v1208
  %v1273 = vmul.f32 %v40, %v1209
  %v1274 = vmul.f32 %v41, %v1210
  %v1275 = vmul.f32 %v42, %v1211
  %v1276 = vmul.f32 %v43, %v1212
  %v1277 = vmul.f32 %v44, %v1213
  %v1278 = vmul.f32 %v45, %v1214
  %v1279 = vmul.f32 %v46, %v1215
  %v1280 = vmul.f32 %v47, %v1216
  %v1281 = vmul.f32 %v48, %v1217
  %v1282 = vmul.f32 %v49, %v1218
  %v1283 = vmul.f32 %v50, %v1219
  %v1284 = vmul.f32 %v51, %v1220
  %v1285 = vmul.f32 %v52, %v1221
  %v1286 = vmul.f32 %v53, %v1222
  %v1287 = vmul.f32 %v54, %v1223
  %v1288 = vmul.f32 %v55, %v1224
  %v1289 = vmul.f32 %v56, %v1225
  %v1290 = vmul.f32 %v57, %v1226
  %v1291 = vmul.f32 %v58, %v1227
  %v1292 = vmul.f32 %v59, %v1228
  %v1293 = vmul.f32 %v60, %v1229
  %v1294 = vmul.f32 %v61, %v1230
  %v1295 = vmul.f32 %v62, %v1231
  %v1296 = vmul.f32 %v63, %v1232
  %v1297 = vmul.f32 %v64, %v1233
  %v1298 = vmul.f32 %v65, %v1234
  %v1299 = vmul.f32 %v66, %v1235
  %v1300 = vmul.f32 %v67, %v1236
  %v1301 = vmul.f32 %v68, %v1237
  %v1302 = vmul.f32 %v69, %v1238
  %v1303 = vmul.f32 %v70, %v1239
  %v1304 = vmul.f32 %v71, %v1240
  %v1305 = vmul.f32 %v72, %v1241
  %v1306 = vmul.f32 %v73, %v1242
  %v1307 = vmul.f32 %v74, %v1243
  %1308 = vst [vmem:[%s2] sm:$0xff] %v1244
  %1309 = vst [vmem:[%s2 + $0x8] sm:$0xff] %v1245
  %1310 = vst [vmem:[%s2 + $0x10] sm:$0xff] %v1246
  %1311 = vst [vmem:[%s2 + $0x18] sm:$0xff] %v1247
  %1312 = vst [vmem:[%s2 + $0x20] sm:$0xff] %v1248
  %1313 = vst [vmem:[%s2 + $0x28] sm:$0xff] %v1249
  %1314 = vst [vmem:[%s2 + $0x30] sm:$0xff] %v1250
  %1315 = vst [vmem:[%s2 + $0x38] sm:$0xff] %v1251
  %1316 = vst [vmem:[%s2 + $0x40] sm:$0xff] %v1252
  %1317 = vst [vmem:[%s2 + $0x48] sm:$0xff] %v1253
  %1318 = vst [vmem:[%s2 + $0x50] sm:$0xff] %v1254
  %1319 = vst [vmem:[%s2 + $0x58] sm:$0xff] %v1255
  %1320 = vst [vmem:[%s2 + $0x60] sm:$0xff] %v1256
  %1321 = vst [vmem:[%s2 + $0x68] sm:$0xff] %v1257
  %1322 = vst [vmem:[%s2 + $0x70] sm:$0xff] %v1258
  %1323 = vst [vmem:[%s2 + $0x78] sm:$0xff] %v1259
  %1324 = vst [vmem:[%s2 + $0x80] sm:$0xff] %v1260
  %1325 = vst [vmem:[%s2 + $0x88] sm:$0xff] %v1261
  %1326 = vst [vmem:[%s2 + $0x90] sm:$0xff] %v1262
  %1327 = vst [vmem:[%s2 + $0x98] sm:$0xff] %v1263
  %1328 = vst [vmem:[%s2 + $0xa0] sm:$0xff] %v1264
  %1329 = vst [vmem:[%s2 + $0xa8] sm:$0xff] %v1265
  %1330 = vst [vmem:[%s2 + $0xb0] sm:$0xff] %v1266
  %1331 = vst [vmem:[%s2 + $0xb8] sm:$0xff] %v1267
  %1332 = vst [vmem:[%s2 + $0xc0] sm:$0xff] %v1268
  %1333 = vst [vmem:[%s2 + $0xc8] sm:$0xff] %v1269
  %1334 = vst [vmem:[%s2 + $0xd0] sm:$0xff] %v1270
  %1335 = vst [vmem:[%s2 + $0xd8] sm:$0xff] %v1271
  %1336 = vst [vmem:[%s2 + $0xe0] sm:$0xff] %v1272
  %1337 = vst [vmem:[%s2 + $0xe8] sm:$0xff] %v1273
  %1338 = vst [vmem:[%s2 + $0xf0] sm:$0xff] %v1274
  %1339 = vst [vmem:[%s2 + $0xf8] sm:$0xff] %v1275
  %1340 = vst [vmem:[%s2 + $0x100] sm:$0xff] %v1276
  %1341 = vst [vmem:[%s2 + $0x108] sm:$0xff] %v1277
  %1342 = vst [vmem:[%s2 + $0x110] sm:$0xff] %v1278
  %1343 = vst [vmem:[%s2 + $0x118] sm:$0xff] %v1279
  %1344 = vst [vmem:[%s2 + $0x120] sm:$0xff] %v1280
  %1345 = vst [vmem:[%s2 + $0x128] sm:$0xff] %v1281
  %1346 = vst [vmem:[%s2 + $0x130] sm:$0xff] %v1282
  %1347 = vst [vmem:[%s2 + $0x138] sm:$0xff] %v1283
  %1348 = vst [vmem:[%s2 + $0x140] sm:$0xff] %v1284
  %1349 = vst [vmem:[%s2 + $0x148] sm:$0xff] %v1285
  %1350 = vst [vmem:[%s2 + $0x150] sm:$0xff] %v1286
  %1351 = vst [vmem:[%s2 + $0x158] sm:$0xff] %v1287
  %1352 = vst [vmem:[%s2 + $0x160] sm:$0xff] %v1288
  %1353 = vst [vmem:[%s2 + $0x168] sm:$0xff] %v1289
  %1354 = vst [vmem:[%s2 + $0x170] sm:$0xff] %v1290
  %1355 = vst [vmem:[%s2 + $0x178] sm:$0xff] %v1291
  %1356 = vst [vmem:[%s2 + $0x180] sm:$0xff] %v1292
  %1357 = vst [vmem:[%s2 + $0x188] sm:$0xff] %v1293
  %1358 = vst [vmem:[%s2 + $0x190] sm:$0xff] %v1294
  %1359 = vst [vmem:[%s2 + $0x198] sm:$0xff] %v1295
  %1360 = vst [vmem:[%s2 + $0x1a0] sm:$0xff] %v1296
  %1361 = vst [vmem:[%s2 + $0x1a8] sm:$0xff] %v1297
  %1362 = vst [vmem:[%s2 + $0x1b0] sm:$0xff] %v1298
  %1363 = vst [vmem:[%s2 + $0x1b8] sm:$0xff] %v1299
  %1364 = vst [vmem:[%s2 + $0x1c0] sm:$0xff] %v1300
  %1365 = vst [vmem:[%s2 + $0x1c8] sm:$0xff] %v1301
  %1366 = vst [vmem:[%s2 + $0x1d0] sm:$0xff] %v1302
  %1367 = vst [vmem:[%s2 + $0x1d8] sm:$0xff] %v1303
  %1368 = vst [vmem:[%s2 + $0x1e0] sm:$0xff] %v1304
  %1369 = vst [vmem:[%s2 + $0x1e8] sm:$0xff] %v1305
  %1370 = vst [vmem:[%s2 + $0x1f0] sm:$0xff] %v1306
  %1371 = vst [vmem:[%s2 + $0x1f8] sm:$0xff] %v1307
  // Predicated region
  $region10: #{vpgnet_forward.27} parent=0 // pred_check
    _
  $region11: #{vpgnet_forward.27} parent=0 // pred_check_branch
    %1373 = sbr.rel (0) target = $region13
  $region12: #{vpgnet_forward.27} parent=0 // pred_region
    _
  $region13: #{vpgnet_forward.27} parent=0 // pred_fallthru
    _
  // Predicated region
  $region14: #{vpgnet_forward.27} parent=0 // pred_check
    _
  $region15: #{vpgnet_forward.27} parent=0 // pred_check_branch
    %1375 = sbr.rel (0) target = $region17
  $region16: #{vpgnet_forward.27} parent=0 // pred_region
    _
  $region17: #{vpgnet_forward.27} parent=0 // pred_fallthru
    _

// kernel: vpgnet_forward.30
$region0: #{vpgnet_forward.30}
  #allocation0 [shape = 'u32[]', space=smem, size = 0x4, offset = 0x4, fixed_abs, tag = 'smem constant byte address 0x4 - core index']
  #allocation1 [shape = 'u32[144,128]{1,0:T(1,128)}', space=vmem, size = 0x12000, scoped, tag = 'internal scratch']
  #allocation2 [shape = 'f32[128,128]{1,0:T(8,128)}', space=vmem, size = 0x10000, scoped, tag = 'scratch operand']
  %s0 = inlined_call_operand.vmem [shape: bf16[128,1024], index: 0, kind: input, shape index: {}]
  %s1 = inlined_call_operand.vmem [shape: bf16[1024,128], index: 1, kind: input, shape index: {}]
  %s2 = inlined_call_operand.vmem [shape: f32[1,128], index: 2, kind: input, shape index: {}]
  %s3 = inlined_call_operand.vmem [shape: f32[128,128], index: 3, kind: output, shape index: {}]
  %s4 = sld [smem:[#allocation0]]
  $region76: #{vpgnet_forward.30} parent=0
    _
  %s6 = ssub.s32 1, %s4
  %s7 = scalar_select 0, %s6, %s4
  $region1: #{vpgnet_forward.30} parent=0
    #allocation3 [shape = 'u8[262144]{0}', space=vmem, size = 0x40000, scoped, tag = 'input window, operand 0']
    loop: start=0, step=1, limit=4
    $region2: #{vpgnet_forward.30} parent=1 // loop_pre_header
      _
    $region3: #{vpgnet_forward.30} parent=1 // loop_header
      %s9 = sphi 0, %s13
      %p10 = scmp.ge.s32.totalorder %s9, 4
      %s16 = sphi 0, %s35
      %s17 = sphi 0, %s31
      %s18 = sphi 0, %s27
      %s19 = sphi 0, %s16
      %s20 = sphi 0, %s17
      %s21 = sphi 0, %s18
      %s22 = sphi 0, %s19
      %s23 = sphi 0, %s20
      %s24 = sphi 0, %s21
      %s40 = sphi 0, %s42
      %s43 = sphi 0, %s40
      %s44 = sphi 0, %s43
      %s60 = sphi 0, %s44
      %s68 = sphi 0, %s70
      %s71 = sphi 0, %s68
      %s72 = sphi 0, %s71
      %s88 = sphi 0, %s72
      %s94 = sphi 0, %s96
      %s97 = sphi 0, %s94
      %s98 = sphi 0, %s97
      %s114 = sphi 0, %s98
      %s122 = sphi 0, %s124
      %s125 = sphi 0, %s122
      %s126 = sphi 0, %s125
      %s142 = sphi 0, %s126
    $region4: #{vpgnet_forward.30} parent=1 // loop_header_branch
      %12 = sbr.rel (%p10) target = $region8
    $region5: #{vpgnet_forward.30} parent=1 // loop_body
      %s14 = ssub.s32 %s9, 1
      %s15 = ssub.s32 %s9, 2
      %s25 = sadd.s32 1, %s18
      %p26 = scmp.ge.s32.totalorder %s25, 2
      %s27 = scalar_select %p26, 0, %s25
      %s28 = sadd.s32 1, %s17
      %s29 = scalar_select %p26, %s28, %s17
      %p30 = scmp.ge.s32.totalorder %s29, 1
      %s31 = scalar_select %p30, 0, %s29
      %s32 = sadd.s32 1, %s16
      %s33 = scalar_select %p30, %s32, %s16
      %p34 = scmp.ge.s32.totalorder %s33, 1
      %s35 = scalar_select %p34, 0, %s33
      %s36 = ssub.s32 %s16, %s35
      %s37 = ssub.s32 %s18, %s27
      %s38 = sor.u32 %s36, %s37
      %p39 = scmp.eq.s32.totalorder %s38, 0
      %s41 = sadd.s32 %s40, 1
      %s42 = scalar_select %p39, %s40, %s41
      %p45 = pneg %p39
      %p46 = scmp.eq.s32.totalorder %s9, 1
      %p47 = por %p45, %p46
      %p48 = scmp.ne.s32.totalorder %s40, %s43
      %p49 = scmp.eq.s32.totalorder %s9, 0
      %p50 = por %p48, %p49
      %p51 = scmp.ne.s32.totalorder %s40, %s43
      %p52 = scmp.eq.s32.totalorder %s14, 1
      %p53 = por %p51, %p52
      %p54 = scmp.ne.s32.totalorder %s43, %s44
      %p55 = scmp.eq.s32.totalorder %s14, 0
      %p56 = por %p54, %p55
      %p57 = scmp.ne.s32.totalorder %s43, %s44
      %p58 = scmp.eq.s32.totalorder %s15, 1
      %p59 = por %p57, %p58
      %p61 = scmp.ne.s32.totalorder %s44, %s60
      %p62 = scmp.eq.s32.totalorder %s15, 0
      %p63 = por %p61, %p62
      %s64 = ssub.s32 %s18, %s27
      %s65 = ssub.s32 %s17, %s31
      %s66 = sor.u32 %s64, %s65
      %p67 = scmp.eq.s32.totalorder %s66, 0
      %s69 = sadd.s32 %s68, 1
      %s70 = scalar_select %p67, %s68, %s69
      %p73 = pneg %p67
      %p74 = scmp.eq.s32.totalorder %s9, 1
      %p75 = por %p73, %p74
      %p76 = scmp.ne.s32.totalorder %s68, %s71
      %p77 = scmp.eq.s32.totalorder %s9, 0
      %p78 = por %p76, %p77
      %p79 = scmp.ne.s32.totalorder %s68, %s71
      %p80 = scmp.eq.s32.totalorder %s14, 1
      %p81 = por %p79, %p80
      %p82 = scmp.ne.s32.totalorder %s71, %s72
      %p83 = scmp.eq.s32.totalorder %s14, 0
      %p84 = por %p82, %p83
      %p85 = scmp.ne.s32.totalorder %s71, %s72
      %p86 = scmp.eq.s32.totalorder %s15, 1
      %p87 = por %p85, %p86
      %p89 = scmp.ne.s32.totalorder %s72, %s88
      %p90 = scmp.eq.s32.totalorder %s15, 0
      %p91 = por %p89, %p90
      %s92 = ssub.s32 %s17, %s31
      %p93 = scmp.eq.s32.totalorder %s92, 0
      %s95 = sadd.s32 %s94, 1
      %s96 = scalar_select %p93, %s94, %s95
      %p99 = pneg %p93
      %p100 = scmp.eq.s32.totalorder %s9, 1
      %p101 = por %p99, %p100
      %p102 = scmp.ne.s32.totalorder %s94, %s97
      %p103 = scmp.eq.s32.totalorder %s9, 0
      %p104 = por %p102, %p103
      %p105 = scmp.ne.s32.totalorder %s94, %s97
      %p106 = scmp.eq.s32.totalorder %s14, 1
      %p107 = por %p105, %p106
      %p108 = scmp.ne.s32.totalorder %s97, %s98
      %p109 = scmp.eq.s32.totalorder %s14, 0
      %p110 = por %p108, %p109
      %p111 = scmp.ne.s32.totalorder %s97, %s98
      %p112 = scmp.eq.s32.totalorder %s15, 1
      %p113 = por %p111, %p112
      %p115 = scmp.ne.s32.totalorder %s98, %s114
      %p116 = scmp.eq.s32.totalorder %s15, 0
      %p117 = por %p115, %p116
      %s118 = ssub.s32 %s16, %s35
      %s119 = ssub.s32 %s17, %s31
      %s120 = sor.u32 %s118, %s119
      %p121 = scmp.eq.s32.totalorder %s120, 0
      %s123 = sadd.s32 %s122, 1
      %s124 = scalar_select %p121, %s122, %s123
      %p127 = pneg %p121
      %p128 = scmp.eq.s32.totalorder %s9, 1
      %p129 = por %p127, %p128
      %p130 = scmp.ne.s32.totalorder %s122, %s125
      %p131 = scmp.eq.s32.totalorder %s9, 0
      %p132 = por %p130, %p131
      %p133 = scmp.ne.s32.totalorder %s122, %s125
      %p134 = scmp.eq.s32.totalorder %s14, 1
      %p135 = por %p133, %p134
      %p136 = scmp.ne.s32.totalorder %s125, %s126
      %p137 = scmp.eq.s32.totalorder %s14, 0
      %p138 = por %p136, %p137
      %p139 = scmp.ne.s32.totalorder %s125, %s126
      %p140 = scmp.eq.s32.totalorder %s15, 1
      %p141 = por %p139, %p140
      %p143 = scmp.ne.s32.totalorder %s126, %s142
      %p144 = scmp.eq.s32.totalorder %s15, 0
      %p145 = por %p143, %p144
      %p146 = scmp.le.s32.totalorder 1, %s9
      %p147 = scmp.lt.s32.totalorder %s9, 3
      %p148 = pnand %p146, %p147
      %p149 = pneg %p148
      // Predicated region
      $region9: #{vpgnet_forward.30} parent=5 // pred_check
        _
      $region10: #{vpgnet_forward.30} parent=5 // pred_check_branch
        %151 = sbr.rel (%p148) target = $region12
      $region11: #{vpgnet_forward.30} parent=5 // pred_region
        %s152 = ssub.s32 %s9, 1
        // Predicated region
        $region13: #{vpgnet_forward.30} parent=11 // pred_check
          %p153 = pneg %p110
        $region14: #{vpgnet_forward.30} parent=11 // pred_check_branch
          %155 = sbr.rel (%p153) target = $region16
        $region15: #{vpgnet_forward.30} parent=11 // pred_region
          %p156 = scmp.lt.s32.totalorder %s20, 0
          %s157 = scalar_select %p156, %s20, 0
          %s158 = scalar_lea.vmem %s2, %s157
        $region16: #{vpgnet_forward.30} parent=11 // pred_fallthru
          _
      $region12: #{vpgnet_forward.30} parent=5 // pred_fallthru
        _
      %p159 = scmp.lt.s32.totalorder %s9, 2
      // Predicated region
      $region17: #{vpgnet_forward.30} parent=5 // pred_check
        %p160 = pneg %p159
      $region18: #{vpgnet_forward.30} parent=5 // pred_check_branch
        %162 = sbr.rel (%p160) target = $region20
      $region19: #{vpgnet_forward.30} parent=5 // pred_region
        // Predicated region
        $region21: #{vpgnet_forward.30} parent=19 // pred_check
          %p163 = pneg %p50
        $region22: #{vpgnet_forward.30} parent=19 // pred_check_branch
          %165 = sbr.rel (%p163) target = $region24
        $region23: #{vpgnet_forward.30} parent=19 // pred_region
          %s166 = sand.u32 %s40, 1
          %s167 = sand.u32 %s40, 1
          %s168 = smul.addr %s167, 256
          %s169 = scalar_lea.vmem [#allocation3], %s168
          %s170 = smul.u32 16, %s16
          %s171 = smul.u32 4, %s18
          %s172 = smul.addr %s170, 8
          %s173 = sadd.s32 %s171, %s172
          %s174 = smul.addr %s173, 4
          %s175 = scalar_lea.vmem %s0, %s174
          // Predicated region
          $region25: #{vpgnet_forward.30} parent=23 // pred_check
            _
          $region26: #{vpgnet_forward.30} parent=23 // pred_check_branch
            %177 = sbr.rel (0) target = $region28
          $region27: #{vpgnet_forward.30} parent=23 // pred_region
            // Predicated region
            $region29: #{vpgnet_forward.30} parent=27 // pred_check
              _
            $region30: #{vpgnet_forward.30} parent=27 // pred_check_branch
              %179 = sbr.rel (0) target = $region32
            $region31: #{vpgnet_forward.30} parent=27 // pred_region
              loop: start=0, step=1, limit=1
              $region33: #{vpgnet_forward.30} parent=31 // loop_pre_header
                _
              $region34: #{vpgnet_forward.30} parent=31 // loop_header
                %s181 = sphi 0, %s185
                %p182 = scmp.ge.s32.totalorder %s181, 1
                %s186 = sphi %s175, %s175
                %s187 = sphi %s169, %s169
              $region35: #{vpgnet_forward.30} parent=31 // loop_header_branch
                %184 = sbr.rel (%p182) target = $region39
              $region36: #{vpgnet_forward.30} parent=31 // loop_body
                %v188 = vld [vmem:[%s186] sm:$0xff]
                %189 = vst [vmem:[%s187] sm:$0xff] %v188
                %v190 = vld [vmem:[%s186 + $0x8] sm:$0xff]
                %191 = vst [vmem:[%s187 + $0x8] sm:$0xff] %v190
                %v192 = vld [vmem:[%s186 + $0x20] sm:$0xff]
                %193 = vst [vmem:[%s187 + $0x10] sm:$0xff] %v192
                %v194 = vld [vmem:[%s186 + $0x28] sm:$0xff]
                %195 = vst [vmem:[%s187 + $0x18] sm:$0xff] %v194
                %v196 = vld [vmem:[%s186 + $0x40] sm:$0xff]
                %197 = vst [vmem:[%s187 + $0x20] sm:$0xff] %v196
                %v198 = vld [vmem:[%s186 + $0x48] sm:$0xff]
                %199 = vst [vmem:[%s187 + $0x28] sm:$0xff] %v198
                %v200 = vld [vmem:[%s186 + $0x60] sm:$0xff]
                %201 = vst [vmem:[%s187 + $0x30] sm:$0xff] %v200
                %v202 = vld [vmem:[%s186 + $0x68] sm:$0xff]
                %203 = vst [vmem:[%s187 + $0x38] sm:$0xff] %v202
                %v204 = vld [vmem:[%s186 + $0x80] sm:$0xff]
                %205 = vst [vmem:[%s187 + $0x40] sm:$0xff] %v204
                %v206 = vld [vmem:[%s186 + $0x88] sm:$0xff]
                %207 = vst [vmem:[%s187 + $0x48] sm:$0xff] %v206
                %v208 = vld [vmem:[%s186 + $0xa0] sm:$0xff]
                %209 = vst [vmem:[%s187 + $0x50] sm:$0xff] %v208
                %v210 = vld [vmem:[%s186 + $0xa8] sm:$0xff]
                %211 = vst [vmem:[%s187 + $0x58] sm:$0xff] %v210
                %v212 = vld [vmem:[%s186 + $0xc0] sm:$0xff]
                %213 = vst [vmem:[%s187 + $0x60] sm:$0xff] %v212
                %v214 = vld [vmem:[%s186 + $0xc8] sm:$0xff]
                %215 = vst [vmem:[%s187 + $0x68] sm:$0xff] %v214
                %v216 = vld [vmem:[%s186 + $0xe0] sm:$0xff]
                %217 = vst [vmem:[%s187 + $0x70] sm:$0xff] %v216
                %v218 = vld [vmem:[%s186 + $0xe8] sm:$0xff]
                %219 = vst [vmem:[%s187 + $0x78] sm:$0xff] %v218
                %v220 = vld [vmem:[%s186 + $0x100] sm:$0xff]
                %221 = vst [vmem:[%s187 + $0x80] sm:$0xff] %v220
                %v222 = vld [vmem:[%s186 + $0x108] sm:$0xff]
                %223 = vst [vmem:[%s187 + $0x88] sm:$0xff] %v222
                %v224 = vld [vmem:[%s186 + $0x120] sm:$0xff]
                %225 = vst [vmem:[%s187 + $0x90] sm:$0xff] %v224
                %v226 = vld [vmem:[%s186 + $0x128] sm:$0xff]
                %227 = vst [vmem:[%s187 + $0x98] sm:$0xff] %v226
                %v228 = vld [vmem:[%s186 + $0x140] sm:$0xff]
                %229 = vst [vmem:[%s187 + $0xa0] sm:$0xff] %v228
                %v230 = vld [vmem:[%s186 + $0x148] sm:$0xff]
                %231 = vst [vmem:[%s187 + $0xa8] sm:$0xff] %v230
                %v232 = vld [vmem:[%s186 + $0x160] sm:$0xff]
                %233 = vst [vmem:[%s187 + $0xb0] sm:$0xff] %v232
                %v234 = vld [vmem:[%s186 + $0x168] sm:$0xff]
                %235 = vst [vmem:[%s187 + $0xb8] sm:$0xff] %v234
                %v236 = vld [vmem:[%s186 + $0x180] sm:$0xff]
                %237 = vst [vmem:[%s187 + $0xc0] sm:$0xff] %v236
                %v238 = vld [vmem:[%s186 + $0x188] sm:$0xff]
                %239 = vst [vmem:[%s187 + $0xc8] sm:$0xff] %v238
                %v240 = vld [vmem:[%s186 + $0x1a0] sm:$0xff]
                %241 = vst [vmem:[%s187 + $0xd0] sm:$0xff] %v240
                %v242 = vld [vmem:[%s186 + $0x1a8] sm:$0xff]
                %243 = vst [vmem:[%s187 + $0xd8] sm:$0xff] %v242
                %v244 = vld [vmem:[%s186 + $0x1c0] sm:$0xff]
                %245 = vst [vmem:[%s187 + $0xe0] sm:$0xff] %v244
                %v246 = vld [vmem:[%s186 + $0x1c8] sm:$0xff]
                %247 = vst [vmem:[%s187 + $0xe8] sm:$0xff] %v246
                %v248 = vld [vmem:[%s186 + $0x1e0] sm:$0xff]
                %249 = vst [vmem:[%s187 + $0xf0] sm:$0xff] %v248
                %v250 = vld [vmem:[%s186 + $0x1e8] sm:$0xff]
                %251 = vst [vmem:[%s187 + $0xf8] sm:$0xff] %v250
              $region37: #{vpgnet_forward.30} parent=31 // loop_footer
                %s185 = sadd.s32 1, %s181
              $region38: #{vpgnet_forward.30} parent=31 // loop_footer_branch
                %180 = sbr.rel target = $region34
              $region39: #{vpgnet_forward.30} parent=31 // loop_exit
                _
            $region32: #{vpgnet_forward.30} parent=27 // pred_fallthru
              _
            // Predicated region
            $region40: #{vpgnet_forward.30} parent=27 // pred_check
              _
            $region41: #{vpgnet_forward.30} parent=27 // pred_check_branch
              %253 = sbr.rel target = $region43
            $region42: #{vpgnet_forward.30} parent=27 // pred_region
              _
            $region43: #{vpgnet_forward.30} parent=27 // pred_fallthru
              _
          $region28: #{vpgnet_forward.30} parent=23 // pred_fallthru
            _
          %254 = vnop
        $region24: #{vpgnet_forward.30} parent=19 // pred_fallthru
          _
        // Predicated region
        $region44: #{vpgnet_forward.30} parent=19 // pred_check
          %p255 = pneg %p78
        $region45: #{vpgnet_forward.30} parent=19 // pred_check_branch
          %257 = sbr.rel (%p255) target = $region47
        $region46: #{vpgnet_forward.30} parent=19 // pred_region
          %s258 = smul.u32 64, %s18
          %p259 = scmp.lt.s32.totalorder %s258, 127
          %s260 = scalar_select %p259, %s258, 127
          %p261 = scmp.lt.s32.totalorder %s17, 0
          %s262 = scalar_select %p261, %s17, 0
          %s263 = sadd.s32 %s262, %s260
          %s264 = smul.addr %s263, 4
          %s265 = scalar_lea.vmem %s1, %s264
          %s266 = smul.u32 64, %s18
        $region47: #{vpgnet_forward.30} parent=19 // pred_fallthru
          _
      $region20: #{vpgnet_forward.30} parent=5 // pred_fallthru
        _
      %p267 = scmp.le.s32.totalorder 1, %s9
      %p268 = scmp.lt.s32.totalorder %s9, 3
      %p269 = pnand %p267, %p268
      %p270 = pneg %p269
      // Predicated region
      $region48: #{vpgnet_forward.30} parent=5 // pred_check
        _
      $region49: #{vpgnet_forward.30} parent=5 // pred_check_branch
        %272 = sbr.rel (%p269) target = $region51
      $region50: #{vpgnet_forward.30} parent=5 // pred_region
        %s273 = ssub.s32 %s9, 1
        %s274 = sand.u32 %s43, 1
        %s275 = sand.u32 %s43, 1
        %s276 = smul.addr %s275, 256
        %s277 = scalar_lea.vmem [#allocation3], %s276
        // Predicated region
        $region52: #{vpgnet_forward.30} parent=50 // pred_check
          %p278 = pneg %p56
        $region53: #{vpgnet_forward.30} parent=50 // pred_check_branch
          %280 = sbr.rel (%p278) target = $region55
        $region54: #{vpgnet_forward.30} parent=50 // pred_region
          _
        $region55: #{vpgnet_forward.30} parent=50 // pred_fallthru
          _
        %s281 = sand.u32 %s43, 1
        %s282 = sand.u32 %s43, 1
        %s283 = smul.addr %s282, 256
        %s284 = scalar_lea.vmem [#allocation3], %s283
        %p285 = pneg %p56
        %p286 = pneg %p53
        %s287 = smul.u32 64, %s21
        %p288 = scmp.lt.s32.totalorder %s287, 127
        %s289 = scalar_select %p288, %s287, 127
        %p290 = scmp.lt.s32.totalorder %s20, 0
        %s291 = scalar_select %p290, %s20, 0
        %s292 = sadd.s32 %s291, %s289
        %s293 = smul.addr %s292, 4
        %s294 = scalar_lea.vmem %s1, %s293
        %p295 = pneg %p84
        %p296 = pneg %p81
        %p297 = scmp.lt.s32.totalorder %s20, 0
        %s298 = scalar_select %p297, %s20, 0
        %s299 = scalar_lea.vmem %s2, %s298
        %p300 = pneg %p110
        %p301 = pneg %p107
        %p302 = pneg %p138
        %p303 = pneg %p135
        %s304 = smul.u32 16, %s19
        %p305 = scmp.lt.s32.totalorder %s304, 15
        %s306 = scalar_select %p305, %s304, 15
        %p307 = scmp.lt.s32.totalorder %s20, 0
        %s308 = scalar_select %p307, %s20, 0
        %s309 = sadd.s32 %s308, %s306
        %s310 = smul.addr %s309, 8
        %s311 = scalar_lea.vmem %s3, %s310
        %s312 = smul.u32 16, %s19
        %s313 = smul.u32 4, %s21
        %s314 = smul.u32 64, %s21
        %p315 = scmp.lt.s32.totalorder %s314, 127
        %s316 = scalar_select %p315, %s314, 127
        %p317 = scmp.lt.s32.totalorder %s20, 0
        %s318 = scalar_select %p317, %s20, 0
        %s319 = sadd.s32 %s318, %s316
        %s320 = smul.addr %s319, 4
        %s321 = scalar_lea.vmem %s1, %s320
        %s322 = smul.u32 64, %s21
        %p323 = scmp.lt.s32.totalorder %s20, 0
        %s324 = scalar_select %p323, %s20, 0
        %s325 = scalar_lea.vmem %s2, %s324
        %s326 = smul.u32 16, %s19
        %p327 = scmp.lt.s32.totalorder %s326, 15
        %s328 = scalar_select %p327, %s326, 15
        %p329 = scmp.lt.s32.totalorder %s20, 0
        %s330 = scalar_select %p329, %s20, 0
        %s331 = sadd.s32 %s330, %s328
        %s332 = smul.addr %s331, 8
        %s333 = scalar_lea.vmem %s3, %s332
        %s334 = smul.u32 16, %s19
        %p336 = scmp.eq.s32.totalorder %s21, 0
        // Predicated region
        $region56: #{vpgnet_forward.30} parent=50 // pred_check
          %p337 = pneg %p336
        $region57: #{vpgnet_forward.30} parent=50 // pred_check_branch
          %339 = sbr.rel (%p337) target = $region59
        $region58: #{vpgnet_forward.30} parent=50 // pred_region
          %340 = vst [vmem:[#allocation2] sm:$0xff] 0.0
          %341 = vst [vmem:[#allocation2 + $0x8] sm:$0xff] 0.0
          %342 = vst [vmem:[#allocation2 + $0x10] sm:$0xff] 0.0
          %343 = vst [vmem:[#allocation2 + $0x18] sm:$0xff] 0.0
          %344 = vst [vmem:[#allocation2 + $0x20] sm:$0xff] 0.0
          %345 = vst [vmem:[#allocation2 + $0x28] sm:$0xff] 0.0
          %346 = vst [vmem:[#allocation2 + $0x30] sm:$0xff] 0.0
          %347 = vst [vmem:[#allocation2 + $0x38] sm:$0xff] 0.0
          %348 = vst [vmem:[#allocation2 + $0x40] sm:$0xff] 0.0
          %349 = vst [vmem:[#allocation2 + $0x48] sm:$0xff] 0.0
          %350 = vst [vmem:[#allocation2 + $0x50] sm:$0xff] 0.0
          %351 = vst [vmem:[#allocation2 + $0x58] sm:$0xff] 0.0
          %352 = vst [vmem:[#allocation2 + $0x60] sm:$0xff] 0.0
          %353 = vst [vmem:[#allocation2 + $0x68] sm:$0xff] 0.0
          %354 = vst [vmem:[#allocation2 + $0x70] sm:$0xff] 0.0
          %355 = vst [vmem:[#allocation2 + $0x78] sm:$0xff] 0.0
        $region59: #{vpgnet_forward.30} parent=50 // pred_fallthru
          _
        %v356 = vld [vmem:[#allocation2] sm:$0xff]
        %v357 = vld [vmem:[#allocation2 + $0x8] sm:$0xff]
        %v358 = vld [vmem:[#allocation2 + $0x10] sm:$0xff]
        %v359 = vld [vmem:[#allocation2 + $0x18] sm:$0xff]
        %v360 = vld [vmem:[#allocation2 + $0x20] sm:$0xff]
        %v361 = vld [vmem:[#allocation2 + $0x28] sm:$0xff]
        %v362 = vld [vmem:[#allocation2 + $0x30] sm:$0xff]
        %v363 = vld [vmem:[#allocation2 + $0x38] sm:$0xff]
        %v364 = vld [vmem:[#allocation2 + $0x40] sm:$0xff]
        %v365 = vld [vmem:[#allocation2 + $0x48] sm:$0xff]
        %v366 = vld [vmem:[#allocation2 + $0x50] sm:$0xff]
        %v367 = vld [vmem:[#allocation2 + $0x58] sm:$0xff]
        %v368 = vld [vmem:[#allocation2 + $0x60] sm:$0xff]
        %v369 = vld [vmem:[#allocation2 + $0x68] sm:$0xff]
        %v370 = vld [vmem:[#allocation2 + $0x70] sm:$0xff]
        %v371 = vld [vmem:[#allocation2 + $0x78] sm:$0xff]
        %v372 = vld [vmem:[%s277] sm:$0xff]
        %v373 = vld [vmem:[%s277 + $0x8] sm:$0xff]
        %v374 = vld [vmem:[%s277 + $0x10] sm:$0xff]
        %v375 = vld [vmem:[%s277 + $0x18] sm:$0xff]
        %v376 = vld [vmem:[%s277 + $0x20] sm:$0xff]
        %v377 = vld [vmem:[%s277 + $0x28] sm:$0xff]
        %v378 = vld [vmem:[%s277 + $0x30] sm:$0xff]
        %v379 = vld [vmem:[%s277 + $0x38] sm:$0xff]
        %v380 = vld [vmem:[%s277 + $0x40] sm:$0xff]
        %v381 = vld [vmem:[%s277 + $0x48] sm:$0xff]
        %v382 = vld [vmem:[%s277 + $0x50] sm:$0xff]
        %v383 = vld [vmem:[%s277 + $0x58] sm:$0xff]
        %v384 = vld [vmem:[%s277 + $0x60] sm:$0xff]
        %v385 = vld [vmem:[%s277 + $0x68] sm:$0xff]
        %v386 = vld [vmem:[%s277 + $0x70] sm:$0xff]
        %v387 = vld [vmem:[%s277 + $0x78] sm:$0xff]
        %v388 = vld [vmem:[%s277 + $0x80] sm:$0xff]
        %v389 = vld [vmem:[%s277 + $0x88] sm:$0xff]
        %v390 = vld [vmem:[%s277 + $0x90] sm:$0xff]
        %v391 = vld [vmem:[%s277 + $0x98] sm:$0xff]
        %v392 = vld [vmem:[%s277 + $0xa0] sm:$0xff]
        %v393 = vld [vmem:[%s277 + $0xa8] sm:$0xff]
        %v394 = vld [vmem:[%s277 + $0xb0] sm:$0xff]
        %v395 = vld [vmem:[%s277 + $0xb8] sm:$0xff]
        %v396 = vld [vmem:[%s277 + $0xc0] sm:$0xff]
        %v397 = vld [vmem:[%s277 + $0xc8] sm:$0xff]
        %v398 = vld [vmem:[%s277 + $0xd0] sm:$0xff]
        %v399 = vld [vmem:[%s277 + $0xd8] sm:$0xff]
        %v400 = vld [vmem:[%s277 + $0xe0] sm:$0xff]
        %v401 = vld [vmem:[%s277 + $0xe8] sm:$0xff]
        %v402 = vld [vmem:[%s277 + $0xf0] sm:$0xff]
        %v403 = vld [vmem:[%s277 + $0xf8] sm:$0xff]
        %v404 = vld [vmem:[%s321] sm:$0xf]
        %v405 = vld [vmem:[%s321 + $0x4] sm:$0xf]
        %v406 = vld [vmem:[%s321 + $0x8] sm:$0xf]
        %v407 = vld [vmem:[%s321 + $0xc] sm:$0xf]
        %v408 = vld [vmem:[%s321 + $0x10] sm:$0xf]
        %v409 = vld [vmem:[%s321 + $0x14] sm:$0xf]
        %v410 = vld [vmem:[%s321 + $0x18] sm:$0xf]
        %v411 = vld [vmem:[%s321 + $0x1c] sm:$0xf]
        %v412 = vld [vmem:[%s321 + $0x20] sm:$0xf]
        %v413 = vld [vmem:[%s321 + $0x24] sm:$0xf]
        %v414 = vld [vmem:[%s321 + $0x28] sm:$0xf]
        %v415 = vld [vmem:[%s321 + $0x2c] sm:$0xf]
        %v416 = vld [vmem:[%s321 + $0x30] sm:$0xf]
        %v417 = vld [vmem:[%s321 + $0x34] sm:$0xf]
        %v418 = vld [vmem:[%s321 + $0x38] sm:$0xf]
        %v419 = vld [vmem:[%s321 + $0x3c] sm:$0xf]
        %v420 = vld [vmem:[%s321 + $0x40] sm:$0xf]
        %v421 = vld [vmem:[%s321 + $0x44] sm:$0xf]
        %v422 = vld [vmem:[%s321 + $0x48] sm:$0xf]
        %v423 = vld [vmem:[%s321 + $0x4c] sm:$0xf]
        %v424 = vld [vmem:[%s321 + $0x50] sm:$0xf]
        %v425 = vld [vmem:[%s321 + $0x54] sm:$0xf]
        %v426 = vld [vmem:[%s321 + $0x58] sm:$0xf]
        %v427 = vld [vmem:[%s321 + $0x5c] sm:$0xf]
        %v428 = vld [vmem:[%s321 + $0x60] sm:$0xf]
        %v429 = vld [vmem:[%s321 + $0x64] sm:$0xf]
        %v430 = vld [vmem:[%s321 + $0x68] sm:$0xf]
        %v431 = vld [vmem:[%s321 + $0x6c] sm:$0xf]
        %v432 = vld [vmem:[%s321 + $0x70] sm:$0xf]
        %v433 = vld [vmem:[%s321 + $0x74] sm:$0xf]
        %v434 = vld [vmem:[%s321 + $0x78] sm:$0xf]
        %v435 = vld [vmem:[%s321 + $0x7c] sm:$0xf]
        %v436 = vld [vmem:[%s321 + $0x80] sm:$0xf]
        %v437 = vld [vmem:[%s321 + $0x84] sm:$0xf]
        %v438 = vld [vmem:[%s321 + $0x88] sm:$0xf]
        %v439 = vld [vmem:[%s321 + $0x8c] sm:$0xf]
        %v440 = vld [vmem:[%s321 + $0x90] sm:$0xf]
        %v441 = vld [vmem:[%s321 + $0x94] sm:$0xf]
        %v442 = vld [vmem:[%s321 + $0x98] sm:$0xf]
        %v443 = vld [vmem:[%s321 + $0x9c] sm:$0xf]
        %v444 = vld [vmem:[%s321 + $0xa0] sm:$0xf]
        %v445 = vld [vmem:[%s321 + $0xa4] sm:$0xf]
        %v446 = vld [vmem:[%s321 + $0xa8] sm:$0xf]
        %v447 = vld [vmem:[%s321 + $0xac] sm:$0xf]
        %v448 = vld [vmem:[%s321 + $0xb0] sm:$0xf]
        %v449 = vld [vmem:[%s321 + $0xb4] sm:$0xf]
        %v450 = vld [vmem:[%s321 + $0xb8] sm:$0xf]
        %v451 = vld [vmem:[%s321 + $0xbc] sm:$0xf]
        %v452 = vld [vmem:[%s321 + $0xc0] sm:$0xf]
        %v453 = vld [vmem:[%s321 + $0xc4] sm:$0xf]
        %v454 = vld [vmem:[%s321 + $0xc8] sm:$0xf]
        %v455 = vld [vmem:[%s321 + $0xcc] sm:$0xf]
        %v456 = vld [vmem:[%s321 + $0xd0] sm:$0xf]
        %v457 = vld [vmem:[%s321 + $0xd4] sm:$0xf]
        %v458 = vld [vmem:[%s321 + $0xd8] sm:$0xf]
        %v459 = vld [vmem:[%s321 + $0xdc] sm:$0xf]
        %v460 = vld [vmem:[%s321 + $0xe0] sm:$0xf]
        %v461 = vld [vmem:[%s321 + $0xe4] sm:$0xf]
        %v462 = vld [vmem:[%s321 + $0xe8] sm:$0xf]
        %v463 = vld [vmem:[%s321 + $0xec] sm:$0xf]
        %v464 = vld [vmem:[%s321 + $0xf0] sm:$0xf]
        %v465 = vld [vmem:[%s321 + $0xf4] sm:$0xf]
        %v466 = vld [vmem:[%s321 + $0xf8] sm:$0xf]
        %v467 = vld [vmem:[%s321 + $0xfc] sm:$0xf]
        %v500 = vunpack.c.l.b16 %v372
        %v501 = vunpack.c.h.b16 %v372
        %v502 = vunpack.c.l.b16 %v373
        %v503 = vunpack.c.h.b16 %v373
        %v504 = vunpack.c.l.b16 %v374
        %v505 = vunpack.c.h.b16 %v374
        %v506 = vunpack.c.l.b16 %v375
        %v507 = vunpack.c.h.b16 %v375
        %v508 = vunpack.c.l.b16 %v376
        %v509 = vunpack.c.h.b16 %v376
        %v510 = vunpack.c.l.b16 %v377
        %v511 = vunpack.c.h.b16 %v377
        %v512 = vunpack.c.l.b16 %v378
        %v513 = vunpack.c.h.b16 %v378
        %v514 = vunpack.c.l.b16 %v379
        %v515 = vunpack.c.h.b16 %v379
        %v516 = vunpack.c.l.b16 %v380
        %v517 = vunpack.c.h.b16 %v380
        %v518 = vunpack.c.l.b16 %v381
        %v519 = vunpack.c.h.b16 %v381
        %v520 = vunpack.c.l.b16 %v382
        %v521 = vunpack.c.h.b16 %v382
        %v522 = vunpack.c.l.b16 %v383
        %v523 = vunpack.c.h.b16 %v383
        %v524 = vunpack.c.l.b16 %v384
        %v525 = vunpack.c.h.b16 %v384
        %v526 = vunpack.c.l.b16 %v385
        %v527 = vunpack.c.h.b16 %v385
        %v528 = vunpack.c.l.b16 %v386
        %v529 = vunpack.c.h.b16 %v386
        %v530 = vunpack.c.l.b16 %v387
        %v531 = vunpack.c.h.b16 %v387
        %v532 = vunpack.c.l.b16 %v388
        %v533 = vunpack.c.h.b16 %v388
        %v534 = vunpack.c.l.b16 %v389
        %v535 = vunpack.c.h.b16 %v389
        %v536 = vunpack.c.l.b16 %v390
        %v537 = vunpack.c.h.b16 %v390
        %v538 = vunpack.c.l.b16 %v391
        %v539 = vunpack.c.h.b16 %v391
        %v540 = vunpack.c.l.b16 %v392
        %v541 = vunpack.c.h.b16 %v392
        %v542 = vunpack.c.l.b16 %v393
        %v543 = vunpack.c.h.b16 %v393
        %v544 = vunpack.c.l.b16 %v394
        %v545 = vunpack.c.h.b16 %v394
        %v546 = vunpack.c.l.b16 %v395
        %v547 = vunpack.c.h.b16 %v395
        %v548 = vunpack.c.l.b16 %v396
        %v549 = vunpack.c.h.b16 %v396
        %v550 = vunpack.c.l.b16 %v397
        %v551 = vunpack.c.h.b16 %v397
        %v552 = vunpack.c.l.b16 %v398
        %v553 = vunpack.c.h.b16 %v398
        %v554 = vunpack.c.l.b16 %v399
        %v555 = vunpack.c.h.b16 %v399
        %v556 = vunpack.c.l.b16 %v400
        %v557 = vunpack.c.h.b16 %v400
        %v558 = vunpack.c.l.b16 %v401
        %v559 = vunpack.c.h.b16 %v401
        %v560 = vunpack.c.l.b16 %v402
        %v561 = vunpack.c.h.b16 %v402
        %v562 = vunpack.c.l.b16 %v403
        %v563 = vunpack.c.h.b16 %v403
        %v564 = vpack.c.b16 %v504, %v500
        %v565 = vpack.c.b16 %v505, %v501
        %v566 = vpack.c.b16 %v506, %v502
        %v567 = vpack.c.b16 %v507, %v503
        %v568 = vpack.c.b16 %v512, %v508
        %v569 = vpack.c.b16 %v513, %v509
        %v570 = vpack.c.b16 %v514, %v510
        %v571 = vpack.c.b16 %v515, %v511
        %v572 = vpack.c.b16 %v520, %v516
        %v573 = vpack.c.b16 %v521, %v517
        %v574 = vpack.c.b16 %v522, %v518
        %v575 = vpack.c.b16 %v523, %v519
        %v576 = vpack.c.b16 %v528, %v524
        %v577 = vpack.c.b16 %v529, %v525
        %v578 = vpack.c.b16 %v530, %v526
        %v579 = vpack.c.b16 %v531, %v527
        %v580 = vpack.c.b16 %v536, %v532
        %v581 = vpack.c.b16 %v537, %v533
        %v582 = vpack.c.b16 %v538, %v534
        %v583 = vpack.c.b16 %v539, %v535
        %v584 = vpack.c.b16 %v544, %v540
        %v585 = vpack.c.b16 %v545, %v541
        %v586 = vpack.c.b16 %v546, %v542
        %v587 = vpack.c.b16 %v547, %v543
        %v588 = vpack.c.b16 %v552, %v548
        %v589 = vpack.c.b16 %v553, %v549
        %v590 = vpack.c.b16 %v554, %v550
        %v591 = vpack.c.b16 %v555, %v551
        %v592 = vpack.c.b16 %v560, %v556
        %v593 = vpack.c.b16 %v561, %v557
        %v594 = vpack.c.b16 %v562, %v558
        %v595 = vpack.c.b16 %v563, %v559
        %v692 = vunpack.c.l.b16 %v404
        %v693 = vunpack.c.l.b16 %v405
        %v694 = vunpack.c.l.b16 %v406
        %v695 = vunpack.c.l.b16 %v407
        %v696 = vunpack.c.l.b16 %v408
        %v697 = vunpack.c.l.b16 %v409
        %v698 = vunpack.c.l.b16 %v410
        %v699 = vunpack.c.l.b16 %v411
        %v700 = vunpack.c.l.b16 %v412
        %v701 = vunpack.c.l.b16 %v413
        %v702 = vunpack.c.l.b16 %v414
        %v703 = vunpack.c.l.b16 %v415
        %v704 = vunpack.c.l.b16 %v416
        %v705 = vunpack.c.l.b16 %v417
        %v706 = vunpack.c.l.b16 %v418
        %v707 = vunpack.c.l.b16 %v419
        %v708 = vunpack.c.l.b16 %v420
        %v709 = vunpack.c.l.b16 %v421
        %v710 = vunpack.c.l.b16 %v422
        %v711 = vunpack.c.l.b16 %v423
        %v712 = vunpack.c.l.b16 %v424
        %v713 = vunpack.c.l.b16 %v425
        %v714 = vunpack.c.l.b16 %v426
        %v715 = vunpack.c.l.b16 %v427
        %v716 = vunpack.c.l.b16 %v428
        %v717 = vunpack.c.l.b16 %v429
        %v718 = vunpack.c.l.b16 %v430
        %v719 = vunpack.c.l.b16 %v431
        %v720 = vunpack.c.l.b16 %v432
        %v721 = vunpack.c.l.b16 %v433
        %v722 = vunpack.c.l.b16 %v434
        %v723 = vunpack.c.l.b16 %v435
        %v724 = vunpack.c.l.b16 %v436
        %v725 = vunpack.c.l.b16 %v437
        %v726 = vunpack.c.l.b16 %v438
        %v727 = vunpack.c.l.b16 %v439
        %v728 = vunpack.c.l.b16 %v440
        %v729 = vunpack.c.l.b16 %v441
        %v730 = vunpack.c.l.b16 %v442
        %v731 = vunpack.c.l.b16 %v443
        %v732 = vunpack.c.l.b16 %v444
        %v733 = vunpack.c.l.b16 %v445
        %v734 = vunpack.c.l.b16 %v446
        %v735 = vunpack.c.l.b16 %v447
        %v736 = vunpack.c.l.b16 %v448
        %v737 = vunpack.c.l.b16 %v449
        %v738 = vunpack.c.l.b16 %v450
        %v739 = vunpack.c.l.b16 %v451
        %v740 = vunpack.c.l.b16 %v452
        %v741 = vunpack.c.l.b16 %v453
        %v742 = vunpack.c.l.b16 %v454
        %v743 = vunpack.c.l.b16 %v455
        %v744 = vunpack.c.l.b16 %v456
        %v745 = vunpack.c.l.b16 %v457
        %v746 = vunpack.c.l.b16 %v458
        %v747 = vunpack.c.l.b16 %v459
        %v748 = vunpack.c.l.b16 %v460
        %v749 = vunpack.c.l.b16 %v461
        %v750 = vunpack.c.l.b16 %v462
        %v751 = vunpack.c.l.b16 %v463
        %v752 = vunpack.c.l.b16 %v464
        %v753 = vunpack.c.l.b16 %v465
        %v754 = vunpack.c.l.b16 %v466
        %v755 = vunpack.c.l.b16 %v467
        %v756 = vpack.c.b16 %v693, %v692
        %v757 = vpack.c.b16 %v695, %v694
        %v758 = vpack.c.b16 %v697, %v696
        %v759 = vpack.c.b16 %v699, %v698
        %v760 = vpack.c.b16 %v701, %v700
        %v761 = vpack.c.b16 %v703, %v702
        %v762 = vpack.c.b16 %v705, %v704
        %v763 = vpack.c.b16 %v707, %v706
        %v764 = vpack.c.b16 %v709, %v708
        %v765 = vpack.c.b16 %v711, %v710
        %v766 = vpack.c.b16 %v713, %v712
        %v767 = vpack.c.b16 %v715, %v714
        %v768 = vpack.c.b16 %v717, %v716
        %v769 = vpack.c.b16 %v719, %v718
        %v770 = vpack.c.b16 %v721, %v720
        %v771 = vpack.c.b16 %v723, %v722
        %v772 = vpack.c.b16 %v725, %v724
        %v773 = vpack.c.b16 %v727, %v726
        %v774 = vpack.c.b16 %v729, %v728
        %v775 = vpack.c.b16 %v731, %v730
        %v776 = vpack.c.b16 %v733, %v732
        %v777 = vpack.c.b16 %v735, %v734
        %v778 = vpack.c.b16 %v737, %v736
        %v779 = vpack.c.b16 %v739, %v738
        %v780 = vpack.c.b16 %v741, %v740
        %v781 = vpack.c.b16 %v743, %v742
        %v782 = vpack.c.b16 %v745, %v744
        %v783 = vpack.c.b16 %v747, %v746
        %v784 = vpack.c.b16 %v749, %v748
        %v785 = vpack.c.b16 %v751, %v750
        %v786 = vpack.c.b16 %v753, %v752
        %v787 = vpack.c.b16 %v755, %v754
        %820 = vmatprep.subr.bf16.mxu0 0
        %821 = vmatpush1.bf16.msra.mxu0 %v763
        %822 = vmatprep.subr.bf16.mxu0 0
        %823 = vmatpush1.bf16.msra.mxu0 %v762
        %824 = vmatprep.subr.bf16.mxu0 0
        %825 = vmatpush1.bf16.msra.mxu0 %v761
        %826 = vmatprep.subr.bf16.mxu0 0
        %827 = vmatpush1.bf16.msra.mxu0 %v760
        %828 = vmatprep.subr.bf16.mxu0 0
        %829 = vmatpush1.bf16.msra.mxu0 %v759
        %830 = vmatprep.subr.bf16.mxu0 0
        %831 = vmatpush1.bf16.msra.mxu0 %v758
        %832 = vmatprep.subr.bf16.mxu0 0
        %833 = vmatpush1.bf16.msra.mxu0 %v757
        %834 = vmatprep.subr.bf16.mxu0 0
        %835 = vmatpush1.bf16.msra.mxu0 %v756
        %836 = vmatprep.subr.bf16.mxu0 0
        %837 = vmatpush2.bf16.msra.mxu0 %v771
        %838 = vmatprep.subr.bf16.mxu0 0
        %839 = vmatpush2.bf16.msra.mxu0 %v770
        %840 = vmatprep.subr.bf16.mxu0 0
        %841 = vmatpush2.bf16.msra.mxu0 %v769
        %842 = vmatprep.subr.bf16.mxu0 0
        %843 = vmatpush2.bf16.msra.mxu0 %v768
        %844 = vmatprep.subr.bf16.mxu0 0
        %845 = vmatpush2.bf16.msra.mxu0 %v767
        %846 = vmatprep.subr.bf16.mxu0 0
        %847 = vmatpush2.bf16.msra.mxu0 %v766
        %848 = vmatprep.subr.bf16.mxu0 0
        %849 = vmatpush2.bf16.msra.mxu0 %v765
        %850 = vmatprep.subr.bf16.mxu0 0
        %851 = vmatpush2.bf16.msra.mxu0 %v764
        %852 = vmatprep.mubr.bf16.mxu0 %v565
        %853 = vmatmul.mubr.bf16.gmra.mxu0 %v564
        %v854 = vpop.f32.mrf.mxu0
        %v855 = vadd.f32 0.0, %v854
        %v856 = vpop.f32.mrf.mxu0
        %v857 = vpop.f32.mrf.mxu0
        %v858 = vadd.f32 0.0, %v857
        %v859 = vpop.f32.mrf.mxu0
        %860 = vmatprep.mubr.bf16.mxu0 %v569
        %861 = vmatmul.mubr.bf16.gmra.mxu0 %v568
        %v862 = vpop.f32.mrf.mxu0
        %v863 = vadd.f32 0.0, %v862
        %v864 = vpop.f32.mrf.mxu0
        %v865 = vpop.f32.mrf.mxu0
        %v866 = vadd.f32 0.0, %v865
        %v867 = vpop.f32.mrf.mxu0
        %868 = vmatprep.mubr.bf16.mxu0 %v573
        %869 = vmatmul.mubr.bf16.gmra.mxu0 %v572
        %v870 = vpop.f32.mrf.mxu0
        %v871 = vadd.f32 0.0, %v870
        %v872 = vpop.f32.mrf.mxu0
        %v873 = vpop.f32.mrf.mxu0
        %v874 = vadd.f32 0.0, %v873
        %v875 = vpop.f32.mrf.mxu0
        %876 = vmatprep.mubr.bf16.mxu0 %v577
        %877 = vmatmul.mubr.bf16.gmra.mxu0 %v576
        %v878 = vpop.f32.mrf.mxu0
        %v879 = vadd.f32 0.0, %v878
        %v880 = vpop.f32.mrf.mxu0
        %v881 = vpop.f32.mrf.mxu0
        %v882 = vadd.f32 0.0, %v881
        %v883 = vpop.f32.mrf.mxu0
        %884 = vmatprep.mubr.bf16.mxu0 %v581
        %885 = vmatmul.mubr.bf16.gmra.mxu0 %v580
        %v886 = vpop.f32.mrf.mxu0
        %v887 = vadd.f32 0.0, %v886
        %v888 = vpop.f32.mrf.mxu0
        %v889 = vpop.f32.mrf.mxu0
        %v890 = vadd.f32 0.0, %v889
        %v891 = vpop.f32.mrf.mxu0
        %892 = vmatprep.mubr.bf16.mxu0 %v585
        %893 = vmatmul.mubr.bf16.gmra.mxu0 %v584
        %v894 = vpop.f32.mrf.mxu0
        %v895 = vadd.f32 0.0, %v894
        %v896 = vpop.f32.mrf.mxu0
        %v897 = vpop.f32.mrf.mxu0
        %v898 = vadd.f32 0.0, %v897
        %v899 = vpop.f32.mrf.mxu0
        %900 = vmatprep.mubr.bf16.mxu0 %v589
        %901 = vmatmul.mubr.bf16.gmra.mxu0 %v588
        %v902 = vpop.f32.mrf.mxu0
        %v903 = vadd.f32 0.0, %v902
        %v904 = vpop.f32.mrf.mxu0
        %v905 = vpop.f32.mrf.mxu0
        %v906 = vadd.f32 0.0, %v905
        %v907 = vpop.f32.mrf.mxu0
        %908 = vmatprep.mubr.bf16.mxu0 %v593
        %909 = vmatmul.mubr.bf16.gmra.mxu0 %v592
        %v910 = vpop.f32.mrf.mxu0
        %v911 = vadd.f32 0.0, %v910
        %v912 = vpop.f32.mrf.mxu0
        %v913 = vpop.f32.mrf.mxu0
        %v914 = vadd.f32 0.0, %v913
        %v915 = vpop.f32.mrf.mxu0
        %916 = vdwg.mxu0
        %917 = vmatprep.subr.bf16.mxu0 0
        %918 = vmatpush1.bf16.msra.mxu0 %v779
        %919 = vmatprep.subr.bf16.mxu0 0
        %920 = vmatpush1.bf16.msra.mxu0 %v778
        %921 = vmatprep.subr.bf16.mxu0 0
        %922 = vmatpush1.bf16.msra.mxu0 %v777
        %923 = vmatprep.subr.bf16.mxu0 0
        %924 = vmatpush1.bf16.msra.mxu0 %v776
        %925 = vmatprep.subr.bf16.mxu0 0
        %926 = vmatpush1.bf16.msra.mxu0 %v775
        %927 = vmatprep.subr.bf16.mxu0 0
        %928 = vmatpush1.bf16.msra.mxu0 %v774
        %929 = vmatprep.subr.bf16.mxu0 0
        %930 = vmatpush1.bf16.msra.mxu0 %v773
        %931 = vmatprep.subr.bf16.mxu0 0
        %932 = vmatpush1.bf16.msra.mxu0 %v772
        %933 = vmatprep.subr.bf16.mxu0 0
        %934 = vmatpush2.bf16.msra.mxu0 %v787
        %935 = vmatprep.subr.bf16.mxu0 0
        %936 = vmatpush2.bf16.msra.mxu0 %v786
        %937 = vmatprep.subr.bf16.mxu0 0
        %938 = vmatpush2.bf16.msra.mxu0 %v785
        %939 = vmatprep.subr.bf16.mxu0 0
        %940 = vmatpush2.bf16.msra.mxu0 %v784
        %941 = vmatprep.subr.bf16.mxu0 0
        %942 = vmatpush2.bf16.msra.mxu0 %v783
        %943 = vmatprep.subr.bf16.mxu0 0
        %944 = vmatpush2.bf16.msra.mxu0 %v782
        %945 = vmatprep.subr.bf16.mxu0 0
        %946 = vmatpush2.bf16.msra.mxu0 %v781
        %947 = vmatprep.subr.bf16.mxu0 0
        %948 = vmatpush2.bf16.msra.mxu0 %v780
        %949 = vmatprep.mubr.bf16.mxu0 %v567
        %950 = vmatmul.mubr.bf16.gmra.mxu0 %v566
        %v951 = vpop.f32.mrf.mxu0
        %v952 = vadd.f32 %v855, %v951
        %v953 = vpop.f32.mrf.mxu0
        %v954 = vpop.f32.mrf.mxu0
        %v955 = vadd.f32 %v858, %v954
        %v956 = vpop.f32.mrf.mxu0
        %957 = vmatprep.mubr.bf16.mxu0 %v571
        %958 = vmatmul.mubr.bf16.gmra.mxu0 %v570
        %v959 = vpop.f32.mrf.mxu0
        %v960 = vadd.f32 %v863, %v959
        %v961 = vpop.f32.mrf.mxu0
        %v962 = vpop.f32.mrf.mxu0
        %v963 = vadd.f32 %v866, %v962
        %v964 = vpop.f32.mrf.mxu0
        %965 = vmatprep.mubr.bf16.mxu0 %v575
        %966 = vmatmul.mubr.bf16.gmra.mxu0 %v574
        %v967 = vpop.f32.mrf.mxu0
        %v968 = vadd.f32 %v871, %v967
        %v969 = vpop.f32.mrf.mxu0
        %v970 = vpop.f32.mrf.mxu0
        %v971 = vadd.f32 %v874, %v970
        %v972 = vpop.f32.mrf.mxu0
        %973 = vmatprep.mubr.bf16.mxu0 %v579
        %974 = vmatmul.mubr.bf16.gmra.mxu0 %v578
        %v975 = vpop.f32.mrf.mxu0
        %v976 = vadd.f32 %v879, %v975
        %v977 = vpop.f32.mrf.mxu0
        %v978 = vpop.f32.mrf.mxu0
        %v979 = vadd.f32 %v882, %v978
        %v980 = vpop.f32.mrf.mxu0
        %981 = vmatprep.mubr.bf16.mxu0 %v583
        %982 = vmatmul.mubr.bf16.gmra.mxu0 %v582
        %v983 = vpop.f32.mrf.mxu0
        %v984 = vadd.f32 %v887, %v983
        %v985 = vpop.f32.mrf.mxu0
        %v986 = vpop.f32.mrf.mxu0
        %v987 = vadd.f32 %v890, %v986
        %v988 = vpop.f32.mrf.mxu0
        %989 = vmatprep.mubr.bf16.mxu0 %v587
        %990 = vmatmul.mubr.bf16.gmra.mxu0 %v586
        %v991 = vpop.f32.mrf.mxu0
        %v992 = vadd.f32 %v895, %v991
        %v993 = vpop.f32.mrf.mxu0
        %v994 = vpop.f32.mrf.mxu0
        %v995 = vadd.f32 %v898, %v994
        %v996 = vpop.f32.mrf.mxu0
        %997 = vmatprep.mubr.bf16.mxu0 %v591
        %998 = vmatmul.mubr.bf16.gmra.mxu0 %v590
        %v999 = vpop.f32.mrf.mxu0
        %v1000 = vadd.f32 %v903, %v999
        %v1001 = vpop.f32.mrf.mxu0
        %v1002 = vpop.f32.mrf.mxu0
        %v1003 = vadd.f32 %v906, %v1002
        %v1004 = vpop.f32.mrf.mxu0
        %1005 = vmatprep.mubr.bf16.mxu0 %v595
        %1006 = vmatmul.mubr.bf16.gmra.mxu0 %v594
        %v1007 = vpop.f32.mrf.mxu0
        %v1008 = vadd.f32 %v911, %v1007
        %v1009 = vpop.f32.mrf.mxu0
        %v1010 = vpop.f32.mrf.mxu0
        %v1011 = vadd.f32 %v914, %v1010
        %v1012 = vpop.f32.mrf.mxu0
        %1013 = vdwg.mxu0
        %v1014 = vadd.f32 %v356, %v952
        %v1015 = vadd.f32 %v357, %v955
        %v1016 = vadd.f32 %v358, %v960
        %v1017 = vadd.f32 %v359, %v963
        %v1018 = vadd.f32 %v360, %v968
        %v1019 = vadd.f32 %v361, %v971
        %v1020 = vadd.f32 %v362, %v976
        %v1021 = vadd.f32 %v363, %v979
        %v1022 = vadd.f32 %v364, %v984
        %v1023 = vadd.f32 %v365, %v987
        %v1024 = vadd.f32 %v366, %v992
        %v1025 = vadd.f32 %v367, %v995
        %v1026 = vadd.f32 %v368, %v1000
        %v1027 = vadd.f32 %v369, %v1003
        %v1028 = vadd.f32 %v370, %v1008
        %v1029 = vadd.f32 %v371, %v1011
        %1030 = vst [vmem:[#allocation2] sm:$0xff] %v1014
        %1031 = vst [vmem:[#allocation2 + $0x8] sm:$0xff] %v1015
        %1032 = vst [vmem:[#allocation2 + $0x10] sm:$0xff] %v1016
        %1033 = vst [vmem:[#allocation2 + $0x18] sm:$0xff] %v1017
        %1034 = vst [vmem:[#allocation2 + $0x20] sm:$0xff] %v1018
        %1035 = vst [vmem:[#allocation2 + $0x28] sm:$0xff] %v1019
        %1036 = vst [vmem:[#allocation2 + $0x30] sm:$0xff] %v1020
        %1037 = vst [vmem:[#allocation2 + $0x38] sm:$0xff] %v1021
        %1038 = vst [vmem:[#allocation2 + $0x40] sm:$0xff] %v1022
        %1039 = vst [vmem:[#allocation2 + $0x48] sm:$0xff] %v1023
        %1040 = vst [vmem:[#allocation2 + $0x50] sm:$0xff] %v1024
        %1041 = vst [vmem:[#allocation2 + $0x58] sm:$0xff] %v1025
        %1042 = vst [vmem:[#allocation2 + $0x60] sm:$0xff] %v1026
        %1043 = vst [vmem:[#allocation2 + $0x68] sm:$0xff] %v1027
        %1044 = vst [vmem:[#allocation2 + $0x70] sm:$0xff] %v1028
        %1045 = vst [vmem:[#allocation2 + $0x78] sm:$0xff] %v1029
        %p1046 = scmp.eq.s32.totalorder %s21, 1
        // Predicated region
        $region60: #{vpgnet_forward.30} parent=50 // pred_check
          %p1047 = pneg %p1046
        $region61: #{vpgnet_forward.30} parent=50 // pred_check_branch
          %1049 = sbr.rel (%p1047) target = $region63
        $region62: #{vpgnet_forward.30} parent=50 // pred_region
          %v1050 = vld [vmem:[#allocation2] sm:$0xff]
          %v1051 = vld [vmem:[#allocation2 + $0x8] sm:$0xff]
          %v1052 = vld [vmem:[#allocation2 + $0x10] sm:$0xff]
          %v1053 = vld [vmem:[#allocation2 + $0x18] sm:$0xff]
          %v1054 = vld [vmem:[#allocation2 + $0x20] sm:$0xff]
          %v1055 = vld [vmem:[#allocation2 + $0x28] sm:$0xff]
          %v1056 = vld [vmem:[#allocation2 + $0x30] sm:$0xff]
          %v1057 = vld [vmem:[#allocation2 + $0x38] sm:$0xff]
          %v1058 = vld [vmem:[#allocation2 + $0x40] sm:$0xff]
          %v1059 = vld [vmem:[#allocation2 + $0x48] sm:$0xff]
          %v1060 = vld [vmem:[#allocation2 + $0x50] sm:$0xff]
          %v1061 = vld [vmem:[#allocation2 + $0x58] sm:$0xff]
          %v1062 = vld [vmem:[#allocation2 + $0x60] sm:$0xff]
          %v1063 = vld [vmem:[#allocation2 + $0x68] sm:$0xff]
          %v1064 = vld [vmem:[#allocation2 + $0x70] sm:$0xff]
          %v1065 = vld [vmem:[#allocation2 + $0x78] sm:$0xff]
          %v1066 = vld [vmem:[%s325] sm:$0x1]
          %v1068 = vlaneseq
          %v1069 = vshrl.u32 %v1068, 7
          %v1070 = vsub.s32 0, %v1069
          %v1071 = vrot.slane %v1066, %v1070
          %v1073 = vadd.f32 %v1050, %v1071
          %v1074 = vadd.f32 %v1051, %v1071
          %v1075 = vadd.f32 %v1052, %v1071
          %v1076 = vadd.f32 %v1053, %v1071
          %v1077 = vadd.f32 %v1054, %v1071
          %v1078 = vadd.f32 %v1055, %v1071
          %v1079 = vadd.f32 %v1056, %v1071
          %v1080 = vadd.f32 %v1057, %v1071
          %v1081 = vadd.f32 %v1058, %v1071
          %v1082 = vadd.f32 %v1059, %v1071
          %v1083 = vadd.f32 %v1060, %v1071
          %v1084 = vadd.f32 %v1061, %v1071
          %v1085 = vadd.f32 %v1062, %v1071
          %v1086 = vadd.f32 %v1063, %v1071
          %v1087 = vadd.f32 %v1064, %v1071
          %v1088 = vadd.f32 %v1065, %v1071
          %v1089 = vmax.f32 %v1073, 0.0
          %v1090 = vmax.f32 %v1074, 0.0
          %v1091 = vmax.f32 %v1075, 0.0
          %v1092 = vmax.f32 %v1076, 0.0
          %v1093 = vmax.f32 %v1077, 0.0
          %v1094 = vmax.f32 %v1078, 0.0
          %v1095 = vmax.f32 %v1079, 0.0
          %v1096 = vmax.f32 %v1080, 0.0
          %v1097 = vmax.f32 %v1081, 0.0
          %v1098 = vmax.f32 %v1082, 0.0
          %v1099 = vmax.f32 %v1083, 0.0
          %v1100 = vmax.f32 %v1084, 0.0
          %v1101 = vmax.f32 %v1085, 0.0
          %v1102 = vmax.f32 %v1086, 0.0
          %v1103 = vmax.f32 %v1087, 0.0
          %v1104 = vmax.f32 %v1088, 0.0
          %1105 = vst [vmem:[%s333] sm:$0xff] %v1089
          %1106 = vst [vmem:[%s333 + $0x8] sm:$0xff] %v1090
          %1107 = vst [vmem:[%s333 + $0x10] sm:$0xff] %v1091
          %1108 = vst [vmem:[%s333 + $0x18] sm:$0xff] %v1092
          %1109 = vst [vmem:[%s333 + $0x20] sm:$0xff] %v1093
          %1110 = vst [vmem:[%s333 + $0x28] sm:$0xff] %v1094
          %1111 = vst [vmem:[%s333 + $0x30] sm:$0xff] %v1095
          %1112 = vst [vmem:[%s333 + $0x38] sm:$0xff] %v1096
          %1113 = vst [vmem:[%s333 + $0x40] sm:$0xff] %v1097
          %1114 = vst [vmem:[%s333 + $0x48] sm:$0xff] %v1098
          %1115 = vst [vmem:[%s333 + $0x50] sm:$0xff] %v1099
          %1116 = vst [vmem:[%s333 + $0x58] sm:$0xff] %v1100
          %1117 = vst [vmem:[%s333 + $0x60] sm:$0xff] %v1101
          %1118 = vst [vmem:[%s333 + $0x68] sm:$0xff] %v1102
          %1119 = vst [vmem:[%s333 + $0x70] sm:$0xff] %v1103
          %1120 = vst [vmem:[%s333 + $0x78] sm:$0xff] %v1104
        $region63: #{vpgnet_forward.30} parent=50 // pred_fallthru
          _
        %s1121 = smul.u32 16, %s19
        %p1122 = scmp.lt.s32.totalorder %s1121, 15
        %s1123 = scalar_select %p1122, %s1121, 15
        %p1124 = scmp.lt.s32.totalorder %s20, 0
        %s1125 = scalar_select %p1124, %s20, 0
        %s1126 = sadd.s32 %s1125, %s1123
        %s1127 = smul.addr %s1126, 8
        %s1128 = scalar_lea.vmem %s3, %s1127
        // Predicated region
        $region64: #{vpgnet_forward.30} parent=50 // pred_check
          %p1129 = pneg %p135
        $region65: #{vpgnet_forward.30} parent=50 // pred_check_branch
          %1131 = sbr.rel (%p1129) target = $region67
        $region66: #{vpgnet_forward.30} parent=50 // pred_region
          %s1132 = smul.u32 16, %s19
        $region67: #{vpgnet_forward.30} parent=50 // pred_fallthru
          _
        // Predicated region
        $region68: #{vpgnet_forward.30} parent=50 // pred_check
          %p1133 = pneg %p135
        $region69: #{vpgnet_forward.30} parent=50 // pred_check_branch
          %1135 = sbr.rel (%p1133) target = $region71
        $region70: #{vpgnet_forward.30} parent=50 // pred_region
          %s1136 = smul.u32 16, %s19
          %p1137 = scmp.lt.s32.totalorder %s1136, 15
          %s1138 = scalar_select %p1137, %s1136, 15
          %p1139 = scmp.lt.s32.totalorder %s20, 0
          %s1140 = scalar_select %p1139, %s20, 0
          %s1141 = sadd.s32 %s1140, %s1138
          %s1142 = smul.addr %s1141, 8
          %s1143 = scalar_lea.vmem %s3, %s1142
        $region71: #{vpgnet_forward.30} parent=50 // pred_fallthru
          _
      $region51: #{vpgnet_forward.30} parent=5 // pred_fallthru
        _
      %p1144 = scmp.le.s32.totalorder 2, %s9
      // Predicated region
      $region72: #{vpgnet_forward.30} parent=5 // pred_check
        %p1145 = pneg %p1144
      $region73: #{vpgnet_forward.30} parent=5 // pred_check_branch
        %1147 = sbr.rel (%p1145) target = $region75
      $region74: #{vpgnet_forward.30} parent=5 // pred_region
        %s1148 = ssub.s32 %s9, 2
      $region75: #{vpgnet_forward.30} parent=5 // pred_fallthru
        _
    $region6: #{vpgnet_forward.30} parent=1 // loop_footer
      %s13 = sadd.s32 1, %s9
    $region7: #{vpgnet_forward.30} parent=1 // loop_footer_branch
      %8 = sbr.rel target = $region3
    $region8: #{vpgnet_forward.30} parent=1 // loop_exit
      _

// kernel: vpgnet_forward.35
$region0: #{vpgnet_forward.35}
  #allocation0 [shape = 'u32[]', space=smem, size = 0x4, offset = 0x4, fixed_abs, tag = 'smem constant byte address 0x4 - core index']
  #allocation1 [shape = 'u32[144,128]{1,0:T(1,128)}', space=vmem, size = 0x12000, scoped, tag = 'internal scratch']
  #allocation2 [shape = 'f32[128,128]{1,0:T(8,128)}', space=vmem, size = 0x10000, scoped, tag = 'scratch operand']
  %s0 = inlined_call_operand.vmem [shape: bf16[128,2560], index: 0, kind: input, shape index: {}]
  %s1 = inlined_call_operand.vmem [shape: bf16[2560,128], index: 1, kind: input, shape index: {}]
  %s2 = inlined_call_operand.vmem [shape: f32[1,128], index: 2, kind: input, shape index: {}]
  %s3 = inlined_call_operand.vmem [shape: f32[128,128], index: 3, kind: output, shape index: {}]
  %s4 = sld [smem:[#allocation0]]
  $region76: #{vpgnet_forward.35} parent=0
    _
  %s6 = ssub.s32 1, %s4
  %s7 = scalar_select 0, %s6, %s4
  $region1: #{vpgnet_forward.35} parent=0
    #allocation3 [shape = 'u8[262144]{0}', space=vmem, size = 0x40000, scoped, tag = 'input window, operand 0']
    loop: start=0, step=1, limit=7
    $region2: #{vpgnet_forward.35} parent=1 // loop_pre_header
      _
    $region3: #{vpgnet_forward.35} parent=1 // loop_header
      %s9 = sphi 0, %s13
      %p10 = scmp.ge.s32.totalorder %s9, 7
      %s16 = sphi 0, %s35
      %s17 = sphi 0, %s31
      %s18 = sphi 0, %s27
      %s19 = sphi 0, %s16
      %s20 = sphi 0, %s17
      %s21 = sphi 0, %s18
      %s22 = sphi 0, %s19
      %s23 = sphi 0, %s20
      %s24 = sphi 0, %s21
      %s40 = sphi 0, %s42
      %s43 = sphi 0, %s40
      %s44 = sphi 0, %s43
      %s60 = sphi 0, %s44
      %s68 = sphi 0, %s70
      %s71 = sphi 0, %s68
      %s72 = sphi 0, %s71
      %s88 = sphi 0, %s72
      %s94 = sphi 0, %s96
      %s97 = sphi 0, %s94
      %s98 = sphi 0, %s97
      %s114 = sphi 0, %s98
      %s122 = sphi 0, %s124
      %s125 = sphi 0, %s122
      %s126 = sphi 0, %s125
      %s142 = sphi 0, %s126
    $region4: #{vpgnet_forward.35} parent=1 // loop_header_branch
      %12 = sbr.rel (%p10) target = $region8
    $region5: #{vpgnet_forward.35} parent=1 // loop_body
      %s14 = ssub.s32 %s9, 1
      %s15 = ssub.s32 %s9, 2
      %s25 = sadd.s32 1, %s18
      %p26 = scmp.ge.s32.totalorder %s25, 5
      %s27 = scalar_select %p26, 0, %s25
      %s28 = sadd.s32 1, %s17
      %s29 = scalar_select %p26, %s28, %s17
      %p30 = scmp.ge.s32.totalorder %s29, 1
      %s31 = scalar_select %p30, 0, %s29
      %s32 = sadd.s32 1, %s16
      %s33 = scalar_select %p30, %s32, %s16
      %p34 = scmp.ge.s32.totalorder %s33, 1
      %s35 = scalar_select %p34, 0, %s33
      %s36 = ssub.s32 %s16, %s35
      %s37 = ssub.s32 %s18, %s27
      %s38 = sor.u32 %s36, %s37
      %p39 = scmp.eq.s32.totalorder %s38, 0
      %s41 = sadd.s32 %s40, 1
      %s42 = scalar_select %p39, %s40, %s41
      %p45 = pneg %p39
      %p46 = scmp.eq.s32.totalorder %s9, 4
      %p47 = por %p45, %p46
      %p48 = scmp.ne.s32.totalorder %s40, %s43
      %p49 = scmp.eq.s32.totalorder %s9, 0
      %p50 = por %p48, %p49
      %p51 = scmp.ne.s32.totalorder %s40, %s43
      %p52 = scmp.eq.s32.totalorder %s14, 4
      %p53 = por %p51, %p52
      %p54 = scmp.ne.s32.totalorder %s43, %s44
      %p55 = scmp.eq.s32.totalorder %s14, 0
      %p56 = por %p54, %p55
      %p57 = scmp.ne.s32.totalorder %s43, %s44
      %p58 = scmp.eq.s32.totalorder %s15, 4
      %p59 = por %p57, %p58
      %p61 = scmp.ne.s32.totalorder %s44, %s60
      %p62 = scmp.eq.s32.totalorder %s15, 0
      %p63 = por %p61, %p62
      %s64 = ssub.s32 %s18, %s27
      %s65 = ssub.s32 %s17, %s31
      %s66 = sor.u32 %s64, %s65
      %p67 = scmp.eq.s32.totalorder %s66, 0
      %s69 = sadd.s32 %s68, 1
      %s70 = scalar_select %p67, %s68, %s69
      %p73 = pneg %p67
      %p74 = scmp.eq.s32.totalorder %s9, 4
      %p75 = por %p73, %p74
      %p76 = scmp.ne.s32.totalorder %s68, %s71
      %p77 = scmp.eq.s32.totalorder %s9, 0
      %p78 = por %p76, %p77
      %p79 = scmp.ne.s32.totalorder %s68, %s71
      %p80 = scmp.eq.s32.totalorder %s14, 4
      %p81 = por %p79, %p80
      %p82 = scmp.ne.s32.totalorder %s71, %s72
      %p83 = scmp.eq.s32.totalorder %s14, 0
      %p84 = por %p82, %p83
      %p85 = scmp.ne.s32.totalorder %s71, %s72
      %p86 = scmp.eq.s32.totalorder %s15, 4
      %p87 = por %p85, %p86
      %p89 = scmp.ne.s32.totalorder %s72, %s88
      %p90 = scmp.eq.s32.totalorder %s15, 0
      %p91 = por %p89, %p90
      %s92 = ssub.s32 %s17, %s31
      %p93 = scmp.eq.s32.totalorder %s92, 0
      %s95 = sadd.s32 %s94, 1
      %s96 = scalar_select %p93, %s94, %s95
      %p99 = pneg %p93
      %p100 = scmp.eq.s32.totalorder %s9, 4
      %p101 = por %p99, %p100
      %p102 = scmp.ne.s32.totalorder %s94, %s97
      %p103 = scmp.eq.s32.totalorder %s9, 0
      %p104 = por %p102, %p103
      %p105 = scmp.ne.s32.totalorder %s94, %s97
      %p106 = scmp.eq.s32.totalorder %s14, 4
      %p107 = por %p105, %p106
      %p108 = scmp.ne.s32.totalorder %s97, %s98
      %p109 = scmp.eq.s32.totalorder %s14, 0
      %p110 = por %p108, %p109
      %p111 = scmp.ne.s32.totalorder %s97, %s98
      %p112 = scmp.eq.s32.totalorder %s15, 4
      %p113 = por %p111, %p112
      %p115 = scmp.ne.s32.totalorder %s98, %s114
      %p116 = scmp.eq.s32.totalorder %s15, 0
      %p117 = por %p115, %p116
      %s118 = ssub.s32 %s16, %s35
      %s119 = ssub.s32 %s17, %s31
      %s120 = sor.u32 %s118, %s119
      %p121 = scmp.eq.s32.totalorder %s120, 0
      %s123 = sadd.s32 %s122, 1
      %s124 = scalar_select %p121, %s122, %s123
      %p127 = pneg %p121
      %p128 = scmp.eq.s32.totalorder %s9, 4
      %p129 = por %p127, %p128
      %p130 = scmp.ne.s32.totalorder %s122, %s125
      %p131 = scmp.eq.s32.totalorder %s9, 0
      %p132 = por %p130, %p131
      %p133 = scmp.ne.s32.totalorder %s122, %s125
      %p134 = scmp.eq.s32.totalorder %s14, 4
      %p135 = por %p133, %p134
      %p136 = scmp.ne.s32.totalorder %s125, %s126
      %p137 = scmp.eq.s32.totalorder %s14, 0
      %p138 = por %p136, %p137
      %p139 = scmp.ne.s32.totalorder %s125, %s126
      %p140 = scmp.eq.s32.totalorder %s15, 4
      %p141 = por %p139, %p140
      %p143 = scmp.ne.s32.totalorder %s126, %s142
      %p144 = scmp.eq.s32.totalorder %s15, 0
      %p145 = por %p143, %p144
      %p146 = scmp.le.s32.totalorder 1, %s9
      %p147 = scmp.lt.s32.totalorder %s9, 6
      %p148 = pnand %p146, %p147
      %p149 = pneg %p148
      // Predicated region
      $region9: #{vpgnet_forward.35} parent=5 // pred_check
        _
      $region10: #{vpgnet_forward.35} parent=5 // pred_check_branch
        %151 = sbr.rel (%p148) target = $region12
      $region11: #{vpgnet_forward.35} parent=5 // pred_region
        %s152 = ssub.s32 %s9, 1
        // Predicated region
        $region13: #{vpgnet_forward.35} parent=11 // pred_check
          %p153 = pneg %p110
        $region14: #{vpgnet_forward.35} parent=11 // pred_check_branch
          %155 = sbr.rel (%p153) target = $region16
        $region15: #{vpgnet_forward.35} parent=11 // pred_region
          %p156 = scmp.lt.s32.totalorder %s20, 0
          %s157 = scalar_select %p156, %s20, 0
          %s158 = scalar_lea.vmem %s2, %s157
        $region16: #{vpgnet_forward.35} parent=11 // pred_fallthru
          _
      $region12: #{vpgnet_forward.35} parent=5 // pred_fallthru
        _
      %p159 = scmp.lt.s32.totalorder %s9, 5
      // Predicated region
      $region17: #{vpgnet_forward.35} parent=5 // pred_check
        %p160 = pneg %p159
      $region18: #{vpgnet_forward.35} parent=5 // pred_check_branch
        %162 = sbr.rel (%p160) target = $region20
      $region19: #{vpgnet_forward.35} parent=5 // pred_region
        // Predicated region
        $region21: #{vpgnet_forward.35} parent=19 // pred_check
          %p163 = pneg %p50
        $region22: #{vpgnet_forward.35} parent=19 // pred_check_branch
          %165 = sbr.rel (%p163) target = $region24
        $region23: #{vpgnet_forward.35} parent=19 // pred_region
          %s166 = sand.u32 %s40, 1
          %s167 = sand.u32 %s40, 1
          %s168 = smul.addr %s167, 256
          %s169 = scalar_lea.vmem [#allocation3], %s168
          %s170 = smul.u32 16, %s16
          %s171 = smul.u32 4, %s18
          %s172 = smul.addr %s170, 20
          %s173 = sadd.s32 %s171, %s172
          %s174 = smul.addr %s173, 4
          %s175 = scalar_lea.vmem %s0, %s174
          // Predicated region
          $region25: #{vpgnet_forward.35} parent=23 // pred_check
            _
          $region26: #{vpgnet_forward.35} parent=23 // pred_check_branch
            %177 = sbr.rel (0) target = $region28
          $region27: #{vpgnet_forward.35} parent=23 // pred_region
            // Predicated region
            $region29: #{vpgnet_forward.35} parent=27 // pred_check
              _
            $region30: #{vpgnet_forward.35} parent=27 // pred_check_branch
              %179 = sbr.rel (0) target = $region32
            $region31: #{vpgnet_forward.35} parent=27 // pred_region
              loop: start=0, step=1, limit=1
              $region33: #{vpgnet_forward.35} parent=31 // loop_pre_header
                _
              $region34: #{vpgnet_forward.35} parent=31 // loop_header
                %s181 = sphi 0, %s185
                %p182 = scmp.ge.s32.totalorder %s181, 1
                %s186 = sphi %s175, %s175
                %s187 = sphi %s169, %s169
              $region35: #{vpgnet_forward.35} parent=31 // loop_header_branch
                %184 = sbr.rel (%p182) target = $region39
              $region36: #{vpgnet_forward.35} parent=31 // loop_body
                %v188 = vld [vmem:[%s186] sm:$0xff]
                %189 = vst [vmem:[%s187] sm:$0xff] %v188
                %v190 = vld [vmem:[%s186 + $0x8] sm:$0xff]
                %191 = vst [vmem:[%s187 + $0x8] sm:$0xff] %v190
                %v192 = vld [vmem:[%s186 + $0x50] sm:$0xff]
                %193 = vst [vmem:[%s187 + $0x10] sm:$0xff] %v192
                %v194 = vld [vmem:[%s186 + $0x58] sm:$0xff]
                %195 = vst [vmem:[%s187 + $0x18] sm:$0xff] %v194
                %v196 = vld [vmem:[%s186 + $0xa0] sm:$0xff]
                %197 = vst [vmem:[%s187 + $0x20] sm:$0xff] %v196
                %v198 = vld [vmem:[%s186 + $0xa8] sm:$0xff]
                %199 = vst [vmem:[%s187 + $0x28] sm:$0xff] %v198
                %v200 = vld [vmem:[%s186 + $0xf0] sm:$0xff]
                %201 = vst [vmem:[%s187 + $0x30] sm:$0xff] %v200
                %v202 = vld [vmem:[%s186 + $0xf8] sm:$0xff]
                %203 = vst [vmem:[%s187 + $0x38] sm:$0xff] %v202
                %v204 = vld [vmem:[%s186 + $0x140] sm:$0xff]
                %205 = vst [vmem:[%s187 + $0x40] sm:$0xff] %v204
                %v206 = vld [vmem:[%s186 + $0x148] sm:$0xff]
                %207 = vst [vmem:[%s187 + $0x48] sm:$0xff] %v206
                %v208 = vld [vmem:[%s186 + $0x190] sm:$0xff]
                %209 = vst [vmem:[%s187 + $0x50] sm:$0xff] %v208
                %v210 = vld [vmem:[%s186 + $0x198] sm:$0xff]
                %211 = vst [vmem:[%s187 + $0x58] sm:$0xff] %v210
                %v212 = vld [vmem:[%s186 + $0x1e0] sm:$0xff]
                %213 = vst [vmem:[%s187 + $0x60] sm:$0xff] %v212
                %v214 = vld [vmem:[%s186 + $0x1e8] sm:$0xff]
                %215 = vst [vmem:[%s187 + $0x68] sm:$0xff] %v214
                %v216 = vld [vmem:[%s186 + $0x230] sm:$0xff]
                %217 = vst [vmem:[%s187 + $0x70] sm:$0xff] %v216
                %v218 = vld [vmem:[%s186 + $0x238] sm:$0xff]
                %219 = vst [vmem:[%s187 + $0x78] sm:$0xff] %v218
                %v220 = vld [vmem:[%s186 + $0x280] sm:$0xff]
                %221 = vst [vmem:[%s187 + $0x80] sm:$0xff] %v220
                %v222 = vld [vmem:[%s186 + $0x288] sm:$0xff]
                %223 = vst [vmem:[%s187 + $0x88] sm:$0xff] %v222
                %v224 = vld [vmem:[%s186 + $0x2d0] sm:$0xff]
                %225 = vst [vmem:[%s187 + $0x90] sm:$0xff] %v224
                %v226 = vld [vmem:[%s186 + $0x2d8] sm:$0xff]
                %227 = vst [vmem:[%s187 + $0x98] sm:$0xff] %v226
                %v228 = vld [vmem:[%s186 + $0x320] sm:$0xff]
                %229 = vst [vmem:[%s187 + $0xa0] sm:$0xff] %v228
                %v230 = vld [vmem:[%s186 + $0x328] sm:$0xff]
                %231 = vst [vmem:[%s187 + $0xa8] sm:$0xff] %v230
                %v232 = vld [vmem:[%s186 + $0x370] sm:$0xff]
                %233 = vst [vmem:[%s187 + $0xb0] sm:$0xff] %v232
                %v234 = vld [vmem:[%s186 + $0x378] sm:$0xff]
                %235 = vst [vmem:[%s187 + $0xb8] sm:$0xff] %v234
                %v236 = vld [vmem:[%s186 + $0x3c0] sm:$0xff]
                %237 = vst [vmem:[%s187 + $0xc0] sm:$0xff] %v236
                %v238 = vld [vmem:[%s186 + $0x3c8] sm:$0xff]
                %239 = vst [vmem:[%s187 + $0xc8] sm:$0xff] %v238
                %v240 = vld [vmem:[%s186 + $0x410] sm:$0xff]
                %241 = vst [vmem:[%s187 + $0xd0] sm:$0xff] %v240
                %v242 = vld [vmem:[%s186 + $0x418] sm:$0xff]
                %243 = vst [vmem:[%s187 + $0xd8] sm:$0xff] %v242
                %v244 = vld [vmem:[%s186 + $0x460] sm:$0xff]
                %245 = vst [vmem:[%s187 + $0xe0] sm:$0xff] %v244
                %v246 = vld [vmem:[%s186 + $0x468] sm:$0xff]
                %247 = vst [vmem:[%s187 + $0xe8] sm:$0xff] %v246
                %v248 = vld [vmem:[%s186 + $0x4b0] sm:$0xff]
                %249 = vst [vmem:[%s187 + $0xf0] sm:$0xff] %v248
                %v250 = vld [vmem:[%s186 + $0x4b8] sm:$0xff]
                %251 = vst [vmem:[%s187 + $0xf8] sm:$0xff] %v250
              $region37: #{vpgnet_forward.35} parent=31 // loop_footer
                %s185 = sadd.s32 1, %s181
              $region38: #{vpgnet_forward.35} parent=31 // loop_footer_branch
                %180 = sbr.rel target = $region34
              $region39: #{vpgnet_forward.35} parent=31 // loop_exit
                _
            $region32: #{vpgnet_forward.35} parent=27 // pred_fallthru
              _
            // Predicated region
            $region40: #{vpgnet_forward.35} parent=27 // pred_check
              _
            $region41: #{vpgnet_forward.35} parent=27 // pred_check_branch
              %253 = sbr.rel target = $region43
            $region42: #{vpgnet_forward.35} parent=27 // pred_region
              _
            $region43: #{vpgnet_forward.35} parent=27 // pred_fallthru
              _
          $region28: #{vpgnet_forward.35} parent=23 // pred_fallthru
            _
          %254 = vnop
        $region24: #{vpgnet_forward.35} parent=19 // pred_fallthru
          _
        // Predicated region
        $region44: #{vpgnet_forward.35} parent=19 // pred_check
          %p255 = pneg %p78
        $region45: #{vpgnet_forward.35} parent=19 // pred_check_branch
          %257 = sbr.rel (%p255) target = $region47
        $region46: #{vpgnet_forward.35} parent=19 // pred_region
          %s258 = smul.u32 64, %s18
          %p259 = scmp.lt.s32.totalorder %s258, 319
          %s260 = scalar_select %p259, %s258, 319
          %p261 = scmp.lt.s32.totalorder %s17, 0
          %s262 = scalar_select %p261, %s17, 0
          %s263 = sadd.s32 %s262, %s260
          %s264 = smul.addr %s263, 4
          %s265 = scalar_lea.vmem %s1, %s264
          %s266 = smul.u32 64, %s18
        $region47: #{vpgnet_forward.35} parent=19 // pred_fallthru
          _
      $region20: #{vpgnet_forward.35} parent=5 // pred_fallthru
        _
      %p267 = scmp.le.s32.totalorder 1, %s9
      %p268 = scmp.lt.s32.totalorder %s9, 6
      %p269 = pnand %p267, %p268
      %p270 = pneg %p269
      // Predicated region
      $region48: #{vpgnet_forward.35} parent=5 // pred_check
        _
      $region49: #{vpgnet_forward.35} parent=5 // pred_check_branch
        %272 = sbr.rel (%p269) target = $region51
      $region50: #{vpgnet_forward.35} parent=5 // pred_region
        %s273 = ssub.s32 %s9, 1
        %s274 = sand.u32 %s43, 1
        %s275 = sand.u32 %s43, 1
        %s276 = smul.addr %s275, 256
        %s277 = scalar_lea.vmem [#allocation3], %s276
        // Predicated region
        $region52: #{vpgnet_forward.35} parent=50 // pred_check
          %p278 = pneg %p56
        $region53: #{vpgnet_forward.35} parent=50 // pred_check_branch
          %280 = sbr.rel (%p278) target = $region55
        $region54: #{vpgnet_forward.35} parent=50 // pred_region
          _
        $region55: #{vpgnet_forward.35} parent=50 // pred_fallthru
          _
        %s281 = sand.u32 %s43, 1
        %s282 = sand.u32 %s43, 1
        %s283 = smul.addr %s282, 256
        %s284 = scalar_lea.vmem [#allocation3], %s283
        %p285 = pneg %p56
        %p286 = pneg %p53
        %s287 = smul.u32 64, %s21
        %p288 = scmp.lt.s32.totalorder %s287, 319
        %s289 = scalar_select %p288, %s287, 319
        %p290 = scmp.lt.s32.totalorder %s20, 0
        %s291 = scalar_select %p290, %s20, 0
        %s292 = sadd.s32 %s291, %s289
        %s293 = smul.addr %s292, 4
        %s294 = scalar_lea.vmem %s1, %s293
        %p295 = pneg %p84
        %p296 = pneg %p81
        %p297 = scmp.lt.s32.totalorder %s20, 0
        %s298 = scalar_select %p297, %s20, 0
        %s299 = scalar_lea.vmem %s2, %s298
        %p300 = pneg %p110
        %p301 = pneg %p107
        %p302 = pneg %p138
        %p303 = pneg %p135
        %s304 = smul.u32 16, %s19
        %p305 = scmp.lt.s32.totalorder %s304, 15
        %s306 = scalar_select %p305, %s304, 15
        %p307 = scmp.lt.s32.totalorder %s20, 0
        %s308 = scalar_select %p307, %s20, 0
        %s309 = sadd.s32 %s308, %s306
        %s310 = smul.addr %s309, 8
        %s311 = scalar_lea.vmem %s3, %s310
        %s312 = smul.u32 16, %s19
        %s313 = smul.u32 4, %s21
        %s314 = smul.u32 64, %s21
        %p315 = scmp.lt.s32.totalorder %s314, 319
        %s316 = scalar_select %p315, %s314, 319
        %p317 = scmp.lt.s32.totalorder %s20, 0
        %s318 = scalar_select %p317, %s20, 0
        %s319 = sadd.s32 %s318, %s316
        %s320 = smul.addr %s319, 4
        %s321 = scalar_lea.vmem %s1, %s320
        %s322 = smul.u32 64, %s21
        %p323 = scmp.lt.s32.totalorder %s20, 0
        %s324 = scalar_select %p323, %s20, 0
        %s325 = scalar_lea.vmem %s2, %s324
        %s326 = smul.u32 16, %s19
        %p327 = scmp.lt.s32.totalorder %s326, 15
        %s328 = scalar_select %p327, %s326, 15
        %p329 = scmp.lt.s32.totalorder %s20, 0
        %s330 = scalar_select %p329, %s20, 0
        %s331 = sadd.s32 %s330, %s328
        %s332 = smul.addr %s331, 8
        %s333 = scalar_lea.vmem %s3, %s332
        %s334 = smul.u32 16, %s19
        %p336 = scmp.eq.s32.totalorder %s21, 0
        // Predicated region
        $region56: #{vpgnet_forward.35} parent=50 // pred_check
          %p337 = pneg %p336
        $region57: #{vpgnet_forward.35} parent=50 // pred_check_branch
          %339 = sbr.rel (%p337) target = $region59
        $region58: #{vpgnet_forward.35} parent=50 // pred_region
          %340 = vst [vmem:[#allocation2] sm:$0xff] 0.0
          %341 = vst [vmem:[#allocation2 + $0x8] sm:$0xff] 0.0
          %342 = vst [vmem:[#allocation2 + $0x10] sm:$0xff] 0.0
          %343 = vst [vmem:[#allocation2 + $0x18] sm:$0xff] 0.0
          %344 = vst [vmem:[#allocation2 + $0x20] sm:$0xff] 0.0
          %345 = vst [vmem:[#allocation2 + $0x28] sm:$0xff] 0.0
          %346 = vst [vmem:[#allocation2 + $0x30] sm:$0xff] 0.0
          %347 = vst [vmem:[#allocation2 + $0x38] sm:$0xff] 0.0
          %348 = vst [vmem:[#allocation2 + $0x40] sm:$0xff] 0.0
          %349 = vst [vmem:[#allocation2 + $0x48] sm:$0xff] 0.0
          %350 = vst [vmem:[#allocation2 + $0x50] sm:$0xff] 0.0
          %351 = vst [vmem:[#allocation2 + $0x58] sm:$0xff] 0.0
          %352 = vst [vmem:[#allocation2 + $0x60] sm:$0xff] 0.0
          %353 = vst [vmem:[#allocation2 + $0x68] sm:$0xff] 0.0
          %354 = vst [vmem:[#allocation2 + $0x70] sm:$0xff] 0.0
          %355 = vst [vmem:[#allocation2 + $0x78] sm:$0xff] 0.0
        $region59: #{vpgnet_forward.35} parent=50 // pred_fallthru
          _
        %v356 = vld [vmem:[#allocation2] sm:$0xff]
        %v357 = vld [vmem:[#allocation2 + $0x8] sm:$0xff]
        %v358 = vld [vmem:[#allocation2 + $0x10] sm:$0xff]
        %v359 = vld [vmem:[#allocation2 + $0x18] sm:$0xff]
        %v360 = vld [vmem:[#allocation2 + $0x20] sm:$0xff]
        %v361 = vld [vmem:[#allocation2 + $0x28] sm:$0xff]
        %v362 = vld [vmem:[#allocation2 + $0x30] sm:$0xff]
        %v363 = vld [vmem:[#allocation2 + $0x38] sm:$0xff]
        %v364 = vld [vmem:[#allocation2 + $0x40] sm:$0xff]
        %v365 = vld [vmem:[#allocation2 + $0x48] sm:$0xff]
        %v366 = vld [vmem:[#allocation2 + $0x50] sm:$0xff]
        %v367 = vld [vmem:[#allocation2 + $0x58] sm:$0xff]
        %v368 = vld [vmem:[#allocation2 + $0x60] sm:$0xff]
        %v369 = vld [vmem:[#allocation2 + $0x68] sm:$0xff]
        %v370 = vld [vmem:[#allocation2 + $0x70] sm:$0xff]
        %v371 = vld [vmem:[#allocation2 + $0x78] sm:$0xff]
        %v372 = vld [vmem:[%s277] sm:$0xff]
        %v373 = vld [vmem:[%s277 + $0x8] sm:$0xff]
        %v374 = vld [vmem:[%s277 + $0x10] sm:$0xff]
        %v375 = vld [vmem:[%s277 + $0x18] sm:$0xff]
        %v376 = vld [vmem:[%s277 + $0x20] sm:$0xff]
        %v377 = vld [vmem:[%s277 + $0x28] sm:$0xff]
        %v378 = vld [vmem:[%s277 + $0x30] sm:$0xff]
        %v379 = vld [vmem:[%s277 + $0x38] sm:$0xff]
        %v380 = vld [vmem:[%s277 + $0x40] sm:$0xff]
        %v381 = vld [vmem:[%s277 + $0x48] sm:$0xff]
        %v382 = vld [vmem:[%s277 + $0x50] sm:$0xff]
        %v383 = vld [vmem:[%s277 + $0x58] sm:$0xff]
        %v384 = vld [vmem:[%s277 + $0x60] sm:$0xff]
        %v385 = vld [vmem:[%s277 + $0x68] sm:$0xff]
        %v386 = vld [vmem:[%s277 + $0x70] sm:$0xff]
        %v387 = vld [vmem:[%s277 + $0x78] sm:$0xff]
        %v388 = vld [vmem:[%s277 + $0x80] sm:$0xff]
        %v389 = vld [vmem:[%s277 + $0x88] sm:$0xff]
        %v390 = vld [vmem:[%s277 + $0x90] sm:$0xff]
        %v391 = vld [vmem:[%s277 + $0x98] sm:$0xff]
        %v392 = vld [vmem:[%s277 + $0xa0] sm:$0xff]
        %v393 = vld [vmem:[%s277 + $0xa8] sm:$0xff]
        %v394 = vld [vmem:[%s277 + $0xb0] sm:$0xff]
        %v395 = vld [vmem:[%s277 + $0xb8] sm:$0xff]
        %v396 = vld [vmem:[%s277 + $0xc0] sm:$0xff]
        %v397 = vld [vmem:[%s277 + $0xc8] sm:$0xff]
        %v398 = vld [vmem:[%s277 + $0xd0] sm:$0xff]
        %v399 = vld [vmem:[%s277 + $0xd8] sm:$0xff]
        %v400 = vld [vmem:[%s277 + $0xe0] sm:$0xff]
        %v401 = vld [vmem:[%s277 + $0xe8] sm:$0xff]
        %v402 = vld [vmem:[%s277 + $0xf0] sm:$0xff]
        %v403 = vld [vmem:[%s277 + $0xf8] sm:$0xff]
        %v404 = vld [vmem:[%s321] sm:$0xf]
        %v405 = vld [vmem:[%s321 + $0x4] sm:$0xf]
        %v406 = vld [vmem:[%s321 + $0x8] sm:$0xf]
        %v407 = vld [vmem:[%s321 + $0xc] sm:$0xf]
        %v408 = vld [vmem:[%s321 + $0x10] sm:$0xf]
        %v409 = vld [vmem:[%s321 + $0x14] sm:$0xf]
        %v410 = vld [vmem:[%s321 + $0x18] sm:$0xf]
        %v411 = vld [vmem:[%s321 + $0x1c] sm:$0xf]
        %v412 = vld [vmem:[%s321 + $0x20] sm:$0xf]
        %v413 = vld [vmem:[%s321 + $0x24] sm:$0xf]
        %v414 = vld [vmem:[%s321 + $0x28] sm:$0xf]
        %v415 = vld [vmem:[%s321 + $0x2c] sm:$0xf]
        %v416 = vld [vmem:[%s321 + $0x30] sm:$0xf]
        %v417 = vld [vmem:[%s321 + $0x34] sm:$0xf]
        %v418 = vld [vmem:[%s321 + $0x38] sm:$0xf]
        %v419 = vld [vmem:[%s321 + $0x3c] sm:$0xf]
        %v420 = vld [vmem:[%s321 + $0x40] sm:$0xf]
        %v421 = vld [vmem:[%s321 + $0x44] sm:$0xf]
        %v422 = vld [vmem:[%s321 + $0x48] sm:$0xf]
        %v423 = vld [vmem:[%s321 + $0x4c] sm:$0xf]
        %v424 = vld [vmem:[%s321 + $0x50] sm:$0xf]
        %v425 = vld [vmem:[%s321 + $0x54] sm:$0xf]
        %v426 = vld [vmem:[%s321 + $0x58] sm:$0xf]
        %v427 = vld [vmem:[%s321 + $0x5c] sm:$0xf]
        %v428 = vld [vmem:[%s321 + $0x60] sm:$0xf]
        %v429 = vld [vmem:[%s321 + $0x64] sm:$0xf]
        %v430 = vld [vmem:[%s321 + $0x68] sm:$0xf]
        %v431 = vld [vmem:[%s321 + $0x6c] sm:$0xf]
        %v432 = vld [vmem:[%s321 + $0x70] sm:$0xf]
        %v433 = vld [vmem:[%s321 + $0x74] sm:$0xf]
        %v434 = vld [vmem:[%s321 + $0x78] sm:$0xf]
        %v435 = vld [vmem:[%s321 + $0x7c] sm:$0xf]
        %v436 = vld [vmem:[%s321 + $0x80] sm:$0xf]
        %v437 = vld [vmem:[%s321 + $0x84] sm:$0xf]
        %v438 = vld [vmem:[%s321 + $0x88] sm:$0xf]
        %v439 = vld [vmem:[%s321 + $0x8c] sm:$0xf]
        %v440 = vld [vmem:[%s321 + $0x90] sm:$0xf]
        %v441 = vld [vmem:[%s321 + $0x94] sm:$0xf]
        %v442 = vld [vmem:[%s321 + $0x98] sm:$0xf]
        %v443 = vld [vmem:[%s321 + $0x9c] sm:$0xf]
        %v444 = vld [vmem:[%s321 + $0xa0] sm:$0xf]
        %v445 = vld [vmem:[%s321 + $0xa4] sm:$0xf]
        %v446 = vld [vmem:[%s321 + $0xa8] sm:$0xf]
        %v447 = vld [vmem:[%s321 + $0xac] sm:$0xf]
        %v448 = vld [vmem:[%s321 + $0xb0] sm:$0xf]
        %v449 = vld [vmem:[%s321 + $0xb4] sm:$0xf]
        %v450 = vld [vmem:[%s321 + $0xb8] sm:$0xf]
        %v451 = vld [vmem:[%s321 + $0xbc] sm:$0xf]
        %v452 = vld [vmem:[%s321 + $0xc0] sm:$0xf]
        %v453 = vld [vmem:[%s321 + $0xc4] sm:$0xf]
        %v454 = vld [vmem:[%s321 + $0xc8] sm:$0xf]
        %v455 = vld [vmem:[%s321 + $0xcc] sm:$0xf]
        %v456 = vld [vmem:[%s321 + $0xd0] sm:$0xf]
        %v457 = vld [vmem:[%s321 + $0xd4] sm:$0xf]
        %v458 = vld [vmem:[%s321 + $0xd8] sm:$0xf]
        %v459 = vld [vmem:[%s321 + $0xdc] sm:$0xf]
        %v460 = vld [vmem:[%s321 + $0xe0] sm:$0xf]
        %v461 = vld [vmem:[%s321 + $0xe4] sm:$0xf]
        %v462 = vld [vmem:[%s321 + $0xe8] sm:$0xf]
        %v463 = vld [vmem:[%s321 + $0xec] sm:$0xf]
        %v464 = vld [vmem:[%s321 + $0xf0] sm:$0xf]
        %v465 = vld [vmem:[%s321 + $0xf4] sm:$0xf]
        %v466 = vld [vmem:[%s321 + $0xf8] sm:$0xf]
        %v467 = vld [vmem:[%s321 + $0xfc] sm:$0xf]
        %v500 = vunpack.c.l.b16 %v372
        %v501 = vunpack.c.h.b16 %v372
        %v502 = vunpack.c.l.b16 %v373
        %v503 = vunpack.c.h.b16 %v373
        %v504 = vunpack.c.l.b16 %v374
        %v505 = vunpack.c.h.b16 %v374
        %v506 = vunpack.c.l.b16 %v375
        %v507 = vunpack.c.h.b16 %v375
        %v508 = vunpack.c.l.b16 %v376
        %v509 = vunpack.c.h.b16 %v376
        %v510 = vunpack.c.l.b16 %v377
        %v511 = vunpack.c.h.b16 %v377
        %v512 = vunpack.c.l.b16 %v378
        %v513 = vunpack.c.h.b16 %v378
        %v514 = vunpack.c.l.b16 %v379
        %v515 = vunpack.c.h.b16 %v379
        %v516 = vunpack.c.l.b16 %v380
        %v517 = vunpack.c.h.b16 %v380
        %v518 = vunpack.c.l.b16 %v381
        %v519 = vunpack.c.h.b16 %v381
        %v520 = vunpack.c.l.b16 %v382
        %v521 = vunpack.c.h.b16 %v382
        %v522 = vunpack.c.l.b16 %v383
        %v523 = vunpack.c.h.b16 %v383
        %v524 = vunpack.c.l.b16 %v384
        %v525 = vunpack.c.h.b16 %v384
        %v526 = vunpack.c.l.b16 %v385
        %v527 = vunpack.c.h.b16 %v385
        %v528 = vunpack.c.l.b16 %v386
        %v529 = vunpack.c.h.b16 %v386
        %v530 = vunpack.c.l.b16 %v387
        %v531 = vunpack.c.h.b16 %v387
        %v532 = vunpack.c.l.b16 %v388
        %v533 = vunpack.c.h.b16 %v388
        %v534 = vunpack.c.l.b16 %v389
        %v535 = vunpack.c.h.b16 %v389
        %v536 = vunpack.c.l.b16 %v390
        %v537 = vunpack.c.h.b16 %v390
        %v538 = vunpack.c.l.b16 %v391
        %v539 = vunpack.c.h.b16 %v391
        %v540 = vunpack.c.l.b16 %v392
        %v541 = vunpack.c.h.b16 %v392
        %v542 = vunpack.c.l.b16 %v393
        %v543 = vunpack.c.h.b16 %v393
        %v544 = vunpack.c.l.b16 %v394
        %v545 = vunpack.c.h.b16 %v394
        %v546 = vunpack.c.l.b16 %v395
        %v547 = vunpack.c.h.b16 %v395
        %v548 = vunpack.c.l.b16 %v396
        %v549 = vunpack.c.h.b16 %v396
        %v550 = vunpack.c.l.b16 %v397
        %v551 = vunpack.c.h.b16 %v397
        %v552 = vunpack.c.l.b16 %v398
        %v553 = vunpack.c.h.b16 %v398
        %v554 = vunpack.c.l.b16 %v399
        %v555 = vunpack.c.h.b16 %v399
        %v556 = vunpack.c.l.b16 %v400
        %v557 = vunpack.c.h.b16 %v400
        %v558 = vunpack.c.l.b16 %v401
        %v559 = vunpack.c.h.b16 %v401
        %v560 = vunpack.c.l.b16 %v402
        %v561 = vunpack.c.h.b16 %v402
        %v562 = vunpack.c.l.b16 %v403
        %v563 = vunpack.c.h.b16 %v403
        %v564 = vpack.c.b16 %v504, %v500
        %v565 = vpack.c.b16 %v505, %v501
        %v566 = vpack.c.b16 %v506, %v502
        %v567 = vpack.c.b16 %v507, %v503
        %v568 = vpack.c.b16 %v512, %v508
        %v569 = vpack.c.b16 %v513, %v509
        %v570 = vpack.c.b16 %v514, %v510
        %v571 = vpack.c.b16 %v515, %v511
        %v572 = vpack.c.b16 %v520, %v516
        %v573 = vpack.c.b16 %v521, %v517
        %v574 = vpack.c.b16 %v522, %v518
        %v575 = vpack.c.b16 %v523, %v519
        %v576 = vpack.c.b16 %v528, %v524
        %v577 = vpack.c.b16 %v529, %v525
        %v578 = vpack.c.b16 %v530, %v526
        %v579 = vpack.c.b16 %v531, %v527
        %v580 = vpack.c.b16 %v536, %v532
        %v581 = vpack.c.b16 %v537, %v533
        %v582 = vpack.c.b16 %v538, %v534
        %v583 = vpack.c.b16 %v539, %v535
        %v584 = vpack.c.b16 %v544, %v540
        %v585 = vpack.c.b16 %v545, %v541
        %v586 = vpack.c.b16 %v546, %v542
        %v587 = vpack.c.b16 %v547, %v543
        %v588 = vpack.c.b16 %v552, %v548
        %v589 = vpack.c.b16 %v553, %v549
        %v590 = vpack.c.b16 %v554, %v550
        %v591 = vpack.c.b16 %v555, %v551
        %v592 = vpack.c.b16 %v560, %v556
        %v593 = vpack.c.b16 %v561, %v557
        %v594 = vpack.c.b16 %v562, %v558
        %v595 = vpack.c.b16 %v563, %v559
        %v692 = vunpack.c.l.b16 %v404
        %v693 = vunpack.c.l.b16 %v405
        %v694 = vunpack.c.l.b16 %v406
        %v695 = vunpack.c.l.b16 %v407
        %v696 = vunpack.c.l.b16 %v408
        %v697 = vunpack.c.l.b16 %v409
        %v698 = vunpack.c.l.b16 %v410
        %v699 = vunpack.c.l.b16 %v411
        %v700 = vunpack.c.l.b16 %v412
        %v701 = vunpack.c.l.b16 %v413
        %v702 = vunpack.c.l.b16 %v414
        %v703 = vunpack.c.l.b16 %v415
        %v704 = vunpack.c.l.b16 %v416
        %v705 = vunpack.c.l.b16 %v417
        %v706 = vunpack.c.l.b16 %v418
        %v707 = vunpack.c.l.b16 %v419
        %v708 = vunpack.c.l.b16 %v420
        %v709 = vunpack.c.l.b16 %v421
        %v710 = vunpack.c.l.b16 %v422
        %v711 = vunpack.c.l.b16 %v423
        %v712 = vunpack.c.l.b16 %v424
        %v713 = vunpack.c.l.b16 %v425
        %v714 = vunpack.c.l.b16 %v426
        %v715 = vunpack.c.l.b16 %v427
        %v716 = vunpack.c.l.b16 %v428
        %v717 = vunpack.c.l.b16 %v429
        %v718 = vunpack.c.l.b16 %v430
        %v719 = vunpack.c.l.b16 %v431
        %v720 = vunpack.c.l.b16 %v432
        %v721 = vunpack.c.l.b16 %v433
        %v722 = vunpack.c.l.b16 %v434
        %v723 = vunpack.c.l.b16 %v435
        %v724 = vunpack.c.l.b16 %v436
        %v725 = vunpack.c.l.b16 %v437
        %v726 = vunpack.c.l.b16 %v438
        %v727 = vunpack.c.l.b16 %v439
        %v728 = vunpack.c.l.b16 %v440
        %v729 = vunpack.c.l.b16 %v441
        %v730 = vunpack.c.l.b16 %v442
        %v731 = vunpack.c.l.b16 %v443
        %v732 = vunpack.c.l.b16 %v444
        %v733 = vunpack.c.l.b16 %v445
        %v734 = vunpack.c.l.b16 %v446
        %v735 = vunpack.c.l.b16 %v447
        %v736 = vunpack.c.l.b16 %v448
        %v737 = vunpack.c.l.b16 %v449
        %v738 = vunpack.c.l.b16 %v450
        %v739 = vunpack.c.l.b16 %v451
        %v740 = vunpack.c.l.b16 %v452
        %v741 = vunpack.c.l.b16 %v453
        %v742 = vunpack.c.l.b16 %v454
        %v743 = vunpack.c.l.b16 %v455
        %v744 = vunpack.c.l.b16 %v456
        %v745 = vunpack.c.l.b16 %v457
        %v746 = vunpack.c.l.b16 %v458
        %v747 = vunpack.c.l.b16 %v459
        %v748 = vunpack.c.l.b16 %v460
        %v749 = vunpack.c.l.b16 %v461
        %v750 = vunpack.c.l.b16 %v462
        %v751 = vunpack.c.l.b16 %v463
        %v752 = vunpack.c.l.b16 %v464
        %v753 = vunpack.c.l.b16 %v465
        %v754 = vunpack.c.l.b16 %v466
        %v755 = vunpack.c.l.b16 %v467
        %v756 = vpack.c.b16 %v693, %v692
        %v757 = vpack.c.b16 %v695, %v694
        %v758 = vpack.c.b16 %v697, %v696
        %v759 = vpack.c.b16 %v699, %v698
        %v760 = vpack.c.b16 %v701, %v700
        %v761 = vpack.c.b16 %v703, %v702
        %v762 = vpack.c.b16 %v705, %v704
        %v763 = vpack.c.b16 %v707, %v706
        %v764 = vpack.c.b16 %v709, %v708
        %v765 = vpack.c.b16 %v711, %v710
        %v766 = vpack.c.b16 %v713, %v712
        %v767 = vpack.c.b16 %v715, %v714
        %v768 = vpack.c.b16 %v717, %v716
        %v769 = vpack.c.b16 %v719, %v718
        %v770 = vpack.c.b16 %v721, %v720
        %v771 = vpack.c.b16 %v723, %v722
        %v772 = vpack.c.b16 %v725, %v724
        %v773 = vpack.c.b16 %v727, %v726
        %v774 = vpack.c.b16 %v729, %v728
        %v775 = vpack.c.b16 %v731, %v730
        %v776 = vpack.c.b16 %v733, %v732
        %v777 = vpack.c.b16 %v735, %v734
        %v778 = vpack.c.b16 %v737, %v736
        %v779 = vpack.c.b16 %v739, %v738
        %v780 = vpack.c.b16 %v741, %v740
        %v781 = vpack.c.b16 %v743, %v742
        %v782 = vpack.c.b16 %v745, %v744
        %v783 = vpack.c.b16 %v747, %v746
        %v784 = vpack.c.b16 %v749, %v748
        %v785 = vpack.c.b16 %v751, %v750
        %v786 = vpack.c.b16 %v753, %v752
        %v787 = vpack.c.b16 %v755, %v754
        %820 = vmatprep.subr.bf16.mxu0 0
        %821 = vmatpush1.bf16.msra.mxu0 %v763
        %822 = vmatprep.subr.bf16.mxu0 0
        %823 = vmatpush1.bf16.msra.mxu0 %v762
        %824 = vmatprep.subr.bf16.mxu0 0
        %825 = vmatpush1.bf16.msra.mxu0 %v761
        %826 = vmatprep.subr.bf16.mxu0 0
        %827 = vmatpush1.bf16.msra.mxu0 %v760
        %828 = vmatprep.subr.bf16.mxu0 0
        %829 = vmatpush1.bf16.msra.mxu0 %v759
        %830 = vmatprep.subr.bf16.mxu0 0
        %831 = vmatpush1.bf16.msra.mxu0 %v758
        %832 = vmatprep.subr.bf16.mxu0 0
        %833 = vmatpush1.bf16.msra.mxu0 %v757
        %834 = vmatprep.subr.bf16.mxu0 0
        %835 = vmatpush1.bf16.msra.mxu0 %v756
        %836 = vmatprep.subr.bf16.mxu0 0
        %837 = vmatpush2.bf16.msra.mxu0 %v771
        %838 = vmatprep.subr.bf16.mxu0 0
        %839 = vmatpush2.bf16.msra.mxu0 %v770
        %840 = vmatprep.subr.bf16.mxu0 0
        %841 = vmatpush2.bf16.msra.mxu0 %v769
        %842 = vmatprep.subr.bf16.mxu0 0
        %843 = vmatpush2.bf16.msra.mxu0 %v768
        %844 = vmatprep.subr.bf16.mxu0 0
        %845 = vmatpush2.bf16.msra.mxu0 %v767
        %846 = vmatprep.subr.bf16.mxu0 0
        %847 = vmatpush2.bf16.msra.mxu0 %v766
        %848 = vmatprep.subr.bf16.mxu0 0
        %849 = vmatpush2.bf16.msra.mxu0 %v765
        %850 = vmatprep.subr.bf16.mxu0 0
        %851 = vmatpush2.bf16.msra.mxu0 %v764
        %852 = vmatprep.mubr.bf16.mxu0 %v565
        %853 = vmatmul.mubr.bf16.gmra.mxu0 %v564
        %v854 = vpop.f32.mrf.mxu0
        %v855 = vadd.f32 0.0, %v854
        %v856 = vpop.f32.mrf.mxu0
        %v857 = vpop.f32.mrf.mxu0
        %v858 = vadd.f32 0.0, %v857
        %v859 = vpop.f32.mrf.mxu0
        %860 = vmatprep.mubr.bf16.mxu0 %v569
        %861 = vmatmul.mubr.bf16.gmra.mxu0 %v568
        %v862 = vpop.f32.mrf.mxu0
        %v863 = vadd.f32 0.0, %v862
        %v864 = vpop.f32.mrf.mxu0
        %v865 = vpop.f32.mrf.mxu0
        %v866 = vadd.f32 0.0, %v865
        %v867 = vpop.f32.mrf.mxu0
        %868 = vmatprep.mubr.bf16.mxu0 %v573
        %869 = vmatmul.mubr.bf16.gmra.mxu0 %v572
        %v870 = vpop.f32.mrf.mxu0
        %v871 = vadd.f32 0.0, %v870
        %v872 = vpop.f32.mrf.mxu0
        %v873 = vpop.f32.mrf.mxu0
        %v874 = vadd.f32 0.0, %v873
        %v875 = vpop.f32.mrf.mxu0
        %876 = vmatprep.mubr.bf16.mxu0 %v577
        %877 = vmatmul.mubr.bf16.gmra.mxu0 %v576
        %v878 = vpop.f32.mrf.mxu0
        %v879 = vadd.f32 0.0, %v878
        %v880 = vpop.f32.mrf.mxu0
        %v881 = vpop.f32.mrf.mxu0
        %v882 = vadd.f32 0.0, %v881
        %v883 = vpop.f32.mrf.mxu0
        %884 = vmatprep.mubr.bf16.mxu0 %v581
        %885 = vmatmul.mubr.bf16.gmra.mxu0 %v580
        %v886 = vpop.f32.mrf.mxu0
        %v887 = vadd.f32 0.0, %v886
        %v888 = vpop.f32.mrf.mxu0
        %v889 = vpop.f32.mrf.mxu0
        %v890 = vadd.f32 0.0, %v889
        %v891 = vpop.f32.mrf.mxu0
        %892 = vmatprep.mubr.bf16.mxu0 %v585
        %893 = vmatmul.mubr.bf16.gmra.mxu0 %v584
        %v894 = vpop.f32.mrf.mxu0
        %v895 = vadd.f32 0.0, %v894
        %v896 = vpop.f32.mrf.mxu0
        %v897 = vpop.f32.mrf.mxu0
        %v898 = vadd.f32 0.0, %v897
        %v899 = vpop.f32.mrf.mxu0
        %900 = vmatprep.mubr.bf16.mxu0 %v589
        %901 = vmatmul.mubr.bf16.gmra.mxu0 %v588
        %v902 = vpop.f32.mrf.mxu0
        %v903 = vadd.f32 0.0, %v902
        %v904 = vpop.f32.mrf.mxu0
        %v905 = vpop.f32.mrf.mxu0
        %v906 = vadd.f32 0.0, %v905
        %v907 = vpop.f32.mrf.mxu0
        %908 = vmatprep.mubr.bf16.mxu0 %v593
        %909 = vmatmul.mubr.bf16.gmra.mxu0 %v592
        %v910 = vpop.f32.mrf.mxu0
        %v911 = vadd.f32 0.0, %v910
        %v912 = vpop.f32.mrf.mxu0
        %v913 = vpop.f32.mrf.mxu0
        %v914 = vadd.f32 0.0, %v913
        %v915 = vpop.f32.mrf.mxu0
        %916 = vdwg.mxu0
        %917 = vmatprep.subr.bf16.mxu0 0
        %918 = vmatpush1.bf16.msra.mxu0 %v779
        %919 = vmatprep.subr.bf16.mxu0 0
        %920 = vmatpush1.bf16.msra.mxu0 %v778
        %921 = vmatprep.subr.bf16.mxu0 0
        %922 = vmatpush1.bf16.msra.mxu0 %v777
        %923 = vmatprep.subr.bf16.mxu0 0
        %924 = vmatpush1.bf16.msra.mxu0 %v776
        %925 = vmatprep.subr.bf16.mxu0 0
        %926 = vmatpush1.bf16.msra.mxu0 %v775
        %927 = vmatprep.subr.bf16.mxu0 0
        %928 = vmatpush1.bf16.msra.mxu0 %v774
        %929 = vmatprep.subr.bf16.mxu0 0
        %930 = vmatpush1.bf16.msra.mxu0 %v773
        %931 = vmatprep.subr.bf16.mxu0 0
        %932 = vmatpush1.bf16.msra.mxu0 %v772
        %933 = vmatprep.subr.bf16.mxu0 0
        %934 = vmatpush2.bf16.msra.mxu0 %v787
        %935 = vmatprep.subr.bf16.mxu0 0
        %936 = vmatpush2.bf16.msra.mxu0 %v786
        %937 = vmatprep.subr.bf16.mxu0 0
        %938 = vmatpush2.bf16.msra.mxu0 %v785
        %939 = vmatprep.subr.bf16.mxu0 0
        %940 = vmatpush2.bf16.msra.mxu0 %v784
        %941 = vmatprep.subr.bf16.mxu0 0
        %942 = vmatpush2.bf16.msra.mxu0 %v783
        %943 = vmatprep.subr.bf16.mxu0 0
        %944 = vmatpush2.bf16.msra.mxu0 %v782
        %945 = vmatprep.subr.bf16.mxu0 0
        %946 = vmatpush2.bf16.msra.mxu0 %v781
        %947 = vmatprep.subr.bf16.mxu0 0
        %948 = vmatpush2.bf16.msra.mxu0 %v780
        %949 = vmatprep.mubr.bf16.mxu0 %v567
        %950 = vmatmul.mubr.bf16.gmra.mxu0 %v566
        %v951 = vpop.f32.mrf.mxu0
        %v952 = vadd.f32 %v855, %v951
        %v953 = vpop.f32.mrf.mxu0
        %v954 = vpop.f32.mrf.mxu0
        %v955 = vadd.f32 %v858, %v954
        %v956 = vpop.f32.mrf.mxu0
        %957 = vmatprep.mubr.bf16.mxu0 %v571
        %958 = vmatmul.mubr.bf16.gmra.mxu0 %v570
        %v959 = vpop.f32.mrf.mxu0
        %v960 = vadd.f32 %v863, %v959
        %v961 = vpop.f32.mrf.mxu0
        %v962 = vpop.f32.mrf.mxu0
        %v963 = vadd.f32 %v866, %v962
        %v964 = vpop.f32.mrf.mxu0
        %965 = vmatprep.mubr.bf16.mxu0 %v575
        %966 = vmatmul.mubr.bf16.gmra.mxu0 %v574
        %v967 = vpop.f32.mrf.mxu0
        %v968 = vadd.f32 %v871, %v967
        %v969 = vpop.f32.mrf.mxu0
        %v970 = vpop.f32.mrf.mxu0
        %v971 = vadd.f32 %v874, %v970
        %v972 = vpop.f32.mrf.mxu0
        %973 = vmatprep.mubr.bf16.mxu0 %v579
        %974 = vmatmul.mubr.bf16.gmra.mxu0 %v578
        %v975 = vpop.f32.mrf.mxu0
        %v976 = vadd.f32 %v879, %v975
        %v977 = vpop.f32.mrf.mxu0
        %v978 = vpop.f32.mrf.mxu0
        %v979 = vadd.f32 %v882, %v978
        %v980 = vpop.f32.mrf.mxu0
        %981 = vmatprep.mubr.bf16.mxu0 %v583
        %982 = vmatmul.mubr.bf16.gmra.mxu0 %v582
        %v983 = vpop.f32.mrf.mxu0
        %v984 = vadd.f32 %v887, %v983
        %v985 = vpop.f32.mrf.mxu0
        %v986 = vpop.f32.mrf.mxu0
        %v987 = vadd.f32 %v890, %v986
        %v988 = vpop.f32.mrf.mxu0
        %989 = vmatprep.mubr.bf16.mxu0 %v587
        %990 = vmatmul.mubr.bf16.gmra.mxu0 %v586
        %v991 = vpop.f32.mrf.mxu0
        %v992 = vadd.f32 %v895, %v991
        %v993 = vpop.f32.mrf.mxu0
        %v994 = vpop.f32.mrf.mxu0
        %v995 = vadd.f32 %v898, %v994
        %v996 = vpop.f32.mrf.mxu0
        %997 = vmatprep.mubr.bf16.mxu0 %v591
        %998 = vmatmul.mubr.bf16.gmra.mxu0 %v590
        %v999 = vpop.f32.mrf.mxu0
        %v1000 = vadd.f32 %v903, %v999
        %v1001 = vpop.f32.mrf.mxu0
        %v1002 = vpop.f32.mrf.mxu0
        %v1003 = vadd.f32 %v906, %v1002
        %v1004 = vpop.f32.mrf.mxu0
        %1005 = vmatprep.mubr.bf16.mxu0 %v595
        %1006 = vmatmul.mubr.bf16.gmra.mxu0 %v594
        %v1007 = vpop.f32.mrf.mxu0
        %v1008 = vadd.f32 %v911, %v1007
        %v1009 = vpop.f32.mrf.mxu0
        %v1010 = vpop.f32.mrf.mxu0
        %v1011 = vadd.f32 %v914, %v1010
        %v1012 = vpop.f32.mrf.mxu0
        %1013 = vdwg.mxu0
        %v1014 = vadd.f32 %v356, %v952
        %v1015 = vadd.f32 %v357, %v955
        %v1016 = vadd.f32 %v358, %v960
        %v1017 = vadd.f32 %v359, %v963
        %v1018 = vadd.f32 %v360, %v968
        %v1019 = vadd.f32 %v361, %v971
        %v1020 = vadd.f32 %v362, %v976
        %v1021 = vadd.f32 %v363, %v979
        %v1022 = vadd.f32 %v364, %v984
        %v1023 = vadd.f32 %v365, %v987
        %v1024 = vadd.f32 %v366, %v992
        %v1025 = vadd.f32 %v367, %v995
        %v1026 = vadd.f32 %v368, %v1000
        %v1027 = vadd.f32 %v369, %v1003
        %v1028 = vadd.f32 %v370, %v1008
        %v1029 = vadd.f32 %v371, %v1011
        %1030 = vst [vmem:[#allocation2] sm:$0xff] %v1014
        %1031 = vst [vmem:[#allocation2 + $0x8] sm:$0xff] %v1015
        %1032 = vst [vmem:[#allocation2 + $0x10] sm:$0xff] %v1016
        %1033 = vst [vmem:[#allocation2 + $0x18] sm:$0xff] %v1017
        %1034 = vst [vmem:[#allocation2 + $0x20] sm:$0xff] %v1018
        %1035 = vst [vmem:[#allocation2 + $0x28] sm:$0xff] %v1019
        %1036 = vst [vmem:[#allocation2 + $0x30] sm:$0xff] %v1020
        %1037 = vst [vmem:[#allocation2 + $0x38] sm:$0xff] %v1021
        %1038 = vst [vmem:[#allocation2 + $0x40] sm:$0xff] %v1022
        %1039 = vst [vmem:[#allocation2 + $0x48] sm:$0xff] %v1023
        %1040 = vst [vmem:[#allocation2 + $0x50] sm:$0xff] %v1024
        %1041 = vst [vmem:[#allocation2 + $0x58] sm:$0xff] %v1025
        %1042 = vst [vmem:[#allocation2 + $0x60] sm:$0xff] %v1026
        %1043 = vst [vmem:[#allocation2 + $0x68] sm:$0xff] %v1027
        %1044 = vst [vmem:[#allocation2 + $0x70] sm:$0xff] %v1028
        %1045 = vst [vmem:[#allocation2 + $0x78] sm:$0xff] %v1029
        %p1046 = scmp.eq.s32.totalorder %s21, 4
        // Predicated region
        $region60: #{vpgnet_forward.35} parent=50 // pred_check
          %p1047 = pneg %p1046
        $region61: #{vpgnet_forward.35} parent=50 // pred_check_branch
          %1049 = sbr.rel (%p1047) target = $region63
        $region62: #{vpgnet_forward.35} parent=50 // pred_region
          %v1050 = vld [vmem:[#allocation2] sm:$0xff]
          %v1051 = vld [vmem:[#allocation2 + $0x8] sm:$0xff]
          %v1052 = vld [vmem:[#allocation2 + $0x10] sm:$0xff]
          %v1053 = vld [vmem:[#allocation2 + $0x18] sm:$0xff]
          %v1054 = vld [vmem:[#allocation2 + $0x20] sm:$0xff]
          %v1055 = vld [vmem:[#allocation2 + $0x28] sm:$0xff]
          %v1056 = vld [vmem:[#allocation2 + $0x30] sm:$0xff]
          %v1057 = vld [vmem:[#allocation2 + $0x38] sm:$0xff]
          %v1058 = vld [vmem:[#allocation2 + $0x40] sm:$0xff]
          %v1059 = vld [vmem:[#allocation2 + $0x48] sm:$0xff]
          %v1060 = vld [vmem:[#allocation2 + $0x50] sm:$0xff]
          %v1061 = vld [vmem:[#allocation2 + $0x58] sm:$0xff]
          %v1062 = vld [vmem:[#allocation2 + $0x60] sm:$0xff]
          %v1063 = vld [vmem:[#allocation2 + $0x68] sm:$0xff]
          %v1064 = vld [vmem:[#allocation2 + $0x70] sm:$0xff]
          %v1065 = vld [vmem:[#allocation2 + $0x78] sm:$0xff]
          %v1066 = vld [vmem:[%s325] sm:$0x1]
          %v1068 = vlaneseq
          %v1069 = vshrl.u32 %v1068, 7
          %v1070 = vsub.s32 0, %v1069
          %v1071 = vrot.slane %v1066, %v1070
          %v1073 = vadd.f32 %v1050, %v1071
          %v1074 = vadd.f32 %v1051, %v1071
          %v1075 = vadd.f32 %v1052, %v1071
          %v1076 = vadd.f32 %v1053, %v1071
          %v1077 = vadd.f32 %v1054, %v1071
          %v1078 = vadd.f32 %v1055, %v1071
          %v1079 = vadd.f32 %v1056, %v1071
          %v1080 = vadd.f32 %v1057, %v1071
          %v1081 = vadd.f32 %v1058, %v1071
          %v1082 = vadd.f32 %v1059, %v1071
          %v1083 = vadd.f32 %v1060, %v1071
          %v1084 = vadd.f32 %v1061, %v1071
          %v1085 = vadd.f32 %v1062, %v1071
          %v1086 = vadd.f32 %v1063, %v1071
          %v1087 = vadd.f32 %v1064, %v1071
          %v1088 = vadd.f32 %v1065, %v1071
          %v1089 = vmax.f32 %v1073, 0.0
          %v1090 = vmax.f32 %v1074, 0.0
          %v1091 = vmax.f32 %v1075, 0.0
          %v1092 = vmax.f32 %v1076, 0.0
          %v1093 = vmax.f32 %v1077, 0.0
          %v1094 = vmax.f32 %v1078, 0.0
          %v1095 = vmax.f32 %v1079, 0.0
          %v1096 = vmax.f32 %v1080, 0.0
          %v1097 = vmax.f32 %v1081, 0.0
          %v1098 = vmax.f32 %v1082, 0.0
          %v1099 = vmax.f32 %v1083, 0.0
          %v1100 = vmax.f32 %v1084, 0.0
          %v1101 = vmax.f32 %v1085, 0.0
          %v1102 = vmax.f32 %v1086, 0.0
          %v1103 = vmax.f32 %v1087, 0.0
          %v1104 = vmax.f32 %v1088, 0.0
          %1105 = vst [vmem:[%s333] sm:$0xff] %v1089
          %1106 = vst [vmem:[%s333 + $0x8] sm:$0xff] %v1090
          %1107 = vst [vmem:[%s333 + $0x10] sm:$0xff] %v1091
          %1108 = vst [vmem:[%s333 + $0x18] sm:$0xff] %v1092
          %1109 = vst [vmem:[%s333 + $0x20] sm:$0xff] %v1093
          %1110 = vst [vmem:[%s333 + $0x28] sm:$0xff] %v1094
          %1111 = vst [vmem:[%s333 + $0x30] sm:$0xff] %v1095
          %1112 = vst [vmem:[%s333 + $0x38] sm:$0xff] %v1096
          %1113 = vst [vmem:[%s333 + $0x40] sm:$0xff] %v1097
          %1114 = vst [vmem:[%s333 + $0x48] sm:$0xff] %v1098
          %1115 = vst [vmem:[%s333 + $0x50] sm:$0xff] %v1099
          %1116 = vst [vmem:[%s333 + $0x58] sm:$0xff] %v1100
          %1117 = vst [vmem:[%s333 + $0x60] sm:$0xff] %v1101
          %1118 = vst [vmem:[%s333 + $0x68] sm:$0xff] %v1102
          %1119 = vst [vmem:[%s333 + $0x70] sm:$0xff] %v1103
          %1120 = vst [vmem:[%s333 + $0x78] sm:$0xff] %v1104
        $region63: #{vpgnet_forward.35} parent=50 // pred_fallthru
          _
        %s1121 = smul.u32 16, %s19
        %p1122 = scmp.lt.s32.totalorder %s1121, 15
        %s1123 = scalar_select %p1122, %s1121, 15
        %p1124 = scmp.lt.s32.totalorder %s20, 0
        %s1125 = scalar_select %p1124, %s20, 0
        %s1126 = sadd.s32 %s1125, %s1123
        %s1127 = smul.addr %s1126, 8
        %s1128 = scalar_lea.vmem %s3, %s1127
        // Predicated region
        $region64: #{vpgnet_forward.35} parent=50 // pred_check
          %p1129 = pneg %p135
        $region65: #{vpgnet_forward.35} parent=50 // pred_check_branch
          %1131 = sbr.rel (%p1129) target = $region67
        $region66: #{vpgnet_forward.35} parent=50 // pred_region
          %s1132 = smul.u32 16, %s19
        $region67: #{vpgnet_forward.35} parent=50 // pred_fallthru
          _
        // Predicated region
        $region68: #{vpgnet_forward.35} parent=50 // pred_check
          %p1133 = pneg %p135
        $region69: #{vpgnet_forward.35} parent=50 // pred_check_branch
          %1135 = sbr.rel (%p1133) target = $region71
        $region70: #{vpgnet_forward.35} parent=50 // pred_region
          %s1136 = smul.u32 16, %s19
          %p1137 = scmp.lt.s32.totalorder %s1136, 15
          %s1138 = scalar_select %p1137, %s1136, 15
          %p1139 = scmp.lt.s32.totalorder %s20, 0
          %s1140 = scalar_select %p1139, %s20, 0
          %s1141 = sadd.s32 %s1140, %s1138
          %s1142 = smul.addr %s1141, 8
          %s1143 = scalar_lea.vmem %s3, %s1142
        $region71: #{vpgnet_forward.35} parent=50 // pred_fallthru
          _
      $region51: #{vpgnet_forward.35} parent=5 // pred_fallthru
        _
      %p1144 = scmp.le.s32.totalorder 2, %s9
      // Predicated region
      $region72: #{vpgnet_forward.35} parent=5 // pred_check
        %p1145 = pneg %p1144
      $region73: #{vpgnet_forward.35} parent=5 // pred_check_branch
        %1147 = sbr.rel (%p1145) target = $region75
      $region74: #{vpgnet_forward.35} parent=5 // pred_region
        %s1148 = ssub.s32 %s9, 2
      $region75: #{vpgnet_forward.35} parent=5 // pred_fallthru
        _
    $region6: #{vpgnet_forward.35} parent=1 // loop_footer
      %s13 = sadd.s32 1, %s9
    $region7: #{vpgnet_forward.35} parent=1 // loop_footer_branch
      %8 = sbr.rel target = $region3
    $region8: #{vpgnet_forward.35} parent=1 // loop_exit
      _

// kernel: vpgnet_forward.42
$region0: #{vpgnet_forward.42}
  #allocation0 [shape = 'u32[]', space=smem, size = 0x4, offset = 0x4, fixed_abs, tag = 'smem constant byte address 0x4 - core index']
  #allocation1 [shape = 'u32[144,128]{1,0:T(1,128)}', space=vmem, size = 0x12000, scoped, tag = 'internal scratch']
  #allocation2 [shape = 'f32[128,128]{1,0:T(8,128)}', space=vmem, size = 0x10000, scoped, tag = 'scratch operand']
  %s0 = inlined_call_operand.vmem [shape: bf16[128,128], index: 0, kind: input, shape index: {}]
  %s1 = inlined_call_operand.vmem [shape: bf16[128,128], index: 1, kind: input, shape index: {}]
  %s2 = inlined_call_operand.vmem [shape: f32[1,128], index: 2, kind: input, shape index: {}]
  %s3 = inlined_call_operand.vmem [shape: f32[128,128], index: 3, kind: output, shape index: {}]
  %s4 = sld [smem:[#allocation0]]
  $region30: #{vpgnet_forward.42} parent=0
    _
  %s6 = ssub.s32 1, %s4
  %s7 = scalar_select 0, %s6, %s4
  // Predicated region
  $region2: #{vpgnet_forward.42} parent=0 // pred_check
    _
  $region3: #{vpgnet_forward.42} parent=0 // pred_check_branch
    %9 = sbr.rel (0) target = $region5
  $region4: #{vpgnet_forward.42} parent=0 // pred_region
    _
  $region5: #{vpgnet_forward.42} parent=0 // pred_fallthru
    _
  // Predicated region
  $region6: #{vpgnet_forward.42} parent=0 // pred_check
    _
  $region7: #{vpgnet_forward.42} parent=0 // pred_check_branch
    %11 = sbr.rel (0) target = $region9
  $region8: #{vpgnet_forward.42} parent=0 // pred_region
    _
  $region9: #{vpgnet_forward.42} parent=0 // pred_fallthru
    _
  // Predicated region
  $region10: #{vpgnet_forward.42} parent=0 // pred_check
    _
  $region11: #{vpgnet_forward.42} parent=0 // pred_check_branch
    %13 = sbr.rel (0) target = $region13
  $region12: #{vpgnet_forward.42} parent=0 // pred_region
    _
  $region13: #{vpgnet_forward.42} parent=0 // pred_fallthru
    _
  %p15 = scmp.eq.s32.totalorder 0, 0
  // Predicated region
  $region14: #{vpgnet_forward.42} parent=0 // pred_check
    %p16 = pneg %p15
  $region15: #{vpgnet_forward.42} parent=0 // pred_check_branch
    %18 = sbr.rel (%p16) target = $region17
  $region16: #{vpgnet_forward.42} parent=0 // pred_region
    %19 = vst [vmem:[#allocation2] sm:$0xff] 0.0
    %20 = vst [vmem:[#allocation2 + $0x8] sm:$0xff] 0.0
    %21 = vst [vmem:[#allocation2 + $0x10] sm:$0xff] 0.0
    %22 = vst [vmem:[#allocation2 + $0x18] sm:$0xff] 0.0
    %23 = vst [vmem:[#allocation2 + $0x20] sm:$0xff] 0.0
    %24 = vst [vmem:[#allocation2 + $0x28] sm:$0xff] 0.0
    %25 = vst [vmem:[#allocation2 + $0x30] sm:$0xff] 0.0
    %26 = vst [vmem:[#allocation2 + $0x38] sm:$0xff] 0.0
    %27 = vst [vmem:[#allocation2 + $0x40] sm:$0xff] 0.0
    %28 = vst [vmem:[#allocation2 + $0x48] sm:$0xff] 0.0
    %29 = vst [vmem:[#allocation2 + $0x50] sm:$0xff] 0.0
    %30 = vst [vmem:[#allocation2 + $0x58] sm:$0xff] 0.0
    %31 = vst [vmem:[#allocation2 + $0x60] sm:$0xff] 0.0
    %32 = vst [vmem:[#allocation2 + $0x68] sm:$0xff] 0.0
    %33 = vst [vmem:[#allocation2 + $0x70] sm:$0xff] 0.0
    %34 = vst [vmem:[#allocation2 + $0x78] sm:$0xff] 0.0
  $region17: #{vpgnet_forward.42} parent=0 // pred_fallthru
    _
  %v35 = vld [vmem:[#allocation2] sm:$0xff]
  %v36 = vld [vmem:[#allocation2 + $0x8] sm:$0xff]
  %v37 = vld [vmem:[#allocation2 + $0x10] sm:$0xff]
  %v38 = vld [vmem:[#allocation2 + $0x18] sm:$0xff]
  %v39 = vld [vmem:[#allocation2 + $0x20] sm:$0xff]
  %v40 = vld [vmem:[#allocation2 + $0x28] sm:$0xff]
  %v41 = vld [vmem:[#allocation2 + $0x30] sm:$0xff]
  %v42 = vld [vmem:[#allocation2 + $0x38] sm:$0xff]
  %v43 = vld [vmem:[#allocation2 + $0x40] sm:$0xff]
  %v44 = vld [vmem:[#allocation2 + $0x48] sm:$0xff]
  %v45 = vld [vmem:[#allocation2 + $0x50] sm:$0xff]
  %v46 = vld [vmem:[#allocation2 + $0x58] sm:$0xff]
  %v47 = vld [vmem:[#allocation2 + $0x60] sm:$0xff]
  %v48 = vld [vmem:[#allocation2 + $0x68] sm:$0xff]
  %v49 = vld [vmem:[#allocation2 + $0x70] sm:$0xff]
  %v50 = vld [vmem:[#allocation2 + $0x78] sm:$0xff]
  %v51 = vld [vmem:[%s0] sm:$0xf]
  %v52 = vld [vmem:[%s0 + $0x4] sm:$0xf]
  %v53 = vld [vmem:[%s0 + $0x8] sm:$0xf]
  %v54 = vld [vmem:[%s0 + $0xc] sm:$0xf]
  %v55 = vld [vmem:[%s0 + $0x10] sm:$0xf]
  %v56 = vld [vmem:[%s0 + $0x14] sm:$0xf]
  %v57 = vld [vmem:[%s0 + $0x18] sm:$0xf]
  %v58 = vld [vmem:[%s0 + $0x1c] sm:$0xf]
  %v59 = vld [vmem:[%s0 + $0x20] sm:$0xf]
  %v60 = vld [vmem:[%s0 + $0x24] sm:$0xf]
  %v61 = vld [vmem:[%s0 + $0x28] sm:$0xf]
  %v62 = vld [vmem:[%s0 + $0x2c] sm:$0xf]
  %v63 = vld [vmem:[%s0 + $0x30] sm:$0xf]
  %v64 = vld [vmem:[%s0 + $0x34] sm:$0xf]
  %v65 = vld [vmem:[%s0 + $0x38] sm:$0xf]
  %v66 = vld [vmem:[%s0 + $0x3c] sm:$0xf]
  %v67 = vld [vmem:[%s1] sm:$0xf]
  %v68 = vld [vmem:[%s1 + $0x4] sm:$0xf]
  %v69 = vld [vmem:[%s1 + $0x8] sm:$0xf]
  %v70 = vld [vmem:[%s1 + $0xc] sm:$0xf]
  %v71 = vld [vmem:[%s1 + $0x10] sm:$0xf]
  %v72 = vld [vmem:[%s1 + $0x14] sm:$0xf]
  %v73 = vld [vmem:[%s1 + $0x18] sm:$0xf]
  %v74 = vld [vmem:[%s1 + $0x1c] sm:$0xf]
  %v75 = vld [vmem:[%s1 + $0x20] sm:$0xf]
  %v76 = vld [vmem:[%s1 + $0x24] sm:$0xf]
  %v77 = vld [vmem:[%s1 + $0x28] sm:$0xf]
  %v78 = vld [vmem:[%s1 + $0x2c] sm:$0xf]
  %v79 = vld [vmem:[%s1 + $0x30] sm:$0xf]
  %v80 = vld [vmem:[%s1 + $0x34] sm:$0xf]
  %v81 = vld [vmem:[%s1 + $0x38] sm:$0xf]
  %v82 = vld [vmem:[%s1 + $0x3c] sm:$0xf]
  %v99 = vunpack.c.l.b16 %v51
  %v100 = vunpack.c.l.b16 %v52
  %v101 = vunpack.c.l.b16 %v53
  %v102 = vunpack.c.l.b16 %v54
  %v103 = vunpack.c.l.b16 %v55
  %v104 = vunpack.c.l.b16 %v56
  %v105 = vunpack.c.l.b16 %v57
  %v106 = vunpack.c.l.b16 %v58
  %v107 = vunpack.c.l.b16 %v59
  %v108 = vunpack.c.l.b16 %v60
  %v109 = vunpack.c.l.b16 %v61
  %v110 = vunpack.c.l.b16 %v62
  %v111 = vunpack.c.l.b16 %v63
  %v112 = vunpack.c.l.b16 %v64
  %v113 = vunpack.c.l.b16 %v65
  %v114 = vunpack.c.l.b16 %v66
  %v115 = vpack.c.b16 %v100, %v99
  %v116 = vpack.c.b16 %v102, %v101
  %v117 = vpack.c.b16 %v104, %v103
  %v118 = vpack.c.b16 %v106, %v105
  %v119 = vpack.c.b16 %v108, %v107
  %v120 = vpack.c.b16 %v110, %v109
  %v121 = vpack.c.b16 %v112, %v111
  %v122 = vpack.c.b16 %v114, %v113
  %v147 = vunpack.c.l.b16 %v67
  %v148 = vunpack.c.l.b16 %v68
  %v149 = vunpack.c.l.b16 %v69
  %v150 = vunpack.c.l.b16 %v70
  %v151 = vunpack.c.l.b16 %v71
  %v152 = vunpack.c.l.b16 %v72
  %v153 = vunpack.c.l.b16 %v73
  %v154 = vunpack.c.l.b16 %v74
  %v155 = vunpack.c.l.b16 %v75
  %v156 = vunpack.c.l.b16 %v76
  %v157 = vunpack.c.l.b16 %v77
  %v158 = vunpack.c.l.b16 %v78
  %v159 = vunpack.c.l.b16 %v79
  %v160 = vunpack.c.l.b16 %v80
  %v161 = vunpack.c.l.b16 %v81
  %v162 = vunpack.c.l.b16 %v82
  %v163 = vpack.c.b16 %v148, %v147
  %v164 = vpack.c.b16 %v150, %v149
  %v165 = vpack.c.b16 %v152, %v151
  %v166 = vpack.c.b16 %v154, %v153
  %v167 = vpack.c.b16 %v156, %v155
  %v168 = vpack.c.b16 %v158, %v157
  %v169 = vpack.c.b16 %v160, %v159
  %v170 = vpack.c.b16 %v162, %v161
  %179 = vmatprep.subr.bf16.mxu0 0
  %180 = vmatpush1.bf16.msra.mxu0 %v170
  %181 = vmatprep.subr.bf16.mxu0 0
  %182 = vmatpush1.bf16.msra.mxu0 %v169
  %183 = vmatprep.subr.bf16.mxu0 0
  %184 = vmatpush1.bf16.msra.mxu0 %v168
  %185 = vmatprep.subr.bf16.mxu0 0
  %186 = vmatpush1.bf16.msra.mxu0 %v167
  %187 = vmatprep.subr.bf16.mxu0 0
  %188 = vmatpush1.bf16.msra.mxu0 %v166
  %189 = vmatprep.subr.bf16.mxu0 0
  %190 = vmatpush1.bf16.msra.mxu0 %v165
  %191 = vmatprep.subr.bf16.mxu0 0
  %192 = vmatpush1.bf16.msra.mxu0 %v164
  %193 = vmatprep.subr.bf16.mxu0 0
  %194 = vmatpush1.bf16.msra.mxu0 %v163
  %195 = vmatprep.subr.bf16.mxu0 0
  %196 = vmatpush2.bf16.msra.mxu0 0
  %197 = vmatprep.subr.bf16.mxu0 0
  %198 = vmatpush2.bf16.msra.mxu0 0
  %199 = vmatprep.subr.bf16.mxu0 0
  %200 = vmatpush2.bf16.msra.mxu0 0
  %201 = vmatprep.subr.bf16.mxu0 0
  %202 = vmatpush2.bf16.msra.mxu0 0
  %203 = vmatprep.subr.bf16.mxu0 0
  %204 = vmatpush2.bf16.msra.mxu0 0
  %205 = vmatprep.subr.bf16.mxu0 0
  %206 = vmatpush2.bf16.msra.mxu0 0
  %207 = vmatprep.subr.bf16.mxu0 0
  %208 = vmatpush2.bf16.msra.mxu0 0
  %209 = vmatprep.subr.bf16.mxu0 0
  %210 = vmatpush2.bf16.msra.mxu0 0
  %211 = vmatprep.mubr.bf16.mxu0 0
  %212 = vmatmul.mubr.bf16.gmra.mxu0 %v115
  %v213 = vpop.f32.mrf.mxu0
  %v214 = vadd.f32 0.0, %v213
  %v215 = vpop.f32.mrf.mxu0
  %v216 = vpop.f32.mrf.mxu0
  %v217 = vadd.f32 0.0, %v216
  %v218 = vpop.f32.mrf.mxu0
  %219 = vmatprep.mubr.bf16.mxu0 0
  %220 = vmatmul.mubr.bf16.gmra.mxu0 %v116
  %v221 = vpop.f32.mrf.mxu0
  %v222 = vadd.f32 0.0, %v221
  %v223 = vpop.f32.mrf.mxu0
  %v224 = vpop.f32.mrf.mxu0
  %v225 = vadd.f32 0.0, %v224
  %v226 = vpop.f32.mrf.mxu0
  %227 = vmatprep.mubr.bf16.mxu0 0
  %228 = vmatmul.mubr.bf16.gmra.mxu0 %v117
  %v229 = vpop.f32.mrf.mxu0
  %v230 = vadd.f32 0.0, %v229
  %v231 = vpop.f32.mrf.mxu0
  %v232 = vpop.f32.mrf.mxu0
  %v233 = vadd.f32 0.0, %v232
  %v234 = vpop.f32.mrf.mxu0
  %235 = vmatprep.mubr.bf16.mxu0 0
  %236 = vmatmul.mubr.bf16.gmra.mxu0 %v118
  %v237 = vpop.f32.mrf.mxu0
  %v238 = vadd.f32 0.0, %v237
  %v239 = vpop.f32.mrf.mxu0
  %v240 = vpop.f32.mrf.mxu0
  %v241 = vadd.f32 0.0, %v240
  %v242 = vpop.f32.mrf.mxu0
  %243 = vmatprep.mubr.bf16.mxu0 0
  %244 = vmatmul.mubr.bf16.gmra.mxu0 %v119
  %v245 = vpop.f32.mrf.mxu0
  %v246 = vadd.f32 0.0, %v245
  %v247 = vpop.f32.mrf.mxu0
  %v248 = vpop.f32.mrf.mxu0
  %v249 = vadd.f32 0.0, %v248
  %v250 = vpop.f32.mrf.mxu0
  %251 = vmatprep.mubr.bf16.mxu0 0
  %252 = vmatmul.mubr.bf16.gmra.mxu0 %v120
  %v253 = vpop.f32.mrf.mxu0
  %v254 = vadd.f32 0.0, %v253
  %v255 = vpop.f32.mrf.mxu0
  %v256 = vpop.f32.mrf.mxu0
  %v257 = vadd.f32 0.0, %v256
  %v258 = vpop.f32.mrf.mxu0
  %259 = vmatprep.mubr.bf16.mxu0 0
  %260 = vmatmul.mubr.bf16.gmra.mxu0 %v121
  %v261 = vpop.f32.mrf.mxu0
  %v262 = vadd.f32 0.0, %v261
  %v263 = vpop.f32.mrf.mxu0
  %v264 = vpop.f32.mrf.mxu0
  %v265 = vadd.f32 0.0, %v264
  %v266 = vpop.f32.mrf.mxu0
  %267 = vmatprep.mubr.bf16.mxu0 0
  %268 = vmatmul.mubr.bf16.gmra.mxu0 %v122
  %v269 = vpop.f32.mrf.mxu0
  %v270 = vadd.f32 0.0, %v269
  %v271 = vpop.f32.mrf.mxu0
  %v272 = vpop.f32.mrf.mxu0
  %v273 = vadd.f32 0.0, %v272
  %v274 = vpop.f32.mrf.mxu0
  %275 = vdwg.mxu0
  %v276 = vadd.f32 %v35, %v214
  %v277 = vadd.f32 %v36, %v217
  %v278 = vadd.f32 %v37, %v222
  %v279 = vadd.f32 %v38, %v225
  %v280 = vadd.f32 %v39, %v230
  %v281 = vadd.f32 %v40, %v233
  %v282 = vadd.f32 %v41, %v238
  %v283 = vadd.f32 %v42, %v241
  %v284 = vadd.f32 %v43, %v246
  %v285 = vadd.f32 %v44, %v249
  %v286 = vadd.f32 %v45, %v254
  %v287 = vadd.f32 %v46, %v257
  %v288 = vadd.f32 %v47, %v262
  %v289 = vadd.f32 %v48, %v265
  %v290 = vadd.f32 %v49, %v270
  %v291 = vadd.f32 %v50, %v273
  %292 = vst [vmem:[#allocation2] sm:$0xff] %v276
  %293 = vst [vmem:[#allocation2 + $0x8] sm:$0xff] %v277
  %294 = vst [vmem:[#allocation2 + $0x10] sm:$0xff] %v278
  %295 = vst [vmem:[#allocation2 + $0x18] sm:$0xff] %v279
  %296 = vst [vmem:[#allocation2 + $0x20] sm:$0xff] %v280
  %297 = vst [vmem:[#allocation2 + $0x28] sm:$0xff] %v281
  %298 = vst [vmem:[#allocation2 + $0x30] sm:$0xff] %v282
  %299 = vst [vmem:[#allocation2 + $0x38] sm:$0xff] %v283
  %300 = vst [vmem:[#allocation2 + $0x40] sm:$0xff] %v284
  %301 = vst [vmem:[#allocation2 + $0x48] sm:$0xff] %v285
  %302 = vst [vmem:[#allocation2 + $0x50] sm:$0xff] %v286
  %303 = vst [vmem:[#allocation2 + $0x58] sm:$0xff] %v287
  %304 = vst [vmem:[#allocation2 + $0x60] sm:$0xff] %v288
  %305 = vst [vmem:[#allocation2 + $0x68] sm:$0xff] %v289
  %306 = vst [vmem:[#allocation2 + $0x70] sm:$0xff] %v290
  %307 = vst [vmem:[#allocation2 + $0x78] sm:$0xff] %v291
  // Predicated region
  $region18: #{vpgnet_forward.42} parent=0 // pred_check
    %p308 = pneg %p15
  $region19: #{vpgnet_forward.42} parent=0 // pred_check_branch
    %310 = sbr.rel (%p308) target = $region21
  $region20: #{vpgnet_forward.42} parent=0 // pred_region
    %v311 = vld [vmem:[#allocation2] sm:$0xff]
    %v312 = vld [vmem:[#allocation2 + $0x8] sm:$0xff]
    %v313 = vld [vmem:[#allocation2 + $0x10] sm:$0xff]
    %v314 = vld [vmem:[#allocation2 + $0x18] sm:$0xff]
    %v315 = vld [vmem:[#allocation2 + $0x20] sm:$0xff]
    %v316 = vld [vmem:[#allocation2 + $0x28] sm:$0xff]
    %v317 = vld [vmem:[#allocation2 + $0x30] sm:$0xff]
    %v318 = vld [vmem:[#allocation2 + $0x38] sm:$0xff]
    %v319 = vld [vmem:[#allocation2 + $0x40] sm:$0xff]
    %v320 = vld [vmem:[#allocation2 + $0x48] sm:$0xff]
    %v321 = vld [vmem:[#allocation2 + $0x50] sm:$0xff]
    %v322 = vld [vmem:[#allocation2 + $0x58] sm:$0xff]
    %v323 = vld [vmem:[#allocation2 + $0x60] sm:$0xff]
    %v324 = vld [vmem:[#allocation2 + $0x68] sm:$0xff]
    %v325 = vld [vmem:[#allocation2 + $0x70] sm:$0xff]
    %v326 = vld [vmem:[#allocation2 + $0x78] sm:$0xff]
    %v327 = vld [vmem:[%s2] sm:$0x1]
    %v329 = vlaneseq
    %v330 = vshrl.u32 %v329, 7
    %v331 = vsub.s32 0, %v330
    %v332 = vrot.slane %v327, %v331
    %v334 = vadd.f32 %v311, %v332
    %v335 = vadd.f32 %v312, %v332
    %v336 = vadd.f32 %v313, %v332
    %v337 = vadd.f32 %v314, %v332
    %v338 = vadd.f32 %v315, %v332
    %v339 = vadd.f32 %v316, %v332
    %v340 = vadd.f32 %v317, %v332
    %v341 = vadd.f32 %v318, %v332
    %v342 = vadd.f32 %v319, %v332
    %v343 = vadd.f32 %v320, %v332
    %v344 = vadd.f32 %v321, %v332
    %v345 = vadd.f32 %v322, %v332
    %v346 = vadd.f32 %v323, %v332
    %v347 = vadd.f32 %v324, %v332
    %v348 = vadd.f32 %v325, %v332
    %v349 = vadd.f32 %v326, %v332
    %v350 = vmax.f32 %v334, 0.0
    %v351 = vmax.f32 %v335, 0.0
    %v352 = vmax.f32 %v336, 0.0
    %v353 = vmax.f32 %v337, 0.0
    %v354 = vmax.f32 %v338, 0.0
    %v355 = vmax.f32 %v339, 0.0
    %v356 = vmax.f32 %v340, 0.0
    %v357 = vmax.f32 %v341, 0.0
    %v358 = vmax.f32 %v342, 0.0
    %v359 = vmax.f32 %v343, 0.0
    %v360 = vmax.f32 %v344, 0.0
    %v361 = vmax.f32 %v345, 0.0
    %v362 = vmax.f32 %v346, 0.0
    %v363 = vmax.f32 %v347, 0.0
    %v364 = vmax.f32 %v348, 0.0
    %v365 = vmax.f32 %v349, 0.0
    %366 = vst [vmem:[%s3] sm:$0xff] %v350
    %367 = vst [vmem:[%s3 + $0x8] sm:$0xff] %v351
    %368 = vst [vmem:[%s3 + $0x10] sm:$0xff] %v352
    %369 = vst [vmem:[%s3 + $0x18] sm:$0xff] %v353
    %370 = vst [vmem:[%s3 + $0x20] sm:$0xff] %v354
    %371 = vst [vmem:[%s3 + $0x28] sm:$0xff] %v355
    %372 = vst [vmem:[%s3 + $0x30] sm:$0xff] %v356
    %373 = vst [vmem:[%s3 + $0x38] sm:$0xff] %v357
    %374 = vst [vmem:[%s3 + $0x40] sm:$0xff] %v358
    %375 = vst [vmem:[%s3 + $0x48] sm:$0xff] %v359
    %376 = vst [vmem:[%s3 + $0x50] sm:$0xff] %v360
    %377 = vst [vmem:[%s3 + $0x58] sm:$0xff] %v361
    %378 = vst [vmem:[%s3 + $0x60] sm:$0xff] %v362
    %379 = vst [vmem:[%s3 + $0x68] sm:$0xff] %v363
    %380 = vst [vmem:[%s3 + $0x70] sm:$0xff] %v364
    %381 = vst [vmem:[%s3 + $0x78] sm:$0xff] %v365
  $region21: #{vpgnet_forward.42} parent=0 // pred_fallthru
    _
  // Predicated region
  $region22: #{vpgnet_forward.42} parent=0 // pred_check
    _
  $region23: #{vpgnet_forward.42} parent=0 // pred_check_branch
    %383 = sbr.rel (0) target = $region25
  $region24: #{vpgnet_forward.42} parent=0 // pred_region
    _
  $region25: #{vpgnet_forward.42} parent=0 // pred_fallthru
    _
  // Predicated region
  $region26: #{vpgnet_forward.42} parent=0 // pred_check
    _
  $region27: #{vpgnet_forward.42} parent=0 // pred_check_branch
    %385 = sbr.rel (0) target = $region29
  $region28: #{vpgnet_forward.42} parent=0 // pred_region
    _
  $region29: #{vpgnet_forward.42} parent=0 // pred_fallthru
    _

// kernel: vpgnet_forward.43
$region0: #{vpgnet_forward.43}
  #allocation0 [shape = 'u32[]', space=smem, size = 0x4, offset = 0x4, fixed_abs, tag = 'smem constant byte address 0x4 - core index']
  #allocation1 [shape = 'u32[144,128]{1,0:T(1,128)}', space=vmem, size = 0x12000, scoped, tag = 'internal scratch']
  #allocation2 [shape = 'f32[128,128]{1,0:T(8,128)}', space=vmem, size = 0x10000, scoped, tag = 'scratch operand']
  %s0 = inlined_call_operand.vmem [shape: bf16[128,128], index: 0, kind: input, shape index: {}]
  %s1 = inlined_call_operand.vmem [shape: bf16[128,128], index: 1, kind: input, shape index: {}]
  %s2 = inlined_call_operand.vmem [shape: f32[1,128], index: 2, kind: input, shape index: {}]
  %s3 = inlined_call_operand.vmem [shape: f32[128,128], index: 3, kind: output, shape index: {}]
  %s4 = sld [smem:[#allocation0]]
  $region30: #{vpgnet_forward.43} parent=0
    _
  %s6 = ssub.s32 1, %s4
  %s7 = scalar_select 0, %s6, %s4
  // Predicated region
  $region2: #{vpgnet_forward.43} parent=0 // pred_check
    _
  $region3: #{vpgnet_forward.43} parent=0 // pred_check_branch
    %9 = sbr.rel (0) target = $region5
  $region4: #{vpgnet_forward.43} parent=0 // pred_region
    _
  $region5: #{vpgnet_forward.43} parent=0 // pred_fallthru
    _
  // Predicated region
  $region6: #{vpgnet_forward.43} parent=0 // pred_check
    _
  $region7: #{vpgnet_forward.43} parent=0 // pred_check_branch
    %11 = sbr.rel (0) target = $region9
  $region8: #{vpgnet_forward.43} parent=0 // pred_region
    _
  $region9: #{vpgnet_forward.43} parent=0 // pred_fallthru
    _
  // Predicated region
  $region10: #{vpgnet_forward.43} parent=0 // pred_check
    _
  $region11: #{vpgnet_forward.43} parent=0 // pred_check_branch
    %13 = sbr.rel (0) target = $region13
  $region12: #{vpgnet_forward.43} parent=0 // pred_region
    _
  $region13: #{vpgnet_forward.43} parent=0 // pred_fallthru
    _
  %p15 = scmp.eq.s32.totalorder 0, 0
  // Predicated region
  $region14: #{vpgnet_forward.43} parent=0 // pred_check
    %p16 = pneg %p15
  $region15: #{vpgnet_forward.43} parent=0 // pred_check_branch
    %18 = sbr.rel (%p16) target = $region17
  $region16: #{vpgnet_forward.43} parent=0 // pred_region
    %19 = vst [vmem:[#allocation2] sm:$0xff] 0.0
    %20 = vst [vmem:[#allocation2 + $0x8] sm:$0xff] 0.0
    %21 = vst [vmem:[#allocation2 + $0x10] sm:$0xff] 0.0
    %22 = vst [vmem:[#allocation2 + $0x18] sm:$0xff] 0.0
    %23 = vst [vmem:[#allocation2 + $0x20] sm:$0xff] 0.0
    %24 = vst [vmem:[#allocation2 + $0x28] sm:$0xff] 0.0
    %25 = vst [vmem:[#allocation2 + $0x30] sm:$0xff] 0.0
    %26 = vst [vmem:[#allocation2 + $0x38] sm:$0xff] 0.0
    %27 = vst [vmem:[#allocation2 + $0x40] sm:$0xff] 0.0
    %28 = vst [vmem:[#allocation2 + $0x48] sm:$0xff] 0.0
    %29 = vst [vmem:[#allocation2 + $0x50] sm:$0xff] 0.0
    %30 = vst [vmem:[#allocation2 + $0x58] sm:$0xff] 0.0
    %31 = vst [vmem:[#allocation2 + $0x60] sm:$0xff] 0.0
    %32 = vst [vmem:[#allocation2 + $0x68] sm:$0xff] 0.0
    %33 = vst [vmem:[#allocation2 + $0x70] sm:$0xff] 0.0
    %34 = vst [vmem:[#allocation2 + $0x78] sm:$0xff] 0.0
  $region17: #{vpgnet_forward.43} parent=0 // pred_fallthru
    _
  %v35 = vld [vmem:[#allocation2] sm:$0xff]
  %v36 = vld [vmem:[#allocation2 + $0x8] sm:$0xff]
  %v37 = vld [vmem:[#allocation2 + $0x10] sm:$0xff]
  %v38 = vld [vmem:[#allocation2 + $0x18] sm:$0xff]
  %v39 = vld [vmem:[#allocation2 + $0x20] sm:$0xff]
  %v40 = vld [vmem:[#allocation2 + $0x28] sm:$0xff]
  %v41 = vld [vmem:[#allocation2 + $0x30] sm:$0xff]
  %v42 = vld [vmem:[#allocation2 + $0x38] sm:$0xff]
  %v43 = vld [vmem:[#allocation2 + $0x40] sm:$0xff]
  %v44 = vld [vmem:[#allocation2 + $0x48] sm:$0xff]
  %v45 = vld [vmem:[#allocation2 + $0x50] sm:$0xff]
  %v46 = vld [vmem:[#allocation2 + $0x58] sm:$0xff]
  %v47 = vld [vmem:[#allocation2 + $0x60] sm:$0xff]
  %v48 = vld [vmem:[#allocation2 + $0x68] sm:$0xff]
  %v49 = vld [vmem:[#allocation2 + $0x70] sm:$0xff]
  %v50 = vld [vmem:[#allocation2 + $0x78] sm:$0xff]
  %v51 = vld [vmem:[%s0] sm:$0xf]
  %v52 = vld [vmem:[%s0 + $0x4] sm:$0xf]
  %v53 = vld [vmem:[%s0 + $0x8] sm:$0xf]
  %v54 = vld [vmem:[%s0 + $0xc] sm:$0xf]
  %v55 = vld [vmem:[%s0 + $0x10] sm:$0xf]
  %v56 = vld [vmem:[%s0 + $0x14] sm:$0xf]
  %v57 = vld [vmem:[%s0 + $0x18] sm:$0xf]
  %v58 = vld [vmem:[%s0 + $0x1c] sm:$0xf]
  %v59 = vld [vmem:[%s0 + $0x20] sm:$0xf]
  %v60 = vld [vmem:[%s0 + $0x24] sm:$0xf]
  %v61 = vld [vmem:[%s0 + $0x28] sm:$0xf]
  %v62 = vld [vmem:[%s0 + $0x2c] sm:$0xf]
  %v63 = vld [vmem:[%s0 + $0x30] sm:$0xf]
  %v64 = vld [vmem:[%s0 + $0x34] sm:$0xf]
  %v65 = vld [vmem:[%s0 + $0x38] sm:$0xf]
  %v66 = vld [vmem:[%s0 + $0x3c] sm:$0xf]
  %v67 = vld [vmem:[%s1] sm:$0xf]
  %v68 = vld [vmem:[%s1 + $0x4] sm:$0xf]
  %v69 = vld [vmem:[%s1 + $0x8] sm:$0xf]
  %v70 = vld [vmem:[%s1 + $0xc] sm:$0xf]
  %v71 = vld [vmem:[%s1 + $0x10] sm:$0xf]
  %v72 = vld [vmem:[%s1 + $0x14] sm:$0xf]
  %v73 = vld [vmem:[%s1 + $0x18] sm:$0xf]
  %v74 = vld [vmem:[%s1 + $0x1c] sm:$0xf]
  %v75 = vld [vmem:[%s1 + $0x20] sm:$0xf]
  %v76 = vld [vmem:[%s1 + $0x24] sm:$0xf]
  %v77 = vld [vmem:[%s1 + $0x28] sm:$0xf]
  %v78 = vld [vmem:[%s1 + $0x2c] sm:$0xf]
  %v79 = vld [vmem:[%s1 + $0x30] sm:$0xf]
  %v80 = vld [vmem:[%s1 + $0x34] sm:$0xf]
  %v81 = vld [vmem:[%s1 + $0x38] sm:$0xf]
  %v82 = vld [vmem:[%s1 + $0x3c] sm:$0xf]
  %v99 = vunpack.c.l.b16 %v51
  %v100 = vunpack.c.l.b16 %v52
  %v101 = vunpack.c.l.b16 %v53
  %v102 = vunpack.c.l.b16 %v54
  %v103 = vunpack.c.l.b16 %v55
  %v104 = vunpack.c.l.b16 %v56
  %v105 = vunpack.c.l.b16 %v57
  %v106 = vunpack.c.l.b16 %v58
  %v107 = vunpack.c.l.b16 %v59
  %v108 = vunpack.c.l.b16 %v60
  %v109 = vunpack.c.l.b16 %v61
  %v110 = vunpack.c.l.b16 %v62
  %v111 = vunpack.c.l.b16 %v63
  %v112 = vunpack.c.l.b16 %v64
  %v113 = vunpack.c.l.b16 %v65
  %v114 = vunpack.c.l.b16 %v66
  %v115 = vpack.c.b16 %v100, %v99
  %v116 = vpack.c.b16 %v102, %v101
  %v117 = vpack.c.b16 %v104, %v103
  %v118 = vpack.c.b16 %v106, %v105
  %v119 = vpack.c.b16 %v108, %v107
  %v120 = vpack.c.b16 %v110, %v109
  %v121 = vpack.c.b16 %v112, %v111
  %v122 = vpack.c.b16 %v114, %v113
  %v147 = vunpack.c.l.b16 %v67
  %v148 = vunpack.c.l.b16 %v68
  %v149 = vunpack.c.l.b16 %v69
  %v150 = vunpack.c.l.b16 %v70
  %v151 = vunpack.c.l.b16 %v71
  %v152 = vunpack.c.l.b16 %v72
  %v153 = vunpack.c.l.b16 %v73
  %v154 = vunpack.c.l.b16 %v74
  %v155 = vunpack.c.l.b16 %v75
  %v156 = vunpack.c.l.b16 %v76
  %v157 = vunpack.c.l.b16 %v77
  %v158 = vunpack.c.l.b16 %v78
  %v159 = vunpack.c.l.b16 %v79
  %v160 = vunpack.c.l.b16 %v80
  %v161 = vunpack.c.l.b16 %v81
  %v162 = vunpack.c.l.b16 %v82
  %v163 = vpack.c.b16 %v148, %v147
  %v164 = vpack.c.b16 %v150, %v149
  %v165 = vpack.c.b16 %v152, %v151
  %v166 = vpack.c.b16 %v154, %v153
  %v167 = vpack.c.b16 %v156, %v155
  %v168 = vpack.c.b16 %v158, %v157
  %v169 = vpack.c.b16 %v160, %v159
  %v170 = vpack.c.b16 %v162, %v161
  %179 = vmatprep.subr.bf16.mxu0 0
  %180 = vmatpush1.bf16.msra.mxu0 %v170
  %181 = vmatprep.subr.bf16.mxu0 0
  %182 = vmatpush1.bf16.msra.mxu0 %v169
  %183 = vmatprep.subr.bf16.mxu0 0
  %184 = vmatpush1.bf16.msra.mxu0 %v168
  %185 = vmatprep.subr.bf16.mxu0 0
  %186 = vmatpush1.bf16.msra.mxu0 %v167
  %187 = vmatprep.subr.bf16.mxu0 0
  %188 = vmatpush1.bf16.msra.mxu0 %v166
  %189 = vmatprep.subr.bf16.mxu0 0
  %190 = vmatpush1.bf16.msra.mxu0 %v165
  %191 = vmatprep.subr.bf16.mxu0 0
  %192 = vmatpush1.bf16.msra.mxu0 %v164
  %193 = vmatprep.subr.bf16.mxu0 0
  %194 = vmatpush1.bf16.msra.mxu0 %v163
  %195 = vmatprep.subr.bf16.mxu0 0
  %196 = vmatpush2.bf16.msra.mxu0 0
  %197 = vmatprep.subr.bf16.mxu0 0
  %198 = vmatpush2.bf16.msra.mxu0 0
  %199 = vmatprep.subr.bf16.mxu0 0
  %200 = vmatpush2.bf16.msra.mxu0 0
  %201 = vmatprep.subr.bf16.mxu0 0
  %202 = vmatpush2.bf16.msra.mxu0 0
  %203 = vmatprep.subr.bf16.mxu0 0
  %204 = vmatpush2.bf16.msra.mxu0 0
  %205 = vmatprep.subr.bf16.mxu0 0
  %206 = vmatpush2.bf16.msra.mxu0 0
  %207 = vmatprep.subr.bf16.mxu0 0
  %208 = vmatpush2.bf16.msra.mxu0 0
  %209 = vmatprep.subr.bf16.mxu0 0
  %210 = vmatpush2.bf16.msra.mxu0 0
  %211 = vmatprep.mubr.bf16.mxu0 0
  %212 = vmatmul.mubr.bf16.gmra.mxu0 %v115
  %v213 = vpop.f32.mrf.mxu0
  %v214 = vadd.f32 0.0, %v213
  %v215 = vpop.f32.mrf.mxu0
  %v216 = vpop.f32.mrf.mxu0
  %v217 = vadd.f32 0.0, %v216
  %v218 = vpop.f32.mrf.mxu0
  %219 = vmatprep.mubr.bf16.mxu0 0
  %220 = vmatmul.mubr.bf16.gmra.mxu0 %v116
  %v221 = vpop.f32.mrf.mxu0
  %v222 = vadd.f32 0.0, %v221
  %v223 = vpop.f32.mrf.mxu0
  %v224 = vpop.f32.mrf.mxu0
  %v225 = vadd.f32 0.0, %v224
  %v226 = vpop.f32.mrf.mxu0
  %227 = vmatprep.mubr.bf16.mxu0 0
  %228 = vmatmul.mubr.bf16.gmra.mxu0 %v117
  %v229 = vpop.f32.mrf.mxu0
  %v230 = vadd.f32 0.0, %v229
  %v231 = vpop.f32.mrf.mxu0
  %v232 = vpop.f32.mrf.mxu0
  %v233 = vadd.f32 0.0, %v232
  %v234 = vpop.f32.mrf.mxu0
  %235 = vmatprep.mubr.bf16.mxu0 0
  %236 = vmatmul.mubr.bf16.gmra.mxu0 %v118
  %v237 = vpop.f32.mrf.mxu0
  %v238 = vadd.f32 0.0, %v237
  %v239 = vpop.f32.mrf.mxu0
  %v240 = vpop.f32.mrf.mxu0
  %v241 = vadd.f32 0.0, %v240
  %v242 = vpop.f32.mrf.mxu0
  %243 = vmatprep.mubr.bf16.mxu0 0
  %244 = vmatmul.mubr.bf16.gmra.mxu0 %v119
  %v245 = vpop.f32.mrf.mxu0
  %v246 = vadd.f32 0.0, %v245
  %v247 = vpop.f32.mrf.mxu0
  %v248 = vpop.f32.mrf.mxu0
  %v249 = vadd.f32 0.0, %v248
  %v250 = vpop.f32.mrf.mxu0
  %251 = vmatprep.mubr.bf16.mxu0 0
  %252 = vmatmul.mubr.bf16.gmra.mxu0 %v120
  %v253 = vpop.f32.mrf.mxu0
  %v254 = vadd.f32 0.0, %v253
  %v255 = vpop.f32.mrf.mxu0
  %v256 = vpop.f32.mrf.mxu0
  %v257 = vadd.f32 0.0, %v256
  %v258 = vpop.f32.mrf.mxu0
  %259 = vmatprep.mubr.bf16.mxu0 0
  %260 = vmatmul.mubr.bf16.gmra.mxu0 %v121
  %v261 = vpop.f32.mrf.mxu0
  %v262 = vadd.f32 0.0, %v261
  %v263 = vpop.f32.mrf.mxu0
  %v264 = vpop.f32.mrf.mxu0
  %v265 = vadd.f32 0.0, %v264
  %v266 = vpop.f32.mrf.mxu0
  %267 = vmatprep.mubr.bf16.mxu0 0
  %268 = vmatmul.mubr.bf16.gmra.mxu0 %v122
  %v269 = vpop.f32.mrf.mxu0
  %v270 = vadd.f32 0.0, %v269
  %v271 = vpop.f32.mrf.mxu0
  %v272 = vpop.f32.mrf.mxu0
  %v273 = vadd.f32 0.0, %v272
  %v274 = vpop.f32.mrf.mxu0
  %275 = vdwg.mxu0
  %v276 = vadd.f32 %v35, %v214
  %v277 = vadd.f32 %v36, %v217
  %v278 = vadd.f32 %v37, %v222
  %v279 = vadd.f32 %v38, %v225
  %v280 = vadd.f32 %v39, %v230
  %v281 = vadd.f32 %v40, %v233
  %v282 = vadd.f32 %v41, %v238
  %v283 = vadd.f32 %v42, %v241
  %v284 = vadd.f32 %v43, %v246
  %v285 = vadd.f32 %v44, %v249
  %v286 = vadd.f32 %v45, %v254
  %v287 = vadd.f32 %v46, %v257
  %v288 = vadd.f32 %v47, %v262
  %v289 = vadd.f32 %v48, %v265
  %v290 = vadd.f32 %v49, %v270
  %v291 = vadd.f32 %v50, %v273
  %292 = vst [vmem:[#allocation2] sm:$0xff] %v276
  %293 = vst [vmem:[#allocation2 + $0x8] sm:$0xff] %v277
  %294 = vst [vmem:[#allocation2 + $0x10] sm:$0xff] %v278
  %295 = vst [vmem:[#allocation2 + $0x18] sm:$0xff] %v279
  %296 = vst [vmem:[#allocation2 + $0x20] sm:$0xff] %v280
  %297 = vst [vmem:[#allocation2 + $0x28] sm:$0xff] %v281
  %298 = vst [vmem:[#allocation2 + $0x30] sm:$0xff] %v282
  %299 = vst [vmem:[#allocation2 + $0x38] sm:$0xff] %v283
  %300 = vst [vmem:[#allocation2 + $0x40] sm:$0xff] %v284
  %301 = vst [vmem:[#allocation2 + $0x48] sm:$0xff] %v285
  %302 = vst [vmem:[#allocation2 + $0x50] sm:$0xff] %v286
  %303 = vst [vmem:[#allocation2 + $0x58] sm:$0xff] %v287
  %304 = vst [vmem:[#allocation2 + $0x60] sm:$0xff] %v288
  %305 = vst [vmem:[#allocation2 + $0x68] sm:$0xff] %v289
  %306 = vst [vmem:[#allocation2 + $0x70] sm:$0xff] %v290
  %307 = vst [vmem:[#allocation2 + $0x78] sm:$0xff] %v291
  // Predicated region
  $region18: #{vpgnet_forward.43} parent=0 // pred_check
    %p308 = pneg %p15
  $region19: #{vpgnet_forward.43} parent=0 // pred_check_branch
    %310 = sbr.rel (%p308) target = $region21
  $region20: #{vpgnet_forward.43} parent=0 // pred_region
    %v311 = vld [vmem:[#allocation2] sm:$0xff]
    %v312 = vld [vmem:[#allocation2 + $0x8] sm:$0xff]
    %v313 = vld [vmem:[#allocation2 + $0x10] sm:$0xff]
    %v314 = vld [vmem:[#allocation2 + $0x18] sm:$0xff]
    %v315 = vld [vmem:[#allocation2 + $0x20] sm:$0xff]
    %v316 = vld [vmem:[#allocation2 + $0x28] sm:$0xff]
    %v317 = vld [vmem:[#allocation2 + $0x30] sm:$0xff]
    %v318 = vld [vmem:[#allocation2 + $0x38] sm:$0xff]
    %v319 = vld [vmem:[#allocation2 + $0x40] sm:$0xff]
    %v320 = vld [vmem:[#allocation2 + $0x48] sm:$0xff]
    %v321 = vld [vmem:[#allocation2 + $0x50] sm:$0xff]
    %v322 = vld [vmem:[#allocation2 + $0x58] sm:$0xff]
    %v323 = vld [vmem:[#allocation2 + $0x60] sm:$0xff]
    %v324 = vld [vmem:[#allocation2 + $0x68] sm:$0xff]
    %v325 = vld [vmem:[#allocation2 + $0x70] sm:$0xff]
    %v326 = vld [vmem:[#allocation2 + $0x78] sm:$0xff]
    %v327 = vld [vmem:[%s2] sm:$0x1]
    %v329 = vlaneseq
    %v330 = vshrl.u32 %v329, 7
    %v331 = vsub.s32 0, %v330
    %v332 = vrot.slane %v327, %v331
    %v334 = vadd.f32 %v311, %v332
    %v335 = vadd.f32 %v312, %v332
    %v336 = vadd.f32 %v313, %v332
    %v337 = vadd.f32 %v314, %v332
    %v338 = vadd.f32 %v315, %v332
    %v339 = vadd.f32 %v316, %v332
    %v340 = vadd.f32 %v317, %v332
    %v341 = vadd.f32 %v318, %v332
    %v342 = vadd.f32 %v319, %v332
    %v343 = vadd.f32 %v320, %v332
    %v344 = vadd.f32 %v321, %v332
    %v345 = vadd.f32 %v322, %v332
    %v346 = vadd.f32 %v323, %v332
    %v347 = vadd.f32 %v324, %v332
    %v348 = vadd.f32 %v325, %v332
    %v349 = vadd.f32 %v326, %v332
    %350 = vst [vmem:[%s3] sm:$0xff] %v334
    %351 = vst [vmem:[%s3 + $0x8] sm:$0xff] %v335
    %352 = vst [vmem:[%s3 + $0x10] sm:$0xff] %v336
    %353 = vst [vmem:[%s3 + $0x18] sm:$0xff] %v337
    %354 = vst [vmem:[%s3 + $0x20] sm:$0xff] %v338
    %355 = vst [vmem:[%s3 + $0x28] sm:$0xff] %v339
    %356 = vst [vmem:[%s3 + $0x30] sm:$0xff] %v340
    %357 = vst [vmem:[%s3 + $0x38] sm:$0xff] %v341
    %358 = vst [vmem:[%s3 + $0x40] sm:$0xff] %v342
    %359 = vst [vmem:[%s3 + $0x48] sm:$0xff] %v343
    %360 = vst [vmem:[%s3 + $0x50] sm:$0xff] %v344
    %361 = vst [vmem:[%s3 + $0x58] sm:$0xff] %v345
    %362 = vst [vmem:[%s3 + $0x60] sm:$0xff] %v346
    %363 = vst [vmem:[%s3 + $0x68] sm:$0xff] %v347
    %364 = vst [vmem:[%s3 + $0x70] sm:$0xff] %v348
    %365 = vst [vmem:[%s3 + $0x78] sm:$0xff] %v349
  $region21: #{vpgnet_forward.43} parent=0 // pred_fallthru
    _
  // Predicated region
  $region22: #{vpgnet_forward.43} parent=0 // pred_check
    _
  $region23: #{vpgnet_forward.43} parent=0 // pred_check_branch
    %367 = sbr.rel (0) target = $region25
  $region24: #{vpgnet_forward.43} parent=0 // pred_region
    _
  $region25: #{vpgnet_forward.43} parent=0 // pred_fallthru
    _
  // Predicated region
  $region26: #{vpgnet_forward.43} parent=0 // pred_check
    _
  $region27: #{vpgnet_forward.43} parent=0 // pred_check_branch
    %369 = sbr.rel (0) target = $region29
  $region28: #{vpgnet_forward.43} parent=0 // pred_region
    _
  $region29: #{vpgnet_forward.43} parent=0 // pred_fallthru
    _

</llo_original>
